<compile_context>
chip_gen: v6e
topology: v6e:2x2x1
jax: 0.10.0
libtpu: 0.0.40
codegen_flags: <defaults>
</compile_context>

<pallas_src>
import functools

import jax
import jax.numpy as jnp
from jax import lax
from jax.experimental import pallas as pl
from jax.experimental.pallas import tpu as pltpu

EPS = 1e-5


def _reflect_pad_into(xp_ref, interior, H, W):
    """Write reflect-pad(interior, 1) into the (H+2, W+2, C) VMEM scratch."""
    xp_ref[1:H + 1, 1:W + 1, :] = interior                       # interior
    xp_ref[0:1, 1:W + 1, :] = interior[1:2]                      # top halo row
    xp_ref[H + 1:H + 2, 1:W + 1, :] = interior[H - 2:H - 1]      # bottom halo row
    # Left / right halo columns are read back from the scratch so the 4 corners
    # come out right (true reflect pad: corner = x[1, 1], etc.).
    xp_ref[:, 0:1, :] = xp_ref[:, 2:3, :]
    xp_ref[:, W + 1:W + 2, :] = xp_ref[:, W - 1:W, :]


def _conv3x3(xp_ref, w_ref, H, W, C):
    """3x3 VALID conv over the padded scratch as 9 (H*W, C) x (C, C) MXU matmuls."""
    acc = jnp.zeros((H * W, C), jnp.float32)
    for dh in range(3):
        for dw in range(3):
            patch = xp_ref[dh:dh + H, dw:dw + W, :].reshape(H * W, C)
            acc += jnp.dot(patch.astype(w_ref.dtype), w_ref[dh, dw],
                           preferred_element_type=jnp.float32)
    return acc


def _instance_norm(acc):
    """Non-affine InstanceNorm over the spatial axis of an (H*W, C) f32 tile."""
    mean = jnp.mean(acc, axis=0, keepdims=True)
    cen = acc - mean
    var = jnp.mean(cen * cen, axis=0, keepdims=True)
    return cen * lax.rsqrt(var + EPS)


def _resnet_block_kernel(x_ref, w1_ref, w2_ref, o_ref, xp_ref):
    # x_ref:  (1, H, W, C)   activation block (C lane-padded to a mult. of 128), f32
    # w*_ref: (3, 3, C, C)   conv weights, HWIO, in the MXU compute dtype (bf16/f32)
    # o_ref:  (1, H, W, C)   output block, f32
    # xp_ref: (H+2, W+2, C)  reused VMEM scratch holding the reflect-padded image
    #
    # Conv biases are omitted: a per-channel constant added before the non-affine
    # InstanceNorm is canceled exactly by the mean subtraction.
    _, H, W, C = x_ref.shape

    # ---- conv1 -> InstanceNorm -> ReLU ----
    _reflect_pad_into(xp_ref, x_ref[0], H, W)
    h = jnp.maximum(_instance_norm(_conv3x3(xp_ref, w1_ref, H, W, C)), 0.0)

    # ---- conv2 -> InstanceNorm (same scratch reused for the second reflect pad) ----
    _reflect_pad_into(xp_ref, h.reshape(H, W, C), H, W)
    z = _instance_norm(_conv3x3(xp_ref, w2_ref, H, W, C))

    # ---- residual add (read straight from the single activation input) ----
    o_ref[0] = x_ref[0] + z.reshape(H, W, C)


@functools.partial(jax.jit, static_argnames=("compute_dtype",))
def resnet_block_forward(x_nchw, w1, b1, w2, b2, *, compute_dtype=jnp.bfloat16):
    """ResnetBlock forward.

    x_nchw: (N, C, H, W); w*: (C, C, 3, 3) PyTorch OIHW; b*: (C,) accepted for
    parity with the nn.Module but mathematically canceled by the non-affine IN.
    compute_dtype: dtype of the MXU operands (bf16 fast path / f32 exact path).
    """
    del b1, b2  # canceled exactly by the non-affine InstanceNorm
    N, C, H, W = x_nchw.shape
    assert H >= 2 and W >= 2, "reflect pad of width 1 needs H, W >= 2"

    # Lane-dense channel padding (C -> multiple of 128).
    Cp = -(-C // 128) * 128

    # NCHW -> NHWC (channels on the 128-lane axis).
    x = jnp.transpose(x_nchw, (0, 2, 3, 1)).astype(jnp.float32)
    if Cp != C:
        x = jnp.pad(x, ((0, 0), (0, 0), (0, 0), (0, Cp - C)))

    def prep_w(w):
        w = jnp.transpose(w, (2, 3, 1, 0))          # OIHW -> HWIO
        if Cp != C:
            w = jnp.pad(w, ((0, 0), (0, 0), (0, Cp - C), (0, Cp - C)))
        return w.astype(compute_dtype)

    w1p = prep_w(w1)
    w2p = prep_w(w2)

    out = pl.pallas_call(
        _resnet_block_kernel,
        out_shape=jax.ShapeDtypeStruct((N, H, W, Cp), jnp.float32),
        grid_spec=pltpu.PrefetchScalarGridSpec(
            num_scalar_prefetch=0,
            grid=(N,),
            in_specs=[
                pl.BlockSpec((1, H, W, Cp), lambda n: (n, 0, 0, 0)),
                pl.BlockSpec((3, 3, Cp, Cp), lambda n: (0, 0, 0, 0)),
                pl.BlockSpec((3, 3, Cp, Cp), lambda n: (0, 0, 0, 0)),
            ],
            out_specs=pl.BlockSpec((1, H, W, Cp), lambda n: (n, 0, 0, 0)),
            # Scratch kept in f32: it is written/read at unaligned (halo) sublane
            # offsets; the bf16 cast happens on the matmul operands instead.
            scratch_shapes=[pltpu.VMEM((H + 2, W + 2, Cp), jnp.float32)],
        ),
        compiler_params=pltpu.CompilerParams(
            dimension_semantics=("parallel",),
            vmem_limit_bytes=32 * 1024 * 1024,
        ),
    )(x, w1p, w2p)

    out = out[..., :C]                              # drop lane padding
    return jnp.transpose(out, (0, 3, 1, 2))         # back to NCHW


def _reference_forward(x, w1, b1, w2, b2):
    """Pure-JAX f32 reference matching the PyTorch module (NCHW, biases included)."""
    def conv(h, w, b):
        hp = jnp.pad(h, ((0, 0), (0, 0), (1, 1), (1, 1)), mode="reflect")
        y = lax.conv_general_dilated(
            hp, w, window_strides=(1, 1), padding="VALID",
            dimension_numbers=("NCHW", "OIHW", "NCHW"))
        return y + b[None, :, None, None]

    def inorm(y):
        m = y.mean(axis=(2, 3), keepdims=True)
        v = ((y - m) ** 2).mean(axis=(2, 3), keepdims=True)
        return (y - m) * lax.rsqrt(v + EPS)

    h = jnp.maximum(inorm(conv(x, w1, b1)), 0.0)
    return x + inorm(conv(h, w2, b2))


if __name__ == "__main__":
    dim = 4       # channels
    N, H, W = 2, 16, 16

    key = jax.random.PRNGKey(0)
    kx, kw1, kb1, kw2, kb2 = jax.random.split(key, 5)

    x = jax.random.normal(kx, (N, dim, H, W), dtype=jnp.float32)
    # Conv2d(dim, dim, kernel_size=3, bias=True) parameters (OIHW), deterministic.
    w1 = 0.1 * jax.random.normal(kw1, (dim, dim, 3, 3), dtype=jnp.float32)
    b1 = 0.1 * jax.random.normal(kb1, (dim,), dtype=jnp.float32)
    w2 = 0.1 * jax.random.normal(kw2, (dim, dim, 3, 3), dtype=jnp.float32)
    b2 = 0.1 * jax.random.normal(kb2, (dim,), dtype=jnp.float32)

    ref = jax.block_until_ready(_reference_forward(x, w1, b1, w2, b2))

    # Exact path (f32 MXU operands): verifies module semantics (incl. the bias
    # cancellation by the non-affine InstanceNorm) to f32 precision.
    out_f32 = jax.block_until_ready(
        resnet_block_forward(x, w1, b1, w2, b2, compute_dtype=jnp.float32))
    assert out_f32.shape == (N, dim, H, W)
    assert jnp.max(jnp.abs(out_f32 - ref)) < 1e-4, "f32 path mismatch vs reference"

    # Fast path (default): bf16 MXU operands, f32 accumulation and f32 norm/residual.
    out = jax.block_until_ready(resnet_block_forward(x, w1, b1, w2, b2))
    assert out.shape == (N, dim, H, W)
    assert jnp.max(jnp.abs(out - ref)) < 1e-1, "bf16 path mismatch vs reference"

    print("KERNEL_OK")
</pallas_src>

<mosaic_0001>
module attributes {stable_mosaic.version = 11 : i64} {
  func.func @_resnet_block_kernel(%arg0: i32, %arg1: memref<1x16x16x128xf32, #tpu.memory_space<vmem>>, %arg2: memref<3x3x128x128xf32, #tpu.memory_space<vmem>>, %arg3: memref<3x3x128x128xf32, #tpu.memory_space<vmem>>, %arg4: memref<1x16x16x128xf32, #tpu.memory_space<vmem>>, %arg5: memref<18x18x128xf32, #tpu.memory_space<vmem>>) attributes {dimension_semantics = [#tpu.dimension_semantics<parallel>], iteration_bounds = array<i64: 2>, scalar_prefetch = 0 : i64, scratch_operands = 1 : i64, tpu.core_type = #tpu.core_type<tc>, window_params = [{transform_indices = @transform_0, window_bounds = array<i64: 1, 16, 16, 128>}, {pipeline_mode = #tpu.pipeline_mode<synchronous>, transform_indices = @transform_1, window_bounds = array<i64: 3, 3, 128, 128>}, {pipeline_mode = #tpu.pipeline_mode<synchronous>, transform_indices = @transform_2, window_bounds = array<i64: 3, 3, 128, 128>}, {transform_indices = @transform_3, window_bounds = array<i64: 1, 16, 16, 128>}]} {
    %c0 = arith.constant 0 : index
    %c0_0 = arith.constant 0 : index
    %c0_1 = arith.constant 0 : index
    %c0_2 = arith.constant 0 : index
    %0 = vector.load %arg1[%c0, %c0_0, %c0_1, %c0_2] : memref<1x16x16x128xf32, #tpu.memory_space<vmem>>, vector<1x16x16x128xf32>
    %1 = vector.shape_cast %0 : vector<1x16x16x128xf32> to vector<16x16x128xf32>
    %c1 = arith.constant 1 : index
    %c1_3 = arith.constant 1 : index
    %c0_4 = arith.constant 0 : index
    %2 = vector.load %arg5[%c1, %c1_3, %c0_4] : memref<18x18x128xf32, #tpu.memory_space<vmem>>, vector<16x16x128xf32>
    tpu.vector_store %arg5[%c1, %c1_3, %c0_4], %1 {strides = array<i32>} : memref<18x18x128xf32, #tpu.memory_space<vmem>>, vector<16x16x128xf32>,
    %3 = vector.extract_strided_slice %1 {offsets = [1, 0, 0], sizes = [1, 16, 128], strides = [1, 1, 1]} : vector<16x16x128xf32> to vector<1x16x128xf32>
    %c0_5 = arith.constant 0 : index
    %c1_6 = arith.constant 1 : index
    %c0_7 = arith.constant 0 : index
    %4 = vector.load %arg5[%c0_5, %c1_6, %c0_7] : memref<18x18x128xf32, #tpu.memory_space<vmem>>, vector<1x16x128xf32>
    tpu.vector_store %arg5[%c0_5, %c1_6, %c0_7], %3 {strides = array<i32>} : memref<18x18x128xf32, #tpu.memory_space<vmem>>, vector<1x16x128xf32>,
    %5 = vector.extract_strided_slice %1 {offsets = [14, 0, 0], sizes = [1, 16, 128], strides = [1, 1, 1]} : vector<16x16x128xf32> to vector<1x16x128xf32>
    %c17 = arith.constant 17 : index
    %c1_8 = arith.constant 1 : index
    %c0_9 = arith.constant 0 : index
    %6 = vector.load %arg5[%c17, %c1_8, %c0_9] : memref<18x18x128xf32, #tpu.memory_space<vmem>>, vector<1x16x128xf32>
    tpu.vector_store %arg5[%c17, %c1_8, %c0_9], %5 {strides = array<i32>} : memref<18x18x128xf32, #tpu.memory_space<vmem>>, vector<1x16x128xf32>,
    %c0_10 = arith.constant 0 : index
    %c2 = arith.constant 2 : index
    %c0_11 = arith.constant 0 : index
    %7 = vector.load %arg5[%c0_10, %c2, %c0_11] : memref<18x18x128xf32, #tpu.memory_space<vmem>>, vector<18x1x128xf32>
    %c0_12 = arith.constant 0 : index
    %c0_13 = arith.constant 0 : index
    %c0_14 = arith.constant 0 : index
    %8 = vector.load %arg5[%c0_12, %c0_13, %c0_14] : memref<18x18x128xf32, #tpu.memory_space<vmem>>, vector<18x1x128xf32>
    tpu.vector_store %arg5[%c0_12, %c0_13, %c0_14], %7 {strides = array<i32>} : memref<18x18x128xf32, #tpu.memory_space<vmem>>, vector<18x1x128xf32>,
    %c0_15 = arith.constant 0 : index
    %c15 = arith.constant 15 : index
    %c0_16 = arith.constant 0 : index
    %9 = vector.load %arg5[%c0_15, %c15, %c0_16] : memref<18x18x128xf32, #tpu.memory_space<vmem>>, vector<18x1x128xf32>
    %c0_17 = arith.constant 0 : index
    %c17_18 = arith.constant 17 : index
    %c0_19 = arith.constant 0 : index
    %10 = vector.load %arg5[%c0_17, %c17_18, %c0_19] : memref<18x18x128xf32, #tpu.memory_space<vmem>>, vector<18x1x128xf32>
    tpu.vector_store %arg5[%c0_17, %c17_18, %c0_19], %9 {strides = array<i32>} : memref<18x18x128xf32, #tpu.memory_space<vmem>>, vector<18x1x128xf32>,
    %cst = arith.constant 0.000000e+00 : f32
    %11 = vector.broadcast %cst : f32 to vector<256x128xf32>
    %c0_20 = arith.constant 0 : index
    %c0_21 = arith.constant 0 : index
    %c0_22 = arith.constant 0 : index
    %12 = vector.load %arg5[%c0_20, %c0_21, %c0_22] : memref<18x18x128xf32, #tpu.memory_space<vmem>>, vector<16x16x128xf32>
    %13 = vector.shape_cast %12 : vector<16x16x128xf32> to vector<256x128xf32>
    %c0_23 = arith.constant 0 : index
    %c0_24 = arith.constant 0 : index
    %c0_25 = arith.constant 0 : index
    %c0_26 = arith.constant 0 : index
    %14 = vector.load %arg2[%c0_23, %c0_24, %c0_25, %c0_26] : memref<3x3x128x128xf32, #tpu.memory_space<vmem>>, vector<1x1x128x128xf32>
    %15 = vector.shape_cast %14 : vector<1x1x128x128xf32> to vector<128x128xf32>
    %cst_27 = arith.constant dense<0.000000e+00> : vector<256x128xf32>
    %16 = tpu.matmul %13, %15, %cst_27 {dimension_numbers = #tpu.dot_dimension_numbers<[1], [0], [0], [1], [0, 0, 1, 1], [], []>} : vector<256x128xf32>, vector<128x128xf32>, vector<256x128xf32> -> vector<256x128xf32>
    %17 = arith.addf %11, %16 : vector<256x128xf32>
    %c0_28 = arith.constant 0 : index
    %c1_29 = arith.constant 1 : index
    %c0_30 = arith.constant 0 : index
    %18 = vector.load %arg5[%c0_28, %c1_29, %c0_30] : memref<18x18x128xf32, #tpu.memory_space<vmem>>, vector<16x16x128xf32>
    %19 = vector.shape_cast %18 : vector<16x16x128xf32> to vector<256x128xf32>
    %c0_31 = arith.constant 0 : index
    %c1_32 = arith.constant 1 : index
    %c0_33 = arith.constant 0 : index
    %c0_34 = arith.constant 0 : index
    %20 = vector.load %arg2[%c0_31, %c1_32, %c0_33, %c0_34] : memref<3x3x128x128xf32, #tpu.memory_space<vmem>>, vector<1x1x128x128xf32>
    %21 = vector.shape_cast %20 : vector<1x1x128x128xf32> to vector<128x128xf32>
    %cst_35 = arith.constant dense<0.000000e+00> : vector<256x128xf32>
    %22 = tpu.matmul %19, %21, %cst_35 {dimension_numbers = #tpu.dot_dimension_numbers<[1], [0], [0], [1], [0, 0, 1, 1], [], []>} : vector<256x128xf32>, vector<128x128xf32>, vector<256x128xf32> -> vector<256x128xf32>
    %23 = arith.addf %17, %22 : vector<256x128xf32>
    %c0_36 = arith.constant 0 : index
    %c2_37 = arith.constant 2 : index
    %c0_38 = arith.constant 0 : index
    %24 = vector.load %arg5[%c0_36, %c2_37, %c0_38] : memref<18x18x128xf32, #tpu.memory_space<vmem>>, vector<16x16x128xf32>
    %25 = vector.shape_cast %24 : vector<16x16x128xf32> to vector<256x128xf32>
    %c0_39 = arith.constant 0 : index
    %c2_40 = arith.constant 2 : index
    %c0_41 = arith.constant 0 : index
    %c0_42 = arith.constant 0 : index
    %26 = vector.load %arg2[%c0_39, %c2_40, %c0_41, %c0_42] : memref<3x3x128x128xf32, #tpu.memory_space<vmem>>, vector<1x1x128x128xf32>
    %27 = vector.shape_cast %26 : vector<1x1x128x128xf32> to vector<128x128xf32>
    %cst_43 = arith.constant dense<0.000000e+00> : vector<256x128xf32>
    %28 = tpu.matmul %25, %27, %cst_43 {dimension_numbers = #tpu.dot_dimension_numbers<[1], [0], [0], [1], [0, 0, 1, 1], [], []>} : vector<256x128xf32>, vector<128x128xf32>, vector<256x128xf32> -> vector<256x128xf32>
    %29 = arith.addf %23, %28 : vector<256x128xf32>
    %c1_44 = arith.constant 1 : index
    %c0_45 = arith.constant 0 : index
    %c0_46 = arith.constant 0 : index
    %30 = vector.load %arg5[%c1_44, %c0_45, %c0_46] : memref<18x18x128xf32, #tpu.memory_space<vmem>>, vector<16x16x128xf32>
    %31 = vector.shape_cast %30 : vector<16x16x128xf32> to vector<256x128xf32>
    %c1_47 = arith.constant 1 : index
    %c0_48 = arith.constant 0 : index
    %c0_49 = arith.constant 0 : index
    %c0_50 = arith.constant 0 : index
    %32 = vector.load %arg2[%c1_47, %c0_48, %c0_49, %c0_50] : memref<3x3x128x128xf32, #tpu.memory_space<vmem>>, vector<1x1x128x128xf32>
    %33 = vector.shape_cast %32 : vector<1x1x128x128xf32> to vector<128x128xf32>
    %cst_51 = arith.constant dense<0.000000e+00> : vector<256x128xf32>
    %34 = tpu.matmul %31, %33, %cst_51 {dimension_numbers = #tpu.dot_dimension_numbers<[1], [0], [0], [1], [0, 0, 1, 1], [], []>} : vector<256x128xf32>, vector<128x128xf32>, vector<256x128xf32> -> vector<256x128xf32>
    %35 = arith.addf %29, %34 : vector<256x128xf32>
    %c1_52 = arith.constant 1 : index
    %c1_53 = arith.constant 1 : index
    %c0_54 = arith.constant 0 : index
    %36 = vector.load %arg5[%c1_52, %c1_53, %c0_54] : memref<18x18x128xf32, #tpu.memory_space<vmem>>, vector<16x16x128xf32>
    %37 = vector.shape_cast %36 : vector<16x16x128xf32> to vector<256x128xf32>
    %c1_55 = arith.constant 1 : index
    %c1_56 = arith.constant 1 : index
    %c0_57 = arith.constant 0 : index
    %c0_58 = arith.constant 0 : index
    %38 = vector.load %arg2[%c1_55, %c1_56, %c0_57, %c0_58] : memref<3x3x128x128xf32, #tpu.memory_space<vmem>>, vector<1x1x128x128xf32>
    %39 = vector.shape_cast %38 : vector<1x1x128x128xf32> to vector<128x128xf32>
    %cst_59 = arith.constant dense<0.000000e+00> : vector<256x128xf32>
    %40 = tpu.matmul %37, %39, %cst_59 {dimension_numbers = #tpu.dot_dimension_numbers<[1], [0], [0], [1], [0, 0, 1, 1], [], []>} : vector<256x128xf32>, vector<128x128xf32>, vector<256x128xf32> -> vector<256x128xf32>
    %41 = arith.addf %35, %40 : vector<256x128xf32>
    %c1_60 = arith.constant 1 : index
    %c2_61 = arith.constant 2 : index
    %c0_62 = arith.constant 0 : index
    %42 = vector.load %arg5[%c1_60, %c2_61, %c0_62] : memref<18x18x128xf32, #tpu.memory_space<vmem>>, vector<16x16x128xf32>
    %43 = vector.shape_cast %42 : vector<16x16x128xf32> to vector<256x128xf32>
    %c1_63 = arith.constant 1 : index
    %c2_64 = arith.constant 2 : index
    %c0_65 = arith.constant 0 : index
    %c0_66 = arith.constant 0 : index
    %44 = vector.load %arg2[%c1_63, %c2_64, %c0_65, %c0_66] : memref<3x3x128x128xf32, #tpu.memory_space<vmem>>, vector<1x1x128x128xf32>
    %45 = vector.shape_cast %44 : vector<1x1x128x128xf32> to vector<128x128xf32>
    %cst_67 = arith.constant dense<0.000000e+00> : vector<256x128xf32>
    %46 = tpu.matmul %43, %45, %cst_67 {dimension_numbers = #tpu.dot_dimension_numbers<[1], [0], [0], [1], [0, 0, 1, 1], [], []>} : vector<256x128xf32>, vector<128x128xf32>, vector<256x128xf32> -> vector<256x128xf32>
    %47 = arith.addf %41, %46 : vector<256x128xf32>
    %c2_68 = arith.constant 2 : index
    %c0_69 = arith.constant 0 : index
    %c0_70 = arith.constant 0 : index
    %48 = vector.load %arg5[%c2_68, %c0_69, %c0_70] : memref<18x18x128xf32, #tpu.memory_space<vmem>>, vector<16x16x128xf32>
    %49 = vector.shape_cast %48 : vector<16x16x128xf32> to vector<256x128xf32>
    %c2_71 = arith.constant 2 : index
    %c0_72 = arith.constant 0 : index
    %c0_73 = arith.constant 0 : index
    %c0_74 = arith.constant 0 : index
    %50 = vector.load %arg2[%c2_71, %c0_72, %c0_73, %c0_74] : memref<3x3x128x128xf32, #tpu.memory_space<vmem>>, vector<1x1x128x128xf32>
    %51 = vector.shape_cast %50 : vector<1x1x128x128xf32> to vector<128x128xf32>
    %cst_75 = arith.constant dense<0.000000e+00> : vector<256x128xf32>
    %52 = tpu.matmul %49, %51, %cst_75 {dimension_numbers = #tpu.dot_dimension_numbers<[1], [0], [0], [1], [0, 0, 1, 1], [], []>} : vector<256x128xf32>, vector<128x128xf32>, vector<256x128xf32> -> vector<256x128xf32>
    %53 = arith.addf %47, %52 : vector<256x128xf32>
    %c2_76 = arith.constant 2 : index
    %c1_77 = arith.constant 1 : index
    %c0_78 = arith.constant 0 : index
    %54 = vector.load %arg5[%c2_76, %c1_77, %c0_78] : memref<18x18x128xf32, #tpu.memory_space<vmem>>, vector<16x16x128xf32>
    %55 = vector.shape_cast %54 : vector<16x16x128xf32> to vector<256x128xf32>
    %c2_79 = arith.constant 2 : index
    %c1_80 = arith.constant 1 : index
    %c0_81 = arith.constant 0 : index
    %c0_82 = arith.constant 0 : index
    %56 = vector.load %arg2[%c2_79, %c1_80, %c0_81, %c0_82] : memref<3x3x128x128xf32, #tpu.memory_space<vmem>>, vector<1x1x128x128xf32>
    %57 = vector.shape_cast %56 : vector<1x1x128x128xf32> to vector<128x128xf32>
    %cst_83 = arith.constant dense<0.000000e+00> : vector<256x128xf32>
    %58 = tpu.matmul %55, %57, %cst_83 {dimension_numbers = #tpu.dot_dimension_numbers<[1], [0], [0], [1], [0, 0, 1, 1], [], []>} : vector<256x128xf32>, vector<128x128xf32>, vector<256x128xf32> -> vector<256x128xf32>
    %59 = arith.addf %53, %58 : vector<256x128xf32>
    %c2_84 = arith.constant 2 : index
    %c2_85 = arith.constant 2 : index
    %c0_86 = arith.constant 0 : index
    %60 = vector.load %arg5[%c2_84, %c2_85, %c0_86] : memref<18x18x128xf32, #tpu.memory_space<vmem>>, vector<16x16x128xf32>
    %61 = vector.shape_cast %60 : vector<16x16x128xf32> to vector<256x128xf32>
    %c2_87 = arith.constant 2 : index
    %c2_88 = arith.constant 2 : index
    %c0_89 = arith.constant 0 : index
    %c0_90 = arith.constant 0 : index
    %62 = vector.load %arg2[%c2_87, %c2_88, %c0_89, %c0_90] : memref<3x3x128x128xf32, #tpu.memory_space<vmem>>, vector<1x1x128x128xf32>
    %63 = vector.shape_cast %62 : vector<1x1x128x128xf32> to vector<128x128xf32>
    %cst_91 = arith.constant dense<0.000000e+00> : vector<256x128xf32>
    %64 = tpu.matmul %61, %63, %cst_91 {dimension_numbers = #tpu.dot_dimension_numbers<[1], [0], [0], [1], [0, 0, 1, 1], [], []>} : vector<256x128xf32>, vector<128x128xf32>, vector<256x128xf32> -> vector<256x128xf32>
    %65 = arith.addf %59, %64 : vector<256x128xf32>
    %cst_92 = arith.constant dense<0.000000e+00> : vector<128xf32>
    %66 = vector.multi_reduction <add>, %65, %cst_92 [0] : vector<256x128xf32> to vector<128xf32>
    %67 = vector.shape_cast %66 : vector<128xf32> to vector<1x128xf32>
    %cst_93 = arith.constant 2.560000e+02 : f32
    %68 = vector.broadcast %cst_93 : f32 to vector<1x128xf32>
    %69 = arith.divf %67, %68 : vector<1x128xf32>
    %70 = vector.broadcast %69 : vector<1x128xf32> to vector<256x128xf32>
    %71 = arith.subf %65, %70 : vector<256x128xf32>
    %72 = arith.mulf %71, %71 : vector<256x128xf32>
    %cst_94 = arith.constant dense<0.000000e+00> : vector<128xf32>
    %73 = vector.multi_reduction <add>, %72, %cst_94 [0] : vector<256x128xf32> to vector<128xf32>
    %74 = vector.shape_cast %73 : vector<128xf32> to vector<1x128xf32>
    %cst_95 = arith.constant 2.560000e+02 : f32
    %75 = vector.broadcast %cst_95 : f32 to vector<1x128xf32>
    %76 = arith.divf %74, %75 : vector<1x128xf32>
    %cst_96 = arith.constant 9.99999974E-6 : f32
    %77 = vector.broadcast %cst_96 : f32 to vector<1x128xf32>
    %78 = arith.addf %76, %77 : vector<1x128xf32>
    %79 = math.rsqrt %78 : vector<1x128xf32>
    %80 = vector.broadcast %79 : vector<1x128xf32> to vector<256x128xf32>
    %81 = arith.mulf %71, %80 : vector<256x128xf32>
    %cst_97 = arith.constant 0.000000e+00 : f32
    %82 = vector.broadcast %cst_97 : f32 to vector<256x128xf32>
    %83 = arith.maximumf %81, %82 : vector<256x128xf32>
    %84 = vector.shape_cast %83 : vector<256x128xf32> to vector<16x16x128xf32>
    %c1_98 = arith.constant 1 : index
    %c1_99 = arith.constant 1 : index
    %c0_100 = arith.constant 0 : index
    %85 = vector.load %arg5[%c1_98, %c1_99, %c0_100] : memref<18x18x128xf32, #tpu.memory_space<vmem>>, vector<16x16x128xf32>
    tpu.vector_store %arg5[%c1_98, %c1_99, %c0_100], %84 {strides = array<i32>} : memref<18x18x128xf32, #tpu.memory_space<vmem>>, vector<16x16x128xf32>,
    %86 = vector.extract_strided_slice %84 {offsets = [1, 0, 0], sizes = [1, 16, 128], strides = [1, 1, 1]} : vector<16x16x128xf32> to vector<1x16x128xf32>
    %c0_101 = arith.constant 0 : index
    %c1_102 = arith.constant 1 : index
    %c0_103 = arith.constant 0 : index
    %87 = vector.load %arg5[%c0_101, %c1_102, %c0_103] : memref<18x18x128xf32, #tpu.memory_space<vmem>>, vector<1x16x128xf32>
    tpu.vector_store %arg5[%c0_101, %c1_102, %c0_103], %86 {strides = array<i32>} : memref<18x18x128xf32, #tpu.memory_space<vmem>>, vector<1x16x128xf32>,
    %88 = vector.extract_strided_slice %84 {offsets = [14, 0, 0], sizes = [1, 16, 128], strides = [1, 1, 1]} : vector<16x16x128xf32> to vector<1x16x128xf32>
    %c17_104 = arith.constant 17 : index
    %c1_105 = arith.constant 1 : index
    %c0_106 = arith.constant 0 : index
    %89 = vector.load %arg5[%c17_104, %c1_105, %c0_106] : memref<18x18x128xf32, #tpu.memory_space<vmem>>, vector<1x16x128xf32>
    tpu.vector_store %arg5[%c17_104, %c1_105, %c0_106], %88 {strides = array<i32>} : memref<18x18x128xf32, #tpu.memory_space<vmem>>, vector<1x16x128xf32>,
    %c0_107 = arith.constant 0 : index
    %c2_108 = arith.constant 2 : index
    %c0_109 = arith.constant 0 : index
    %90 = vector.load %arg5[%c0_107, %c2_108, %c0_109] : memref<18x18x128xf32, #tpu.memory_space<vmem>>, vector<18x1x128xf32>
    %c0_110 = arith.constant 0 : index
    %c0_111 = arith.constant 0 : index
    %c0_112 = arith.constant 0 : index
    %91 = vector.load %arg5[%c0_110, %c0_111, %c0_112] : memref<18x18x128xf32, #tpu.memory_space<vmem>>, vector<18x1x128xf32>
    tpu.vector_store %arg5[%c0_110, %c0_111, %c0_112], %90 {strides = array<i32>} : memref<18x18x128xf32, #tpu.memory_space<vmem>>, vector<18x1x128xf32>,
    %c0_113 = arith.constant 0 : index
    %c15_114 = arith.constant 15 : index
    %c0_115 = arith.constant 0 : index
    %92 = vector.load %arg5[%c0_113, %c15_114, %c0_115] : memref<18x18x128xf32, #tpu.memory_space<vmem>>, vector<18x1x128xf32>
    %c0_116 = arith.constant 0 : index
    %c17_117 = arith.constant 17 : index
    %c0_118 = arith.constant 0 : index
    %93 = vector.load %arg5[%c0_116, %c17_117, %c0_118] : memref<18x18x128xf32, #tpu.memory_space<vmem>>, vector<18x1x128xf32>
    tpu.vector_store %arg5[%c0_116, %c17_117, %c0_118], %92 {strides = array<i32>} : memref<18x18x128xf32, #tpu.memory_space<vmem>>, vector<18x1x128xf32>,
    %cst_119 = arith.constant 0.000000e+00 : f32
    %94 = vector.broadcast %cst_119 : f32 to vector<256x128xf32>
    %c0_120 = arith.constant 0 : index
    %c0_121 = arith.constant 0 : index
    %c0_122 = arith.constant 0 : index
    %95 = vector.load %arg5[%c0_120, %c0_121, %c0_122] : memref<18x18x128xf32, #tpu.memory_space<vmem>>, vector<16x16x128xf32>
    %96 = vector.shape_cast %95 : vector<16x16x128xf32> to vector<256x128xf32>
    %c0_123 = arith.constant 0 : index
    %c0_124 = arith.constant 0 : index
    %c0_125 = arith.constant 0 : index
    %c0_126 = arith.constant 0 : index
    %97 = vector.load %arg3[%c0_123, %c0_124, %c0_125, %c0_126] : memref<3x3x128x128xf32, #tpu.memory_space<vmem>>, vector<1x1x128x128xf32>
    %98 = vector.shape_cast %97 : vector<1x1x128x128xf32> to vector<128x128xf32>
    %cst_127 = arith.constant dense<0.000000e+00> : vector<256x128xf32>
    %99 = tpu.matmul %96, %98, %cst_127 {dimension_numbers = #tpu.dot_dimension_numbers<[1], [0], [0], [1], [0, 0, 1, 1], [], []>} : vector<256x128xf32>, vector<128x128xf32>, vector<256x128xf32> -> vector<256x128xf32>
    %100 = arith.addf %94, %99 : vector<256x128xf32>
    %c0_128 = arith.constant 0 : index
    %c1_129 = arith.constant 1 : index
    %c0_130 = arith.constant 0 : index
    %101 = vector.load %arg5[%c0_128, %c1_129, %c0_130] : memref<18x18x128xf32, #tpu.memory_space<vmem>>, vector<16x16x128xf32>
    %102 = vector.shape_cast %101 : vector<16x16x128xf32> to vector<256x128xf32>
    %c0_131 = arith.constant 0 : index
    %c1_132 = arith.constant 1 : index
    %c0_133 = arith.constant 0 : index
    %c0_134 = arith.constant 0 : index
    %103 = vector.load %arg3[%c0_131, %c1_132, %c0_133, %c0_134] : memref<3x3x128x128xf32, #tpu.memory_space<vmem>>, vector<1x1x128x128xf32>
    %104 = vector.shape_cast %103 : vector<1x1x128x128xf32> to vector<128x128xf32>
    %cst_135 = arith.constant dense<0.000000e+00> : vector<256x128xf32>
    %105 = tpu.matmul %102, %104, %cst_135 {dimension_numbers = #tpu.dot_dimension_numbers<[1], [0], [0], [1], [0, 0, 1, 1], [], []>} : vector<256x128xf32>, vector<128x128xf32>, vector<256x128xf32> -> vector<256x128xf32>
    %106 = arith.addf %100, %105 : vector<256x128xf32>
    %c0_136 = arith.constant 0 : index
    %c2_137 = arith.constant 2 : index
    %c0_138 = arith.constant 0 : index
    %107 = vector.load %arg5[%c0_136, %c2_137, %c0_138] : memref<18x18x128xf32, #tpu.memory_space<vmem>>, vector<16x16x128xf32>
    %108 = vector.shape_cast %107 : vector<16x16x128xf32> to vector<256x128xf32>
    %c0_139 = arith.constant 0 : index
    %c2_140 = arith.constant 2 : index
    %c0_141 = arith.constant 0 : index
    %c0_142 = arith.constant 0 : index
    %109 = vector.load %arg3[%c0_139, %c2_140, %c0_141, %c0_142] : memref<3x3x128x128xf32, #tpu.memory_space<vmem>>, vector<1x1x128x128xf32>
    %110 = vector.shape_cast %109 : vector<1x1x128x128xf32> to vector<128x128xf32>
    %cst_143 = arith.constant dense<0.000000e+00> : vector<256x128xf32>
    %111 = tpu.matmul %108, %110, %cst_143 {dimension_numbers = #tpu.dot_dimension_numbers<[1], [0], [0], [1], [0, 0, 1, 1], [], []>} : vector<256x128xf32>, vector<128x128xf32>, vector<256x128xf32> -> vector<256x128xf32>
    %112 = arith.addf %106, %111 : vector<256x128xf32>
    %c1_144 = arith.constant 1 : index
    %c0_145 = arith.constant 0 : index
    %c0_146 = arith.constant 0 : index
    %113 = vector.load %arg5[%c1_144, %c0_145, %c0_146] : memref<18x18x128xf32, #tpu.memory_space<vmem>>, vector<16x16x128xf32>
    %114 = vector.shape_cast %113 : vector<16x16x128xf32> to vector<256x128xf32>
    %c1_147 = arith.constant 1 : index
    %c0_148 = arith.constant 0 : index
    %c0_149 = arith.constant 0 : index
    %c0_150 = arith.constant 0 : index
    %115 = vector.load %arg3[%c1_147, %c0_148, %c0_149, %c0_150] : memref<3x3x128x128xf32, #tpu.memory_space<vmem>>, vector<1x1x128x128xf32>
    %116 = vector.shape_cast %115 : vector<1x1x128x128xf32> to vector<128x128xf32>
    %cst_151 = arith.constant dense<0.000000e+00> : vector<256x128xf32>
    %117 = tpu.matmul %114, %116, %cst_151 {dimension_numbers = #tpu.dot_dimension_numbers<[1], [0], [0], [1], [0, 0, 1, 1], [], []>} : vector<256x128xf32>, vector<128x128xf32>, vector<256x128xf32> -> vector<256x128xf32>
    %118 = arith.addf %112, %117 : vector<256x128xf32>
    %c1_152 = arith.constant 1 : index
    %c1_153 = arith.constant 1 : index
    %c0_154 = arith.constant 0 : index
    %119 = vector.load %arg5[%c1_152, %c1_153, %c0_154] : memref<18x18x128xf32, #tpu.memory_space<vmem>>, vector<16x16x128xf32>
    %120 = vector.shape_cast %119 : vector<16x16x128xf32> to vector<256x128xf32>
    %c1_155 = arith.constant 1 : index
    %c1_156 = arith.constant 1 : index
    %c0_157 = arith.constant 0 : index
    %c0_158 = arith.constant 0 : index
    %121 = vector.load %arg3[%c1_155, %c1_156, %c0_157, %c0_158] : memref<3x3x128x128xf32, #tpu.memory_space<vmem>>, vector<1x1x128x128xf32>
    %122 = vector.shape_cast %121 : vector<1x1x128x128xf32> to vector<128x128xf32>
    %cst_159 = arith.constant dense<0.000000e+00> : vector<256x128xf32>
    %123 = tpu.matmul %120, %122, %cst_159 {dimension_numbers = #tpu.dot_dimension_numbers<[1], [0], [0], [1], [0, 0, 1, 1], [], []>} : vector<256x128xf32>, vector<128x128xf32>, vector<256x128xf32> -> vector<256x128xf32>
    %124 = arith.addf %118, %123 : vector<256x128xf32>
    %c1_160 = arith.constant 1 : index
    %c2_161 = arith.constant 2 : index
    %c0_162 = arith.constant 0 : index
    %125 = vector.load %arg5[%c1_160, %c2_161, %c0_162] : memref<18x18x128xf32, #tpu.memory_space<vmem>>, vector<16x16x128xf32>
    %126 = vector.shape_cast %125 : vector<16x16x128xf32> to vector<256x128xf32>
    %c1_163 = arith.constant 1 : index
    %c2_164 = arith.constant 2 : index
    %c0_165 = arith.constant 0 : index
    %c0_166 = arith.constant 0 : index
    %127 = vector.load %arg3[%c1_163, %c2_164, %c0_165, %c0_166] : memref<3x3x128x128xf32, #tpu.memory_space<vmem>>, vector<1x1x128x128xf32>
    %128 = vector.shape_cast %127 : vector<1x1x128x128xf32> to vector<128x128xf32>
    %cst_167 = arith.constant dense<0.000000e+00> : vector<256x128xf32>
    %129 = tpu.matmul %126, %128, %cst_167 {dimension_numbers = #tpu.dot_dimension_numbers<[1], [0], [0], [1], [0, 0, 1, 1], [], []>} : vector<256x128xf32>, vector<128x128xf32>, vector<256x128xf32> -> vector<256x128xf32>
    %130 = arith.addf %124, %129 : vector<256x128xf32>
    %c2_168 = arith.constant 2 : index
    %c0_169 = arith.constant 0 : index
    %c0_170 = arith.constant 0 : index
    %131 = vector.load %arg5[%c2_168, %c0_169, %c0_170] : memref<18x18x128xf32, #tpu.memory_space<vmem>>, vector<16x16x128xf32>
    %132 = vector.shape_cast %131 : vector<16x16x128xf32> to vector<256x128xf32>
    %c2_171 = arith.constant 2 : index
    %c0_172 = arith.constant 0 : index
    %c0_173 = arith.constant 0 : index
    %c0_174 = arith.constant 0 : index
    %133 = vector.load %arg3[%c2_171, %c0_172, %c0_173, %c0_174] : memref<3x3x128x128xf32, #tpu.memory_space<vmem>>, vector<1x1x128x128xf32>
    %134 = vector.shape_cast %133 : vector<1x1x128x128xf32> to vector<128x128xf32>
    %cst_175 = arith.constant dense<0.000000e+00> : vector<256x128xf32>
    %135 = tpu.matmul %132, %134, %cst_175 {dimension_numbers = #tpu.dot_dimension_numbers<[1], [0], [0], [1], [0, 0, 1, 1], [], []>} : vector<256x128xf32>, vector<128x128xf32>, vector<256x128xf32> -> vector<256x128xf32>
    %136 = arith.addf %130, %135 : vector<256x128xf32>
    %c2_176 = arith.constant 2 : index
    %c1_177 = arith.constant 1 : index
    %c0_178 = arith.constant 0 : index
    %137 = vector.load %arg5[%c2_176, %c1_177, %c0_178] : memref<18x18x128xf32, #tpu.memory_space<vmem>>, vector<16x16x128xf32>
    %138 = vector.shape_cast %137 : vector<16x16x128xf32> to vector<256x128xf32>
    %c2_179 = arith.constant 2 : index
    %c1_180 = arith.constant 1 : index
    %c0_181 = arith.constant 0 : index
    %c0_182 = arith.constant 0 : index
    %139 = vector.load %arg3[%c2_179, %c1_180, %c0_181, %c0_182] : memref<3x3x128x128xf32, #tpu.memory_space<vmem>>, vector<1x1x128x128xf32>
    %140 = vector.shape_cast %139 : vector<1x1x128x128xf32> to vector<128x128xf32>
    %cst_183 = arith.constant dense<0.000000e+00> : vector<256x128xf32>
    %141 = tpu.matmul %138, %140, %cst_183 {dimension_numbers = #tpu.dot_dimension_numbers<[1], [0], [0], [1], [0, 0, 1, 1], [], []>} : vector<256x128xf32>, vector<128x128xf32>, vector<256x128xf32> -> vector<256x128xf32>
    %142 = arith.addf %136, %141 : vector<256x128xf32>
    %c2_184 = arith.constant 2 : index
    %c2_185 = arith.constant 2 : index
    %c0_186 = arith.constant 0 : index
    %143 = vector.load %arg5[%c2_184, %c2_185, %c0_186] : memref<18x18x128xf32, #tpu.memory_space<vmem>>, vector<16x16x128xf32>
    %144 = vector.shape_cast %143 : vector<16x16x128xf32> to vector<256x128xf32>
    %c2_187 = arith.constant 2 : index
    %c2_188 = arith.constant 2 : index
    %c0_189 = arith.constant 0 : index
    %c0_190 = arith.constant 0 : index
    %145 = vector.load %arg3[%c2_187, %c2_188, %c0_189, %c0_190] : memref<3x3x128x128xf32, #tpu.memory_space<vmem>>, vector<1x1x128x128xf32>
    %146 = vector.shape_cast %145 : vector<1x1x128x128xf32> to vector<128x128xf32>
    %cst_191 = arith.constant dense<0.000000e+00> : vector<256x128xf32>
    %147 = tpu.matmul %144, %146, %cst_191 {dimension_numbers = #tpu.dot_dimension_numbers<[1], [0], [0], [1], [0, 0, 1, 1], [], []>} : vector<256x128xf32>, vector<128x128xf32>, vector<256x128xf32> -> vector<256x128xf32>
    %148 = arith.addf %142, %147 : vector<256x128xf32>
    %cst_192 = arith.constant dense<0.000000e+00> : vector<128xf32>
    %149 = vector.multi_reduction <add>, %148, %cst_192 [0] : vector<256x128xf32> to vector<128xf32>
    %150 = vector.shape_cast %149 : vector<128xf32> to vector<1x128xf32>
    %cst_193 = arith.constant 2.560000e+02 : f32
    %151 = vector.broadcast %cst_193 : f32 to vector<1x128xf32>
    %152 = arith.divf %150, %151 : vector<1x128xf32>
    %153 = vector.broadcast %152 : vector<1x128xf32> to vector<256x128xf32>
    %154 = arith.subf %148, %153 : vector<256x128xf32>
    %155 = arith.mulf %154, %154 : vector<256x128xf32>
    %cst_194 = arith.constant dense<0.000000e+00> : vector<128xf32>
    %156 = vector.multi_reduction <add>, %155, %cst_194 [0] : vector<256x128xf32> to vector<128xf32>
    %157 = vector.shape_cast %156 : vector<128xf32> to vector<1x128xf32>
    %cst_195 = arith.constant 2.560000e+02 : f32
    %158 = vector.broadcast %cst_195 : f32 to vector<1x128xf32>
    %159 = arith.divf %157, %158 : vector<1x128xf32>
    %cst_196 = arith.constant 9.99999974E-6 : f32
    %160 = vector.broadcast %cst_196 : f32 to vector<1x128xf32>
    %161 = arith.addf %159, %160 : vector<1x128xf32>
    %162 = math.rsqrt %161 : vector<1x128xf32>
    %163 = vector.broadcast %162 : vector<1x128xf32> to vector<256x128xf32>
    %164 = arith.mulf %154, %163 : vector<256x128xf32>
    %c0_197 = arith.constant 0 : index
    %c0_198 = arith.constant 0 : index
    %c0_199 = arith.constant 0 : index
    %c0_200 = arith.constant 0 : index
    %165 = vector.load %arg1[%c0_197, %c0_198, %c0_199, %c0_200] : memref<1x16x16x128xf32, #tpu.memory_space<vmem>>, vector<1x16x16x128xf32>
    %166 = vector.shape_cast %165 : vector<1x16x16x128xf32> to vector<16x16x128xf32>
    %167 = vector.shape_cast %164 : vector<256x128xf32> to vector<16x16x128xf32>
    %168 = arith.addf %166, %167 : vector<16x16x128xf32>
    %c0_201 = arith.constant 0 : index
    %c0_202 = arith.constant 0 : index
    %c0_203 = arith.constant 0 : index
    %c0_204 = arith.constant 0 : index
    %169 = vector.load %arg4[%c0_201, %c0_202, %c0_203, %c0_204] : memref<1x16x16x128xf32, #tpu.memory_space<vmem>>, vector<1x16x16x128xf32>
    %170 = vector.shape_cast %169 : vector<1x16x16x128xf32> to vector<16x16x128xf32>
    %171 = vector.shape_cast %168 : vector<16x16x128xf32> to vector<1x16x16x128xf32>
    tpu.vector_store %arg4[%c0_201, %c0_202, %c0_203, %c0_204], %171 {strides = array<i32>} : memref<1x16x16x128xf32, #tpu.memory_space<vmem>>, vector<1x16x16x128xf32>,
    return
  }
  func.func @transform_0(%arg0: i32) -> (i32, i32, i32, i32) {
    %c0_i32 = arith.constant 0 : i32
    %c0_i32_0 = arith.constant 0 : i32
    %c0_i32_1 = arith.constant 0 : i32
    %c0_i32_2 = arith.constant 0 : i32
    return %arg0, %c0_i32, %c0_i32_0, %c0_i32_1 : i32, i32, i32, i32
  }
  func.func @transform_1(%arg0: i32) -> (i32, i32, i32, i32) {
    %c0_i32 = arith.constant 0 : i32
    %c0_i32_0 = arith.constant 0 : i32
    %c0_i32_1 = arith.constant 0 : i32
    %c0_i32_2 = arith.constant 0 : i32
    %c0_i32_3 = arith.constant 0 : i32
    return %c0_i32, %c0_i32_0, %c0_i32_1, %c0_i32_2 : i32, i32, i32, i32
  }
  func.func @transform_2(%arg0: i32) -> (i32, i32, i32, i32) {
    %c0_i32 = arith.constant 0 : i32
    %c0_i32_0 = arith.constant 0 : i32
    %c0_i32_1 = arith.constant 0 : i32
    %c0_i32_2 = arith.constant 0 : i32
    %c0_i32_3 = arith.constant 0 : i32
    return %c0_i32, %c0_i32_0, %c0_i32_1, %c0_i32_2 : i32, i32, i32, i32
  }
  func.func @transform_3(%arg0: i32) -> (i32, i32, i32, i32) {
    %c0_i32 = arith.constant 0 : i32
    %c0_i32_0 = arith.constant 0 : i32
    %c0_i32_1 = arith.constant 0 : i32
    %c0_i32_2 = arith.constant 0 : i32
    return %arg0, %c0_i32, %c0_i32_0, %c0_i32_1 : i32, i32, i32, i32
  }
}

</mosaic_0001>

<llo_original>
// kernel: resnet_block_forward.1
$region0: #{resnet_block_forward.1}
  #allocation0 [shape = 'u32[]', space=smem, size = 0x4, offset = 0x4, fixed_abs, tag = 'smem constant byte address 0x4 - core index']
  #allocation1 [shape = 'u32[144,128]{1,0:T(1,128)}', space=vmem, size = 0x12000, scoped, tag = 'internal scratch']
  #allocation2 [shape = 'f32[18,18,128]{2,1,0:T(8,128)}', space=vmem, size = 0x36000, scoped, tag = 'scratch operand']
  %s0 = inlined_call_operand.vmem [shape: f32[2,16,16,128], index: 0, kind: input, shape index: {}]
  %s1 = inlined_call_operand.vmem [shape: f32[3,3,128,128], index: 1, kind: input, shape index: {}]
  %s2 = inlined_call_operand.vmem [shape: f32[3,3,128,128], index: 2, kind: input, shape index: {}]
  %s3 = inlined_call_operand.vmem [shape: f32[2,16,16,128], index: 3, kind: output, shape index: {}]
  %s4 = sld [smem:[#allocation0]]
  $region45: #{resnet_block_forward.1} parent=0
    _
  %s6 = ssub.s32 1, %s4
  %s7 = scalar_select 0, %s6, %s4
  loop: start=0, step=1, limit=4
  $region2: #{resnet_block_forward.1} parent=0 // loop_pre_header
    _
  $region3: #{resnet_block_forward.1} parent=0 // loop_header
    %s9 = sphi 0, %s13
    %p10 = scmp.ge.s32.totalorder %s9, 4
    %s19 = sphi 0, %s21
    %s22 = sphi 0, %s19
    %s23 = sphi 0, %s22
    %s39 = sphi 0, %s23
    %s43 = sphi 0, %s43
    %s45 = sphi 0, %s43
    %s46 = sphi 0, %s45
    %s60 = sphi 0, %s46
    %s64 = sphi 0, %s64
    %s66 = sphi 0, %s64
    %s67 = sphi 0, %s66
    %s81 = sphi 0, %s67
    %s87 = sphi 0, %s89
    %s90 = sphi 0, %s87
    %s91 = sphi 0, %s90
    %s107 = sphi 0, %s91
  $region4: #{resnet_block_forward.1} parent=0 // loop_header_branch
    %12 = sbr.rel (%p10) target = $region8
  $region5: #{resnet_block_forward.1} parent=0 // loop_body
    %s14 = ssub.s32 %s9, 1
    %s15 = ssub.s32 %s9, 2
    %s16 = sadd.s32 %s9, 1
    %s17 = ssub.s32 %s9, %s16
    %p18 = scmp.eq.s32.totalorder %s17, 0
    %s20 = sadd.s32 %s19, 1
    %s21 = scalar_select %p18, %s19, %s20
    %p24 = pneg %p18
    %p25 = scmp.eq.s32.totalorder %s9, 1
    %p26 = por %p24, %p25
    %p27 = scmp.ne.s32.totalorder %s19, %s22
    %p28 = scmp.eq.s32.totalorder %s9, 0
    %p29 = por %p27, %p28
    %p30 = scmp.ne.s32.totalorder %s19, %s22
    %p31 = scmp.eq.s32.totalorder %s14, 1
    %p32 = por %p30, %p31
    %p33 = scmp.ne.s32.totalorder %s22, %s23
    %p34 = scmp.eq.s32.totalorder %s14, 0
    %p35 = por %p33, %p34
    %p36 = scmp.ne.s32.totalorder %s22, %s23
    %p37 = scmp.eq.s32.totalorder %s15, 1
    %p38 = por %p36, %p37
    %p40 = scmp.ne.s32.totalorder %s23, %s39
    %p41 = scmp.eq.s32.totalorder %s15, 0
    %p42 = por %p40, %p41
    %s44 = sadd.s32 %s43, 1
    %p47 = scmp.eq.s32.totalorder %s9, 1
    %p48 = scmp.ne.s32.totalorder %s43, %s45
    %p49 = scmp.eq.s32.totalorder %s9, 0
    %p50 = por %p48, %p49
    %p51 = scmp.ne.s32.totalorder %s43, %s45
    %p52 = scmp.eq.s32.totalorder %s14, 1
    %p53 = por %p51, %p52
    %p54 = scmp.ne.s32.totalorder %s45, %s46
    %p55 = scmp.eq.s32.totalorder %s14, 0
    %p56 = por %p54, %p55
    %p57 = scmp.ne.s32.totalorder %s45, %s46
    %p58 = scmp.eq.s32.totalorder %s15, 1
    %p59 = por %p57, %p58
    %p61 = scmp.ne.s32.totalorder %s46, %s60
    %p62 = scmp.eq.s32.totalorder %s15, 0
    %p63 = por %p61, %p62
    %s65 = sadd.s32 %s64, 1
    %p68 = scmp.eq.s32.totalorder %s9, 1
    %p69 = scmp.ne.s32.totalorder %s64, %s66
    %p70 = scmp.eq.s32.totalorder %s9, 0
    %p71 = por %p69, %p70
    %p72 = scmp.ne.s32.totalorder %s64, %s66
    %p73 = scmp.eq.s32.totalorder %s14, 1
    %p74 = por %p72, %p73
    %p75 = scmp.ne.s32.totalorder %s66, %s67
    %p76 = scmp.eq.s32.totalorder %s14, 0
    %p77 = por %p75, %p76
    %p78 = scmp.ne.s32.totalorder %s66, %s67
    %p79 = scmp.eq.s32.totalorder %s15, 1
    %p80 = por %p78, %p79
    %p82 = scmp.ne.s32.totalorder %s67, %s81
    %p83 = scmp.eq.s32.totalorder %s15, 0
    %p84 = por %p82, %p83
    %s85 = ssub.s32 %s9, %s16
    %p86 = scmp.eq.s32.totalorder %s85, 0
    %s88 = sadd.s32 %s87, 1
    %s89 = scalar_select %p86, %s87, %s88
    %p92 = pneg %p86
    %p93 = scmp.eq.s32.totalorder %s9, 1
    %p94 = por %p92, %p93
    %p95 = scmp.ne.s32.totalorder %s87, %s90
    %p96 = scmp.eq.s32.totalorder %s9, 0
    %p97 = por %p95, %p96
    %p98 = scmp.ne.s32.totalorder %s87, %s90
    %p99 = scmp.eq.s32.totalorder %s14, 1
    %p100 = por %p98, %p99
    %p101 = scmp.ne.s32.totalorder %s90, %s91
    %p102 = scmp.eq.s32.totalorder %s14, 0
    %p103 = por %p101, %p102
    %p104 = scmp.ne.s32.totalorder %s90, %s91
    %p105 = scmp.eq.s32.totalorder %s15, 1
    %p106 = por %p104, %p105
    %p108 = scmp.ne.s32.totalorder %s91, %s107
    %p109 = scmp.eq.s32.totalorder %s15, 0
    %p110 = por %p108, %p109
    %p111 = scmp.le.s32.totalorder 1, %s9
    %p112 = scmp.lt.s32.totalorder %s9, 3
    %p113 = pnand %p111, %p112
    %p114 = pneg %p113
    // Predicated region
    $region9: #{resnet_block_forward.1} parent=5 // pred_check
      _
    $region10: #{resnet_block_forward.1} parent=5 // pred_check_branch
      %116 = sbr.rel (%p113) target = $region12
    $region11: #{resnet_block_forward.1} parent=5 // pred_region
      %s117 = ssub.s32 %s9, 1
      // Predicated region
      $region13: #{resnet_block_forward.1} parent=11 // pred_check
        %p118 = pneg %p56
      $region14: #{resnet_block_forward.1} parent=11 // pred_check_branch
        %120 = sbr.rel (%p118) target = $region16
      $region15: #{resnet_block_forward.1} parent=11 // pred_region
        _
      $region16: #{resnet_block_forward.1} parent=11 // pred_fallthru
        _
      // Predicated region
      $region17: #{resnet_block_forward.1} parent=11 // pred_check
        %p121 = pneg %p77
      $region18: #{resnet_block_forward.1} parent=11 // pred_check_branch
        %123 = sbr.rel (%p121) target = $region20
      $region19: #{resnet_block_forward.1} parent=11 // pred_region
        _
      $region20: #{resnet_block_forward.1} parent=11 // pred_fallthru
        _
    $region12: #{resnet_block_forward.1} parent=5 // pred_fallthru
      _
    %p124 = scmp.lt.s32.totalorder %s9, 2
    // Predicated region
    $region21: #{resnet_block_forward.1} parent=5 // pred_check
      %p125 = pneg %p124
    $region22: #{resnet_block_forward.1} parent=5 // pred_check_branch
      %127 = sbr.rel (%p125) target = $region24
    $region23: #{resnet_block_forward.1} parent=5 // pred_region
      // Predicated region
      $region25: #{resnet_block_forward.1} parent=23 // pred_check
        %p128 = pneg %p29
      $region26: #{resnet_block_forward.1} parent=23 // pred_check_branch
        %130 = sbr.rel (%p128) target = $region28
      $region27: #{resnet_block_forward.1} parent=23 // pred_region
        %p131 = scmp.lt.s32.totalorder %s9, 1
        %s132 = scalar_select %p131, %s9, 1
        %s133 = smul.addr %s132, 32
        %s134 = smul.addr %s133, 8
        %s135 = scalar_lea.vmem %s0, %s134
      $region28: #{resnet_block_forward.1} parent=23 // pred_fallthru
        _
    $region24: #{resnet_block_forward.1} parent=5 // pred_fallthru
      _
    %p136 = scmp.le.s32.totalorder 1, %s9
    %p137 = scmp.lt.s32.totalorder %s9, 3
    %p138 = pnand %p136, %p137
    %p139 = pneg %p138
    // Predicated region
    $region29: #{resnet_block_forward.1} parent=5 // pred_check
      _
    $region30: #{resnet_block_forward.1} parent=5 // pred_check_branch
      %141 = sbr.rel (%p138) target = $region32
    $region31: #{resnet_block_forward.1} parent=5 // pred_region
      %s142 = ssub.s32 %s9, 1
      %p143 = scmp.lt.s32.totalorder %s14, 1
      %s144 = scalar_select %p143, %s14, 1
      %s145 = smul.addr %s144, 32
      %s146 = smul.addr %s145, 8
      %s147 = scalar_lea.vmem %s0, %s146
      %p148 = pneg %p35
      %p149 = pneg %p32
      %p150 = pneg %p56
      %p151 = pneg %p53
      %p152 = pneg %p77
      %p153 = pneg %p74
      %p154 = pneg %p103
      %p155 = pneg %p100
      %p156 = scmp.lt.s32.totalorder %s14, 1
      %s157 = scalar_select %p156, %s14, 1
      %s158 = smul.addr %s157, 32
      %s159 = smul.addr %s158, 8
      %s160 = scalar_lea.vmem %s3, %s159
      %p161 = scmp.lt.s32.totalorder %s14, 1
      %s162 = scalar_select %p161, %s14, 1
      %s163 = smul.addr %s162, 32
      %s164 = smul.addr %s163, 8
      %s165 = scalar_lea.vmem %s0, %s164
      %p166 = scmp.lt.s32.totalorder %s14, 1
      %s167 = scalar_select %p166, %s14, 1
      %s168 = smul.addr %s167, 32
      %s169 = smul.addr %s168, 8
      %s170 = scalar_lea.vmem %s3, %s169
      %v171 = vld [vmem:[%s165] sm:$0xff]
      %v172 = vld [vmem:[%s165 + $0x8] sm:$0xff]
      %v173 = vld [vmem:[%s165 + $0x10] sm:$0xff]
      %v174 = vld [vmem:[%s165 + $0x18] sm:$0xff]
      %v175 = vld [vmem:[%s165 + $0x20] sm:$0xff]
      %v176 = vld [vmem:[%s165 + $0x28] sm:$0xff]
      %v177 = vld [vmem:[%s165 + $0x30] sm:$0xff]
      %v178 = vld [vmem:[%s165 + $0x38] sm:$0xff]
      %v179 = vld [vmem:[%s165 + $0x40] sm:$0xff]
      %v180 = vld [vmem:[%s165 + $0x48] sm:$0xff]
      %v181 = vld [vmem:[%s165 + $0x50] sm:$0xff]
      %v182 = vld [vmem:[%s165 + $0x58] sm:$0xff]
      %v183 = vld [vmem:[%s165 + $0x60] sm:$0xff]
      %v184 = vld [vmem:[%s165 + $0x68] sm:$0xff]
      %v185 = vld [vmem:[%s165 + $0x70] sm:$0xff]
      %v186 = vld [vmem:[%s165 + $0x78] sm:$0xff]
      %v187 = vld [vmem:[%s165 + $0x80] sm:$0xff]
      %v188 = vld [vmem:[%s165 + $0x88] sm:$0xff]
      %v189 = vld [vmem:[%s165 + $0x90] sm:$0xff]
      %v190 = vld [vmem:[%s165 + $0x98] sm:$0xff]
      %v191 = vld [vmem:[%s165 + $0xa0] sm:$0xff]
      %v192 = vld [vmem:[%s165 + $0xa8] sm:$0xff]
      %v193 = vld [vmem:[%s165 + $0xb0] sm:$0xff]
      %v194 = vld [vmem:[%s165 + $0xb8] sm:$0xff]
      %v195 = vld [vmem:[%s165 + $0xc0] sm:$0xff]
      %v196 = vld [vmem:[%s165 + $0xc8] sm:$0xff]
      %v197 = vld [vmem:[%s165 + $0xd0] sm:$0xff]
      %v198 = vld [vmem:[%s165 + $0xd8] sm:$0xff]
      %v199 = vld [vmem:[%s165 + $0xe0] sm:$0xff]
      %v200 = vld [vmem:[%s165 + $0xe8] sm:$0xff]
      %v201 = vld [vmem:[%s165 + $0xf0] sm:$0xff]
      %v202 = vld [vmem:[%s165 + $0xf8] sm:$0xff]
      %s203 = scalar_lea.vmem [#allocation2], 24
      %204 = vst [vmem:[%s203 + $0x1] sm:$0xff] %v171
      %205 = vst [vmem:[%s203 + $0x9] sm:$0xff] %v172
      %206 = vst [vmem:[%s203 + $0x19] sm:$0xff] %v173
      %207 = vst [vmem:[%s203 + $0x21] sm:$0xff] %v174
      %208 = vst [vmem:[%s203 + $0x31] sm:$0xff] %v175
      %209 = vst [vmem:[%s203 + $0x39] sm:$0xff] %v176
      %210 = vst [vmem:[%s203 + $0x49] sm:$0xff] %v177
      %211 = vst [vmem:[%s203 + $0x51] sm:$0xff] %v178
      %212 = vst [vmem:[%s203 + $0x61] sm:$0xff] %v179
      %213 = vst [vmem:[%s203 + $0x69] sm:$0xff] %v180
      %214 = vst [vmem:[%s203 + $0x79] sm:$0xff] %v181
      %215 = vst [vmem:[%s203 + $0x81] sm:$0xff] %v182
      %216 = vst [vmem:[%s203 + $0x91] sm:$0xff] %v183
      %217 = vst [vmem:[%s203 + $0x99] sm:$0xff] %v184
      %218 = vst [vmem:[%s203 + $0xa9] sm:$0xff] %v185
      %219 = vst [vmem:[%s203 + $0xb1] sm:$0xff] %v186
      %220 = vst [vmem:[%s203 + $0xc1] sm:$0xff] %v187
      %221 = vst [vmem:[%s203 + $0xc9] sm:$0xff] %v188
      %222 = vst [vmem:[%s203 + $0xd9] sm:$0xff] %v189
      %223 = vst [vmem:[%s203 + $0xe1] sm:$0xff] %v190
      %224 = vst [vmem:[%s203 + $0xf1] sm:$0xff] %v191
      %225 = vst [vmem:[%s203 + $0xf9] sm:$0xff] %v192
      %226 = vst [vmem:[%s203 + $0x109] sm:$0xff] %v193
      %227 = vst [vmem:[%s203 + $0x111] sm:$0xff] %v194
      %228 = vst [vmem:[%s203 + $0x121] sm:$0xff] %v195
      %229 = vst [vmem:[%s203 + $0x129] sm:$0xff] %v196
      %230 = vst [vmem:[%s203 + $0x139] sm:$0xff] %v197
      %231 = vst [vmem:[%s203 + $0x141] sm:$0xff] %v198
      %232 = vst [vmem:[%s203 + $0x151] sm:$0xff] %v199
      %233 = vst [vmem:[%s203 + $0x159] sm:$0xff] %v200
      %234 = vst [vmem:[%s203 + $0x169] sm:$0xff] %v201
      %235 = vst [vmem:[%s203 + $0x171] sm:$0xff] %v202
      %236 = vst [vmem:[#allocation2 + $0x1] sm:$0xff] %v173
      %237 = vst [vmem:[#allocation2 + $0x9] sm:$0xff] %v174
      %s238 = scalar_lea.vmem [#allocation2], 408
      %239 = vst [vmem:[%s238 + $0x1] sm:$0xff] %v199
      %240 = vst [vmem:[%s238 + $0x9] sm:$0xff] %v200
      %v241 = vld [vmem:[#allocation2 + $0x2] sm:$0x1]
      %v242 = vld [vmem:[#allocation2 + $0x1a] sm:$0x1]
      %v243 = vld [vmem:[#allocation2 + $0x32] sm:$0x1]
      %v244 = vld [vmem:[#allocation2 + $0x4a] sm:$0x1]
      %v245 = vld [vmem:[#allocation2 + $0x62] sm:$0x1]
      %v246 = vld [vmem:[#allocation2 + $0x7a] sm:$0x1]
      %v247 = vld [vmem:[#allocation2 + $0x92] sm:$0x1]
      %v248 = vld [vmem:[#allocation2 + $0xaa] sm:$0x1]
      %v249 = vld [vmem:[#allocation2 + $0xc2] sm:$0x1]
      %v250 = vld [vmem:[#allocation2 + $0xda] sm:$0x1]
      %v251 = vld [vmem:[#allocation2 + $0xf2] sm:$0x1]
      %v252 = vld [vmem:[#allocation2 + $0x10a] sm:$0x1]
      %v253 = vld [vmem:[#allocation2 + $0x122] sm:$0x1]
      %v254 = vld [vmem:[#allocation2 + $0x13a] sm:$0x1]
      %v255 = vld [vmem:[#allocation2 + $0x152] sm:$0x1]
      %v256 = vld [vmem:[#allocation2 + $0x16a] sm:$0x1]
      %v257 = vld [vmem:[#allocation2 + $0x182] sm:$0x1]
      %v258 = vld [vmem:[#allocation2 + $0x19a] sm:$0x1]
      %259 = vst [vmem:[#allocation2] sm:$0x1] %v241
      %260 = vst [vmem:[#allocation2 + $0x18] sm:$0x1] %v242
      %261 = vst [vmem:[#allocation2 + $0x30] sm:$0x1] %v243
      %262 = vst [vmem:[#allocation2 + $0x48] sm:$0x1] %v244
      %263 = vst [vmem:[#allocation2 + $0x60] sm:$0x1] %v245
      %264 = vst [vmem:[#allocation2 + $0x78] sm:$0x1] %v246
      %265 = vst [vmem:[#allocation2 + $0x90] sm:$0x1] %v247
      %266 = vst [vmem:[#allocation2 + $0xa8] sm:$0x1] %v248
      %267 = vst [vmem:[#allocation2 + $0xc0] sm:$0x1] %v249
      %268 = vst [vmem:[#allocation2 + $0xd8] sm:$0x1] %v250
      %269 = vst [vmem:[#allocation2 + $0xf0] sm:$0x1] %v251
      %270 = vst [vmem:[#allocation2 + $0x108] sm:$0x1] %v252
      %271 = vst [vmem:[#allocation2 + $0x120] sm:$0x1] %v253
      %272 = vst [vmem:[#allocation2 + $0x138] sm:$0x1] %v254
      %273 = vst [vmem:[#allocation2 + $0x150] sm:$0x1] %v255
      %274 = vst [vmem:[#allocation2 + $0x168] sm:$0x1] %v256
      %275 = vst [vmem:[#allocation2 + $0x180] sm:$0x1] %v257
      %276 = vst [vmem:[#allocation2 + $0x198] sm:$0x1] %v258
      %v277 = vld [vmem:[#allocation2 + $0xf] sm:$0x1]
      %v278 = vld [vmem:[#allocation2 + $0x27] sm:$0x1]
      %v279 = vld [vmem:[#allocation2 + $0x3f] sm:$0x1]
      %v280 = vld [vmem:[#allocation2 + $0x57] sm:$0x1]
      %v281 = vld [vmem:[#allocation2 + $0x6f] sm:$0x1]
      %v282 = vld [vmem:[#allocation2 + $0x87] sm:$0x1]
      %v283 = vld [vmem:[#allocation2 + $0x9f] sm:$0x1]
      %v284 = vld [vmem:[#allocation2 + $0xb7] sm:$0x1]
      %v285 = vld [vmem:[#allocation2 + $0xcf] sm:$0x1]
      %v286 = vld [vmem:[#allocation2 + $0xe7] sm:$0x1]
      %v287 = vld [vmem:[#allocation2 + $0xff] sm:$0x1]
      %v288 = vld [vmem:[#allocation2 + $0x117] sm:$0x1]
      %v289 = vld [vmem:[#allocation2 + $0x12f] sm:$0x1]
      %v290 = vld [vmem:[#allocation2 + $0x147] sm:$0x1]
      %v291 = vld [vmem:[#allocation2 + $0x15f] sm:$0x1]
      %v292 = vld [vmem:[#allocation2 + $0x177] sm:$0x1]
      %v293 = vld [vmem:[#allocation2 + $0x18f] sm:$0x1]
      %v294 = vld [vmem:[#allocation2 + $0x1a7] sm:$0x1]
      %295 = vst [vmem:[#allocation2 + $0x11] sm:$0x1] %v277
      %296 = vst [vmem:[#allocation2 + $0x29] sm:$0x1] %v278
      %297 = vst [vmem:[#allocation2 + $0x41] sm:$0x1] %v279
      %298 = vst [vmem:[#allocation2 + $0x59] sm:$0x1] %v280
      %299 = vst [vmem:[#allocation2 + $0x71] sm:$0x1] %v281
      %300 = vst [vmem:[#allocation2 + $0x89] sm:$0x1] %v282
      %301 = vst [vmem:[#allocation2 + $0xa1] sm:$0x1] %v283
      %302 = vst [vmem:[#allocation2 + $0xb9] sm:$0x1] %v284
      %303 = vst [vmem:[#allocation2 + $0xd1] sm:$0x1] %v285
      %304 = vst [vmem:[#allocation2 + $0xe9] sm:$0x1] %v286
      %305 = vst [vmem:[#allocation2 + $0x101] sm:$0x1] %v287
      %306 = vst [vmem:[#allocation2 + $0x119] sm:$0x1] %v288
      %307 = vst [vmem:[#allocation2 + $0x131] sm:$0x1] %v289
      %308 = vst [vmem:[#allocation2 + $0x149] sm:$0x1] %v290
      %309 = vst [vmem:[#allocation2 + $0x161] sm:$0x1] %v291
      %310 = vst [vmem:[#allocation2 + $0x179] sm:$0x1] %v292
      %311 = vst [vmem:[#allocation2 + $0x191] sm:$0x1] %v293
      %312 = vst [vmem:[#allocation2 + $0x1a9] sm:$0x1] %v294
      %v313 = vld [vmem:[#allocation2] sm:$0xff]
      %v314 = vld [vmem:[#allocation2 + $0x8] sm:$0xff]
      %v315 = vld [vmem:[#allocation2 + $0x18] sm:$0xff]
      %v316 = vld [vmem:[#allocation2 + $0x20] sm:$0xff]
      %v317 = vld [vmem:[#allocation2 + $0x30] sm:$0xff]
      %v318 = vld [vmem:[#allocation2 + $0x38] sm:$0xff]
      %v319 = vld [vmem:[#allocation2 + $0x48] sm:$0xff]
      %v320 = vld [vmem:[#allocation2 + $0x50] sm:$0xff]
      %v321 = vld [vmem:[#allocation2 + $0x60] sm:$0xff]
      %v322 = vld [vmem:[#allocation2 + $0x68] sm:$0xff]
      %v323 = vld [vmem:[#allocation2 + $0x78] sm:$0xff]
      %v324 = vld [vmem:[#allocation2 + $0x80] sm:$0xff]
      %v325 = vld [vmem:[#allocation2 + $0x90] sm:$0xff]
      %v326 = vld [vmem:[#allocation2 + $0x98] sm:$0xff]
      %v327 = vld [vmem:[#allocation2 + $0xa8] sm:$0xff]
      %v328 = vld [vmem:[#allocation2 + $0xb0] sm:$0xff]
      %v329 = vld [vmem:[#allocation2 + $0xc0] sm:$0xff]
      %v330 = vld [vmem:[#allocation2 + $0xc8] sm:$0xff]
      %v331 = vld [vmem:[#allocation2 + $0xd8] sm:$0xff]
      %v332 = vld [vmem:[#allocation2 + $0xe0] sm:$0xff]
      %v333 = vld [vmem:[#allocation2 + $0xf0] sm:$0xff]
      %v334 = vld [vmem:[#allocation2 + $0xf8] sm:$0xff]
      %v335 = vld [vmem:[#allocation2 + $0x108] sm:$0xff]
      %v336 = vld [vmem:[#allocation2 + $0x110] sm:$0xff]
      %v337 = vld [vmem:[#allocation2 + $0x120] sm:$0xff]
      %v338 = vld [vmem:[#allocation2 + $0x128] sm:$0xff]
      %v339 = vld [vmem:[#allocation2 + $0x138] sm:$0xff]
      %v340 = vld [vmem:[#allocation2 + $0x140] sm:$0xff]
      %v341 = vld [vmem:[#allocation2 + $0x150] sm:$0xff]
      %v342 = vld [vmem:[#allocation2 + $0x158] sm:$0xff]
      %v343 = vld [vmem:[#allocation2 + $0x168] sm:$0xff]
      %v344 = vld [vmem:[#allocation2 + $0x170] sm:$0xff]
      %v345 = vld [vmem:[%s1] sm:$0xff]
      %v346 = vld [vmem:[%s1 + $0x8] sm:$0xff]
      %v347 = vld [vmem:[%s1 + $0x10] sm:$0xff]
      %v348 = vld [vmem:[%s1 + $0x18] sm:$0xff]
      %v349 = vld [vmem:[%s1 + $0x20] sm:$0xff]
      %v350 = vld [vmem:[%s1 + $0x28] sm:$0xff]
      %v351 = vld [vmem:[%s1 + $0x30] sm:$0xff]
      %v352 = vld [vmem:[%s1 + $0x38] sm:$0xff]
      %v353 = vld [vmem:[%s1 + $0x40] sm:$0xff]
      %v354 = vld [vmem:[%s1 + $0x48] sm:$0xff]
      %v355 = vld [vmem:[%s1 + $0x50] sm:$0xff]
      %v356 = vld [vmem:[%s1 + $0x58] sm:$0xff]
      %v357 = vld [vmem:[%s1 + $0x60] sm:$0xff]
      %v358 = vld [vmem:[%s1 + $0x68] sm:$0xff]
      %v359 = vld [vmem:[%s1 + $0x70] sm:$0xff]
      %v360 = vld [vmem:[%s1 + $0x78] sm:$0xff]
      %v361 = vld [vmem:[#allocation2 + $0x1] sm:$0xff]
      %v362 = vld [vmem:[#allocation2 + $0x9] sm:$0xff]
      %v363 = vld [vmem:[#allocation2 + $0x19] sm:$0xff]
      %v364 = vld [vmem:[#allocation2 + $0x21] sm:$0xff]
      %v365 = vld [vmem:[#allocation2 + $0x31] sm:$0xff]
      %v366 = vld [vmem:[#allocation2 + $0x39] sm:$0xff]
      %v367 = vld [vmem:[#allocation2 + $0x49] sm:$0xff]
      %v368 = vld [vmem:[#allocation2 + $0x51] sm:$0xff]
      %v369 = vld [vmem:[#allocation2 + $0x61] sm:$0xff]
      %v370 = vld [vmem:[#allocation2 + $0x69] sm:$0xff]
      %v371 = vld [vmem:[#allocation2 + $0x79] sm:$0xff]
      %v372 = vld [vmem:[#allocation2 + $0x81] sm:$0xff]
      %v373 = vld [vmem:[#allocation2 + $0x91] sm:$0xff]
      %v374 = vld [vmem:[#allocation2 + $0x99] sm:$0xff]
      %v375 = vld [vmem:[#allocation2 + $0xa9] sm:$0xff]
      %v376 = vld [vmem:[#allocation2 + $0xb1] sm:$0xff]
      %v377 = vld [vmem:[#allocation2 + $0xc1] sm:$0xff]
      %v378 = vld [vmem:[#allocation2 + $0xc9] sm:$0xff]
      %v379 = vld [vmem:[#allocation2 + $0xd9] sm:$0xff]
      %v380 = vld [vmem:[#allocation2 + $0xe1] sm:$0xff]
      %v381 = vld [vmem:[#allocation2 + $0xf1] sm:$0xff]
      %v382 = vld [vmem:[#allocation2 + $0xf9] sm:$0xff]
      %v383 = vld [vmem:[#allocation2 + $0x109] sm:$0xff]
      %v384 = vld [vmem:[#allocation2 + $0x111] sm:$0xff]
      %v385 = vld [vmem:[#allocation2 + $0x121] sm:$0xff]
      %v386 = vld [vmem:[#allocation2 + $0x129] sm:$0xff]
      %v387 = vld [vmem:[#allocation2 + $0x139] sm:$0xff]
      %v388 = vld [vmem:[#allocation2 + $0x141] sm:$0xff]
      %v389 = vld [vmem:[#allocation2 + $0x151] sm:$0xff]
      %v390 = vld [vmem:[#allocation2 + $0x159] sm:$0xff]
      %v391 = vld [vmem:[#allocation2 + $0x169] sm:$0xff]
      %v392 = vld [vmem:[#allocation2 + $0x171] sm:$0xff]
      %s393 = scalar_lea.vmem %s1, 128
      %v394 = vld [vmem:[%s393] sm:$0xff]
      %v395 = vld [vmem:[%s393 + $0x8] sm:$0xff]
      %v396 = vld [vmem:[%s393 + $0x10] sm:$0xff]
      %v397 = vld [vmem:[%s393 + $0x18] sm:$0xff]
      %v398 = vld [vmem:[%s393 + $0x20] sm:$0xff]
      %v399 = vld [vmem:[%s393 + $0x28] sm:$0xff]
      %v400 = vld [vmem:[%s393 + $0x30] sm:$0xff]
      %v401 = vld [vmem:[%s393 + $0x38] sm:$0xff]
      %v402 = vld [vmem:[%s393 + $0x40] sm:$0xff]
      %v403 = vld [vmem:[%s393 + $0x48] sm:$0xff]
      %v404 = vld [vmem:[%s393 + $0x50] sm:$0xff]
      %v405 = vld [vmem:[%s393 + $0x58] sm:$0xff]
      %v406 = vld [vmem:[%s393 + $0x60] sm:$0xff]
      %v407 = vld [vmem:[%s393 + $0x68] sm:$0xff]
      %v408 = vld [vmem:[%s393 + $0x70] sm:$0xff]
      %v409 = vld [vmem:[%s393 + $0x78] sm:$0xff]
      %410 = vmatprep.subr.mxu0 0.0
      %411 = vmatpush1.msra.mxu0 %v409
      %412 = vmatprep.subr.mxu0 0.0
      %413 = vmatpush1.msra.mxu0 %v408
      %414 = vmatprep.subr.mxu0 0.0
      %415 = vmatpush1.msra.mxu0 %v407
      %416 = vmatprep.subr.mxu0 0.0
      %417 = vmatpush1.msra.mxu0 %v406
      %418 = vmatprep.subr.mxu0 0.0
      %419 = vmatpush1.msra.mxu0 %v405
      %420 = vmatprep.subr.mxu0 0.0
      %421 = vmatpush1.msra.mxu0 %v404
      %422 = vmatprep.subr.mxu0 0.0
      %423 = vmatpush1.msra.mxu0 %v403
      %424 = vmatprep.subr.mxu0 0.0
      %425 = vmatpush1.msra.mxu0 %v402
      %426 = vmatprep.subr.mxu0 0.0
      %427 = vmatpush1.msra.mxu0 %v401
      %428 = vmatprep.subr.mxu0 0.0
      %429 = vmatpush1.msra.mxu0 %v400
      %430 = vmatprep.subr.mxu0 0.0
      %431 = vmatpush1.msra.mxu0 %v399
      %432 = vmatprep.subr.mxu0 0.0
      %433 = vmatpush1.msra.mxu0 %v398
      %434 = vmatprep.subr.mxu0 0.0
      %435 = vmatpush1.msra.mxu0 %v397
      %436 = vmatprep.subr.mxu0 0.0
      %437 = vmatpush1.msra.mxu0 %v396
      %438 = vmatprep.subr.mxu0 0.0
      %439 = vmatpush1.msra.mxu0 %v395
      %440 = vmatprep.subr.mxu0 0.0
      %441 = vmatpush1.msra.mxu0 %v394
      %442 = vmatprep.subr.mxu0 0.0
      %443 = vmatpush2.msra.mxu0 0.0
      %444 = vmatprep.subr.mxu0 0.0
      %445 = vmatpush2.msra.mxu0 0.0
      %446 = vmatprep.subr.mxu0 0.0
      %447 = vmatpush2.msra.mxu0 0.0
      %448 = vmatprep.subr.mxu0 0.0
      %449 = vmatpush2.msra.mxu0 0.0
      %450 = vmatprep.subr.mxu0 0.0
      %451 = vmatpush2.msra.mxu0 0.0
      %452 = vmatprep.subr.mxu0 0.0
      %453 = vmatpush2.msra.mxu0 0.0
      %454 = vmatprep.subr.mxu0 0.0
      %455 = vmatpush2.msra.mxu0 0.0
      %456 = vmatprep.subr.mxu0 0.0
      %457 = vmatpush2.msra.mxu0 0.0
      %458 = vmatprep.subr.mxu0 0.0
      %459 = vmatpush2.msra.mxu0 0.0
      %460 = vmatprep.subr.mxu0 0.0
      %461 = vmatpush2.msra.mxu0 0.0
      %462 = vmatprep.subr.mxu0 0.0
      %463 = vmatpush2.msra.mxu0 0.0
      %464 = vmatprep.subr.mxu0 0.0
      %465 = vmatpush2.msra.mxu0 0.0
      %466 = vmatprep.subr.mxu0 0.0
      %467 = vmatpush2.msra.mxu0 0.0
      %468 = vmatprep.subr.mxu0 0.0
      %469 = vmatpush2.msra.mxu0 0.0
      %470 = vmatprep.subr.mxu0 0.0
      %471 = vmatpush2.msra.mxu0 0.0
      %472 = vmatprep.subr.mxu0 0.0
      %473 = vmatpush2.msra.mxu0 0.0
      %474 = vmatprep.mubr.f32.mxu0 0.0
      %475 = vmatmul.mubr.f32.gmra.mxu0 %v361
      %v476 = vpop.f32.mrf.mxu0
      %v477 = vadd.f32 0.0, %v476
      %v478 = vpop.f32.mrf.mxu0
      %479 = vmatprep.mubr.f32.mxu0 0.0
      %480 = vmatmul.mubr.f32.gmra.mxu0 %v362
      %v481 = vpop.f32.mrf.mxu0
      %v482 = vadd.f32 0.0, %v481
      %v483 = vpop.f32.mrf.mxu0
      %484 = vmatprep.mubr.f32.mxu0 0.0
      %485 = vmatmul.mubr.f32.gmra.mxu0 %v363
      %v486 = vpop.f32.mrf.mxu0
      %v487 = vadd.f32 0.0, %v486
      %v488 = vpop.f32.mrf.mxu0
      %489 = vmatprep.mubr.f32.mxu0 0.0
      %490 = vmatmul.mubr.f32.gmra.mxu0 %v364
      %v491 = vpop.f32.mrf.mxu0
      %v492 = vadd.f32 0.0, %v491
      %v493 = vpop.f32.mrf.mxu0
      %494 = vmatprep.mubr.f32.mxu0 0.0
      %495 = vmatmul.mubr.f32.gmra.mxu0 %v365
      %v496 = vpop.f32.mrf.mxu0
      %v497 = vadd.f32 0.0, %v496
      %v498 = vpop.f32.mrf.mxu0
      %499 = vmatprep.mubr.f32.mxu0 0.0
      %500 = vmatmul.mubr.f32.gmra.mxu0 %v366
      %v501 = vpop.f32.mrf.mxu0
      %v502 = vadd.f32 0.0, %v501
      %v503 = vpop.f32.mrf.mxu0
      %504 = vmatprep.mubr.f32.mxu0 0.0
      %505 = vmatmul.mubr.f32.gmra.mxu0 %v367
      %v506 = vpop.f32.mrf.mxu0
      %v507 = vadd.f32 0.0, %v506
      %v508 = vpop.f32.mrf.mxu0
      %509 = vmatprep.mubr.f32.mxu0 0.0
      %510 = vmatmul.mubr.f32.gmra.mxu0 %v368
      %v511 = vpop.f32.mrf.mxu0
      %v512 = vadd.f32 0.0, %v511
      %v513 = vpop.f32.mrf.mxu0
      %514 = vmatprep.mubr.f32.mxu0 0.0
      %515 = vmatmul.mubr.f32.gmra.mxu0 %v369
      %v516 = vpop.f32.mrf.mxu0
      %v517 = vadd.f32 0.0, %v516
      %v518 = vpop.f32.mrf.mxu0
      %519 = vmatprep.mubr.f32.mxu0 0.0
      %520 = vmatmul.mubr.f32.gmra.mxu0 %v370
      %v521 = vpop.f32.mrf.mxu0
      %v522 = vadd.f32 0.0, %v521
      %v523 = vpop.f32.mrf.mxu0
      %524 = vmatprep.mubr.f32.mxu0 0.0
      %525 = vmatmul.mubr.f32.gmra.mxu0 %v371
      %v526 = vpop.f32.mrf.mxu0
      %v527 = vadd.f32 0.0, %v526
      %v528 = vpop.f32.mrf.mxu0
      %529 = vmatprep.mubr.f32.mxu0 0.0
      %530 = vmatmul.mubr.f32.gmra.mxu0 %v372
      %v531 = vpop.f32.mrf.mxu0
      %v532 = vadd.f32 0.0, %v531
      %v533 = vpop.f32.mrf.mxu0
      %534 = vmatprep.mubr.f32.mxu0 0.0
      %535 = vmatmul.mubr.f32.gmra.mxu0 %v373
      %v536 = vpop.f32.mrf.mxu0
      %v537 = vadd.f32 0.0, %v536
      %v538 = vpop.f32.mrf.mxu0
      %539 = vmatprep.mubr.f32.mxu0 0.0
      %540 = vmatmul.mubr.f32.gmra.mxu0 %v374
      %v541 = vpop.f32.mrf.mxu0
      %v542 = vadd.f32 0.0, %v541
      %v543 = vpop.f32.mrf.mxu0
      %544 = vmatprep.mubr.f32.mxu0 0.0
      %545 = vmatmul.mubr.f32.gmra.mxu0 %v375
      %v546 = vpop.f32.mrf.mxu0
      %v547 = vadd.f32 0.0, %v546
      %v548 = vpop.f32.mrf.mxu0
      %549 = vmatprep.mubr.f32.mxu0 0.0
      %550 = vmatmul.mubr.f32.gmra.mxu0 %v376
      %v551 = vpop.f32.mrf.mxu0
      %v552 = vadd.f32 0.0, %v551
      %v553 = vpop.f32.mrf.mxu0
      %554 = vmatprep.mubr.f32.mxu0 0.0
      %555 = vmatmul.mubr.f32.gmra.mxu0 %v377
      %v556 = vpop.f32.mrf.mxu0
      %v557 = vadd.f32 0.0, %v556
      %v558 = vpop.f32.mrf.mxu0
      %559 = vmatprep.mubr.f32.mxu0 0.0
      %560 = vmatmul.mubr.f32.gmra.mxu0 %v378
      %v561 = vpop.f32.mrf.mxu0
      %v562 = vadd.f32 0.0, %v561
      %v563 = vpop.f32.mrf.mxu0
      %564 = vmatprep.mubr.f32.mxu0 0.0
      %565 = vmatmul.mubr.f32.gmra.mxu0 %v379
      %v566 = vpop.f32.mrf.mxu0
      %v567 = vadd.f32 0.0, %v566
      %v568 = vpop.f32.mrf.mxu0
      %569 = vmatprep.mubr.f32.mxu0 0.0
      %570 = vmatmul.mubr.f32.gmra.mxu0 %v380
      %v571 = vpop.f32.mrf.mxu0
      %v572 = vadd.f32 0.0, %v571
      %v573 = vpop.f32.mrf.mxu0
      %574 = vmatprep.mubr.f32.mxu0 0.0
      %575 = vmatmul.mubr.f32.gmra.mxu0 %v381
      %v576 = vpop.f32.mrf.mxu0
      %v577 = vadd.f32 0.0, %v576
      %v578 = vpop.f32.mrf.mxu0
      %579 = vmatprep.mubr.f32.mxu0 0.0
      %580 = vmatmul.mubr.f32.gmra.mxu0 %v382
      %v581 = vpop.f32.mrf.mxu0
      %v582 = vadd.f32 0.0, %v581
      %v583 = vpop.f32.mrf.mxu0
      %584 = vmatprep.mubr.f32.mxu0 0.0
      %585 = vmatmul.mubr.f32.gmra.mxu0 %v383
      %v586 = vpop.f32.mrf.mxu0
      %v587 = vadd.f32 0.0, %v586
      %v588 = vpop.f32.mrf.mxu0
      %589 = vmatprep.mubr.f32.mxu0 0.0
      %590 = vmatmul.mubr.f32.gmra.mxu0 %v384
      %v591 = vpop.f32.mrf.mxu0
      %v592 = vadd.f32 0.0, %v591
      %v593 = vpop.f32.mrf.mxu0
      %594 = vmatprep.mubr.f32.mxu0 0.0
      %595 = vmatmul.mubr.f32.gmra.mxu0 %v385
      %v596 = vpop.f32.mrf.mxu0
      %v597 = vadd.f32 0.0, %v596
      %v598 = vpop.f32.mrf.mxu0
      %599 = vmatprep.mubr.f32.mxu0 0.0
      %600 = vmatmul.mubr.f32.gmra.mxu0 %v386
      %v601 = vpop.f32.mrf.mxu0
      %v602 = vadd.f32 0.0, %v601
      %v603 = vpop.f32.mrf.mxu0
      %604 = vmatprep.mubr.f32.mxu0 0.0
      %605 = vmatmul.mubr.f32.gmra.mxu0 %v387
      %v606 = vpop.f32.mrf.mxu0
      %v607 = vadd.f32 0.0, %v606
      %v608 = vpop.f32.mrf.mxu0
      %609 = vmatprep.mubr.f32.mxu0 0.0
      %610 = vmatmul.mubr.f32.gmra.mxu0 %v388
      %v611 = vpop.f32.mrf.mxu0
      %v612 = vadd.f32 0.0, %v611
      %v613 = vpop.f32.mrf.mxu0
      %614 = vmatprep.mubr.f32.mxu0 0.0
      %615 = vmatmul.mubr.f32.gmra.mxu0 %v389
      %v616 = vpop.f32.mrf.mxu0
      %v617 = vadd.f32 0.0, %v616
      %v618 = vpop.f32.mrf.mxu0
      %619 = vmatprep.mubr.f32.mxu0 0.0
      %620 = vmatmul.mubr.f32.gmra.mxu0 %v390
      %v621 = vpop.f32.mrf.mxu0
      %v622 = vadd.f32 0.0, %v621
      %v623 = vpop.f32.mrf.mxu0
      %624 = vmatprep.mubr.f32.mxu0 0.0
      %625 = vmatmul.mubr.f32.gmra.mxu0 %v391
      %v626 = vpop.f32.mrf.mxu0
      %v627 = vadd.f32 0.0, %v626
      %v628 = vpop.f32.mrf.mxu0
      %629 = vmatprep.mubr.f32.mxu0 0.0
      %630 = vmatmul.mubr.f32.gmra.mxu0 %v392
      %v631 = vpop.f32.mrf.mxu0
      %v632 = vadd.f32 0.0, %v631
      %v633 = vpop.f32.mrf.mxu0
      %634 = vdwg.mxu0
      %635 = vmatprep.subr.mxu0 0.0
      %636 = vmatpush1.msra.mxu0 %v360
      %637 = vmatprep.subr.mxu0 0.0
      %638 = vmatpush1.msra.mxu0 %v359
      %639 = vmatprep.subr.mxu0 0.0
      %640 = vmatpush1.msra.mxu0 %v358
      %641 = vmatprep.subr.mxu0 0.0
      %642 = vmatpush1.msra.mxu0 %v357
      %643 = vmatprep.subr.mxu0 0.0
      %644 = vmatpush1.msra.mxu0 %v356
      %645 = vmatprep.subr.mxu0 0.0
      %646 = vmatpush1.msra.mxu0 %v355
      %647 = vmatprep.subr.mxu0 0.0
      %648 = vmatpush1.msra.mxu0 %v354
      %649 = vmatprep.subr.mxu0 0.0
      %650 = vmatpush1.msra.mxu0 %v353
      %651 = vmatprep.subr.mxu0 0.0
      %652 = vmatpush1.msra.mxu0 %v352
      %653 = vmatprep.subr.mxu0 0.0
      %654 = vmatpush1.msra.mxu0 %v351
      %655 = vmatprep.subr.mxu0 0.0
      %656 = vmatpush1.msra.mxu0 %v350
      %657 = vmatprep.subr.mxu0 0.0
      %658 = vmatpush1.msra.mxu0 %v349
      %659 = vmatprep.subr.mxu0 0.0
      %660 = vmatpush1.msra.mxu0 %v348
      %661 = vmatprep.subr.mxu0 0.0
      %662 = vmatpush1.msra.mxu0 %v347
      %663 = vmatprep.subr.mxu0 0.0
      %664 = vmatpush1.msra.mxu0 %v346
      %665 = vmatprep.subr.mxu0 0.0
      %666 = vmatpush1.msra.mxu0 %v345
      %667 = vmatprep.subr.mxu0 0.0
      %668 = vmatpush2.msra.mxu0 0.0
      %669 = vmatprep.subr.mxu0 0.0
      %670 = vmatpush2.msra.mxu0 0.0
      %671 = vmatprep.subr.mxu0 0.0
      %672 = vmatpush2.msra.mxu0 0.0
      %673 = vmatprep.subr.mxu0 0.0
      %674 = vmatpush2.msra.mxu0 0.0
      %675 = vmatprep.subr.mxu0 0.0
      %676 = vmatpush2.msra.mxu0 0.0
      %677 = vmatprep.subr.mxu0 0.0
      %678 = vmatpush2.msra.mxu0 0.0
      %679 = vmatprep.subr.mxu0 0.0
      %680 = vmatpush2.msra.mxu0 0.0
      %681 = vmatprep.subr.mxu0 0.0
      %682 = vmatpush2.msra.mxu0 0.0
      %683 = vmatprep.subr.mxu0 0.0
      %684 = vmatpush2.msra.mxu0 0.0
      %685 = vmatprep.subr.mxu0 0.0
      %686 = vmatpush2.msra.mxu0 0.0
      %687 = vmatprep.subr.mxu0 0.0
      %688 = vmatpush2.msra.mxu0 0.0
      %689 = vmatprep.subr.mxu0 0.0
      %690 = vmatpush2.msra.mxu0 0.0
      %691 = vmatprep.subr.mxu0 0.0
      %692 = vmatpush2.msra.mxu0 0.0
      %693 = vmatprep.subr.mxu0 0.0
      %694 = vmatpush2.msra.mxu0 0.0
      %695 = vmatprep.subr.mxu0 0.0
      %696 = vmatpush2.msra.mxu0 0.0
      %697 = vmatprep.subr.mxu0 0.0
      %698 = vmatpush2.msra.mxu0 0.0
      %699 = vmatprep.mubr.f32.mxu0 0.0
      %700 = vmatmul.mubr.f32.gmra.mxu0 %v313
      %v701 = vpop.f32.mrf.mxu0
      %v702 = vadd.f32 %v477, %v701
      %v703 = vpop.f32.mrf.mxu0
      %704 = vmatprep.mubr.f32.mxu0 0.0
      %705 = vmatmul.mubr.f32.gmra.mxu0 %v314
      %v706 = vpop.f32.mrf.mxu0
      %v707 = vadd.f32 %v482, %v706
      %v708 = vpop.f32.mrf.mxu0
      %709 = vmatprep.mubr.f32.mxu0 0.0
      %710 = vmatmul.mubr.f32.gmra.mxu0 %v315
      %v711 = vpop.f32.mrf.mxu0
      %v712 = vadd.f32 %v487, %v711
      %v713 = vpop.f32.mrf.mxu0
      %714 = vmatprep.mubr.f32.mxu0 0.0
      %715 = vmatmul.mubr.f32.gmra.mxu0 %v316
      %v716 = vpop.f32.mrf.mxu0
      %v717 = vadd.f32 %v492, %v716
      %v718 = vpop.f32.mrf.mxu0
      %719 = vmatprep.mubr.f32.mxu0 0.0
      %720 = vmatmul.mubr.f32.gmra.mxu0 %v317
      %v721 = vpop.f32.mrf.mxu0
      %v722 = vadd.f32 %v497, %v721
      %v723 = vpop.f32.mrf.mxu0
      %724 = vmatprep.mubr.f32.mxu0 0.0
      %725 = vmatmul.mubr.f32.gmra.mxu0 %v318
      %v726 = vpop.f32.mrf.mxu0
      %v727 = vadd.f32 %v502, %v726
      %v728 = vpop.f32.mrf.mxu0
      %729 = vmatprep.mubr.f32.mxu0 0.0
      %730 = vmatmul.mubr.f32.gmra.mxu0 %v319
      %v731 = vpop.f32.mrf.mxu0
      %v732 = vadd.f32 %v507, %v731
      %v733 = vpop.f32.mrf.mxu0
      %734 = vmatprep.mubr.f32.mxu0 0.0
      %735 = vmatmul.mubr.f32.gmra.mxu0 %v320
      %v736 = vpop.f32.mrf.mxu0
      %v737 = vadd.f32 %v512, %v736
      %v738 = vpop.f32.mrf.mxu0
      %739 = vmatprep.mubr.f32.mxu0 0.0
      %740 = vmatmul.mubr.f32.gmra.mxu0 %v321
      %v741 = vpop.f32.mrf.mxu0
      %v742 = vadd.f32 %v517, %v741
      %v743 = vpop.f32.mrf.mxu0
      %744 = vmatprep.mubr.f32.mxu0 0.0
      %745 = vmatmul.mubr.f32.gmra.mxu0 %v322
      %v746 = vpop.f32.mrf.mxu0
      %v747 = vadd.f32 %v522, %v746
      %v748 = vpop.f32.mrf.mxu0
      %749 = vmatprep.mubr.f32.mxu0 0.0
      %750 = vmatmul.mubr.f32.gmra.mxu0 %v323
      %v751 = vpop.f32.mrf.mxu0
      %v752 = vadd.f32 %v527, %v751
      %v753 = vpop.f32.mrf.mxu0
      %754 = vmatprep.mubr.f32.mxu0 0.0
      %755 = vmatmul.mubr.f32.gmra.mxu0 %v324
      %v756 = vpop.f32.mrf.mxu0
      %v757 = vadd.f32 %v532, %v756
      %v758 = vpop.f32.mrf.mxu0
      %759 = vmatprep.mubr.f32.mxu0 0.0
      %760 = vmatmul.mubr.f32.gmra.mxu0 %v325
      %v761 = vpop.f32.mrf.mxu0
      %v762 = vadd.f32 %v537, %v761
      %v763 = vpop.f32.mrf.mxu0
      %764 = vmatprep.mubr.f32.mxu0 0.0
      %765 = vmatmul.mubr.f32.gmra.mxu0 %v326
      %v766 = vpop.f32.mrf.mxu0
      %v767 = vadd.f32 %v542, %v766
      %v768 = vpop.f32.mrf.mxu0
      %769 = vmatprep.mubr.f32.mxu0 0.0
      %770 = vmatmul.mubr.f32.gmra.mxu0 %v327
      %v771 = vpop.f32.mrf.mxu0
      %v772 = vadd.f32 %v547, %v771
      %v773 = vpop.f32.mrf.mxu0
      %774 = vmatprep.mubr.f32.mxu0 0.0
      %775 = vmatmul.mubr.f32.gmra.mxu0 %v328
      %v776 = vpop.f32.mrf.mxu0
      %v777 = vadd.f32 %v552, %v776
      %v778 = vpop.f32.mrf.mxu0
      %779 = vmatprep.mubr.f32.mxu0 0.0
      %780 = vmatmul.mubr.f32.gmra.mxu0 %v329
      %v781 = vpop.f32.mrf.mxu0
      %v782 = vadd.f32 %v557, %v781
      %v783 = vpop.f32.mrf.mxu0
      %784 = vmatprep.mubr.f32.mxu0 0.0
      %785 = vmatmul.mubr.f32.gmra.mxu0 %v330
      %v786 = vpop.f32.mrf.mxu0
      %v787 = vadd.f32 %v562, %v786
      %v788 = vpop.f32.mrf.mxu0
      %789 = vmatprep.mubr.f32.mxu0 0.0
      %790 = vmatmul.mubr.f32.gmra.mxu0 %v331
      %v791 = vpop.f32.mrf.mxu0
      %v792 = vadd.f32 %v567, %v791
      %v793 = vpop.f32.mrf.mxu0
      %794 = vmatprep.mubr.f32.mxu0 0.0
      %795 = vmatmul.mubr.f32.gmra.mxu0 %v332
      %v796 = vpop.f32.mrf.mxu0
      %v797 = vadd.f32 %v572, %v796
      %v798 = vpop.f32.mrf.mxu0
      %799 = vmatprep.mubr.f32.mxu0 0.0
      %800 = vmatmul.mubr.f32.gmra.mxu0 %v333
      %v801 = vpop.f32.mrf.mxu0
      %v802 = vadd.f32 %v577, %v801
      %v803 = vpop.f32.mrf.mxu0
      %804 = vmatprep.mubr.f32.mxu0 0.0
      %805 = vmatmul.mubr.f32.gmra.mxu0 %v334
      %v806 = vpop.f32.mrf.mxu0
      %v807 = vadd.f32 %v582, %v806
      %v808 = vpop.f32.mrf.mxu0
      %809 = vmatprep.mubr.f32.mxu0 0.0
      %810 = vmatmul.mubr.f32.gmra.mxu0 %v335
      %v811 = vpop.f32.mrf.mxu0
      %v812 = vadd.f32 %v587, %v811
      %v813 = vpop.f32.mrf.mxu0
      %814 = vmatprep.mubr.f32.mxu0 0.0
      %815 = vmatmul.mubr.f32.gmra.mxu0 %v336
      %v816 = vpop.f32.mrf.mxu0
      %v817 = vadd.f32 %v592, %v816
      %v818 = vpop.f32.mrf.mxu0
      %819 = vmatprep.mubr.f32.mxu0 0.0
      %820 = vmatmul.mubr.f32.gmra.mxu0 %v337
      %v821 = vpop.f32.mrf.mxu0
      %v822 = vadd.f32 %v597, %v821
      %v823 = vpop.f32.mrf.mxu0
      %824 = vmatprep.mubr.f32.mxu0 0.0
      %825 = vmatmul.mubr.f32.gmra.mxu0 %v338
      %v826 = vpop.f32.mrf.mxu0
      %v827 = vadd.f32 %v602, %v826
      %v828 = vpop.f32.mrf.mxu0
      %829 = vmatprep.mubr.f32.mxu0 0.0
      %830 = vmatmul.mubr.f32.gmra.mxu0 %v339
      %v831 = vpop.f32.mrf.mxu0
      %v832 = vadd.f32 %v607, %v831
      %v833 = vpop.f32.mrf.mxu0
      %834 = vmatprep.mubr.f32.mxu0 0.0
      %835 = vmatmul.mubr.f32.gmra.mxu0 %v340
      %v836 = vpop.f32.mrf.mxu0
      %v837 = vadd.f32 %v612, %v836
      %v838 = vpop.f32.mrf.mxu0
      %839 = vmatprep.mubr.f32.mxu0 0.0
      %840 = vmatmul.mubr.f32.gmra.mxu0 %v341
      %v841 = vpop.f32.mrf.mxu0
      %v842 = vadd.f32 %v617, %v841
      %v843 = vpop.f32.mrf.mxu0
      %844 = vmatprep.mubr.f32.mxu0 0.0
      %845 = vmatmul.mubr.f32.gmra.mxu0 %v342
      %v846 = vpop.f32.mrf.mxu0
      %v847 = vadd.f32 %v622, %v846
      %v848 = vpop.f32.mrf.mxu0
      %849 = vmatprep.mubr.f32.mxu0 0.0
      %850 = vmatmul.mubr.f32.gmra.mxu0 %v343
      %v851 = vpop.f32.mrf.mxu0
      %v852 = vadd.f32 %v627, %v851
      %v853 = vpop.f32.mrf.mxu0
      %854 = vmatprep.mubr.f32.mxu0 0.0
      %855 = vmatmul.mubr.f32.gmra.mxu0 %v344
      %v856 = vpop.f32.mrf.mxu0
      %v857 = vadd.f32 %v632, %v856
      %v858 = vpop.f32.mrf.mxu0
      %859 = vdwg.mxu0
      %v860 = vld [vmem:[#allocation2 + $0x2] sm:$0xff]
      %v861 = vld [vmem:[#allocation2 + $0xa] sm:$0xff]
      %v862 = vld [vmem:[#allocation2 + $0x1a] sm:$0xff]
      %v863 = vld [vmem:[#allocation2 + $0x22] sm:$0xff]
      %v864 = vld [vmem:[#allocation2 + $0x32] sm:$0xff]
      %v865 = vld [vmem:[#allocation2 + $0x3a] sm:$0xff]
      %v866 = vld [vmem:[#allocation2 + $0x4a] sm:$0xff]
      %v867 = vld [vmem:[#allocation2 + $0x52] sm:$0xff]
      %v868 = vld [vmem:[#allocation2 + $0x62] sm:$0xff]
      %v869 = vld [vmem:[#allocation2 + $0x6a] sm:$0xff]
      %v870 = vld [vmem:[#allocation2 + $0x7a] sm:$0xff]
      %v871 = vld [vmem:[#allocation2 + $0x82] sm:$0xff]
      %v872 = vld [vmem:[#allocation2 + $0x92] sm:$0xff]
      %v873 = vld [vmem:[#allocation2 + $0x9a] sm:$0xff]
      %v874 = vld [vmem:[#allocation2 + $0xaa] sm:$0xff]
      %v875 = vld [vmem:[#allocation2 + $0xb2] sm:$0xff]
      %v876 = vld [vmem:[#allocation2 + $0xc2] sm:$0xff]
      %v877 = vld [vmem:[#allocation2 + $0xca] sm:$0xff]
      %v878 = vld [vmem:[#allocation2 + $0xda] sm:$0xff]
      %v879 = vld [vmem:[#allocation2 + $0xe2] sm:$0xff]
      %v880 = vld [vmem:[#allocation2 + $0xf2] sm:$0xff]
      %v881 = vld [vmem:[#allocation2 + $0xfa] sm:$0xff]
      %v882 = vld [vmem:[#allocation2 + $0x10a] sm:$0xff]
      %v883 = vld [vmem:[#allocation2 + $0x112] sm:$0xff]
      %v884 = vld [vmem:[#allocation2 + $0x122] sm:$0xff]
      %v885 = vld [vmem:[#allocation2 + $0x12a] sm:$0xff]
      %v886 = vld [vmem:[#allocation2 + $0x13a] sm:$0xff]
      %v887 = vld [vmem:[#allocation2 + $0x142] sm:$0xff]
      %v888 = vld [vmem:[#allocation2 + $0x152] sm:$0xff]
      %v889 = vld [vmem:[#allocation2 + $0x15a] sm:$0xff]
      %v890 = vld [vmem:[#allocation2 + $0x16a] sm:$0xff]
      %v891 = vld [vmem:[#allocation2 + $0x172] sm:$0xff]
      %s892 = scalar_lea.vmem %s1, 256
      %v893 = vld [vmem:[%s892] sm:$0xff]
      %v894 = vld [vmem:[%s892 + $0x8] sm:$0xff]
      %v895 = vld [vmem:[%s892 + $0x10] sm:$0xff]
      %v896 = vld [vmem:[%s892 + $0x18] sm:$0xff]
      %v897 = vld [vmem:[%s892 + $0x20] sm:$0xff]
      %v898 = vld [vmem:[%s892 + $0x28] sm:$0xff]
      %v899 = vld [vmem:[%s892 + $0x30] sm:$0xff]
      %v900 = vld [vmem:[%s892 + $0x38] sm:$0xff]
      %v901 = vld [vmem:[%s892 + $0x40] sm:$0xff]
      %v902 = vld [vmem:[%s892 + $0x48] sm:$0xff]
      %v903 = vld [vmem:[%s892 + $0x50] sm:$0xff]
      %v904 = vld [vmem:[%s892 + $0x58] sm:$0xff]
      %v905 = vld [vmem:[%s892 + $0x60] sm:$0xff]
      %v906 = vld [vmem:[%s892 + $0x68] sm:$0xff]
      %v907 = vld [vmem:[%s892 + $0x70] sm:$0xff]
      %v908 = vld [vmem:[%s892 + $0x78] sm:$0xff]
      %909 = vmatprep.subr.mxu0 0.0
      %910 = vmatpush1.msra.mxu0 %v908
      %911 = vmatprep.subr.mxu0 0.0
      %912 = vmatpush1.msra.mxu0 %v907
      %913 = vmatprep.subr.mxu0 0.0
      %914 = vmatpush1.msra.mxu0 %v906
      %915 = vmatprep.subr.mxu0 0.0
      %916 = vmatpush1.msra.mxu0 %v905
      %917 = vmatprep.subr.mxu0 0.0
      %918 = vmatpush1.msra.mxu0 %v904
      %919 = vmatprep.subr.mxu0 0.0
      %920 = vmatpush1.msra.mxu0 %v903
      %921 = vmatprep.subr.mxu0 0.0
      %922 = vmatpush1.msra.mxu0 %v902
      %923 = vmatprep.subr.mxu0 0.0
      %924 = vmatpush1.msra.mxu0 %v901
      %925 = vmatprep.subr.mxu0 0.0
      %926 = vmatpush1.msra.mxu0 %v900
      %927 = vmatprep.subr.mxu0 0.0
      %928 = vmatpush1.msra.mxu0 %v899
      %929 = vmatprep.subr.mxu0 0.0
      %930 = vmatpush1.msra.mxu0 %v898
      %931 = vmatprep.subr.mxu0 0.0
      %932 = vmatpush1.msra.mxu0 %v897
      %933 = vmatprep.subr.mxu0 0.0
      %934 = vmatpush1.msra.mxu0 %v896
      %935 = vmatprep.subr.mxu0 0.0
      %936 = vmatpush1.msra.mxu0 %v895
      %937 = vmatprep.subr.mxu0 0.0
      %938 = vmatpush1.msra.mxu0 %v894
      %939 = vmatprep.subr.mxu0 0.0
      %940 = vmatpush1.msra.mxu0 %v893
      %941 = vmatprep.subr.mxu0 0.0
      %942 = vmatpush2.msra.mxu0 0.0
      %943 = vmatprep.subr.mxu0 0.0
      %944 = vmatpush2.msra.mxu0 0.0
      %945 = vmatprep.subr.mxu0 0.0
      %946 = vmatpush2.msra.mxu0 0.0
      %947 = vmatprep.subr.mxu0 0.0
      %948 = vmatpush2.msra.mxu0 0.0
      %949 = vmatprep.subr.mxu0 0.0
      %950 = vmatpush2.msra.mxu0 0.0
      %951 = vmatprep.subr.mxu0 0.0
      %952 = vmatpush2.msra.mxu0 0.0
      %953 = vmatprep.subr.mxu0 0.0
      %954 = vmatpush2.msra.mxu0 0.0
      %955 = vmatprep.subr.mxu0 0.0
      %956 = vmatpush2.msra.mxu0 0.0
      %957 = vmatprep.subr.mxu0 0.0
      %958 = vmatpush2.msra.mxu0 0.0
      %959 = vmatprep.subr.mxu0 0.0
      %960 = vmatpush2.msra.mxu0 0.0
      %961 = vmatprep.subr.mxu0 0.0
      %962 = vmatpush2.msra.mxu0 0.0
      %963 = vmatprep.subr.mxu0 0.0
      %964 = vmatpush2.msra.mxu0 0.0
      %965 = vmatprep.subr.mxu0 0.0
      %966 = vmatpush2.msra.mxu0 0.0
      %967 = vmatprep.subr.mxu0 0.0
      %968 = vmatpush2.msra.mxu0 0.0
      %969 = vmatprep.subr.mxu0 0.0
      %970 = vmatpush2.msra.mxu0 0.0
      %971 = vmatprep.subr.mxu0 0.0
      %972 = vmatpush2.msra.mxu0 0.0
      %973 = vmatprep.mubr.f32.mxu0 0.0
      %974 = vmatmul.mubr.f32.gmra.mxu0 %v860
      %v975 = vpop.f32.mrf.mxu0
      %v976 = vadd.f32 0.0, %v975
      %v977 = vpop.f32.mrf.mxu0
      %978 = vmatprep.mubr.f32.mxu0 0.0
      %979 = vmatmul.mubr.f32.gmra.mxu0 %v861
      %v980 = vpop.f32.mrf.mxu0
      %v981 = vadd.f32 0.0, %v980
      %v982 = vpop.f32.mrf.mxu0
      %983 = vmatprep.mubr.f32.mxu0 0.0
      %984 = vmatmul.mubr.f32.gmra.mxu0 %v862
      %v985 = vpop.f32.mrf.mxu0
      %v986 = vadd.f32 0.0, %v985
      %v987 = vpop.f32.mrf.mxu0
      %988 = vmatprep.mubr.f32.mxu0 0.0
      %989 = vmatmul.mubr.f32.gmra.mxu0 %v863
      %v990 = vpop.f32.mrf.mxu0
      %v991 = vadd.f32 0.0, %v990
      %v992 = vpop.f32.mrf.mxu0
      %993 = vmatprep.mubr.f32.mxu0 0.0
      %994 = vmatmul.mubr.f32.gmra.mxu0 %v864
      %v995 = vpop.f32.mrf.mxu0
      %v996 = vadd.f32 0.0, %v995
      %v997 = vpop.f32.mrf.mxu0
      %998 = vmatprep.mubr.f32.mxu0 0.0
      %999 = vmatmul.mubr.f32.gmra.mxu0 %v865
      %v1000 = vpop.f32.mrf.mxu0
      %v1001 = vadd.f32 0.0, %v1000
      %v1002 = vpop.f32.mrf.mxu0
      %1003 = vmatprep.mubr.f32.mxu0 0.0
      %1004 = vmatmul.mubr.f32.gmra.mxu0 %v866
      %v1005 = vpop.f32.mrf.mxu0
      %v1006 = vadd.f32 0.0, %v1005
      %v1007 = vpop.f32.mrf.mxu0
      %1008 = vmatprep.mubr.f32.mxu0 0.0
      %1009 = vmatmul.mubr.f32.gmra.mxu0 %v867
      %v1010 = vpop.f32.mrf.mxu0
      %v1011 = vadd.f32 0.0, %v1010
      %v1012 = vpop.f32.mrf.mxu0
      %1013 = vmatprep.mubr.f32.mxu0 0.0
      %1014 = vmatmul.mubr.f32.gmra.mxu0 %v868
      %v1015 = vpop.f32.mrf.mxu0
      %v1016 = vadd.f32 0.0, %v1015
      %v1017 = vpop.f32.mrf.mxu0
      %1018 = vmatprep.mubr.f32.mxu0 0.0
      %1019 = vmatmul.mubr.f32.gmra.mxu0 %v869
      %v1020 = vpop.f32.mrf.mxu0
      %v1021 = vadd.f32 0.0, %v1020
      %v1022 = vpop.f32.mrf.mxu0
      %1023 = vmatprep.mubr.f32.mxu0 0.0
      %1024 = vmatmul.mubr.f32.gmra.mxu0 %v870
      %v1025 = vpop.f32.mrf.mxu0
      %v1026 = vadd.f32 0.0, %v1025
      %v1027 = vpop.f32.mrf.mxu0
      %1028 = vmatprep.mubr.f32.mxu0 0.0
      %1029 = vmatmul.mubr.f32.gmra.mxu0 %v871
      %v1030 = vpop.f32.mrf.mxu0
      %v1031 = vadd.f32 0.0, %v1030
      %v1032 = vpop.f32.mrf.mxu0
      %1033 = vmatprep.mubr.f32.mxu0 0.0
      %1034 = vmatmul.mubr.f32.gmra.mxu0 %v872
      %v1035 = vpop.f32.mrf.mxu0
      %v1036 = vadd.f32 0.0, %v1035
      %v1037 = vpop.f32.mrf.mxu0
      %1038 = vmatprep.mubr.f32.mxu0 0.0
      %1039 = vmatmul.mubr.f32.gmra.mxu0 %v873
      %v1040 = vpop.f32.mrf.mxu0
      %v1041 = vadd.f32 0.0, %v1040
      %v1042 = vpop.f32.mrf.mxu0
      %1043 = vmatprep.mubr.f32.mxu0 0.0
      %1044 = vmatmul.mubr.f32.gmra.mxu0 %v874
      %v1045 = vpop.f32.mrf.mxu0
      %v1046 = vadd.f32 0.0, %v1045
      %v1047 = vpop.f32.mrf.mxu0
      %1048 = vmatprep.mubr.f32.mxu0 0.0
      %1049 = vmatmul.mubr.f32.gmra.mxu0 %v875
      %v1050 = vpop.f32.mrf.mxu0
      %v1051 = vadd.f32 0.0, %v1050
      %v1052 = vpop.f32.mrf.mxu0
      %1053 = vmatprep.mubr.f32.mxu0 0.0
      %1054 = vmatmul.mubr.f32.gmra.mxu0 %v876
      %v1055 = vpop.f32.mrf.mxu0
      %v1056 = vadd.f32 0.0, %v1055
      %v1057 = vpop.f32.mrf.mxu0
      %1058 = vmatprep.mubr.f32.mxu0 0.0
      %1059 = vmatmul.mubr.f32.gmra.mxu0 %v877
      %v1060 = vpop.f32.mrf.mxu0
      %v1061 = vadd.f32 0.0, %v1060
      %v1062 = vpop.f32.mrf.mxu0
      %1063 = vmatprep.mubr.f32.mxu0 0.0
      %1064 = vmatmul.mubr.f32.gmra.mxu0 %v878
      %v1065 = vpop.f32.mrf.mxu0
      %v1066 = vadd.f32 0.0, %v1065
      %v1067 = vpop.f32.mrf.mxu0
      %1068 = vmatprep.mubr.f32.mxu0 0.0
      %1069 = vmatmul.mubr.f32.gmra.mxu0 %v879
      %v1070 = vpop.f32.mrf.mxu0
      %v1071 = vadd.f32 0.0, %v1070
      %v1072 = vpop.f32.mrf.mxu0
      %1073 = vmatprep.mubr.f32.mxu0 0.0
      %1074 = vmatmul.mubr.f32.gmra.mxu0 %v880
      %v1075 = vpop.f32.mrf.mxu0
      %v1076 = vadd.f32 0.0, %v1075
      %v1077 = vpop.f32.mrf.mxu0
      %1078 = vmatprep.mubr.f32.mxu0 0.0
      %1079 = vmatmul.mubr.f32.gmra.mxu0 %v881
      %v1080 = vpop.f32.mrf.mxu0
      %v1081 = vadd.f32 0.0, %v1080
      %v1082 = vpop.f32.mrf.mxu0
      %1083 = vmatprep.mubr.f32.mxu0 0.0
      %1084 = vmatmul.mubr.f32.gmra.mxu0 %v882
      %v1085 = vpop.f32.mrf.mxu0
      %v1086 = vadd.f32 0.0, %v1085
      %v1087 = vpop.f32.mrf.mxu0
      %1088 = vmatprep.mubr.f32.mxu0 0.0
      %1089 = vmatmul.mubr.f32.gmra.mxu0 %v883
      %v1090 = vpop.f32.mrf.mxu0
      %v1091 = vadd.f32 0.0, %v1090
      %v1092 = vpop.f32.mrf.mxu0
      %1093 = vmatprep.mubr.f32.mxu0 0.0
      %1094 = vmatmul.mubr.f32.gmra.mxu0 %v884
      %v1095 = vpop.f32.mrf.mxu0
      %v1096 = vadd.f32 0.0, %v1095
      %v1097 = vpop.f32.mrf.mxu0
      %1098 = vmatprep.mubr.f32.mxu0 0.0
      %1099 = vmatmul.mubr.f32.gmra.mxu0 %v885
      %v1100 = vpop.f32.mrf.mxu0
      %v1101 = vadd.f32 0.0, %v1100
      %v1102 = vpop.f32.mrf.mxu0
      %1103 = vmatprep.mubr.f32.mxu0 0.0
      %1104 = vmatmul.mubr.f32.gmra.mxu0 %v886
      %v1105 = vpop.f32.mrf.mxu0
      %v1106 = vadd.f32 0.0, %v1105
      %v1107 = vpop.f32.mrf.mxu0
      %1108 = vmatprep.mubr.f32.mxu0 0.0
      %1109 = vmatmul.mubr.f32.gmra.mxu0 %v887
      %v1110 = vpop.f32.mrf.mxu0
      %v1111 = vadd.f32 0.0, %v1110
      %v1112 = vpop.f32.mrf.mxu0
      %1113 = vmatprep.mubr.f32.mxu0 0.0
      %1114 = vmatmul.mubr.f32.gmra.mxu0 %v888
      %v1115 = vpop.f32.mrf.mxu0
      %v1116 = vadd.f32 0.0, %v1115
      %v1117 = vpop.f32.mrf.mxu0
      %1118 = vmatprep.mubr.f32.mxu0 0.0
      %1119 = vmatmul.mubr.f32.gmra.mxu0 %v889
      %v1120 = vpop.f32.mrf.mxu0
      %v1121 = vadd.f32 0.0, %v1120
      %v1122 = vpop.f32.mrf.mxu0
      %1123 = vmatprep.mubr.f32.mxu0 0.0
      %1124 = vmatmul.mubr.f32.gmra.mxu0 %v890
      %v1125 = vpop.f32.mrf.mxu0
      %v1126 = vadd.f32 0.0, %v1125
      %v1127 = vpop.f32.mrf.mxu0
      %1128 = vmatprep.mubr.f32.mxu0 0.0
      %1129 = vmatmul.mubr.f32.gmra.mxu0 %v891
      %v1130 = vpop.f32.mrf.mxu0
      %v1131 = vadd.f32 0.0, %v1130
      %v1132 = vpop.f32.mrf.mxu0
      %1133 = vdwg.mxu0
      %v1134 = vadd.f32 %v702, %v976
      %v1135 = vadd.f32 %v707, %v981
      %v1136 = vadd.f32 %v712, %v986
      %v1137 = vadd.f32 %v717, %v991
      %v1138 = vadd.f32 %v722, %v996
      %v1139 = vadd.f32 %v727, %v1001
      %v1140 = vadd.f32 %v732, %v1006
      %v1141 = vadd.f32 %v737, %v1011
      %v1142 = vadd.f32 %v742, %v1016
      %v1143 = vadd.f32 %v747, %v1021
      %v1144 = vadd.f32 %v752, %v1026
      %v1145 = vadd.f32 %v757, %v1031
      %v1146 = vadd.f32 %v762, %v1036
      %v1147 = vadd.f32 %v767, %v1041
      %v1148 = vadd.f32 %v772, %v1046
      %v1149 = vadd.f32 %v777, %v1051
      %v1150 = vadd.f32 %v782, %v1056
      %v1151 = vadd.f32 %v787, %v1061
      %v1152 = vadd.f32 %v792, %v1066
      %v1153 = vadd.f32 %v797, %v1071
      %v1154 = vadd.f32 %v802, %v1076
      %v1155 = vadd.f32 %v807, %v1081
      %v1156 = vadd.f32 %v812, %v1086
      %v1157 = vadd.f32 %v817, %v1091
      %v1158 = vadd.f32 %v822, %v1096
      %v1159 = vadd.f32 %v827, %v1101
      %v1160 = vadd.f32 %v832, %v1106
      %v1161 = vadd.f32 %v837, %v1111
      %v1162 = vadd.f32 %v842, %v1116
      %v1163 = vadd.f32 %v847, %v1121
      %v1164 = vadd.f32 %v852, %v1126
      %v1165 = vadd.f32 %v857, %v1131
      %v1166 = vld [vmem:[%s203] sm:$0xff]
      %v1167 = vld [vmem:[%s203 + $0x8] sm:$0xff]
      %v1168 = vld [vmem:[%s203 + $0x18] sm:$0xff]
      %v1169 = vld [vmem:[%s203 + $0x20] sm:$0xff]
      %v1170 = vld [vmem:[%s203 + $0x30] sm:$0xff]
      %v1171 = vld [vmem:[%s203 + $0x38] sm:$0xff]
      %v1172 = vld [vmem:[%s203 + $0x48] sm:$0xff]
      %v1173 = vld [vmem:[%s203 + $0x50] sm:$0xff]
      %v1174 = vld [vmem:[%s203 + $0x60] sm:$0xff]
      %v1175 = vld [vmem:[%s203 + $0x68] sm:$0xff]
      %v1176 = vld [vmem:[%s203 + $0x78] sm:$0xff]
      %v1177 = vld [vmem:[%s203 + $0x80] sm:$0xff]
      %v1178 = vld [vmem:[%s203 + $0x90] sm:$0xff]
      %v1179 = vld [vmem:[%s203 + $0x98] sm:$0xff]
      %v1180 = vld [vmem:[%s203 + $0xa8] sm:$0xff]
      %v1181 = vld [vmem:[%s203 + $0xb0] sm:$0xff]
      %v1182 = vld [vmem:[%s203 + $0xc0] sm:$0xff]
      %v1183 = vld [vmem:[%s203 + $0xc8] sm:$0xff]
      %v1184 = vld [vmem:[%s203 + $0xd8] sm:$0xff]
      %v1185 = vld [vmem:[%s203 + $0xe0] sm:$0xff]
      %v1186 = vld [vmem:[%s203 + $0xf0] sm:$0xff]
      %v1187 = vld [vmem:[%s203 + $0xf8] sm:$0xff]
      %v1188 = vld [vmem:[%s203 + $0x108] sm:$0xff]
      %v1189 = vld [vmem:[%s203 + $0x110] sm:$0xff]
      %v1190 = vld [vmem:[%s203 + $0x120] sm:$0xff]
      %v1191 = vld [vmem:[%s203 + $0x128] sm:$0xff]
      %v1192 = vld [vmem:[%s203 + $0x138] sm:$0xff]
      %v1193 = vld [vmem:[%s203 + $0x140] sm:$0xff]
      %v1194 = vld [vmem:[%s203 + $0x150] sm:$0xff]
      %v1195 = vld [vmem:[%s203 + $0x158] sm:$0xff]
      %v1196 = vld [vmem:[%s203 + $0x168] sm:$0xff]
      %v1197 = vld [vmem:[%s203 + $0x170] sm:$0xff]
      %s1198 = scalar_lea.vmem %s1, 384
      %v1199 = vld [vmem:[%s1198] sm:$0xff]
      %v1200 = vld [vmem:[%s1198 + $0x8] sm:$0xff]
      %v1201 = vld [vmem:[%s1198 + $0x10] sm:$0xff]
      %v1202 = vld [vmem:[%s1198 + $0x18] sm:$0xff]
      %v1203 = vld [vmem:[%s1198 + $0x20] sm:$0xff]
      %v1204 = vld [vmem:[%s1198 + $0x28] sm:$0xff]
      %v1205 = vld [vmem:[%s1198 + $0x30] sm:$0xff]
      %v1206 = vld [vmem:[%s1198 + $0x38] sm:$0xff]
      %v1207 = vld [vmem:[%s1198 + $0x40] sm:$0xff]
      %v1208 = vld [vmem:[%s1198 + $0x48] sm:$0xff]
      %v1209 = vld [vmem:[%s1198 + $0x50] sm:$0xff]
      %v1210 = vld [vmem:[%s1198 + $0x58] sm:$0xff]
      %v1211 = vld [vmem:[%s1198 + $0x60] sm:$0xff]
      %v1212 = vld [vmem:[%s1198 + $0x68] sm:$0xff]
      %v1213 = vld [vmem:[%s1198 + $0x70] sm:$0xff]
      %v1214 = vld [vmem:[%s1198 + $0x78] sm:$0xff]
      %1215 = vmatprep.subr.mxu0 0.0
      %1216 = vmatpush1.msra.mxu0 %v1214
      %1217 = vmatprep.subr.mxu0 0.0
      %1218 = vmatpush1.msra.mxu0 %v1213
      %1219 = vmatprep.subr.mxu0 0.0
      %1220 = vmatpush1.msra.mxu0 %v1212
      %1221 = vmatprep.subr.mxu0 0.0
      %1222 = vmatpush1.msra.mxu0 %v1211
      %1223 = vmatprep.subr.mxu0 0.0
      %1224 = vmatpush1.msra.mxu0 %v1210
      %1225 = vmatprep.subr.mxu0 0.0
      %1226 = vmatpush1.msra.mxu0 %v1209
      %1227 = vmatprep.subr.mxu0 0.0
      %1228 = vmatpush1.msra.mxu0 %v1208
      %1229 = vmatprep.subr.mxu0 0.0
      %1230 = vmatpush1.msra.mxu0 %v1207
      %1231 = vmatprep.subr.mxu0 0.0
      %1232 = vmatpush1.msra.mxu0 %v1206
      %1233 = vmatprep.subr.mxu0 0.0
      %1234 = vmatpush1.msra.mxu0 %v1205
      %1235 = vmatprep.subr.mxu0 0.0
      %1236 = vmatpush1.msra.mxu0 %v1204
      %1237 = vmatprep.subr.mxu0 0.0
      %1238 = vmatpush1.msra.mxu0 %v1203
      %1239 = vmatprep.subr.mxu0 0.0
      %1240 = vmatpush1.msra.mxu0 %v1202
      %1241 = vmatprep.subr.mxu0 0.0
      %1242 = vmatpush1.msra.mxu0 %v1201
      %1243 = vmatprep.subr.mxu0 0.0
      %1244 = vmatpush1.msra.mxu0 %v1200
      %1245 = vmatprep.subr.mxu0 0.0
      %1246 = vmatpush1.msra.mxu0 %v1199
      %1247 = vmatprep.subr.mxu0 0.0
      %1248 = vmatpush2.msra.mxu0 0.0
      %1249 = vmatprep.subr.mxu0 0.0
      %1250 = vmatpush2.msra.mxu0 0.0
      %1251 = vmatprep.subr.mxu0 0.0
      %1252 = vmatpush2.msra.mxu0 0.0
      %1253 = vmatprep.subr.mxu0 0.0
      %1254 = vmatpush2.msra.mxu0 0.0
      %1255 = vmatprep.subr.mxu0 0.0
      %1256 = vmatpush2.msra.mxu0 0.0
      %1257 = vmatprep.subr.mxu0 0.0
      %1258 = vmatpush2.msra.mxu0 0.0
      %1259 = vmatprep.subr.mxu0 0.0
      %1260 = vmatpush2.msra.mxu0 0.0
      %1261 = vmatprep.subr.mxu0 0.0
      %1262 = vmatpush2.msra.mxu0 0.0
      %1263 = vmatprep.subr.mxu0 0.0
      %1264 = vmatpush2.msra.mxu0 0.0
      %1265 = vmatprep.subr.mxu0 0.0
      %1266 = vmatpush2.msra.mxu0 0.0
      %1267 = vmatprep.subr.mxu0 0.0
      %1268 = vmatpush2.msra.mxu0 0.0
      %1269 = vmatprep.subr.mxu0 0.0
      %1270 = vmatpush2.msra.mxu0 0.0
      %1271 = vmatprep.subr.mxu0 0.0
      %1272 = vmatpush2.msra.mxu0 0.0
      %1273 = vmatprep.subr.mxu0 0.0
      %1274 = vmatpush2.msra.mxu0 0.0
      %1275 = vmatprep.subr.mxu0 0.0
      %1276 = vmatpush2.msra.mxu0 0.0
      %1277 = vmatprep.subr.mxu0 0.0
      %1278 = vmatpush2.msra.mxu0 0.0
      %1279 = vmatprep.mubr.f32.mxu0 0.0
      %1280 = vmatmul.mubr.f32.gmra.mxu0 %v1166
      %v1281 = vpop.f32.mrf.mxu0
      %v1282 = vadd.f32 0.0, %v1281
      %v1283 = vpop.f32.mrf.mxu0
      %1284 = vmatprep.mubr.f32.mxu0 0.0
      %1285 = vmatmul.mubr.f32.gmra.mxu0 %v1167
      %v1286 = vpop.f32.mrf.mxu0
      %v1287 = vadd.f32 0.0, %v1286
      %v1288 = vpop.f32.mrf.mxu0
      %1289 = vmatprep.mubr.f32.mxu0 0.0
      %1290 = vmatmul.mubr.f32.gmra.mxu0 %v1168
      %v1291 = vpop.f32.mrf.mxu0
      %v1292 = vadd.f32 0.0, %v1291
      %v1293 = vpop.f32.mrf.mxu0
      %1294 = vmatprep.mubr.f32.mxu0 0.0
      %1295 = vmatmul.mubr.f32.gmra.mxu0 %v1169
      %v1296 = vpop.f32.mrf.mxu0
      %v1297 = vadd.f32 0.0, %v1296
      %v1298 = vpop.f32.mrf.mxu0
      %1299 = vmatprep.mubr.f32.mxu0 0.0
      %1300 = vmatmul.mubr.f32.gmra.mxu0 %v1170
      %v1301 = vpop.f32.mrf.mxu0
      %v1302 = vadd.f32 0.0, %v1301
      %v1303 = vpop.f32.mrf.mxu0
      %1304 = vmatprep.mubr.f32.mxu0 0.0
      %1305 = vmatmul.mubr.f32.gmra.mxu0 %v1171
      %v1306 = vpop.f32.mrf.mxu0
      %v1307 = vadd.f32 0.0, %v1306
      %v1308 = vpop.f32.mrf.mxu0
      %1309 = vmatprep.mubr.f32.mxu0 0.0
      %1310 = vmatmul.mubr.f32.gmra.mxu0 %v1172
      %v1311 = vpop.f32.mrf.mxu0
      %v1312 = vadd.f32 0.0, %v1311
      %v1313 = vpop.f32.mrf.mxu0
      %1314 = vmatprep.mubr.f32.mxu0 0.0
      %1315 = vmatmul.mubr.f32.gmra.mxu0 %v1173
      %v1316 = vpop.f32.mrf.mxu0
      %v1317 = vadd.f32 0.0, %v1316
      %v1318 = vpop.f32.mrf.mxu0
      %1319 = vmatprep.mubr.f32.mxu0 0.0
      %1320 = vmatmul.mubr.f32.gmra.mxu0 %v1174
      %v1321 = vpop.f32.mrf.mxu0
      %v1322 = vadd.f32 0.0, %v1321
      %v1323 = vpop.f32.mrf.mxu0
      %1324 = vmatprep.mubr.f32.mxu0 0.0
      %1325 = vmatmul.mubr.f32.gmra.mxu0 %v1175
      %v1326 = vpop.f32.mrf.mxu0
      %v1327 = vadd.f32 0.0, %v1326
      %v1328 = vpop.f32.mrf.mxu0
      %1329 = vmatprep.mubr.f32.mxu0 0.0
      %1330 = vmatmul.mubr.f32.gmra.mxu0 %v1176
      %v1331 = vpop.f32.mrf.mxu0
      %v1332 = vadd.f32 0.0, %v1331
      %v1333 = vpop.f32.mrf.mxu0
      %1334 = vmatprep.mubr.f32.mxu0 0.0
      %1335 = vmatmul.mubr.f32.gmra.mxu0 %v1177
      %v1336 = vpop.f32.mrf.mxu0
      %v1337 = vadd.f32 0.0, %v1336
      %v1338 = vpop.f32.mrf.mxu0
      %1339 = vmatprep.mubr.f32.mxu0 0.0
      %1340 = vmatmul.mubr.f32.gmra.mxu0 %v1178
      %v1341 = vpop.f32.mrf.mxu0
      %v1342 = vadd.f32 0.0, %v1341
      %v1343 = vpop.f32.mrf.mxu0
      %1344 = vmatprep.mubr.f32.mxu0 0.0
      %1345 = vmatmul.mubr.f32.gmra.mxu0 %v1179
      %v1346 = vpop.f32.mrf.mxu0
      %v1347 = vadd.f32 0.0, %v1346
      %v1348 = vpop.f32.mrf.mxu0
      %1349 = vmatprep.mubr.f32.mxu0 0.0
      %1350 = vmatmul.mubr.f32.gmra.mxu0 %v1180
      %v1351 = vpop.f32.mrf.mxu0
      %v1352 = vadd.f32 0.0, %v1351
      %v1353 = vpop.f32.mrf.mxu0
      %1354 = vmatprep.mubr.f32.mxu0 0.0
      %1355 = vmatmul.mubr.f32.gmra.mxu0 %v1181
      %v1356 = vpop.f32.mrf.mxu0
      %v1357 = vadd.f32 0.0, %v1356
      %v1358 = vpop.f32.mrf.mxu0
      %1359 = vmatprep.mubr.f32.mxu0 0.0
      %1360 = vmatmul.mubr.f32.gmra.mxu0 %v1182
      %v1361 = vpop.f32.mrf.mxu0
      %v1362 = vadd.f32 0.0, %v1361
      %v1363 = vpop.f32.mrf.mxu0
      %1364 = vmatprep.mubr.f32.mxu0 0.0
      %1365 = vmatmul.mubr.f32.gmra.mxu0 %v1183
      %v1366 = vpop.f32.mrf.mxu0
      %v1367 = vadd.f32 0.0, %v1366
      %v1368 = vpop.f32.mrf.mxu0
      %1369 = vmatprep.mubr.f32.mxu0 0.0
      %1370 = vmatmul.mubr.f32.gmra.mxu0 %v1184
      %v1371 = vpop.f32.mrf.mxu0
      %v1372 = vadd.f32 0.0, %v1371
      %v1373 = vpop.f32.mrf.mxu0
      %1374 = vmatprep.mubr.f32.mxu0 0.0
      %1375 = vmatmul.mubr.f32.gmra.mxu0 %v1185
      %v1376 = vpop.f32.mrf.mxu0
      %v1377 = vadd.f32 0.0, %v1376
      %v1378 = vpop.f32.mrf.mxu0
      %1379 = vmatprep.mubr.f32.mxu0 0.0
      %1380 = vmatmul.mubr.f32.gmra.mxu0 %v1186
      %v1381 = vpop.f32.mrf.mxu0
      %v1382 = vadd.f32 0.0, %v1381
      %v1383 = vpop.f32.mrf.mxu0
      %1384 = vmatprep.mubr.f32.mxu0 0.0
      %1385 = vmatmul.mubr.f32.gmra.mxu0 %v1187
      %v1386 = vpop.f32.mrf.mxu0
      %v1387 = vadd.f32 0.0, %v1386
      %v1388 = vpop.f32.mrf.mxu0
      %1389 = vmatprep.mubr.f32.mxu0 0.0
      %1390 = vmatmul.mubr.f32.gmra.mxu0 %v1188
      %v1391 = vpop.f32.mrf.mxu0
      %v1392 = vadd.f32 0.0, %v1391
      %v1393 = vpop.f32.mrf.mxu0
      %1394 = vmatprep.mubr.f32.mxu0 0.0
      %1395 = vmatmul.mubr.f32.gmra.mxu0 %v1189
      %v1396 = vpop.f32.mrf.mxu0
      %v1397 = vadd.f32 0.0, %v1396
      %v1398 = vpop.f32.mrf.mxu0
      %1399 = vmatprep.mubr.f32.mxu0 0.0
      %1400 = vmatmul.mubr.f32.gmra.mxu0 %v1190
      %v1401 = vpop.f32.mrf.mxu0
      %v1402 = vadd.f32 0.0, %v1401
      %v1403 = vpop.f32.mrf.mxu0
      %1404 = vmatprep.mubr.f32.mxu0 0.0
      %1405 = vmatmul.mubr.f32.gmra.mxu0 %v1191
      %v1406 = vpop.f32.mrf.mxu0
      %v1407 = vadd.f32 0.0, %v1406
      %v1408 = vpop.f32.mrf.mxu0
      %1409 = vmatprep.mubr.f32.mxu0 0.0
      %1410 = vmatmul.mubr.f32.gmra.mxu0 %v1192
      %v1411 = vpop.f32.mrf.mxu0
      %v1412 = vadd.f32 0.0, %v1411
      %v1413 = vpop.f32.mrf.mxu0
      %1414 = vmatprep.mubr.f32.mxu0 0.0
      %1415 = vmatmul.mubr.f32.gmra.mxu0 %v1193
      %v1416 = vpop.f32.mrf.mxu0
      %v1417 = vadd.f32 0.0, %v1416
      %v1418 = vpop.f32.mrf.mxu0
      %1419 = vmatprep.mubr.f32.mxu0 0.0
      %1420 = vmatmul.mubr.f32.gmra.mxu0 %v1194
      %v1421 = vpop.f32.mrf.mxu0
      %v1422 = vadd.f32 0.0, %v1421
      %v1423 = vpop.f32.mrf.mxu0
      %1424 = vmatprep.mubr.f32.mxu0 0.0
      %1425 = vmatmul.mubr.f32.gmra.mxu0 %v1195
      %v1426 = vpop.f32.mrf.mxu0
      %v1427 = vadd.f32 0.0, %v1426
      %v1428 = vpop.f32.mrf.mxu0
      %1429 = vmatprep.mubr.f32.mxu0 0.0
      %1430 = vmatmul.mubr.f32.gmra.mxu0 %v1196
      %v1431 = vpop.f32.mrf.mxu0
      %v1432 = vadd.f32 0.0, %v1431
      %v1433 = vpop.f32.mrf.mxu0
      %1434 = vmatprep.mubr.f32.mxu0 0.0
      %1435 = vmatmul.mubr.f32.gmra.mxu0 %v1197
      %v1436 = vpop.f32.mrf.mxu0
      %v1437 = vadd.f32 0.0, %v1436
      %v1438 = vpop.f32.mrf.mxu0
      %1439 = vdwg.mxu0
      %v1440 = vadd.f32 %v1134, %v1282
      %v1441 = vadd.f32 %v1135, %v1287
      %v1442 = vadd.f32 %v1136, %v1292
      %v1443 = vadd.f32 %v1137, %v1297
      %v1444 = vadd.f32 %v1138, %v1302
      %v1445 = vadd.f32 %v1139, %v1307
      %v1446 = vadd.f32 %v1140, %v1312
      %v1447 = vadd.f32 %v1141, %v1317
      %v1448 = vadd.f32 %v1142, %v1322
      %v1449 = vadd.f32 %v1143, %v1327
      %v1450 = vadd.f32 %v1144, %v1332
      %v1451 = vadd.f32 %v1145, %v1337
      %v1452 = vadd.f32 %v1146, %v1342
      %v1453 = vadd.f32 %v1147, %v1347
      %v1454 = vadd.f32 %v1148, %v1352
      %v1455 = vadd.f32 %v1149, %v1357
      %v1456 = vadd.f32 %v1150, %v1362
      %v1457 = vadd.f32 %v1151, %v1367
      %v1458 = vadd.f32 %v1152, %v1372
      %v1459 = vadd.f32 %v1153, %v1377
      %v1460 = vadd.f32 %v1154, %v1382
      %v1461 = vadd.f32 %v1155, %v1387
      %v1462 = vadd.f32 %v1156, %v1392
      %v1463 = vadd.f32 %v1157, %v1397
      %v1464 = vadd.f32 %v1158, %v1402
      %v1465 = vadd.f32 %v1159, %v1407
      %v1466 = vadd.f32 %v1160, %v1412
      %v1467 = vadd.f32 %v1161, %v1417
      %v1468 = vadd.f32 %v1162, %v1422
      %v1469 = vadd.f32 %v1163, %v1427
      %v1470 = vadd.f32 %v1164, %v1432
      %v1471 = vadd.f32 %v1165, %v1437
      %v1472 = vld [vmem:[%s203 + $0x1] sm:$0xff]
      %v1473 = vld [vmem:[%s203 + $0x9] sm:$0xff]
      %v1474 = vld [vmem:[%s203 + $0x19] sm:$0xff]
      %v1475 = vld [vmem:[%s203 + $0x21] sm:$0xff]
      %v1476 = vld [vmem:[%s203 + $0x31] sm:$0xff]
      %v1477 = vld [vmem:[%s203 + $0x39] sm:$0xff]
      %v1478 = vld [vmem:[%s203 + $0x49] sm:$0xff]
      %v1479 = vld [vmem:[%s203 + $0x51] sm:$0xff]
      %v1480 = vld [vmem:[%s203 + $0x61] sm:$0xff]
      %v1481 = vld [vmem:[%s203 + $0x69] sm:$0xff]
      %v1482 = vld [vmem:[%s203 + $0x79] sm:$0xff]
      %v1483 = vld [vmem:[%s203 + $0x81] sm:$0xff]
      %v1484 = vld [vmem:[%s203 + $0x91] sm:$0xff]
      %v1485 = vld [vmem:[%s203 + $0x99] sm:$0xff]
      %v1486 = vld [vmem:[%s203 + $0xa9] sm:$0xff]
      %v1487 = vld [vmem:[%s203 + $0xb1] sm:$0xff]
      %v1488 = vld [vmem:[%s203 + $0xc1] sm:$0xff]
      %v1489 = vld [vmem:[%s203 + $0xc9] sm:$0xff]
      %v1490 = vld [vmem:[%s203 + $0xd9] sm:$0xff]
      %v1491 = vld [vmem:[%s203 + $0xe1] sm:$0xff]
      %v1492 = vld [vmem:[%s203 + $0xf1] sm:$0xff]
      %v1493 = vld [vmem:[%s203 + $0xf9] sm:$0xff]
      %v1494 = vld [vmem:[%s203 + $0x109] sm:$0xff]
      %v1495 = vld [vmem:[%s203 + $0x111] sm:$0xff]
      %v1496 = vld [vmem:[%s203 + $0x121] sm:$0xff]
      %v1497 = vld [vmem:[%s203 + $0x129] sm:$0xff]
      %v1498 = vld [vmem:[%s203 + $0x139] sm:$0xff]
      %v1499 = vld [vmem:[%s203 + $0x141] sm:$0xff]
      %v1500 = vld [vmem:[%s203 + $0x151] sm:$0xff]
      %v1501 = vld [vmem:[%s203 + $0x159] sm:$0xff]
      %v1502 = vld [vmem:[%s203 + $0x169] sm:$0xff]
      %v1503 = vld [vmem:[%s203 + $0x171] sm:$0xff]
      %s1504 = scalar_lea.vmem %s1, 512
      %v1505 = vld [vmem:[%s1504] sm:$0xff]
      %v1506 = vld [vmem:[%s1504 + $0x8] sm:$0xff]
      %v1507 = vld [vmem:[%s1504 + $0x10] sm:$0xff]
      %v1508 = vld [vmem:[%s1504 + $0x18] sm:$0xff]
      %v1509 = vld [vmem:[%s1504 + $0x20] sm:$0xff]
      %v1510 = vld [vmem:[%s1504 + $0x28] sm:$0xff]
      %v1511 = vld [vmem:[%s1504 + $0x30] sm:$0xff]
      %v1512 = vld [vmem:[%s1504 + $0x38] sm:$0xff]
      %v1513 = vld [vmem:[%s1504 + $0x40] sm:$0xff]
      %v1514 = vld [vmem:[%s1504 + $0x48] sm:$0xff]
      %v1515 = vld [vmem:[%s1504 + $0x50] sm:$0xff]
      %v1516 = vld [vmem:[%s1504 + $0x58] sm:$0xff]
      %v1517 = vld [vmem:[%s1504 + $0x60] sm:$0xff]
      %v1518 = vld [vmem:[%s1504 + $0x68] sm:$0xff]
      %v1519 = vld [vmem:[%s1504 + $0x70] sm:$0xff]
      %v1520 = vld [vmem:[%s1504 + $0x78] sm:$0xff]
      %1521 = vmatprep.subr.mxu0 0.0
      %1522 = vmatpush1.msra.mxu0 %v1520
      %1523 = vmatprep.subr.mxu0 0.0
      %1524 = vmatpush1.msra.mxu0 %v1519
      %1525 = vmatprep.subr.mxu0 0.0
      %1526 = vmatpush1.msra.mxu0 %v1518
      %1527 = vmatprep.subr.mxu0 0.0
      %1528 = vmatpush1.msra.mxu0 %v1517
      %1529 = vmatprep.subr.mxu0 0.0
      %1530 = vmatpush1.msra.mxu0 %v1516
      %1531 = vmatprep.subr.mxu0 0.0
      %1532 = vmatpush1.msra.mxu0 %v1515
      %1533 = vmatprep.subr.mxu0 0.0
      %1534 = vmatpush1.msra.mxu0 %v1514
      %1535 = vmatprep.subr.mxu0 0.0
      %1536 = vmatpush1.msra.mxu0 %v1513
      %1537 = vmatprep.subr.mxu0 0.0
      %1538 = vmatpush1.msra.mxu0 %v1512
      %1539 = vmatprep.subr.mxu0 0.0
      %1540 = vmatpush1.msra.mxu0 %v1511
      %1541 = vmatprep.subr.mxu0 0.0
      %1542 = vmatpush1.msra.mxu0 %v1510
      %1543 = vmatprep.subr.mxu0 0.0
      %1544 = vmatpush1.msra.mxu0 %v1509
      %1545 = vmatprep.subr.mxu0 0.0
      %1546 = vmatpush1.msra.mxu0 %v1508
      %1547 = vmatprep.subr.mxu0 0.0
      %1548 = vmatpush1.msra.mxu0 %v1507
      %1549 = vmatprep.subr.mxu0 0.0
      %1550 = vmatpush1.msra.mxu0 %v1506
      %1551 = vmatprep.subr.mxu0 0.0
      %1552 = vmatpush1.msra.mxu0 %v1505
      %1553 = vmatprep.subr.mxu0 0.0
      %1554 = vmatpush2.msra.mxu0 0.0
      %1555 = vmatprep.subr.mxu0 0.0
      %1556 = vmatpush2.msra.mxu0 0.0
      %1557 = vmatprep.subr.mxu0 0.0
      %1558 = vmatpush2.msra.mxu0 0.0
      %1559 = vmatprep.subr.mxu0 0.0
      %1560 = vmatpush2.msra.mxu0 0.0
      %1561 = vmatprep.subr.mxu0 0.0
      %1562 = vmatpush2.msra.mxu0 0.0
      %1563 = vmatprep.subr.mxu0 0.0
      %1564 = vmatpush2.msra.mxu0 0.0
      %1565 = vmatprep.subr.mxu0 0.0
      %1566 = vmatpush2.msra.mxu0 0.0
      %1567 = vmatprep.subr.mxu0 0.0
      %1568 = vmatpush2.msra.mxu0 0.0
      %1569 = vmatprep.subr.mxu0 0.0
      %1570 = vmatpush2.msra.mxu0 0.0
      %1571 = vmatprep.subr.mxu0 0.0
      %1572 = vmatpush2.msra.mxu0 0.0
      %1573 = vmatprep.subr.mxu0 0.0
      %1574 = vmatpush2.msra.mxu0 0.0
      %1575 = vmatprep.subr.mxu0 0.0
      %1576 = vmatpush2.msra.mxu0 0.0
      %1577 = vmatprep.subr.mxu0 0.0
      %1578 = vmatpush2.msra.mxu0 0.0
      %1579 = vmatprep.subr.mxu0 0.0
      %1580 = vmatpush2.msra.mxu0 0.0
      %1581 = vmatprep.subr.mxu0 0.0
      %1582 = vmatpush2.msra.mxu0 0.0
      %1583 = vmatprep.subr.mxu0 0.0
      %1584 = vmatpush2.msra.mxu0 0.0
      %1585 = vmatprep.mubr.f32.mxu0 0.0
      %1586 = vmatmul.mubr.f32.gmra.mxu0 %v1472
      %v1587 = vpop.f32.mrf.mxu0
      %v1588 = vadd.f32 0.0, %v1587
      %v1589 = vpop.f32.mrf.mxu0
      %1590 = vmatprep.mubr.f32.mxu0 0.0
      %1591 = vmatmul.mubr.f32.gmra.mxu0 %v1473
      %v1592 = vpop.f32.mrf.mxu0
      %v1593 = vadd.f32 0.0, %v1592
      %v1594 = vpop.f32.mrf.mxu0
      %1595 = vmatprep.mubr.f32.mxu0 0.0
      %1596 = vmatmul.mubr.f32.gmra.mxu0 %v1474
      %v1597 = vpop.f32.mrf.mxu0
      %v1598 = vadd.f32 0.0, %v1597
      %v1599 = vpop.f32.mrf.mxu0
      %1600 = vmatprep.mubr.f32.mxu0 0.0
      %1601 = vmatmul.mubr.f32.gmra.mxu0 %v1475
      %v1602 = vpop.f32.mrf.mxu0
      %v1603 = vadd.f32 0.0, %v1602
      %v1604 = vpop.f32.mrf.mxu0
      %1605 = vmatprep.mubr.f32.mxu0 0.0
      %1606 = vmatmul.mubr.f32.gmra.mxu0 %v1476
      %v1607 = vpop.f32.mrf.mxu0
      %v1608 = vadd.f32 0.0, %v1607
      %v1609 = vpop.f32.mrf.mxu0
      %1610 = vmatprep.mubr.f32.mxu0 0.0
      %1611 = vmatmul.mubr.f32.gmra.mxu0 %v1477
      %v1612 = vpop.f32.mrf.mxu0
      %v1613 = vadd.f32 0.0, %v1612
      %v1614 = vpop.f32.mrf.mxu0
      %1615 = vmatprep.mubr.f32.mxu0 0.0
      %1616 = vmatmul.mubr.f32.gmra.mxu0 %v1478
      %v1617 = vpop.f32.mrf.mxu0
      %v1618 = vadd.f32 0.0, %v1617
      %v1619 = vpop.f32.mrf.mxu0
      %1620 = vmatprep.mubr.f32.mxu0 0.0
      %1621 = vmatmul.mubr.f32.gmra.mxu0 %v1479
      %v1622 = vpop.f32.mrf.mxu0
      %v1623 = vadd.f32 0.0, %v1622
      %v1624 = vpop.f32.mrf.mxu0
      %1625 = vmatprep.mubr.f32.mxu0 0.0
      %1626 = vmatmul.mubr.f32.gmra.mxu0 %v1480
      %v1627 = vpop.f32.mrf.mxu0
      %v1628 = vadd.f32 0.0, %v1627
      %v1629 = vpop.f32.mrf.mxu0
      %1630 = vmatprep.mubr.f32.mxu0 0.0
      %1631 = vmatmul.mubr.f32.gmra.mxu0 %v1481
      %v1632 = vpop.f32.mrf.mxu0
      %v1633 = vadd.f32 0.0, %v1632
      %v1634 = vpop.f32.mrf.mxu0
      %1635 = vmatprep.mubr.f32.mxu0 0.0
      %1636 = vmatmul.mubr.f32.gmra.mxu0 %v1482
      %v1637 = vpop.f32.mrf.mxu0
      %v1638 = vadd.f32 0.0, %v1637
      %v1639 = vpop.f32.mrf.mxu0
      %1640 = vmatprep.mubr.f32.mxu0 0.0
      %1641 = vmatmul.mubr.f32.gmra.mxu0 %v1483
      %v1642 = vpop.f32.mrf.mxu0
      %v1643 = vadd.f32 0.0, %v1642
      %v1644 = vpop.f32.mrf.mxu0
      %1645 = vmatprep.mubr.f32.mxu0 0.0
      %1646 = vmatmul.mubr.f32.gmra.mxu0 %v1484
      %v1647 = vpop.f32.mrf.mxu0
      %v1648 = vadd.f32 0.0, %v1647
      %v1649 = vpop.f32.mrf.mxu0
      %1650 = vmatprep.mubr.f32.mxu0 0.0
      %1651 = vmatmul.mubr.f32.gmra.mxu0 %v1485
      %v1652 = vpop.f32.mrf.mxu0
      %v1653 = vadd.f32 0.0, %v1652
      %v1654 = vpop.f32.mrf.mxu0
      %1655 = vmatprep.mubr.f32.mxu0 0.0
      %1656 = vmatmul.mubr.f32.gmra.mxu0 %v1486
      %v1657 = vpop.f32.mrf.mxu0
      %v1658 = vadd.f32 0.0, %v1657
      %v1659 = vpop.f32.mrf.mxu0
      %1660 = vmatprep.mubr.f32.mxu0 0.0
      %1661 = vmatmul.mubr.f32.gmra.mxu0 %v1487
      %v1662 = vpop.f32.mrf.mxu0
      %v1663 = vadd.f32 0.0, %v1662
      %v1664 = vpop.f32.mrf.mxu0
      %1665 = vmatprep.mubr.f32.mxu0 0.0
      %1666 = vmatmul.mubr.f32.gmra.mxu0 %v1488
      %v1667 = vpop.f32.mrf.mxu0
      %v1668 = vadd.f32 0.0, %v1667
      %v1669 = vpop.f32.mrf.mxu0
      %1670 = vmatprep.mubr.f32.mxu0 0.0
      %1671 = vmatmul.mubr.f32.gmra.mxu0 %v1489
      %v1672 = vpop.f32.mrf.mxu0
      %v1673 = vadd.f32 0.0, %v1672
      %v1674 = vpop.f32.mrf.mxu0
      %1675 = vmatprep.mubr.f32.mxu0 0.0
      %1676 = vmatmul.mubr.f32.gmra.mxu0 %v1490
      %v1677 = vpop.f32.mrf.mxu0
      %v1678 = vadd.f32 0.0, %v1677
      %v1679 = vpop.f32.mrf.mxu0
      %1680 = vmatprep.mubr.f32.mxu0 0.0
      %1681 = vmatmul.mubr.f32.gmra.mxu0 %v1491
      %v1682 = vpop.f32.mrf.mxu0
      %v1683 = vadd.f32 0.0, %v1682
      %v1684 = vpop.f32.mrf.mxu0
      %1685 = vmatprep.mubr.f32.mxu0 0.0
      %1686 = vmatmul.mubr.f32.gmra.mxu0 %v1492
      %v1687 = vpop.f32.mrf.mxu0
      %v1688 = vadd.f32 0.0, %v1687
      %v1689 = vpop.f32.mrf.mxu0
      %1690 = vmatprep.mubr.f32.mxu0 0.0
      %1691 = vmatmul.mubr.f32.gmra.mxu0 %v1493
      %v1692 = vpop.f32.mrf.mxu0
      %v1693 = vadd.f32 0.0, %v1692
      %v1694 = vpop.f32.mrf.mxu0
      %1695 = vmatprep.mubr.f32.mxu0 0.0
      %1696 = vmatmul.mubr.f32.gmra.mxu0 %v1494
      %v1697 = vpop.f32.mrf.mxu0
      %v1698 = vadd.f32 0.0, %v1697
      %v1699 = vpop.f32.mrf.mxu0
      %1700 = vmatprep.mubr.f32.mxu0 0.0
      %1701 = vmatmul.mubr.f32.gmra.mxu0 %v1495
      %v1702 = vpop.f32.mrf.mxu0
      %v1703 = vadd.f32 0.0, %v1702
      %v1704 = vpop.f32.mrf.mxu0
      %1705 = vmatprep.mubr.f32.mxu0 0.0
      %1706 = vmatmul.mubr.f32.gmra.mxu0 %v1496
      %v1707 = vpop.f32.mrf.mxu0
      %v1708 = vadd.f32 0.0, %v1707
      %v1709 = vpop.f32.mrf.mxu0
      %1710 = vmatprep.mubr.f32.mxu0 0.0
      %1711 = vmatmul.mubr.f32.gmra.mxu0 %v1497
      %v1712 = vpop.f32.mrf.mxu0
      %v1713 = vadd.f32 0.0, %v1712
      %v1714 = vpop.f32.mrf.mxu0
      %1715 = vmatprep.mubr.f32.mxu0 0.0
      %1716 = vmatmul.mubr.f32.gmra.mxu0 %v1498
      %v1717 = vpop.f32.mrf.mxu0
      %v1718 = vadd.f32 0.0, %v1717
      %v1719 = vpop.f32.mrf.mxu0
      %1720 = vmatprep.mubr.f32.mxu0 0.0
      %1721 = vmatmul.mubr.f32.gmra.mxu0 %v1499
      %v1722 = vpop.f32.mrf.mxu0
      %v1723 = vadd.f32 0.0, %v1722
      %v1724 = vpop.f32.mrf.mxu0
      %1725 = vmatprep.mubr.f32.mxu0 0.0
      %1726 = vmatmul.mubr.f32.gmra.mxu0 %v1500
      %v1727 = vpop.f32.mrf.mxu0
      %v1728 = vadd.f32 0.0, %v1727
      %v1729 = vpop.f32.mrf.mxu0
      %1730 = vmatprep.mubr.f32.mxu0 0.0
      %1731 = vmatmul.mubr.f32.gmra.mxu0 %v1501
      %v1732 = vpop.f32.mrf.mxu0
      %v1733 = vadd.f32 0.0, %v1732
      %v1734 = vpop.f32.mrf.mxu0
      %1735 = vmatprep.mubr.f32.mxu0 0.0
      %1736 = vmatmul.mubr.f32.gmra.mxu0 %v1502
      %v1737 = vpop.f32.mrf.mxu0
      %v1738 = vadd.f32 0.0, %v1737
      %v1739 = vpop.f32.mrf.mxu0
      %1740 = vmatprep.mubr.f32.mxu0 0.0
      %1741 = vmatmul.mubr.f32.gmra.mxu0 %v1503
      %v1742 = vpop.f32.mrf.mxu0
      %v1743 = vadd.f32 0.0, %v1742
      %v1744 = vpop.f32.mrf.mxu0
      %1745 = vdwg.mxu0
      %v1746 = vadd.f32 %v1440, %v1588
      %v1747 = vadd.f32 %v1441, %v1593
      %v1748 = vadd.f32 %v1442, %v1598
      %v1749 = vadd.f32 %v1443, %v1603
      %v1750 = vadd.f32 %v1444, %v1608
      %v1751 = vadd.f32 %v1445, %v1613
      %v1752 = vadd.f32 %v1446, %v1618
      %v1753 = vadd.f32 %v1447, %v1623
      %v1754 = vadd.f32 %v1448, %v1628
      %v1755 = vadd.f32 %v1449, %v1633
      %v1756 = vadd.f32 %v1450, %v1638
      %v1757 = vadd.f32 %v1451, %v1643
      %v1758 = vadd.f32 %v1452, %v1648
      %v1759 = vadd.f32 %v1453, %v1653
      %v1760 = vadd.f32 %v1454, %v1658
      %v1761 = vadd.f32 %v1455, %v1663
      %v1762 = vadd.f32 %v1456, %v1668
      %v1763 = vadd.f32 %v1457, %v1673
      %v1764 = vadd.f32 %v1458, %v1678
      %v1765 = vadd.f32 %v1459, %v1683
      %v1766 = vadd.f32 %v1460, %v1688
      %v1767 = vadd.f32 %v1461, %v1693
      %v1768 = vadd.f32 %v1462, %v1698
      %v1769 = vadd.f32 %v1463, %v1703
      %v1770 = vadd.f32 %v1464, %v1708
      %v1771 = vadd.f32 %v1465, %v1713
      %v1772 = vadd.f32 %v1466, %v1718
      %v1773 = vadd.f32 %v1467, %v1723
      %v1774 = vadd.f32 %v1468, %v1728
      %v1775 = vadd.f32 %v1469, %v1733
      %v1776 = vadd.f32 %v1470, %v1738
      %v1777 = vadd.f32 %v1471, %v1743
      %v1778 = vld [vmem:[%s203 + $0x2] sm:$0xff]
      %v1779 = vld [vmem:[%s203 + $0xa] sm:$0xff]
      %v1780 = vld [vmem:[%s203 + $0x1a] sm:$0xff]
      %v1781 = vld [vmem:[%s203 + $0x22] sm:$0xff]
      %v1782 = vld [vmem:[%s203 + $0x32] sm:$0xff]
      %v1783 = vld [vmem:[%s203 + $0x3a] sm:$0xff]
      %v1784 = vld [vmem:[%s203 + $0x4a] sm:$0xff]
      %v1785 = vld [vmem:[%s203 + $0x52] sm:$0xff]
      %v1786 = vld [vmem:[%s203 + $0x62] sm:$0xff]
      %v1787 = vld [vmem:[%s203 + $0x6a] sm:$0xff]
      %v1788 = vld [vmem:[%s203 + $0x7a] sm:$0xff]
      %v1789 = vld [vmem:[%s203 + $0x82] sm:$0xff]
      %v1790 = vld [vmem:[%s203 + $0x92] sm:$0xff]
      %v1791 = vld [vmem:[%s203 + $0x9a] sm:$0xff]
      %v1792 = vld [vmem:[%s203 + $0xaa] sm:$0xff]
      %v1793 = vld [vmem:[%s203 + $0xb2] sm:$0xff]
      %v1794 = vld [vmem:[%s203 + $0xc2] sm:$0xff]
      %v1795 = vld [vmem:[%s203 + $0xca] sm:$0xff]
      %v1796 = vld [vmem:[%s203 + $0xda] sm:$0xff]
      %v1797 = vld [vmem:[%s203 + $0xe2] sm:$0xff]
      %v1798 = vld [vmem:[%s203 + $0xf2] sm:$0xff]
      %v1799 = vld [vmem:[%s203 + $0xfa] sm:$0xff]
      %v1800 = vld [vmem:[%s203 + $0x10a] sm:$0xff]
      %v1801 = vld [vmem:[%s203 + $0x112] sm:$0xff]
      %v1802 = vld [vmem:[%s203 + $0x122] sm:$0xff]
      %v1803 = vld [vmem:[%s203 + $0x12a] sm:$0xff]
      %v1804 = vld [vmem:[%s203 + $0x13a] sm:$0xff]
      %v1805 = vld [vmem:[%s203 + $0x142] sm:$0xff]
      %v1806 = vld [vmem:[%s203 + $0x152] sm:$0xff]
      %v1807 = vld [vmem:[%s203 + $0x15a] sm:$0xff]
      %v1808 = vld [vmem:[%s203 + $0x16a] sm:$0xff]
      %v1809 = vld [vmem:[%s203 + $0x172] sm:$0xff]
      %s1810 = scalar_lea.vmem %s1, 640
      %v1811 = vld [vmem:[%s1810] sm:$0xff]
      %v1812 = vld [vmem:[%s1810 + $0x8] sm:$0xff]
      %v1813 = vld [vmem:[%s1810 + $0x10] sm:$0xff]
      %v1814 = vld [vmem:[%s1810 + $0x18] sm:$0xff]
      %v1815 = vld [vmem:[%s1810 + $0x20] sm:$0xff]
      %v1816 = vld [vmem:[%s1810 + $0x28] sm:$0xff]
      %v1817 = vld [vmem:[%s1810 + $0x30] sm:$0xff]
      %v1818 = vld [vmem:[%s1810 + $0x38] sm:$0xff]
      %v1819 = vld [vmem:[%s1810 + $0x40] sm:$0xff]
      %v1820 = vld [vmem:[%s1810 + $0x48] sm:$0xff]
      %v1821 = vld [vmem:[%s1810 + $0x50] sm:$0xff]
      %v1822 = vld [vmem:[%s1810 + $0x58] sm:$0xff]
      %v1823 = vld [vmem:[%s1810 + $0x60] sm:$0xff]
      %v1824 = vld [vmem:[%s1810 + $0x68] sm:$0xff]
      %v1825 = vld [vmem:[%s1810 + $0x70] sm:$0xff]
      %v1826 = vld [vmem:[%s1810 + $0x78] sm:$0xff]
      %1827 = vmatprep.subr.mxu0 0.0
      %1828 = vmatpush1.msra.mxu0 %v1826
      %1829 = vmatprep.subr.mxu0 0.0
      %1830 = vmatpush1.msra.mxu0 %v1825
      %1831 = vmatprep.subr.mxu0 0.0
      %1832 = vmatpush1.msra.mxu0 %v1824
      %1833 = vmatprep.subr.mxu0 0.0
      %1834 = vmatpush1.msra.mxu0 %v1823
      %1835 = vmatprep.subr.mxu0 0.0
      %1836 = vmatpush1.msra.mxu0 %v1822
      %1837 = vmatprep.subr.mxu0 0.0
      %1838 = vmatpush1.msra.mxu0 %v1821
      %1839 = vmatprep.subr.mxu0 0.0
      %1840 = vmatpush1.msra.mxu0 %v1820
      %1841 = vmatprep.subr.mxu0 0.0
      %1842 = vmatpush1.msra.mxu0 %v1819
      %1843 = vmatprep.subr.mxu0 0.0
      %1844 = vmatpush1.msra.mxu0 %v1818
      %1845 = vmatprep.subr.mxu0 0.0
      %1846 = vmatpush1.msra.mxu0 %v1817
      %1847 = vmatprep.subr.mxu0 0.0
      %1848 = vmatpush1.msra.mxu0 %v1816
      %1849 = vmatprep.subr.mxu0 0.0
      %1850 = vmatpush1.msra.mxu0 %v1815
      %1851 = vmatprep.subr.mxu0 0.0
      %1852 = vmatpush1.msra.mxu0 %v1814
      %1853 = vmatprep.subr.mxu0 0.0
      %1854 = vmatpush1.msra.mxu0 %v1813
      %1855 = vmatprep.subr.mxu0 0.0
      %1856 = vmatpush1.msra.mxu0 %v1812
      %1857 = vmatprep.subr.mxu0 0.0
      %1858 = vmatpush1.msra.mxu0 %v1811
      %1859 = vmatprep.subr.mxu0 0.0
      %1860 = vmatpush2.msra.mxu0 0.0
      %1861 = vmatprep.subr.mxu0 0.0
      %1862 = vmatpush2.msra.mxu0 0.0
      %1863 = vmatprep.subr.mxu0 0.0
      %1864 = vmatpush2.msra.mxu0 0.0
      %1865 = vmatprep.subr.mxu0 0.0
      %1866 = vmatpush2.msra.mxu0 0.0
      %1867 = vmatprep.subr.mxu0 0.0
      %1868 = vmatpush2.msra.mxu0 0.0
      %1869 = vmatprep.subr.mxu0 0.0
      %1870 = vmatpush2.msra.mxu0 0.0
      %1871 = vmatprep.subr.mxu0 0.0
      %1872 = vmatpush2.msra.mxu0 0.0
      %1873 = vmatprep.subr.mxu0 0.0
      %1874 = vmatpush2.msra.mxu0 0.0
      %1875 = vmatprep.subr.mxu0 0.0
      %1876 = vmatpush2.msra.mxu0 0.0
      %1877 = vmatprep.subr.mxu0 0.0
      %1878 = vmatpush2.msra.mxu0 0.0
      %1879 = vmatprep.subr.mxu0 0.0
      %1880 = vmatpush2.msra.mxu0 0.0
      %1881 = vmatprep.subr.mxu0 0.0
      %1882 = vmatpush2.msra.mxu0 0.0
      %1883 = vmatprep.subr.mxu0 0.0
      %1884 = vmatpush2.msra.mxu0 0.0
      %1885 = vmatprep.subr.mxu0 0.0
      %1886 = vmatpush2.msra.mxu0 0.0
      %1887 = vmatprep.subr.mxu0 0.0
      %1888 = vmatpush2.msra.mxu0 0.0
      %1889 = vmatprep.subr.mxu0 0.0
      %1890 = vmatpush2.msra.mxu0 0.0
      %1891 = vmatprep.mubr.f32.mxu0 0.0
      %1892 = vmatmul.mubr.f32.gmra.mxu0 %v1778
      %v1893 = vpop.f32.mrf.mxu0
      %v1894 = vadd.f32 0.0, %v1893
      %v1895 = vpop.f32.mrf.mxu0
      %1896 = vmatprep.mubr.f32.mxu0 0.0
      %1897 = vmatmul.mubr.f32.gmra.mxu0 %v1779
      %v1898 = vpop.f32.mrf.mxu0
      %v1899 = vadd.f32 0.0, %v1898
      %v1900 = vpop.f32.mrf.mxu0
      %1901 = vmatprep.mubr.f32.mxu0 0.0
      %1902 = vmatmul.mubr.f32.gmra.mxu0 %v1780
      %v1903 = vpop.f32.mrf.mxu0
      %v1904 = vadd.f32 0.0, %v1903
      %v1905 = vpop.f32.mrf.mxu0
      %1906 = vmatprep.mubr.f32.mxu0 0.0
      %1907 = vmatmul.mubr.f32.gmra.mxu0 %v1781
      %v1908 = vpop.f32.mrf.mxu0
      %v1909 = vadd.f32 0.0, %v1908
      %v1910 = vpop.f32.mrf.mxu0
      %1911 = vmatprep.mubr.f32.mxu0 0.0
      %1912 = vmatmul.mubr.f32.gmra.mxu0 %v1782
      %v1913 = vpop.f32.mrf.mxu0
      %v1914 = vadd.f32 0.0, %v1913
      %v1915 = vpop.f32.mrf.mxu0
      %1916 = vmatprep.mubr.f32.mxu0 0.0
      %1917 = vmatmul.mubr.f32.gmra.mxu0 %v1783
      %v1918 = vpop.f32.mrf.mxu0
      %v1919 = vadd.f32 0.0, %v1918
      %v1920 = vpop.f32.mrf.mxu0
      %1921 = vmatprep.mubr.f32.mxu0 0.0
      %1922 = vmatmul.mubr.f32.gmra.mxu0 %v1784
      %v1923 = vpop.f32.mrf.mxu0
      %v1924 = vadd.f32 0.0, %v1923
      %v1925 = vpop.f32.mrf.mxu0
      %1926 = vmatprep.mubr.f32.mxu0 0.0
      %1927 = vmatmul.mubr.f32.gmra.mxu0 %v1785
      %v1928 = vpop.f32.mrf.mxu0
      %v1929 = vadd.f32 0.0, %v1928
      %v1930 = vpop.f32.mrf.mxu0
      %1931 = vmatprep.mubr.f32.mxu0 0.0
      %1932 = vmatmul.mubr.f32.gmra.mxu0 %v1786
      %v1933 = vpop.f32.mrf.mxu0
      %v1934 = vadd.f32 0.0, %v1933
      %v1935 = vpop.f32.mrf.mxu0
      %1936 = vmatprep.mubr.f32.mxu0 0.0
      %1937 = vmatmul.mubr.f32.gmra.mxu0 %v1787
      %v1938 = vpop.f32.mrf.mxu0
      %v1939 = vadd.f32 0.0, %v1938
      %v1940 = vpop.f32.mrf.mxu0
      %1941 = vmatprep.mubr.f32.mxu0 0.0
      %1942 = vmatmul.mubr.f32.gmra.mxu0 %v1788
      %v1943 = vpop.f32.mrf.mxu0
      %v1944 = vadd.f32 0.0, %v1943
      %v1945 = vpop.f32.mrf.mxu0
      %1946 = vmatprep.mubr.f32.mxu0 0.0
      %1947 = vmatmul.mubr.f32.gmra.mxu0 %v1789
      %v1948 = vpop.f32.mrf.mxu0
      %v1949 = vadd.f32 0.0, %v1948
      %v1950 = vpop.f32.mrf.mxu0
      %1951 = vmatprep.mubr.f32.mxu0 0.0
      %1952 = vmatmul.mubr.f32.gmra.mxu0 %v1790
      %v1953 = vpop.f32.mrf.mxu0
      %v1954 = vadd.f32 0.0, %v1953
      %v1955 = vpop.f32.mrf.mxu0
      %1956 = vmatprep.mubr.f32.mxu0 0.0
      %1957 = vmatmul.mubr.f32.gmra.mxu0 %v1791
      %v1958 = vpop.f32.mrf.mxu0
      %v1959 = vadd.f32 0.0, %v1958
      %v1960 = vpop.f32.mrf.mxu0
      %1961 = vmatprep.mubr.f32.mxu0 0.0
      %1962 = vmatmul.mubr.f32.gmra.mxu0 %v1792
      %v1963 = vpop.f32.mrf.mxu0
      %v1964 = vadd.f32 0.0, %v1963
      %v1965 = vpop.f32.mrf.mxu0
      %1966 = vmatprep.mubr.f32.mxu0 0.0
      %1967 = vmatmul.mubr.f32.gmra.mxu0 %v1793
      %v1968 = vpop.f32.mrf.mxu0
      %v1969 = vadd.f32 0.0, %v1968
      %v1970 = vpop.f32.mrf.mxu0
      %1971 = vmatprep.mubr.f32.mxu0 0.0
      %1972 = vmatmul.mubr.f32.gmra.mxu0 %v1794
      %v1973 = vpop.f32.mrf.mxu0
      %v1974 = vadd.f32 0.0, %v1973
      %v1975 = vpop.f32.mrf.mxu0
      %1976 = vmatprep.mubr.f32.mxu0 0.0
      %1977 = vmatmul.mubr.f32.gmra.mxu0 %v1795
      %v1978 = vpop.f32.mrf.mxu0
      %v1979 = vadd.f32 0.0, %v1978
      %v1980 = vpop.f32.mrf.mxu0
      %1981 = vmatprep.mubr.f32.mxu0 0.0
      %1982 = vmatmul.mubr.f32.gmra.mxu0 %v1796
      %v1983 = vpop.f32.mrf.mxu0
      %v1984 = vadd.f32 0.0, %v1983
      %v1985 = vpop.f32.mrf.mxu0
      %1986 = vmatprep.mubr.f32.mxu0 0.0
      %1987 = vmatmul.mubr.f32.gmra.mxu0 %v1797
      %v1988 = vpop.f32.mrf.mxu0
      %v1989 = vadd.f32 0.0, %v1988
      %v1990 = vpop.f32.mrf.mxu0
      %1991 = vmatprep.mubr.f32.mxu0 0.0
      %1992 = vmatmul.mubr.f32.gmra.mxu0 %v1798
      %v1993 = vpop.f32.mrf.mxu0
      %v1994 = vadd.f32 0.0, %v1993
      %v1995 = vpop.f32.mrf.mxu0
      %1996 = vmatprep.mubr.f32.mxu0 0.0
      %1997 = vmatmul.mubr.f32.gmra.mxu0 %v1799
      %v1998 = vpop.f32.mrf.mxu0
      %v1999 = vadd.f32 0.0, %v1998
      %v2000 = vpop.f32.mrf.mxu0
      %2001 = vmatprep.mubr.f32.mxu0 0.0
      %2002 = vmatmul.mubr.f32.gmra.mxu0 %v1800
      %v2003 = vpop.f32.mrf.mxu0
      %v2004 = vadd.f32 0.0, %v2003
      %v2005 = vpop.f32.mrf.mxu0
      %2006 = vmatprep.mubr.f32.mxu0 0.0
      %2007 = vmatmul.mubr.f32.gmra.mxu0 %v1801
      %v2008 = vpop.f32.mrf.mxu0
      %v2009 = vadd.f32 0.0, %v2008
      %v2010 = vpop.f32.mrf.mxu0
      %2011 = vmatprep.mubr.f32.mxu0 0.0
      %2012 = vmatmul.mubr.f32.gmra.mxu0 %v1802
      %v2013 = vpop.f32.mrf.mxu0
      %v2014 = vadd.f32 0.0, %v2013
      %v2015 = vpop.f32.mrf.mxu0
      %2016 = vmatprep.mubr.f32.mxu0 0.0
      %2017 = vmatmul.mubr.f32.gmra.mxu0 %v1803
      %v2018 = vpop.f32.mrf.mxu0
      %v2019 = vadd.f32 0.0, %v2018
      %v2020 = vpop.f32.mrf.mxu0
      %2021 = vmatprep.mubr.f32.mxu0 0.0
      %2022 = vmatmul.mubr.f32.gmra.mxu0 %v1804
      %v2023 = vpop.f32.mrf.mxu0
      %v2024 = vadd.f32 0.0, %v2023
      %v2025 = vpop.f32.mrf.mxu0
      %2026 = vmatprep.mubr.f32.mxu0 0.0
      %2027 = vmatmul.mubr.f32.gmra.mxu0 %v1805
      %v2028 = vpop.f32.mrf.mxu0
      %v2029 = vadd.f32 0.0, %v2028
      %v2030 = vpop.f32.mrf.mxu0
      %2031 = vmatprep.mubr.f32.mxu0 0.0
      %2032 = vmatmul.mubr.f32.gmra.mxu0 %v1806
      %v2033 = vpop.f32.mrf.mxu0
      %v2034 = vadd.f32 0.0, %v2033
      %v2035 = vpop.f32.mrf.mxu0
      %2036 = vmatprep.mubr.f32.mxu0 0.0
      %2037 = vmatmul.mubr.f32.gmra.mxu0 %v1807
      %v2038 = vpop.f32.mrf.mxu0
      %v2039 = vadd.f32 0.0, %v2038
      %v2040 = vpop.f32.mrf.mxu0
      %2041 = vmatprep.mubr.f32.mxu0 0.0
      %2042 = vmatmul.mubr.f32.gmra.mxu0 %v1808
      %v2043 = vpop.f32.mrf.mxu0
      %v2044 = vadd.f32 0.0, %v2043
      %v2045 = vpop.f32.mrf.mxu0
      %2046 = vmatprep.mubr.f32.mxu0 0.0
      %2047 = vmatmul.mubr.f32.gmra.mxu0 %v1809
      %v2048 = vpop.f32.mrf.mxu0
      %v2049 = vadd.f32 0.0, %v2048
      %v2050 = vpop.f32.mrf.mxu0
      %2051 = vdwg.mxu0
      %v2052 = vadd.f32 %v1746, %v1894
      %v2053 = vadd.f32 %v1747, %v1899
      %v2054 = vadd.f32 %v1748, %v1904
      %v2055 = vadd.f32 %v1749, %v1909
      %v2056 = vadd.f32 %v1750, %v1914
      %v2057 = vadd.f32 %v1751, %v1919
      %v2058 = vadd.f32 %v1752, %v1924
      %v2059 = vadd.f32 %v1753, %v1929
      %v2060 = vadd.f32 %v1754, %v1934
      %v2061 = vadd.f32 %v1755, %v1939
      %v2062 = vadd.f32 %v1756, %v1944
      %v2063 = vadd.f32 %v1757, %v1949
      %v2064 = vadd.f32 %v1758, %v1954
      %v2065 = vadd.f32 %v1759, %v1959
      %v2066 = vadd.f32 %v1760, %v1964
      %v2067 = vadd.f32 %v1761, %v1969
      %v2068 = vadd.f32 %v1762, %v1974
      %v2069 = vadd.f32 %v1763, %v1979
      %v2070 = vadd.f32 %v1764, %v1984
      %v2071 = vadd.f32 %v1765, %v1989
      %v2072 = vadd.f32 %v1766, %v1994
      %v2073 = vadd.f32 %v1767, %v1999
      %v2074 = vadd.f32 %v1768, %v2004
      %v2075 = vadd.f32 %v1769, %v2009
      %v2076 = vadd.f32 %v1770, %v2014
      %v2077 = vadd.f32 %v1771, %v2019
      %v2078 = vadd.f32 %v1772, %v2024
      %v2079 = vadd.f32 %v1773, %v2029
      %v2080 = vadd.f32 %v1774, %v2034
      %v2081 = vadd.f32 %v1775, %v2039
      %v2082 = vadd.f32 %v1776, %v2044
      %v2083 = vadd.f32 %v1777, %v2049
      %s2084 = scalar_lea.vmem [#allocation2], 48
      %v2085 = vld [vmem:[%s2084] sm:$0xff]
      %v2086 = vld [vmem:[%s2084 + $0x8] sm:$0xff]
      %v2087 = vld [vmem:[%s2084 + $0x18] sm:$0xff]
      %v2088 = vld [vmem:[%s2084 + $0x20] sm:$0xff]
      %v2089 = vld [vmem:[%s2084 + $0x30] sm:$0xff]
      %v2090 = vld [vmem:[%s2084 + $0x38] sm:$0xff]
      %v2091 = vld [vmem:[%s2084 + $0x48] sm:$0xff]
      %v2092 = vld [vmem:[%s2084 + $0x50] sm:$0xff]
      %v2093 = vld [vmem:[%s2084 + $0x60] sm:$0xff]
      %v2094 = vld [vmem:[%s2084 + $0x68] sm:$0xff]
      %v2095 = vld [vmem:[%s2084 + $0x78] sm:$0xff]
      %v2096 = vld [vmem:[%s2084 + $0x80] sm:$0xff]
      %v2097 = vld [vmem:[%s2084 + $0x90] sm:$0xff]
      %v2098 = vld [vmem:[%s2084 + $0x98] sm:$0xff]
      %v2099 = vld [vmem:[%s2084 + $0xa8] sm:$0xff]
      %v2100 = vld [vmem:[%s2084 + $0xb0] sm:$0xff]
      %v2101 = vld [vmem:[%s2084 + $0xc0] sm:$0xff]
      %v2102 = vld [vmem:[%s2084 + $0xc8] sm:$0xff]
      %v2103 = vld [vmem:[%s2084 + $0xd8] sm:$0xff]
      %v2104 = vld [vmem:[%s2084 + $0xe0] sm:$0xff]
      %v2105 = vld [vmem:[%s2084 + $0xf0] sm:$0xff]
      %v2106 = vld [vmem:[%s2084 + $0xf8] sm:$0xff]
      %v2107 = vld [vmem:[%s2084 + $0x108] sm:$0xff]
      %v2108 = vld [vmem:[%s2084 + $0x110] sm:$0xff]
      %v2109 = vld [vmem:[%s2084 + $0x120] sm:$0xff]
      %v2110 = vld [vmem:[%s2084 + $0x128] sm:$0xff]
      %v2111 = vld [vmem:[%s2084 + $0x138] sm:$0xff]
      %v2112 = vld [vmem:[%s2084 + $0x140] sm:$0xff]
      %v2113 = vld [vmem:[%s2084 + $0x150] sm:$0xff]
      %v2114 = vld [vmem:[%s2084 + $0x158] sm:$0xff]
      %v2115 = vld [vmem:[%s2084 + $0x168] sm:$0xff]
      %v2116 = vld [vmem:[%s2084 + $0x170] sm:$0xff]
      %s2117 = scalar_lea.vmem %s1, 768
      %v2118 = vld [vmem:[%s2117] sm:$0xff]
      %v2119 = vld [vmem:[%s2117 + $0x8] sm:$0xff]
      %v2120 = vld [vmem:[%s2117 + $0x10] sm:$0xff]
      %v2121 = vld [vmem:[%s2117 + $0x18] sm:$0xff]
      %v2122 = vld [vmem:[%s2117 + $0x20] sm:$0xff]
      %v2123 = vld [vmem:[%s2117 + $0x28] sm:$0xff]
      %v2124 = vld [vmem:[%s2117 + $0x30] sm:$0xff]
      %v2125 = vld [vmem:[%s2117 + $0x38] sm:$0xff]
      %v2126 = vld [vmem:[%s2117 + $0x40] sm:$0xff]
      %v2127 = vld [vmem:[%s2117 + $0x48] sm:$0xff]
      %v2128 = vld [vmem:[%s2117 + $0x50] sm:$0xff]
      %v2129 = vld [vmem:[%s2117 + $0x58] sm:$0xff]
      %v2130 = vld [vmem:[%s2117 + $0x60] sm:$0xff]
      %v2131 = vld [vmem:[%s2117 + $0x68] sm:$0xff]
      %v2132 = vld [vmem:[%s2117 + $0x70] sm:$0xff]
      %v2133 = vld [vmem:[%s2117 + $0x78] sm:$0xff]
      %2134 = vmatprep.subr.mxu0 0.0
      %2135 = vmatpush1.msra.mxu0 %v2133
      %2136 = vmatprep.subr.mxu0 0.0
      %2137 = vmatpush1.msra.mxu0 %v2132
      %2138 = vmatprep.subr.mxu0 0.0
      %2139 = vmatpush1.msra.mxu0 %v2131
      %2140 = vmatprep.subr.mxu0 0.0
      %2141 = vmatpush1.msra.mxu0 %v2130
      %2142 = vmatprep.subr.mxu0 0.0
      %2143 = vmatpush1.msra.mxu0 %v2129
      %2144 = vmatprep.subr.mxu0 0.0
      %2145 = vmatpush1.msra.mxu0 %v2128
      %2146 = vmatprep.subr.mxu0 0.0
      %2147 = vmatpush1.msra.mxu0 %v2127
      %2148 = vmatprep.subr.mxu0 0.0
      %2149 = vmatpush1.msra.mxu0 %v2126
      %2150 = vmatprep.subr.mxu0 0.0
      %2151 = vmatpush1.msra.mxu0 %v2125
      %2152 = vmatprep.subr.mxu0 0.0
      %2153 = vmatpush1.msra.mxu0 %v2124
      %2154 = vmatprep.subr.mxu0 0.0
      %2155 = vmatpush1.msra.mxu0 %v2123
      %2156 = vmatprep.subr.mxu0 0.0
      %2157 = vmatpush1.msra.mxu0 %v2122
      %2158 = vmatprep.subr.mxu0 0.0
      %2159 = vmatpush1.msra.mxu0 %v2121
      %2160 = vmatprep.subr.mxu0 0.0
      %2161 = vmatpush1.msra.mxu0 %v2120
      %2162 = vmatprep.subr.mxu0 0.0
      %2163 = vmatpush1.msra.mxu0 %v2119
      %2164 = vmatprep.subr.mxu0 0.0
      %2165 = vmatpush1.msra.mxu0 %v2118
      %2166 = vmatprep.subr.mxu0 0.0
      %2167 = vmatpush2.msra.mxu0 0.0
      %2168 = vmatprep.subr.mxu0 0.0
      %2169 = vmatpush2.msra.mxu0 0.0
      %2170 = vmatprep.subr.mxu0 0.0
      %2171 = vmatpush2.msra.mxu0 0.0
      %2172 = vmatprep.subr.mxu0 0.0
      %2173 = vmatpush2.msra.mxu0 0.0
      %2174 = vmatprep.subr.mxu0 0.0
      %2175 = vmatpush2.msra.mxu0 0.0
      %2176 = vmatprep.subr.mxu0 0.0
      %2177 = vmatpush2.msra.mxu0 0.0
      %2178 = vmatprep.subr.mxu0 0.0
      %2179 = vmatpush2.msra.mxu0 0.0
      %2180 = vmatprep.subr.mxu0 0.0
      %2181 = vmatpush2.msra.mxu0 0.0
      %2182 = vmatprep.subr.mxu0 0.0
      %2183 = vmatpush2.msra.mxu0 0.0
      %2184 = vmatprep.subr.mxu0 0.0
      %2185 = vmatpush2.msra.mxu0 0.0
      %2186 = vmatprep.subr.mxu0 0.0
      %2187 = vmatpush2.msra.mxu0 0.0
      %2188 = vmatprep.subr.mxu0 0.0
      %2189 = vmatpush2.msra.mxu0 0.0
      %2190 = vmatprep.subr.mxu0 0.0
      %2191 = vmatpush2.msra.mxu0 0.0
      %2192 = vmatprep.subr.mxu0 0.0
      %2193 = vmatpush2.msra.mxu0 0.0
      %2194 = vmatprep.subr.mxu0 0.0
      %2195 = vmatpush2.msra.mxu0 0.0
      %2196 = vmatprep.subr.mxu0 0.0
      %2197 = vmatpush2.msra.mxu0 0.0
      %2198 = vmatprep.mubr.f32.mxu0 0.0
      %2199 = vmatmul.mubr.f32.gmra.mxu0 %v2085
      %v2200 = vpop.f32.mrf.mxu0
      %v2201 = vadd.f32 0.0, %v2200
      %v2202 = vpop.f32.mrf.mxu0
      %2203 = vmatprep.mubr.f32.mxu0 0.0
      %2204 = vmatmul.mubr.f32.gmra.mxu0 %v2086
      %v2205 = vpop.f32.mrf.mxu0
      %v2206 = vadd.f32 0.0, %v2205
      %v2207 = vpop.f32.mrf.mxu0
      %2208 = vmatprep.mubr.f32.mxu0 0.0
      %2209 = vmatmul.mubr.f32.gmra.mxu0 %v2087
      %v2210 = vpop.f32.mrf.mxu0
      %v2211 = vadd.f32 0.0, %v2210
      %v2212 = vpop.f32.mrf.mxu0
      %2213 = vmatprep.mubr.f32.mxu0 0.0
      %2214 = vmatmul.mubr.f32.gmra.mxu0 %v2088
      %v2215 = vpop.f32.mrf.mxu0
      %v2216 = vadd.f32 0.0, %v2215
      %v2217 = vpop.f32.mrf.mxu0
      %2218 = vmatprep.mubr.f32.mxu0 0.0
      %2219 = vmatmul.mubr.f32.gmra.mxu0 %v2089
      %v2220 = vpop.f32.mrf.mxu0
      %v2221 = vadd.f32 0.0, %v2220
      %v2222 = vpop.f32.mrf.mxu0
      %2223 = vmatprep.mubr.f32.mxu0 0.0
      %2224 = vmatmul.mubr.f32.gmra.mxu0 %v2090
      %v2225 = vpop.f32.mrf.mxu0
      %v2226 = vadd.f32 0.0, %v2225
      %v2227 = vpop.f32.mrf.mxu0
      %2228 = vmatprep.mubr.f32.mxu0 0.0
      %2229 = vmatmul.mubr.f32.gmra.mxu0 %v2091
      %v2230 = vpop.f32.mrf.mxu0
      %v2231 = vadd.f32 0.0, %v2230
      %v2232 = vpop.f32.mrf.mxu0
      %2233 = vmatprep.mubr.f32.mxu0 0.0
      %2234 = vmatmul.mubr.f32.gmra.mxu0 %v2092
      %v2235 = vpop.f32.mrf.mxu0
      %v2236 = vadd.f32 0.0, %v2235
      %v2237 = vpop.f32.mrf.mxu0
      %2238 = vmatprep.mubr.f32.mxu0 0.0
      %2239 = vmatmul.mubr.f32.gmra.mxu0 %v2093
      %v2240 = vpop.f32.mrf.mxu0
      %v2241 = vadd.f32 0.0, %v2240
      %v2242 = vpop.f32.mrf.mxu0
      %2243 = vmatprep.mubr.f32.mxu0 0.0
      %2244 = vmatmul.mubr.f32.gmra.mxu0 %v2094
      %v2245 = vpop.f32.mrf.mxu0
      %v2246 = vadd.f32 0.0, %v2245
      %v2247 = vpop.f32.mrf.mxu0
      %2248 = vmatprep.mubr.f32.mxu0 0.0
      %2249 = vmatmul.mubr.f32.gmra.mxu0 %v2095
      %v2250 = vpop.f32.mrf.mxu0
      %v2251 = vadd.f32 0.0, %v2250
      %v2252 = vpop.f32.mrf.mxu0
      %2253 = vmatprep.mubr.f32.mxu0 0.0
      %2254 = vmatmul.mubr.f32.gmra.mxu0 %v2096
      %v2255 = vpop.f32.mrf.mxu0
      %v2256 = vadd.f32 0.0, %v2255
      %v2257 = vpop.f32.mrf.mxu0
      %2258 = vmatprep.mubr.f32.mxu0 0.0
      %2259 = vmatmul.mubr.f32.gmra.mxu0 %v2097
      %v2260 = vpop.f32.mrf.mxu0
      %v2261 = vadd.f32 0.0, %v2260
      %v2262 = vpop.f32.mrf.mxu0
      %2263 = vmatprep.mubr.f32.mxu0 0.0
      %2264 = vmatmul.mubr.f32.gmra.mxu0 %v2098
      %v2265 = vpop.f32.mrf.mxu0
      %v2266 = vadd.f32 0.0, %v2265
      %v2267 = vpop.f32.mrf.mxu0
      %2268 = vmatprep.mubr.f32.mxu0 0.0
      %2269 = vmatmul.mubr.f32.gmra.mxu0 %v2099
      %v2270 = vpop.f32.mrf.mxu0
      %v2271 = vadd.f32 0.0, %v2270
      %v2272 = vpop.f32.mrf.mxu0
      %2273 = vmatprep.mubr.f32.mxu0 0.0
      %2274 = vmatmul.mubr.f32.gmra.mxu0 %v2100
      %v2275 = vpop.f32.mrf.mxu0
      %v2276 = vadd.f32 0.0, %v2275
      %v2277 = vpop.f32.mrf.mxu0
      %2278 = vmatprep.mubr.f32.mxu0 0.0
      %2279 = vmatmul.mubr.f32.gmra.mxu0 %v2101
      %v2280 = vpop.f32.mrf.mxu0
      %v2281 = vadd.f32 0.0, %v2280
      %v2282 = vpop.f32.mrf.mxu0
      %2283 = vmatprep.mubr.f32.mxu0 0.0
      %2284 = vmatmul.mubr.f32.gmra.mxu0 %v2102
      %v2285 = vpop.f32.mrf.mxu0
      %v2286 = vadd.f32 0.0, %v2285
      %v2287 = vpop.f32.mrf.mxu0
      %2288 = vmatprep.mubr.f32.mxu0 0.0
      %2289 = vmatmul.mubr.f32.gmra.mxu0 %v2103
      %v2290 = vpop.f32.mrf.mxu0
      %v2291 = vadd.f32 0.0, %v2290
      %v2292 = vpop.f32.mrf.mxu0
      %2293 = vmatprep.mubr.f32.mxu0 0.0
      %2294 = vmatmul.mubr.f32.gmra.mxu0 %v2104
      %v2295 = vpop.f32.mrf.mxu0
      %v2296 = vadd.f32 0.0, %v2295
      %v2297 = vpop.f32.mrf.mxu0
      %2298 = vmatprep.mubr.f32.mxu0 0.0
      %2299 = vmatmul.mubr.f32.gmra.mxu0 %v2105
      %v2300 = vpop.f32.mrf.mxu0
      %v2301 = vadd.f32 0.0, %v2300
      %v2302 = vpop.f32.mrf.mxu0
      %2303 = vmatprep.mubr.f32.mxu0 0.0
      %2304 = vmatmul.mubr.f32.gmra.mxu0 %v2106
      %v2305 = vpop.f32.mrf.mxu0
      %v2306 = vadd.f32 0.0, %v2305
      %v2307 = vpop.f32.mrf.mxu0
      %2308 = vmatprep.mubr.f32.mxu0 0.0
      %2309 = vmatmul.mubr.f32.gmra.mxu0 %v2107
      %v2310 = vpop.f32.mrf.mxu0
      %v2311 = vadd.f32 0.0, %v2310
      %v2312 = vpop.f32.mrf.mxu0
      %2313 = vmatprep.mubr.f32.mxu0 0.0
      %2314 = vmatmul.mubr.f32.gmra.mxu0 %v2108
      %v2315 = vpop.f32.mrf.mxu0
      %v2316 = vadd.f32 0.0, %v2315
      %v2317 = vpop.f32.mrf.mxu0
      %2318 = vmatprep.mubr.f32.mxu0 0.0
      %2319 = vmatmul.mubr.f32.gmra.mxu0 %v2109
      %v2320 = vpop.f32.mrf.mxu0
      %v2321 = vadd.f32 0.0, %v2320
      %v2322 = vpop.f32.mrf.mxu0
      %2323 = vmatprep.mubr.f32.mxu0 0.0
      %2324 = vmatmul.mubr.f32.gmra.mxu0 %v2110
      %v2325 = vpop.f32.mrf.mxu0
      %v2326 = vadd.f32 0.0, %v2325
      %v2327 = vpop.f32.mrf.mxu0
      %2328 = vmatprep.mubr.f32.mxu0 0.0
      %2329 = vmatmul.mubr.f32.gmra.mxu0 %v2111
      %v2330 = vpop.f32.mrf.mxu0
      %v2331 = vadd.f32 0.0, %v2330
      %v2332 = vpop.f32.mrf.mxu0
      %2333 = vmatprep.mubr.f32.mxu0 0.0
      %2334 = vmatmul.mubr.f32.gmra.mxu0 %v2112
      %v2335 = vpop.f32.mrf.mxu0
      %v2336 = vadd.f32 0.0, %v2335
      %v2337 = vpop.f32.mrf.mxu0
      %2338 = vmatprep.mubr.f32.mxu0 0.0
      %2339 = vmatmul.mubr.f32.gmra.mxu0 %v2113
      %v2340 = vpop.f32.mrf.mxu0
      %v2341 = vadd.f32 0.0, %v2340
      %v2342 = vpop.f32.mrf.mxu0
      %2343 = vmatprep.mubr.f32.mxu0 0.0
      %2344 = vmatmul.mubr.f32.gmra.mxu0 %v2114
      %v2345 = vpop.f32.mrf.mxu0
      %v2346 = vadd.f32 0.0, %v2345
      %v2347 = vpop.f32.mrf.mxu0
      %2348 = vmatprep.mubr.f32.mxu0 0.0
      %2349 = vmatmul.mubr.f32.gmra.mxu0 %v2115
      %v2350 = vpop.f32.mrf.mxu0
      %v2351 = vadd.f32 0.0, %v2350
      %v2352 = vpop.f32.mrf.mxu0
      %2353 = vmatprep.mubr.f32.mxu0 0.0
      %2354 = vmatmul.mubr.f32.gmra.mxu0 %v2116
      %v2355 = vpop.f32.mrf.mxu0
      %v2356 = vadd.f32 0.0, %v2355
      %v2357 = vpop.f32.mrf.mxu0
      %2358 = vdwg.mxu0
      %v2359 = vadd.f32 %v2052, %v2201
      %v2360 = vadd.f32 %v2053, %v2206
      %v2361 = vadd.f32 %v2054, %v2211
      %v2362 = vadd.f32 %v2055, %v2216
      %v2363 = vadd.f32 %v2056, %v2221
      %v2364 = vadd.f32 %v2057, %v2226
      %v2365 = vadd.f32 %v2058, %v2231
      %v2366 = vadd.f32 %v2059, %v2236
      %v2367 = vadd.f32 %v2060, %v2241
      %v2368 = vadd.f32 %v2061, %v2246
      %v2369 = vadd.f32 %v2062, %v2251
      %v2370 = vadd.f32 %v2063, %v2256
      %v2371 = vadd.f32 %v2064, %v2261
      %v2372 = vadd.f32 %v2065, %v2266
      %v2373 = vadd.f32 %v2066, %v2271
      %v2374 = vadd.f32 %v2067, %v2276
      %v2375 = vadd.f32 %v2068, %v2281
      %v2376 = vadd.f32 %v2069, %v2286
      %v2377 = vadd.f32 %v2070, %v2291
      %v2378 = vadd.f32 %v2071, %v2296
      %v2379 = vadd.f32 %v2072, %v2301
      %v2380 = vadd.f32 %v2073, %v2306
      %v2381 = vadd.f32 %v2074, %v2311
      %v2382 = vadd.f32 %v2075, %v2316
      %v2383 = vadd.f32 %v2076, %v2321
      %v2384 = vadd.f32 %v2077, %v2326
      %v2385 = vadd.f32 %v2078, %v2331
      %v2386 = vadd.f32 %v2079, %v2336
      %v2387 = vadd.f32 %v2080, %v2341
      %v2388 = vadd.f32 %v2081, %v2346
      %v2389 = vadd.f32 %v2082, %v2351
      %v2390 = vadd.f32 %v2083, %v2356
      %v2391 = vld [vmem:[%s2084 + $0x1] sm:$0xff]
      %v2392 = vld [vmem:[%s2084 + $0x9] sm:$0xff]
      %v2393 = vld [vmem:[%s2084 + $0x19] sm:$0xff]
      %v2394 = vld [vmem:[%s2084 + $0x21] sm:$0xff]
      %v2395 = vld [vmem:[%s2084 + $0x31] sm:$0xff]
      %v2396 = vld [vmem:[%s2084 + $0x39] sm:$0xff]
      %v2397 = vld [vmem:[%s2084 + $0x49] sm:$0xff]
      %v2398 = vld [vmem:[%s2084 + $0x51] sm:$0xff]
      %v2399 = vld [vmem:[%s2084 + $0x61] sm:$0xff]
      %v2400 = vld [vmem:[%s2084 + $0x69] sm:$0xff]
      %v2401 = vld [vmem:[%s2084 + $0x79] sm:$0xff]
      %v2402 = vld [vmem:[%s2084 + $0x81] sm:$0xff]
      %v2403 = vld [vmem:[%s2084 + $0x91] sm:$0xff]
      %v2404 = vld [vmem:[%s2084 + $0x99] sm:$0xff]
      %v2405 = vld [vmem:[%s2084 + $0xa9] sm:$0xff]
      %v2406 = vld [vmem:[%s2084 + $0xb1] sm:$0xff]
      %v2407 = vld [vmem:[%s2084 + $0xc1] sm:$0xff]
      %v2408 = vld [vmem:[%s2084 + $0xc9] sm:$0xff]
      %v2409 = vld [vmem:[%s2084 + $0xd9] sm:$0xff]
      %v2410 = vld [vmem:[%s2084 + $0xe1] sm:$0xff]
      %v2411 = vld [vmem:[%s2084 + $0xf1] sm:$0xff]
      %v2412 = vld [vmem:[%s2084 + $0xf9] sm:$0xff]
      %v2413 = vld [vmem:[%s2084 + $0x109] sm:$0xff]
      %v2414 = vld [vmem:[%s2084 + $0x111] sm:$0xff]
      %v2415 = vld [vmem:[%s2084 + $0x121] sm:$0xff]
      %v2416 = vld [vmem:[%s2084 + $0x129] sm:$0xff]
      %v2417 = vld [vmem:[%s2084 + $0x139] sm:$0xff]
      %v2418 = vld [vmem:[%s2084 + $0x141] sm:$0xff]
      %v2419 = vld [vmem:[%s2084 + $0x151] sm:$0xff]
      %v2420 = vld [vmem:[%s2084 + $0x159] sm:$0xff]
      %v2421 = vld [vmem:[%s2084 + $0x169] sm:$0xff]
      %v2422 = vld [vmem:[%s2084 + $0x171] sm:$0xff]
      %s2423 = scalar_lea.vmem %s1, 896
      %v2424 = vld [vmem:[%s2423] sm:$0xff]
      %v2425 = vld [vmem:[%s2423 + $0x8] sm:$0xff]
      %v2426 = vld [vmem:[%s2423 + $0x10] sm:$0xff]
      %v2427 = vld [vmem:[%s2423 + $0x18] sm:$0xff]
      %v2428 = vld [vmem:[%s2423 + $0x20] sm:$0xff]
      %v2429 = vld [vmem:[%s2423 + $0x28] sm:$0xff]
      %v2430 = vld [vmem:[%s2423 + $0x30] sm:$0xff]
      %v2431 = vld [vmem:[%s2423 + $0x38] sm:$0xff]
      %v2432 = vld [vmem:[%s2423 + $0x40] sm:$0xff]
      %v2433 = vld [vmem:[%s2423 + $0x48] sm:$0xff]
      %v2434 = vld [vmem:[%s2423 + $0x50] sm:$0xff]
      %v2435 = vld [vmem:[%s2423 + $0x58] sm:$0xff]
      %v2436 = vld [vmem:[%s2423 + $0x60] sm:$0xff]
      %v2437 = vld [vmem:[%s2423 + $0x68] sm:$0xff]
      %v2438 = vld [vmem:[%s2423 + $0x70] sm:$0xff]
      %v2439 = vld [vmem:[%s2423 + $0x78] sm:$0xff]
      %2440 = vmatprep.subr.mxu0 0.0
      %2441 = vmatpush1.msra.mxu0 %v2439
      %2442 = vmatprep.subr.mxu0 0.0
      %2443 = vmatpush1.msra.mxu0 %v2438
      %2444 = vmatprep.subr.mxu0 0.0
      %2445 = vmatpush1.msra.mxu0 %v2437
      %2446 = vmatprep.subr.mxu0 0.0
      %2447 = vmatpush1.msra.mxu0 %v2436
      %2448 = vmatprep.subr.mxu0 0.0
      %2449 = vmatpush1.msra.mxu0 %v2435
      %2450 = vmatprep.subr.mxu0 0.0
      %2451 = vmatpush1.msra.mxu0 %v2434
      %2452 = vmatprep.subr.mxu0 0.0
      %2453 = vmatpush1.msra.mxu0 %v2433
      %2454 = vmatprep.subr.mxu0 0.0
      %2455 = vmatpush1.msra.mxu0 %v2432
      %2456 = vmatprep.subr.mxu0 0.0
      %2457 = vmatpush1.msra.mxu0 %v2431
      %2458 = vmatprep.subr.mxu0 0.0
      %2459 = vmatpush1.msra.mxu0 %v2430
      %2460 = vmatprep.subr.mxu0 0.0
      %2461 = vmatpush1.msra.mxu0 %v2429
      %2462 = vmatprep.subr.mxu0 0.0
      %2463 = vmatpush1.msra.mxu0 %v2428
      %2464 = vmatprep.subr.mxu0 0.0
      %2465 = vmatpush1.msra.mxu0 %v2427
      %2466 = vmatprep.subr.mxu0 0.0
      %2467 = vmatpush1.msra.mxu0 %v2426
      %2468 = vmatprep.subr.mxu0 0.0
      %2469 = vmatpush1.msra.mxu0 %v2425
      %2470 = vmatprep.subr.mxu0 0.0
      %2471 = vmatpush1.msra.mxu0 %v2424
      %2472 = vmatprep.subr.mxu0 0.0
      %2473 = vmatpush2.msra.mxu0 0.0
      %2474 = vmatprep.subr.mxu0 0.0
      %2475 = vmatpush2.msra.mxu0 0.0
      %2476 = vmatprep.subr.mxu0 0.0
      %2477 = vmatpush2.msra.mxu0 0.0
      %2478 = vmatprep.subr.mxu0 0.0
      %2479 = vmatpush2.msra.mxu0 0.0
      %2480 = vmatprep.subr.mxu0 0.0
      %2481 = vmatpush2.msra.mxu0 0.0
      %2482 = vmatprep.subr.mxu0 0.0
      %2483 = vmatpush2.msra.mxu0 0.0
      %2484 = vmatprep.subr.mxu0 0.0
      %2485 = vmatpush2.msra.mxu0 0.0
      %2486 = vmatprep.subr.mxu0 0.0
      %2487 = vmatpush2.msra.mxu0 0.0
      %2488 = vmatprep.subr.mxu0 0.0
      %2489 = vmatpush2.msra.mxu0 0.0
      %2490 = vmatprep.subr.mxu0 0.0
      %2491 = vmatpush2.msra.mxu0 0.0
      %2492 = vmatprep.subr.mxu0 0.0
      %2493 = vmatpush2.msra.mxu0 0.0
      %2494 = vmatprep.subr.mxu0 0.0
      %2495 = vmatpush2.msra.mxu0 0.0
      %2496 = vmatprep.subr.mxu0 0.0
      %2497 = vmatpush2.msra.mxu0 0.0
      %2498 = vmatprep.subr.mxu0 0.0
      %2499 = vmatpush2.msra.mxu0 0.0
      %2500 = vmatprep.subr.mxu0 0.0
      %2501 = vmatpush2.msra.mxu0 0.0
      %2502 = vmatprep.subr.mxu0 0.0
      %2503 = vmatpush2.msra.mxu0 0.0
      %2504 = vmatprep.mubr.f32.mxu0 0.0
      %2505 = vmatmul.mubr.f32.gmra.mxu0 %v2391
      %v2506 = vpop.f32.mrf.mxu0
      %v2507 = vadd.f32 0.0, %v2506
      %v2508 = vpop.f32.mrf.mxu0
      %2509 = vmatprep.mubr.f32.mxu0 0.0
      %2510 = vmatmul.mubr.f32.gmra.mxu0 %v2392
      %v2511 = vpop.f32.mrf.mxu0
      %v2512 = vadd.f32 0.0, %v2511
      %v2513 = vpop.f32.mrf.mxu0
      %2514 = vmatprep.mubr.f32.mxu0 0.0
      %2515 = vmatmul.mubr.f32.gmra.mxu0 %v2393
      %v2516 = vpop.f32.mrf.mxu0
      %v2517 = vadd.f32 0.0, %v2516
      %v2518 = vpop.f32.mrf.mxu0
      %2519 = vmatprep.mubr.f32.mxu0 0.0
      %2520 = vmatmul.mubr.f32.gmra.mxu0 %v2394
      %v2521 = vpop.f32.mrf.mxu0
      %v2522 = vadd.f32 0.0, %v2521
      %v2523 = vpop.f32.mrf.mxu0
      %2524 = vmatprep.mubr.f32.mxu0 0.0
      %2525 = vmatmul.mubr.f32.gmra.mxu0 %v2395
      %v2526 = vpop.f32.mrf.mxu0
      %v2527 = vadd.f32 0.0, %v2526
      %v2528 = vpop.f32.mrf.mxu0
      %2529 = vmatprep.mubr.f32.mxu0 0.0
      %2530 = vmatmul.mubr.f32.gmra.mxu0 %v2396
      %v2531 = vpop.f32.mrf.mxu0
      %v2532 = vadd.f32 0.0, %v2531
      %v2533 = vpop.f32.mrf.mxu0
      %2534 = vmatprep.mubr.f32.mxu0 0.0
      %2535 = vmatmul.mubr.f32.gmra.mxu0 %v2397
      %v2536 = vpop.f32.mrf.mxu0
      %v2537 = vadd.f32 0.0, %v2536
      %v2538 = vpop.f32.mrf.mxu0
      %2539 = vmatprep.mubr.f32.mxu0 0.0
      %2540 = vmatmul.mubr.f32.gmra.mxu0 %v2398
      %v2541 = vpop.f32.mrf.mxu0
      %v2542 = vadd.f32 0.0, %v2541
      %v2543 = vpop.f32.mrf.mxu0
      %2544 = vmatprep.mubr.f32.mxu0 0.0
      %2545 = vmatmul.mubr.f32.gmra.mxu0 %v2399
      %v2546 = vpop.f32.mrf.mxu0
      %v2547 = vadd.f32 0.0, %v2546
      %v2548 = vpop.f32.mrf.mxu0
      %2549 = vmatprep.mubr.f32.mxu0 0.0
      %2550 = vmatmul.mubr.f32.gmra.mxu0 %v2400
      %v2551 = vpop.f32.mrf.mxu0
      %v2552 = vadd.f32 0.0, %v2551
      %v2553 = vpop.f32.mrf.mxu0
      %2554 = vmatprep.mubr.f32.mxu0 0.0
      %2555 = vmatmul.mubr.f32.gmra.mxu0 %v2401
      %v2556 = vpop.f32.mrf.mxu0
      %v2557 = vadd.f32 0.0, %v2556
      %v2558 = vpop.f32.mrf.mxu0
      %2559 = vmatprep.mubr.f32.mxu0 0.0
      %2560 = vmatmul.mubr.f32.gmra.mxu0 %v2402
      %v2561 = vpop.f32.mrf.mxu0
      %v2562 = vadd.f32 0.0, %v2561
      %v2563 = vpop.f32.mrf.mxu0
      %2564 = vmatprep.mubr.f32.mxu0 0.0
      %2565 = vmatmul.mubr.f32.gmra.mxu0 %v2403
      %v2566 = vpop.f32.mrf.mxu0
      %v2567 = vadd.f32 0.0, %v2566
      %v2568 = vpop.f32.mrf.mxu0
      %2569 = vmatprep.mubr.f32.mxu0 0.0
      %2570 = vmatmul.mubr.f32.gmra.mxu0 %v2404
      %v2571 = vpop.f32.mrf.mxu0
      %v2572 = vadd.f32 0.0, %v2571
      %v2573 = vpop.f32.mrf.mxu0
      %2574 = vmatprep.mubr.f32.mxu0 0.0
      %2575 = vmatmul.mubr.f32.gmra.mxu0 %v2405
      %v2576 = vpop.f32.mrf.mxu0
      %v2577 = vadd.f32 0.0, %v2576
      %v2578 = vpop.f32.mrf.mxu0
      %2579 = vmatprep.mubr.f32.mxu0 0.0
      %2580 = vmatmul.mubr.f32.gmra.mxu0 %v2406
      %v2581 = vpop.f32.mrf.mxu0
      %v2582 = vadd.f32 0.0, %v2581
      %v2583 = vpop.f32.mrf.mxu0
      %2584 = vmatprep.mubr.f32.mxu0 0.0
      %2585 = vmatmul.mubr.f32.gmra.mxu0 %v2407
      %v2586 = vpop.f32.mrf.mxu0
      %v2587 = vadd.f32 0.0, %v2586
      %v2588 = vpop.f32.mrf.mxu0
      %2589 = vmatprep.mubr.f32.mxu0 0.0
      %2590 = vmatmul.mubr.f32.gmra.mxu0 %v2408
      %v2591 = vpop.f32.mrf.mxu0
      %v2592 = vadd.f32 0.0, %v2591
      %v2593 = vpop.f32.mrf.mxu0
      %2594 = vmatprep.mubr.f32.mxu0 0.0
      %2595 = vmatmul.mubr.f32.gmra.mxu0 %v2409
      %v2596 = vpop.f32.mrf.mxu0
      %v2597 = vadd.f32 0.0, %v2596
      %v2598 = vpop.f32.mrf.mxu0
      %2599 = vmatprep.mubr.f32.mxu0 0.0
      %2600 = vmatmul.mubr.f32.gmra.mxu0 %v2410
      %v2601 = vpop.f32.mrf.mxu0
      %v2602 = vadd.f32 0.0, %v2601
      %v2603 = vpop.f32.mrf.mxu0
      %2604 = vmatprep.mubr.f32.mxu0 0.0
      %2605 = vmatmul.mubr.f32.gmra.mxu0 %v2411
      %v2606 = vpop.f32.mrf.mxu0
      %v2607 = vadd.f32 0.0, %v2606
      %v2608 = vpop.f32.mrf.mxu0
      %2609 = vmatprep.mubr.f32.mxu0 0.0
      %2610 = vmatmul.mubr.f32.gmra.mxu0 %v2412
      %v2611 = vpop.f32.mrf.mxu0
      %v2612 = vadd.f32 0.0, %v2611
      %v2613 = vpop.f32.mrf.mxu0
      %2614 = vmatprep.mubr.f32.mxu0 0.0
      %2615 = vmatmul.mubr.f32.gmra.mxu0 %v2413
      %v2616 = vpop.f32.mrf.mxu0
      %v2617 = vadd.f32 0.0, %v2616
      %v2618 = vpop.f32.mrf.mxu0
      %2619 = vmatprep.mubr.f32.mxu0 0.0
      %2620 = vmatmul.mubr.f32.gmra.mxu0 %v2414
      %v2621 = vpop.f32.mrf.mxu0
      %v2622 = vadd.f32 0.0, %v2621
      %v2623 = vpop.f32.mrf.mxu0
      %2624 = vmatprep.mubr.f32.mxu0 0.0
      %2625 = vmatmul.mubr.f32.gmra.mxu0 %v2415
      %v2626 = vpop.f32.mrf.mxu0
      %v2627 = vadd.f32 0.0, %v2626
      %v2628 = vpop.f32.mrf.mxu0
      %2629 = vmatprep.mubr.f32.mxu0 0.0
      %2630 = vmatmul.mubr.f32.gmra.mxu0 %v2416
      %v2631 = vpop.f32.mrf.mxu0
      %v2632 = vadd.f32 0.0, %v2631
      %v2633 = vpop.f32.mrf.mxu0
      %2634 = vmatprep.mubr.f32.mxu0 0.0
      %2635 = vmatmul.mubr.f32.gmra.mxu0 %v2417
      %v2636 = vpop.f32.mrf.mxu0
      %v2637 = vadd.f32 0.0, %v2636
      %v2638 = vpop.f32.mrf.mxu0
      %2639 = vmatprep.mubr.f32.mxu0 0.0
      %2640 = vmatmul.mubr.f32.gmra.mxu0 %v2418
      %v2641 = vpop.f32.mrf.mxu0
      %v2642 = vadd.f32 0.0, %v2641
      %v2643 = vpop.f32.mrf.mxu0
      %2644 = vmatprep.mubr.f32.mxu0 0.0
      %2645 = vmatmul.mubr.f32.gmra.mxu0 %v2419
      %v2646 = vpop.f32.mrf.mxu0
      %v2647 = vadd.f32 0.0, %v2646
      %v2648 = vpop.f32.mrf.mxu0
      %2649 = vmatprep.mubr.f32.mxu0 0.0
      %2650 = vmatmul.mubr.f32.gmra.mxu0 %v2420
      %v2651 = vpop.f32.mrf.mxu0
      %v2652 = vadd.f32 0.0, %v2651
      %v2653 = vpop.f32.mrf.mxu0
      %2654 = vmatprep.mubr.f32.mxu0 0.0
      %2655 = vmatmul.mubr.f32.gmra.mxu0 %v2421
      %v2656 = vpop.f32.mrf.mxu0
      %v2657 = vadd.f32 0.0, %v2656
      %v2658 = vpop.f32.mrf.mxu0
      %2659 = vmatprep.mubr.f32.mxu0 0.0
      %2660 = vmatmul.mubr.f32.gmra.mxu0 %v2422
      %v2661 = vpop.f32.mrf.mxu0
      %v2662 = vadd.f32 0.0, %v2661
      %v2663 = vpop.f32.mrf.mxu0
      %2664 = vdwg.mxu0
      %v2665 = vadd.f32 %v2359, %v2507
      %v2666 = vadd.f32 %v2360, %v2512
      %v2667 = vadd.f32 %v2361, %v2517
      %v2668 = vadd.f32 %v2362, %v2522
      %v2669 = vadd.f32 %v2363, %v2527
      %v2670 = vadd.f32 %v2364, %v2532
      %v2671 = vadd.f32 %v2365, %v2537
      %v2672 = vadd.f32 %v2366, %v2542
      %v2673 = vadd.f32 %v2367, %v2547
      %v2674 = vadd.f32 %v2368, %v2552
      %v2675 = vadd.f32 %v2369, %v2557
      %v2676 = vadd.f32 %v2370, %v2562
      %v2677 = vadd.f32 %v2371, %v2567
      %v2678 = vadd.f32 %v2372, %v2572
      %v2679 = vadd.f32 %v2373, %v2577
      %v2680 = vadd.f32 %v2374, %v2582
      %v2681 = vadd.f32 %v2375, %v2587
      %v2682 = vadd.f32 %v2376, %v2592
      %v2683 = vadd.f32 %v2377, %v2597
      %v2684 = vadd.f32 %v2378, %v2602
      %v2685 = vadd.f32 %v2379, %v2607
      %v2686 = vadd.f32 %v2380, %v2612
      %v2687 = vadd.f32 %v2381, %v2617
      %v2688 = vadd.f32 %v2382, %v2622
      %v2689 = vadd.f32 %v2383, %v2627
      %v2690 = vadd.f32 %v2384, %v2632
      %v2691 = vadd.f32 %v2385, %v2637
      %v2692 = vadd.f32 %v2386, %v2642
      %v2693 = vadd.f32 %v2387, %v2647
      %v2694 = vadd.f32 %v2388, %v2652
      %v2695 = vadd.f32 %v2389, %v2657
      %v2696 = vadd.f32 %v2390, %v2662
      %v2697 = vld [vmem:[%s2084 + $0x2] sm:$0xff]
      %v2698 = vld [vmem:[%s2084 + $0xa] sm:$0xff]
      %v2699 = vld [vmem:[%s2084 + $0x1a] sm:$0xff]
      %v2700 = vld [vmem:[%s2084 + $0x22] sm:$0xff]
      %v2701 = vld [vmem:[%s2084 + $0x32] sm:$0xff]
      %v2702 = vld [vmem:[%s2084 + $0x3a] sm:$0xff]
      %v2703 = vld [vmem:[%s2084 + $0x4a] sm:$0xff]
      %v2704 = vld [vmem:[%s2084 + $0x52] sm:$0xff]
      %v2705 = vld [vmem:[%s2084 + $0x62] sm:$0xff]
      %v2706 = vld [vmem:[%s2084 + $0x6a] sm:$0xff]
      %v2707 = vld [vmem:[%s2084 + $0x7a] sm:$0xff]
      %v2708 = vld [vmem:[%s2084 + $0x82] sm:$0xff]
      %v2709 = vld [vmem:[%s2084 + $0x92] sm:$0xff]
      %v2710 = vld [vmem:[%s2084 + $0x9a] sm:$0xff]
      %v2711 = vld [vmem:[%s2084 + $0xaa] sm:$0xff]
      %v2712 = vld [vmem:[%s2084 + $0xb2] sm:$0xff]
      %v2713 = vld [vmem:[%s2084 + $0xc2] sm:$0xff]
      %v2714 = vld [vmem:[%s2084 + $0xca] sm:$0xff]
      %v2715 = vld [vmem:[%s2084 + $0xda] sm:$0xff]
      %v2716 = vld [vmem:[%s2084 + $0xe2] sm:$0xff]
      %v2717 = vld [vmem:[%s2084 + $0xf2] sm:$0xff]
      %v2718 = vld [vmem:[%s2084 + $0xfa] sm:$0xff]
      %v2719 = vld [vmem:[%s2084 + $0x10a] sm:$0xff]
      %v2720 = vld [vmem:[%s2084 + $0x112] sm:$0xff]
      %v2721 = vld [vmem:[%s2084 + $0x122] sm:$0xff]
      %v2722 = vld [vmem:[%s2084 + $0x12a] sm:$0xff]
      %v2723 = vld [vmem:[%s2084 + $0x13a] sm:$0xff]
      %v2724 = vld [vmem:[%s2084 + $0x142] sm:$0xff]
      %v2725 = vld [vmem:[%s2084 + $0x152] sm:$0xff]
      %v2726 = vld [vmem:[%s2084 + $0x15a] sm:$0xff]
      %v2727 = vld [vmem:[%s2084 + $0x16a] sm:$0xff]
      %v2728 = vld [vmem:[%s2084 + $0x172] sm:$0xff]
      %s2729 = scalar_lea.vmem %s1, 1024
      %v2730 = vld [vmem:[%s2729] sm:$0xff]
      %v2731 = vld [vmem:[%s2729 + $0x8] sm:$0xff]
      %v2732 = vld [vmem:[%s2729 + $0x10] sm:$0xff]
      %v2733 = vld [vmem:[%s2729 + $0x18] sm:$0xff]
      %v2734 = vld [vmem:[%s2729 + $0x20] sm:$0xff]
      %v2735 = vld [vmem:[%s2729 + $0x28] sm:$0xff]
      %v2736 = vld [vmem:[%s2729 + $0x30] sm:$0xff]
      %v2737 = vld [vmem:[%s2729 + $0x38] sm:$0xff]
      %v2738 = vld [vmem:[%s2729 + $0x40] sm:$0xff]
      %v2739 = vld [vmem:[%s2729 + $0x48] sm:$0xff]
      %v2740 = vld [vmem:[%s2729 + $0x50] sm:$0xff]
      %v2741 = vld [vmem:[%s2729 + $0x58] sm:$0xff]
      %v2742 = vld [vmem:[%s2729 + $0x60] sm:$0xff]
      %v2743 = vld [vmem:[%s2729 + $0x68] sm:$0xff]
      %v2744 = vld [vmem:[%s2729 + $0x70] sm:$0xff]
      %v2745 = vld [vmem:[%s2729 + $0x78] sm:$0xff]
      %2746 = vmatprep.subr.mxu0 0.0
      %2747 = vmatpush1.msra.mxu0 %v2745
      %2748 = vmatprep.subr.mxu0 0.0
      %2749 = vmatpush1.msra.mxu0 %v2744
      %2750 = vmatprep.subr.mxu0 0.0
      %2751 = vmatpush1.msra.mxu0 %v2743
      %2752 = vmatprep.subr.mxu0 0.0
      %2753 = vmatpush1.msra.mxu0 %v2742
      %2754 = vmatprep.subr.mxu0 0.0
      %2755 = vmatpush1.msra.mxu0 %v2741
      %2756 = vmatprep.subr.mxu0 0.0
      %2757 = vmatpush1.msra.mxu0 %v2740
      %2758 = vmatprep.subr.mxu0 0.0
      %2759 = vmatpush1.msra.mxu0 %v2739
      %2760 = vmatprep.subr.mxu0 0.0
      %2761 = vmatpush1.msra.mxu0 %v2738
      %2762 = vmatprep.subr.mxu0 0.0
      %2763 = vmatpush1.msra.mxu0 %v2737
      %2764 = vmatprep.subr.mxu0 0.0
      %2765 = vmatpush1.msra.mxu0 %v2736
      %2766 = vmatprep.subr.mxu0 0.0
      %2767 = vmatpush1.msra.mxu0 %v2735
      %2768 = vmatprep.subr.mxu0 0.0
      %2769 = vmatpush1.msra.mxu0 %v2734
      %2770 = vmatprep.subr.mxu0 0.0
      %2771 = vmatpush1.msra.mxu0 %v2733
      %2772 = vmatprep.subr.mxu0 0.0
      %2773 = vmatpush1.msra.mxu0 %v2732
      %2774 = vmatprep.subr.mxu0 0.0
      %2775 = vmatpush1.msra.mxu0 %v2731
      %2776 = vmatprep.subr.mxu0 0.0
      %2777 = vmatpush1.msra.mxu0 %v2730
      %2778 = vmatprep.subr.mxu0 0.0
      %2779 = vmatpush2.msra.mxu0 0.0
      %2780 = vmatprep.subr.mxu0 0.0
      %2781 = vmatpush2.msra.mxu0 0.0
      %2782 = vmatprep.subr.mxu0 0.0
      %2783 = vmatpush2.msra.mxu0 0.0
      %2784 = vmatprep.subr.mxu0 0.0
      %2785 = vmatpush2.msra.mxu0 0.0
      %2786 = vmatprep.subr.mxu0 0.0
      %2787 = vmatpush2.msra.mxu0 0.0
      %2788 = vmatprep.subr.mxu0 0.0
      %2789 = vmatpush2.msra.mxu0 0.0
      %2790 = vmatprep.subr.mxu0 0.0
      %2791 = vmatpush2.msra.mxu0 0.0
      %2792 = vmatprep.subr.mxu0 0.0
      %2793 = vmatpush2.msra.mxu0 0.0
      %2794 = vmatprep.subr.mxu0 0.0
      %2795 = vmatpush2.msra.mxu0 0.0
      %2796 = vmatprep.subr.mxu0 0.0
      %2797 = vmatpush2.msra.mxu0 0.0
      %2798 = vmatprep.subr.mxu0 0.0
      %2799 = vmatpush2.msra.mxu0 0.0
      %2800 = vmatprep.subr.mxu0 0.0
      %2801 = vmatpush2.msra.mxu0 0.0
      %2802 = vmatprep.subr.mxu0 0.0
      %2803 = vmatpush2.msra.mxu0 0.0
      %2804 = vmatprep.subr.mxu0 0.0
      %2805 = vmatpush2.msra.mxu0 0.0
      %2806 = vmatprep.subr.mxu0 0.0
      %2807 = vmatpush2.msra.mxu0 0.0
      %2808 = vmatprep.subr.mxu0 0.0
      %2809 = vmatpush2.msra.mxu0 0.0
      %2810 = vmatprep.mubr.f32.mxu0 0.0
      %2811 = vmatmul.mubr.f32.gmra.mxu0 %v2697
      %v2812 = vpop.f32.mrf.mxu0
      %v2813 = vadd.f32 0.0, %v2812
      %v2814 = vpop.f32.mrf.mxu0
      %2815 = vmatprep.mubr.f32.mxu0 0.0
      %2816 = vmatmul.mubr.f32.gmra.mxu0 %v2698
      %v2817 = vpop.f32.mrf.mxu0
      %v2818 = vadd.f32 0.0, %v2817
      %v2819 = vpop.f32.mrf.mxu0
      %2820 = vmatprep.mubr.f32.mxu0 0.0
      %2821 = vmatmul.mubr.f32.gmra.mxu0 %v2699
      %v2822 = vpop.f32.mrf.mxu0
      %v2823 = vadd.f32 0.0, %v2822
      %v2824 = vpop.f32.mrf.mxu0
      %2825 = vmatprep.mubr.f32.mxu0 0.0
      %2826 = vmatmul.mubr.f32.gmra.mxu0 %v2700
      %v2827 = vpop.f32.mrf.mxu0
      %v2828 = vadd.f32 0.0, %v2827
      %v2829 = vpop.f32.mrf.mxu0
      %2830 = vmatprep.mubr.f32.mxu0 0.0
      %2831 = vmatmul.mubr.f32.gmra.mxu0 %v2701
      %v2832 = vpop.f32.mrf.mxu0
      %v2833 = vadd.f32 0.0, %v2832
      %v2834 = vpop.f32.mrf.mxu0
      %2835 = vmatprep.mubr.f32.mxu0 0.0
      %2836 = vmatmul.mubr.f32.gmra.mxu0 %v2702
      %v2837 = vpop.f32.mrf.mxu0
      %v2838 = vadd.f32 0.0, %v2837
      %v2839 = vpop.f32.mrf.mxu0
      %2840 = vmatprep.mubr.f32.mxu0 0.0
      %2841 = vmatmul.mubr.f32.gmra.mxu0 %v2703
      %v2842 = vpop.f32.mrf.mxu0
      %v2843 = vadd.f32 0.0, %v2842
      %v2844 = vpop.f32.mrf.mxu0
      %2845 = vmatprep.mubr.f32.mxu0 0.0
      %2846 = vmatmul.mubr.f32.gmra.mxu0 %v2704
      %v2847 = vpop.f32.mrf.mxu0
      %v2848 = vadd.f32 0.0, %v2847
      %v2849 = vpop.f32.mrf.mxu0
      %2850 = vmatprep.mubr.f32.mxu0 0.0
      %2851 = vmatmul.mubr.f32.gmra.mxu0 %v2705
      %v2852 = vpop.f32.mrf.mxu0
      %v2853 = vadd.f32 0.0, %v2852
      %v2854 = vpop.f32.mrf.mxu0
      %2855 = vmatprep.mubr.f32.mxu0 0.0
      %2856 = vmatmul.mubr.f32.gmra.mxu0 %v2706
      %v2857 = vpop.f32.mrf.mxu0
      %v2858 = vadd.f32 0.0, %v2857
      %v2859 = vpop.f32.mrf.mxu0
      %2860 = vmatprep.mubr.f32.mxu0 0.0
      %2861 = vmatmul.mubr.f32.gmra.mxu0 %v2707
      %v2862 = vpop.f32.mrf.mxu0
      %v2863 = vadd.f32 0.0, %v2862
      %v2864 = vpop.f32.mrf.mxu0
      %2865 = vmatprep.mubr.f32.mxu0 0.0
      %2866 = vmatmul.mubr.f32.gmra.mxu0 %v2708
      %v2867 = vpop.f32.mrf.mxu0
      %v2868 = vadd.f32 0.0, %v2867
      %v2869 = vpop.f32.mrf.mxu0
      %2870 = vmatprep.mubr.f32.mxu0 0.0
      %2871 = vmatmul.mubr.f32.gmra.mxu0 %v2709
      %v2872 = vpop.f32.mrf.mxu0
      %v2873 = vadd.f32 0.0, %v2872
      %v2874 = vpop.f32.mrf.mxu0
      %2875 = vmatprep.mubr.f32.mxu0 0.0
      %2876 = vmatmul.mubr.f32.gmra.mxu0 %v2710
      %v2877 = vpop.f32.mrf.mxu0
      %v2878 = vadd.f32 0.0, %v2877
      %v2879 = vpop.f32.mrf.mxu0
      %2880 = vmatprep.mubr.f32.mxu0 0.0
      %2881 = vmatmul.mubr.f32.gmra.mxu0 %v2711
      %v2882 = vpop.f32.mrf.mxu0
      %v2883 = vadd.f32 0.0, %v2882
      %v2884 = vpop.f32.mrf.mxu0
      %2885 = vmatprep.mubr.f32.mxu0 0.0
      %2886 = vmatmul.mubr.f32.gmra.mxu0 %v2712
      %v2887 = vpop.f32.mrf.mxu0
      %v2888 = vadd.f32 0.0, %v2887
      %v2889 = vpop.f32.mrf.mxu0
      %2890 = vmatprep.mubr.f32.mxu0 0.0
      %2891 = vmatmul.mubr.f32.gmra.mxu0 %v2713
      %v2892 = vpop.f32.mrf.mxu0
      %v2893 = vadd.f32 0.0, %v2892
      %v2894 = vpop.f32.mrf.mxu0
      %2895 = vmatprep.mubr.f32.mxu0 0.0
      %2896 = vmatmul.mubr.f32.gmra.mxu0 %v2714
      %v2897 = vpop.f32.mrf.mxu0
      %v2898 = vadd.f32 0.0, %v2897
      %v2899 = vpop.f32.mrf.mxu0
      %2900 = vmatprep.mubr.f32.mxu0 0.0
      %2901 = vmatmul.mubr.f32.gmra.mxu0 %v2715
      %v2902 = vpop.f32.mrf.mxu0
      %v2903 = vadd.f32 0.0, %v2902
      %v2904 = vpop.f32.mrf.mxu0
      %2905 = vmatprep.mubr.f32.mxu0 0.0
      %2906 = vmatmul.mubr.f32.gmra.mxu0 %v2716
      %v2907 = vpop.f32.mrf.mxu0
      %v2908 = vadd.f32 0.0, %v2907
      %v2909 = vpop.f32.mrf.mxu0
      %2910 = vmatprep.mubr.f32.mxu0 0.0
      %2911 = vmatmul.mubr.f32.gmra.mxu0 %v2717
      %v2912 = vpop.f32.mrf.mxu0
      %v2913 = vadd.f32 0.0, %v2912
      %v2914 = vpop.f32.mrf.mxu0
      %2915 = vmatprep.mubr.f32.mxu0 0.0
      %2916 = vmatmul.mubr.f32.gmra.mxu0 %v2718
      %v2917 = vpop.f32.mrf.mxu0
      %v2918 = vadd.f32 0.0, %v2917
      %v2919 = vpop.f32.mrf.mxu0
      %2920 = vmatprep.mubr.f32.mxu0 0.0
      %2921 = vmatmul.mubr.f32.gmra.mxu0 %v2719
      %v2922 = vpop.f32.mrf.mxu0
      %v2923 = vadd.f32 0.0, %v2922
      %v2924 = vpop.f32.mrf.mxu0
      %2925 = vmatprep.mubr.f32.mxu0 0.0
      %2926 = vmatmul.mubr.f32.gmra.mxu0 %v2720
      %v2927 = vpop.f32.mrf.mxu0
      %v2928 = vadd.f32 0.0, %v2927
      %v2929 = vpop.f32.mrf.mxu0
      %2930 = vmatprep.mubr.f32.mxu0 0.0
      %2931 = vmatmul.mubr.f32.gmra.mxu0 %v2721
      %v2932 = vpop.f32.mrf.mxu0
      %v2933 = vadd.f32 0.0, %v2932
      %v2934 = vpop.f32.mrf.mxu0
      %2935 = vmatprep.mubr.f32.mxu0 0.0
      %2936 = vmatmul.mubr.f32.gmra.mxu0 %v2722
      %v2937 = vpop.f32.mrf.mxu0
      %v2938 = vadd.f32 0.0, %v2937
      %v2939 = vpop.f32.mrf.mxu0
      %2940 = vmatprep.mubr.f32.mxu0 0.0
      %2941 = vmatmul.mubr.f32.gmra.mxu0 %v2723
      %v2942 = vpop.f32.mrf.mxu0
      %v2943 = vadd.f32 0.0, %v2942
      %v2944 = vpop.f32.mrf.mxu0
      %2945 = vmatprep.mubr.f32.mxu0 0.0
      %2946 = vmatmul.mubr.f32.gmra.mxu0 %v2724
      %v2947 = vpop.f32.mrf.mxu0
      %v2948 = vadd.f32 0.0, %v2947
      %v2949 = vpop.f32.mrf.mxu0
      %2950 = vmatprep.mubr.f32.mxu0 0.0
      %2951 = vmatmul.mubr.f32.gmra.mxu0 %v2725
      %v2952 = vpop.f32.mrf.mxu0
      %v2953 = vadd.f32 0.0, %v2952
      %v2954 = vpop.f32.mrf.mxu0
      %2955 = vmatprep.mubr.f32.mxu0 0.0
      %2956 = vmatmul.mubr.f32.gmra.mxu0 %v2726
      %v2957 = vpop.f32.mrf.mxu0
      %v2958 = vadd.f32 0.0, %v2957
      %v2959 = vpop.f32.mrf.mxu0
      %2960 = vmatprep.mubr.f32.mxu0 0.0
      %2961 = vmatmul.mubr.f32.gmra.mxu0 %v2727
      %v2962 = vpop.f32.mrf.mxu0
      %v2963 = vadd.f32 0.0, %v2962
      %v2964 = vpop.f32.mrf.mxu0
      %2965 = vmatprep.mubr.f32.mxu0 0.0
      %2966 = vmatmul.mubr.f32.gmra.mxu0 %v2728
      %v2967 = vpop.f32.mrf.mxu0
      %v2968 = vadd.f32 0.0, %v2967
      %v2969 = vpop.f32.mrf.mxu0
      %2970 = vdwg.mxu0
      %v2971 = vadd.f32 %v2665, %v2813
      %v2972 = vadd.f32 %v2666, %v2818
      %v2973 = vadd.f32 %v2667, %v2823
      %v2974 = vadd.f32 %v2668, %v2828
      %v2975 = vadd.f32 %v2669, %v2833
      %v2976 = vadd.f32 %v2670, %v2838
      %v2977 = vadd.f32 %v2671, %v2843
      %v2978 = vadd.f32 %v2672, %v2848
      %v2979 = vadd.f32 %v2673, %v2853
      %v2980 = vadd.f32 %v2674, %v2858
      %v2981 = vadd.f32 %v2675, %v2863
      %v2982 = vadd.f32 %v2676, %v2868
      %v2983 = vadd.f32 %v2677, %v2873
      %v2984 = vadd.f32 %v2678, %v2878
      %v2985 = vadd.f32 %v2679, %v2883
      %v2986 = vadd.f32 %v2680, %v2888
      %v2987 = vadd.f32 %v2681, %v2893
      %v2988 = vadd.f32 %v2682, %v2898
      %v2989 = vadd.f32 %v2683, %v2903
      %v2990 = vadd.f32 %v2684, %v2908
      %v2991 = vadd.f32 %v2685, %v2913
      %v2992 = vadd.f32 %v2686, %v2918
      %v2993 = vadd.f32 %v2687, %v2923
      %v2994 = vadd.f32 %v2688, %v2928
      %v2995 = vadd.f32 %v2689, %v2933
      %v2996 = vadd.f32 %v2690, %v2938
      %v2997 = vadd.f32 %v2691, %v2943
      %v2998 = vadd.f32 %v2692, %v2948
      %v2999 = vadd.f32 %v2693, %v2953
      %v3000 = vadd.f32 %v2694, %v2958
      %v3001 = vadd.f32 %v2695, %v2963
      %v3002 = vadd.f32 %v2696, %v2968
      %v3003 = vadd.f32 %v2971, %v2972
      %v3004 = vadd.f32 %v3003, %v2973
      %v3005 = vadd.f32 %v3004, %v2974
      %v3006 = vadd.f32 %v3005, %v2975
      %v3007 = vadd.f32 %v3006, %v2976
      %v3008 = vadd.f32 %v3007, %v2977
      %v3009 = vadd.f32 %v3008, %v2978
      %v3010 = vadd.f32 %v3009, %v2979
      %v3011 = vadd.f32 %v3010, %v2980
      %v3012 = vadd.f32 %v3011, %v2981
      %v3013 = vadd.f32 %v3012, %v2982
      %v3014 = vadd.f32 %v3013, %v2983
      %v3015 = vadd.f32 %v3014, %v2984
      %v3016 = vadd.f32 %v3015, %v2985
      %v3017 = vadd.f32 %v3016, %v2986
      %v3018 = vadd.f32 %v3017, %v2987
      %v3019 = vadd.f32 %v3018, %v2988
      %v3020 = vadd.f32 %v3019, %v2989
      %v3021 = vadd.f32 %v3020, %v2990
      %v3022 = vadd.f32 %v3021, %v2991
      %v3023 = vadd.f32 %v3022, %v2992
      %v3024 = vadd.f32 %v3023, %v2993
      %v3025 = vadd.f32 %v3024, %v2994
      %v3026 = vadd.f32 %v3025, %v2995
      %v3027 = vadd.f32 %v3026, %v2996
      %v3028 = vadd.f32 %v3027, %v2997
      %v3029 = vadd.f32 %v3028, %v2998
      %v3030 = vadd.f32 %v3029, %v2999
      %v3031 = vadd.f32 %v3030, %v3000
      %v3032 = vadd.f32 %v3031, %v3001
      %v3033 = vadd.f32 %v3032, %v3002
      %v3034 = vrot.slane %v3033, 4
      %v3035 = vadd.f32 %v3033, %v3034
      %v3036 = vrot.slane %v3035, 2
      %v3037 = vadd.f32 %v3035, %v3036
      %v3038 = vrot.slane %v3037, 1
      %v3039 = vadd.f32 %v3037, %v3038
      %v3040 = vrcp.pop 256.0
      %v3041 = vmul.f32 %v3039, %v3040
      %v3042 = vsub.f32 %v2971, %v3041
      %v3043 = vsub.f32 %v2972, %v3041
      %v3044 = vsub.f32 %v2973, %v3041
      %v3045 = vsub.f32 %v2974, %v3041
      %v3046 = vsub.f32 %v2975, %v3041
      %v3047 = vsub.f32 %v2976, %v3041
      %v3048 = vsub.f32 %v2977, %v3041
      %v3049 = vsub.f32 %v2978, %v3041
      %v3050 = vsub.f32 %v2979, %v3041
      %v3051 = vsub.f32 %v2980, %v3041
      %v3052 = vsub.f32 %v2981, %v3041
      %v3053 = vsub.f32 %v2982, %v3041
      %v3054 = vsub.f32 %v2983, %v3041
      %v3055 = vsub.f32 %v2984, %v3041
      %v3056 = vsub.f32 %v2985, %v3041
      %v3057 = vsub.f32 %v2986, %v3041
      %v3058 = vsub.f32 %v2987, %v3041
      %v3059 = vsub.f32 %v2988, %v3041
      %v3060 = vsub.f32 %v2989, %v3041
      %v3061 = vsub.f32 %v2990, %v3041
      %v3062 = vsub.f32 %v2991, %v3041
      %v3063 = vsub.f32 %v2992, %v3041
      %v3064 = vsub.f32 %v2993, %v3041
      %v3065 = vsub.f32 %v2994, %v3041
      %v3066 = vsub.f32 %v2995, %v3041
      %v3067 = vsub.f32 %v2996, %v3041
      %v3068 = vsub.f32 %v2997, %v3041
      %v3069 = vsub.f32 %v2998, %v3041
      %v3070 = vsub.f32 %v2999, %v3041
      %v3071 = vsub.f32 %v3000, %v3041
      %v3072 = vsub.f32 %v3001, %v3041
      %v3073 = vsub.f32 %v3002, %v3041
      %v3074 = vmul.f32 %v3042, %v3042
      %v3075 = vmul.f32 %v3043, %v3043
      %v3076 = vmul.f32 %v3044, %v3044
      %v3077 = vmul.f32 %v3045, %v3045
      %v3078 = vmul.f32 %v3046, %v3046
      %v3079 = vmul.f32 %v3047, %v3047
      %v3080 = vmul.f32 %v3048, %v3048
      %v3081 = vmul.f32 %v3049, %v3049
      %v3082 = vmul.f32 %v3050, %v3050
      %v3083 = vmul.f32 %v3051, %v3051
      %v3084 = vmul.f32 %v3052, %v3052
      %v3085 = vmul.f32 %v3053, %v3053
      %v3086 = vmul.f32 %v3054, %v3054
      %v3087 = vmul.f32 %v3055, %v3055
      %v3088 = vmul.f32 %v3056, %v3056
      %v3089 = vmul.f32 %v3057, %v3057
      %v3090 = vmul.f32 %v3058, %v3058
      %v3091 = vmul.f32 %v3059, %v3059
      %v3092 = vmul.f32 %v3060, %v3060
      %v3093 = vmul.f32 %v3061, %v3061
      %v3094 = vmul.f32 %v3062, %v3062
      %v3095 = vmul.f32 %v3063, %v3063
      %v3096 = vmul.f32 %v3064, %v3064
      %v3097 = vmul.f32 %v3065, %v3065
      %v3098 = vmul.f32 %v3066, %v3066
      %v3099 = vmul.f32 %v3067, %v3067
      %v3100 = vmul.f32 %v3068, %v3068
      %v3101 = vmul.f32 %v3069, %v3069
      %v3102 = vmul.f32 %v3070, %v3070
      %v3103 = vmul.f32 %v3071, %v3071
      %v3104 = vmul.f32 %v3072, %v3072
      %v3105 = vmul.f32 %v3073, %v3073
      %v3106 = vadd.f32 %v3074, %v3075
      %v3107 = vadd.f32 %v3106, %v3076
      %v3108 = vadd.f32 %v3107, %v3077
      %v3109 = vadd.f32 %v3108, %v3078
      %v3110 = vadd.f32 %v3109, %v3079
      %v3111 = vadd.f32 %v3110, %v3080
      %v3112 = vadd.f32 %v3111, %v3081
      %v3113 = vadd.f32 %v3112, %v3082
      %v3114 = vadd.f32 %v3113, %v3083
      %v3115 = vadd.f32 %v3114, %v3084
      %v3116 = vadd.f32 %v3115, %v3085
      %v3117 = vadd.f32 %v3116, %v3086
      %v3118 = vadd.f32 %v3117, %v3087
      %v3119 = vadd.f32 %v3118, %v3088
      %v3120 = vadd.f32 %v3119, %v3089
      %v3121 = vadd.f32 %v3120, %v3090
      %v3122 = vadd.f32 %v3121, %v3091
      %v3123 = vadd.f32 %v3122, %v3092
      %v3124 = vadd.f32 %v3123, %v3093
      %v3125 = vadd.f32 %v3124, %v3094
      %v3126 = vadd.f32 %v3125, %v3095
      %v3127 = vadd.f32 %v3126, %v3096
      %v3128 = vadd.f32 %v3127, %v3097
      %v3129 = vadd.f32 %v3128, %v3098
      %v3130 = vadd.f32 %v3129, %v3099
      %v3131 = vadd.f32 %v3130, %v3100
      %v3132 = vadd.f32 %v3131, %v3101
      %v3133 = vadd.f32 %v3132, %v3102
      %v3134 = vadd.f32 %v3133, %v3103
      %v3135 = vadd.f32 %v3134, %v3104
      %v3136 = vadd.f32 %v3135, %v3105
      %v3137 = vrot.slane %v3136, 4
      %v3138 = vadd.f32 %v3136, %v3137
      %v3139 = vrot.slane %v3138, 2
      %v3140 = vadd.f32 %v3138, %v3139
      %v3141 = vrot.slane %v3140, 1
      %v3142 = vadd.f32 %v3140, %v3141
      %v3143 = vmul.f32 %v3142, %v3040
      %v3144 = vadd.f32 %v3143, 1e-05
      %v3145 = vrsqrt.pop %v3144
      %v3146 = vmul.f32 %v3042, %v3145
      %v3147 = vmul.f32 %v3043, %v3145
      %v3148 = vmul.f32 %v3044, %v3145
      %v3149 = vmul.f32 %v3045, %v3145
      %v3150 = vmul.f32 %v3046, %v3145
      %v3151 = vmul.f32 %v3047, %v3145
      %v3152 = vmul.f32 %v3048, %v3145
      %v3153 = vmul.f32 %v3049, %v3145
      %v3154 = vmul.f32 %v3050, %v3145
      %v3155 = vmul.f32 %v3051, %v3145
      %v3156 = vmul.f32 %v3052, %v3145
      %v3157 = vmul.f32 %v3053, %v3145
      %v3158 = vmul.f32 %v3054, %v3145
      %v3159 = vmul.f32 %v3055, %v3145
      %v3160 = vmul.f32 %v3056, %v3145
      %v3161 = vmul.f32 %v3057, %v3145
      %v3162 = vmul.f32 %v3058, %v3145
      %v3163 = vmul.f32 %v3059, %v3145
      %v3164 = vmul.f32 %v3060, %v3145
      %v3165 = vmul.f32 %v3061, %v3145
      %v3166 = vmul.f32 %v3062, %v3145
      %v3167 = vmul.f32 %v3063, %v3145
      %v3168 = vmul.f32 %v3064, %v3145
      %v3169 = vmul.f32 %v3065, %v3145
      %v3170 = vmul.f32 %v3066, %v3145
      %v3171 = vmul.f32 %v3067, %v3145
      %v3172 = vmul.f32 %v3068, %v3145
      %v3173 = vmul.f32 %v3069, %v3145
      %v3174 = vmul.f32 %v3070, %v3145
      %v3175 = vmul.f32 %v3071, %v3145
      %v3176 = vmul.f32 %v3072, %v3145
      %v3177 = vmul.f32 %v3073, %v3145
      %v3178 = vmax.f32 %v3146, 0.0
      %v3179 = vmax.f32 %v3147, 0.0
      %v3180 = vmax.f32 %v3148, 0.0
      %v3181 = vmax.f32 %v3149, 0.0
      %v3182 = vmax.f32 %v3150, 0.0
      %v3183 = vmax.f32 %v3151, 0.0
      %v3184 = vmax.f32 %v3152, 0.0
      %v3185 = vmax.f32 %v3153, 0.0
      %v3186 = vmax.f32 %v3154, 0.0
      %v3187 = vmax.f32 %v3155, 0.0
      %v3188 = vmax.f32 %v3156, 0.0
      %v3189 = vmax.f32 %v3157, 0.0
      %v3190 = vmax.f32 %v3158, 0.0
      %v3191 = vmax.f32 %v3159, 0.0
      %v3192 = vmax.f32 %v3160, 0.0
      %v3193 = vmax.f32 %v3161, 0.0
      %v3194 = vmax.f32 %v3162, 0.0
      %v3195 = vmax.f32 %v3163, 0.0
      %v3196 = vmax.f32 %v3164, 0.0
      %v3197 = vmax.f32 %v3165, 0.0
      %v3198 = vmax.f32 %v3166, 0.0
      %v3199 = vmax.f32 %v3167, 0.0
      %v3200 = vmax.f32 %v3168, 0.0
      %v3201 = vmax.f32 %v3169, 0.0
      %v3202 = vmax.f32 %v3170, 0.0
      %v3203 = vmax.f32 %v3171, 0.0
      %v3204 = vmax.f32 %v3172, 0.0
      %v3205 = vmax.f32 %v3173, 0.0
      %v3206 = vmax.f32 %v3174, 0.0
      %v3207 = vmax.f32 %v3175, 0.0
      %v3208 = vmax.f32 %v3176, 0.0
      %v3209 = vmax.f32 %v3177, 0.0
      %3210 = vst [vmem:[%s203 + $0x1] sm:$0xff] %v3178
      %3211 = vst [vmem:[%s203 + $0x9] sm:$0xff] %v3179
      %3212 = vst [vmem:[%s203 + $0x19] sm:$0xff] %v3180
      %3213 = vst [vmem:[%s203 + $0x21] sm:$0xff] %v3181
      %3214 = vst [vmem:[%s203 + $0x31] sm:$0xff] %v3182
      %3215 = vst [vmem:[%s203 + $0x39] sm:$0xff] %v3183
      %3216 = vst [vmem:[%s203 + $0x49] sm:$0xff] %v3184
      %3217 = vst [vmem:[%s203 + $0x51] sm:$0xff] %v3185
      %3218 = vst [vmem:[%s203 + $0x61] sm:$0xff] %v3186
      %3219 = vst [vmem:[%s203 + $0x69] sm:$0xff] %v3187
      %3220 = vst [vmem:[%s203 + $0x79] sm:$0xff] %v3188
      %3221 = vst [vmem:[%s203 + $0x81] sm:$0xff] %v3189
      %3222 = vst [vmem:[%s203 + $0x91] sm:$0xff] %v3190
      %3223 = vst [vmem:[%s203 + $0x99] sm:$0xff] %v3191
      %3224 = vst [vmem:[%s203 + $0xa9] sm:$0xff] %v3192
      %3225 = vst [vmem:[%s203 + $0xb1] sm:$0xff] %v3193
      %3226 = vst [vmem:[%s203 + $0xc1] sm:$0xff] %v3194
      %3227 = vst [vmem:[%s203 + $0xc9] sm:$0xff] %v3195
      %3228 = vst [vmem:[%s203 + $0xd9] sm:$0xff] %v3196
      %3229 = vst [vmem:[%s203 + $0xe1] sm:$0xff] %v3197
      %3230 = vst [vmem:[%s203 + $0xf1] sm:$0xff] %v3198
      %3231 = vst [vmem:[%s203 + $0xf9] sm:$0xff] %v3199
      %3232 = vst [vmem:[%s203 + $0x109] sm:$0xff] %v3200
      %3233 = vst [vmem:[%s203 + $0x111] sm:$0xff] %v3201
      %3234 = vst [vmem:[%s203 + $0x121] sm:$0xff] %v3202
      %3235 = vst [vmem:[%s203 + $0x129] sm:$0xff] %v3203
      %3236 = vst [vmem:[%s203 + $0x139] sm:$0xff] %v3204
      %3237 = vst [vmem:[%s203 + $0x141] sm:$0xff] %v3205
      %3238 = vst [vmem:[%s203 + $0x151] sm:$0xff] %v3206
      %3239 = vst [vmem:[%s203 + $0x159] sm:$0xff] %v3207
      %3240 = vst [vmem:[%s203 + $0x169] sm:$0xff] %v3208
      %3241 = vst [vmem:[%s203 + $0x171] sm:$0xff] %v3209
      %3242 = vst [vmem:[#allocation2 + $0x1] sm:$0xff] %v3180
      %3243 = vst [vmem:[#allocation2 + $0x9] sm:$0xff] %v3181
      %3244 = vst [vmem:[%s238 + $0x1] sm:$0xff] %v3206
      %3245 = vst [vmem:[%s238 + $0x9] sm:$0xff] %v3207
      %v3246 = vld [vmem:[#allocation2 + $0x2] sm:$0x1]
      %v3247 = vld [vmem:[#allocation2 + $0x1a] sm:$0x1]
      %v3248 = vld [vmem:[#allocation2 + $0x32] sm:$0x1]
      %v3249 = vld [vmem:[#allocation2 + $0x4a] sm:$0x1]
      %v3250 = vld [vmem:[#allocation2 + $0x62] sm:$0x1]
      %v3251 = vld [vmem:[#allocation2 + $0x7a] sm:$0x1]
      %v3252 = vld [vmem:[#allocation2 + $0x92] sm:$0x1]
      %v3253 = vld [vmem:[#allocation2 + $0xaa] sm:$0x1]
      %v3254 = vld [vmem:[#allocation2 + $0xc2] sm:$0x1]
      %v3255 = vld [vmem:[#allocation2 + $0xda] sm:$0x1]
      %v3256 = vld [vmem:[#allocation2 + $0xf2] sm:$0x1]
      %v3257 = vld [vmem:[#allocation2 + $0x10a] sm:$0x1]
      %v3258 = vld [vmem:[#allocation2 + $0x122] sm:$0x1]
      %v3259 = vld [vmem:[#allocation2 + $0x13a] sm:$0x1]
      %v3260 = vld [vmem:[#allocation2 + $0x152] sm:$0x1]
      %v3261 = vld [vmem:[#allocation2 + $0x16a] sm:$0x1]
      %v3262 = vld [vmem:[#allocation2 + $0x182] sm:$0x1]
      %v3263 = vld [vmem:[#allocation2 + $0x19a] sm:$0x1]
      %3264 = vst [vmem:[#allocation2] sm:$0x1] %v3246
      %3265 = vst [vmem:[#allocation2 + $0x18] sm:$0x1] %v3247
      %3266 = vst [vmem:[#allocation2 + $0x30] sm:$0x1] %v3248
      %3267 = vst [vmem:[#allocation2 + $0x48] sm:$0x1] %v3249
      %3268 = vst [vmem:[#allocation2 + $0x60] sm:$0x1] %v3250
      %3269 = vst [vmem:[#allocation2 + $0x78] sm:$0x1] %v3251
      %3270 = vst [vmem:[#allocation2 + $0x90] sm:$0x1] %v3252
      %3271 = vst [vmem:[#allocation2 + $0xa8] sm:$0x1] %v3253
      %3272 = vst [vmem:[#allocation2 + $0xc0] sm:$0x1] %v3254
      %3273 = vst [vmem:[#allocation2 + $0xd8] sm:$0x1] %v3255
      %3274 = vst [vmem:[#allocation2 + $0xf0] sm:$0x1] %v3256
      %3275 = vst [vmem:[#allocation2 + $0x108] sm:$0x1] %v3257
      %3276 = vst [vmem:[#allocation2 + $0x120] sm:$0x1] %v3258
      %3277 = vst [vmem:[#allocation2 + $0x138] sm:$0x1] %v3259
      %3278 = vst [vmem:[#allocation2 + $0x150] sm:$0x1] %v3260
      %3279 = vst [vmem:[#allocation2 + $0x168] sm:$0x1] %v3261
      %3280 = vst [vmem:[#allocation2 + $0x180] sm:$0x1] %v3262
      %3281 = vst [vmem:[#allocation2 + $0x198] sm:$0x1] %v3263
      %v3282 = vld [vmem:[#allocation2 + $0xf] sm:$0x1]
      %v3283 = vld [vmem:[#allocation2 + $0x27] sm:$0x1]
      %v3284 = vld [vmem:[#allocation2 + $0x3f] sm:$0x1]
      %v3285 = vld [vmem:[#allocation2 + $0x57] sm:$0x1]
      %v3286 = vld [vmem:[#allocation2 + $0x6f] sm:$0x1]
      %v3287 = vld [vmem:[#allocation2 + $0x87] sm:$0x1]
      %v3288 = vld [vmem:[#allocation2 + $0x9f] sm:$0x1]
      %v3289 = vld [vmem:[#allocation2 + $0xb7] sm:$0x1]
      %v3290 = vld [vmem:[#allocation2 + $0xcf] sm:$0x1]
      %v3291 = vld [vmem:[#allocation2 + $0xe7] sm:$0x1]
      %v3292 = vld [vmem:[#allocation2 + $0xff] sm:$0x1]
      %v3293 = vld [vmem:[#allocation2 + $0x117] sm:$0x1]
      %v3294 = vld [vmem:[#allocation2 + $0x12f] sm:$0x1]
      %v3295 = vld [vmem:[#allocation2 + $0x147] sm:$0x1]
      %v3296 = vld [vmem:[#allocation2 + $0x15f] sm:$0x1]
      %v3297 = vld [vmem:[#allocation2 + $0x177] sm:$0x1]
      %v3298 = vld [vmem:[#allocation2 + $0x18f] sm:$0x1]
      %v3299 = vld [vmem:[#allocation2 + $0x1a7] sm:$0x1]
      %3300 = vst [vmem:[#allocation2 + $0x11] sm:$0x1] %v3282
      %3301 = vst [vmem:[#allocation2 + $0x29] sm:$0x1] %v3283
      %3302 = vst [vmem:[#allocation2 + $0x41] sm:$0x1] %v3284
      %3303 = vst [vmem:[#allocation2 + $0x59] sm:$0x1] %v3285
      %3304 = vst [vmem:[#allocation2 + $0x71] sm:$0x1] %v3286
      %3305 = vst [vmem:[#allocation2 + $0x89] sm:$0x1] %v3287
      %3306 = vst [vmem:[#allocation2 + $0xa1] sm:$0x1] %v3288
      %3307 = vst [vmem:[#allocation2 + $0xb9] sm:$0x1] %v3289
      %3308 = vst [vmem:[#allocation2 + $0xd1] sm:$0x1] %v3290
      %3309 = vst [vmem:[#allocation2 + $0xe9] sm:$0x1] %v3291
      %3310 = vst [vmem:[#allocation2 + $0x101] sm:$0x1] %v3292
      %3311 = vst [vmem:[#allocation2 + $0x119] sm:$0x1] %v3293
      %3312 = vst [vmem:[#allocation2 + $0x131] sm:$0x1] %v3294
      %3313 = vst [vmem:[#allocation2 + $0x149] sm:$0x1] %v3295
      %3314 = vst [vmem:[#allocation2 + $0x161] sm:$0x1] %v3296
      %3315 = vst [vmem:[#allocation2 + $0x179] sm:$0x1] %v3297
      %3316 = vst [vmem:[#allocation2 + $0x191] sm:$0x1] %v3298
      %3317 = vst [vmem:[#allocation2 + $0x1a9] sm:$0x1] %v3299
      %v3318 = vld [vmem:[#allocation2] sm:$0xff]
      %v3319 = vld [vmem:[#allocation2 + $0x8] sm:$0xff]
      %v3320 = vld [vmem:[#allocation2 + $0x18] sm:$0xff]
      %v3321 = vld [vmem:[#allocation2 + $0x20] sm:$0xff]
      %v3322 = vld [vmem:[#allocation2 + $0x30] sm:$0xff]
      %v3323 = vld [vmem:[#allocation2 + $0x38] sm:$0xff]
      %v3324 = vld [vmem:[#allocation2 + $0x48] sm:$0xff]
      %v3325 = vld [vmem:[#allocation2 + $0x50] sm:$0xff]
      %v3326 = vld [vmem:[#allocation2 + $0x60] sm:$0xff]
      %v3327 = vld [vmem:[#allocation2 + $0x68] sm:$0xff]
      %v3328 = vld [vmem:[#allocation2 + $0x78] sm:$0xff]
      %v3329 = vld [vmem:[#allocation2 + $0x80] sm:$0xff]
      %v3330 = vld [vmem:[#allocation2 + $0x90] sm:$0xff]
      %v3331 = vld [vmem:[#allocation2 + $0x98] sm:$0xff]
      %v3332 = vld [vmem:[#allocation2 + $0xa8] sm:$0xff]
      %v3333 = vld [vmem:[#allocation2 + $0xb0] sm:$0xff]
      %v3334 = vld [vmem:[#allocation2 + $0xc0] sm:$0xff]
      %v3335 = vld [vmem:[#allocation2 + $0xc8] sm:$0xff]
      %v3336 = vld [vmem:[#allocation2 + $0xd8] sm:$0xff]
      %v3337 = vld [vmem:[#allocation2 + $0xe0] sm:$0xff]
      %v3338 = vld [vmem:[#allocation2 + $0xf0] sm:$0xff]
      %v3339 = vld [vmem:[#allocation2 + $0xf8] sm:$0xff]
      %v3340 = vld [vmem:[#allocation2 + $0x108] sm:$0xff]
      %v3341 = vld [vmem:[#allocation2 + $0x110] sm:$0xff]
      %v3342 = vld [vmem:[#allocation2 + $0x120] sm:$0xff]
      %v3343 = vld [vmem:[#allocation2 + $0x128] sm:$0xff]
      %v3344 = vld [vmem:[#allocation2 + $0x138] sm:$0xff]
      %v3345 = vld [vmem:[#allocation2 + $0x140] sm:$0xff]
      %v3346 = vld [vmem:[#allocation2 + $0x150] sm:$0xff]
      %v3347 = vld [vmem:[#allocation2 + $0x158] sm:$0xff]
      %v3348 = vld [vmem:[#allocation2 + $0x168] sm:$0xff]
      %v3349 = vld [vmem:[#allocation2 + $0x170] sm:$0xff]
      %v3350 = vld [vmem:[%s2] sm:$0xff]
      %v3351 = vld [vmem:[%s2 + $0x8] sm:$0xff]
      %v3352 = vld [vmem:[%s2 + $0x10] sm:$0xff]
      %v3353 = vld [vmem:[%s2 + $0x18] sm:$0xff]
      %v3354 = vld [vmem:[%s2 + $0x20] sm:$0xff]
      %v3355 = vld [vmem:[%s2 + $0x28] sm:$0xff]
      %v3356 = vld [vmem:[%s2 + $0x30] sm:$0xff]
      %v3357 = vld [vmem:[%s2 + $0x38] sm:$0xff]
      %v3358 = vld [vmem:[%s2 + $0x40] sm:$0xff]
      %v3359 = vld [vmem:[%s2 + $0x48] sm:$0xff]
      %v3360 = vld [vmem:[%s2 + $0x50] sm:$0xff]
      %v3361 = vld [vmem:[%s2 + $0x58] sm:$0xff]
      %v3362 = vld [vmem:[%s2 + $0x60] sm:$0xff]
      %v3363 = vld [vmem:[%s2 + $0x68] sm:$0xff]
      %v3364 = vld [vmem:[%s2 + $0x70] sm:$0xff]
      %v3365 = vld [vmem:[%s2 + $0x78] sm:$0xff]
      %v3366 = vld [vmem:[#allocation2 + $0x1] sm:$0xff]
      %v3367 = vld [vmem:[#allocation2 + $0x9] sm:$0xff]
      %v3368 = vld [vmem:[#allocation2 + $0x19] sm:$0xff]
      %v3369 = vld [vmem:[#allocation2 + $0x21] sm:$0xff]
      %v3370 = vld [vmem:[#allocation2 + $0x31] sm:$0xff]
      %v3371 = vld [vmem:[#allocation2 + $0x39] sm:$0xff]
      %v3372 = vld [vmem:[#allocation2 + $0x49] sm:$0xff]
      %v3373 = vld [vmem:[#allocation2 + $0x51] sm:$0xff]
      %v3374 = vld [vmem:[#allocation2 + $0x61] sm:$0xff]
      %v3375 = vld [vmem:[#allocation2 + $0x69] sm:$0xff]
      %v3376 = vld [vmem:[#allocation2 + $0x79] sm:$0xff]
      %v3377 = vld [vmem:[#allocation2 + $0x81] sm:$0xff]
      %v3378 = vld [vmem:[#allocation2 + $0x91] sm:$0xff]
      %v3379 = vld [vmem:[#allocation2 + $0x99] sm:$0xff]
      %v3380 = vld [vmem:[#allocation2 + $0xa9] sm:$0xff]
      %v3381 = vld [vmem:[#allocation2 + $0xb1] sm:$0xff]
      %v3382 = vld [vmem:[#allocation2 + $0xc1] sm:$0xff]
      %v3383 = vld [vmem:[#allocation2 + $0xc9] sm:$0xff]
      %v3384 = vld [vmem:[#allocation2 + $0xd9] sm:$0xff]
      %v3385 = vld [vmem:[#allocation2 + $0xe1] sm:$0xff]
      %v3386 = vld [vmem:[#allocation2 + $0xf1] sm:$0xff]
      %v3387 = vld [vmem:[#allocation2 + $0xf9] sm:$0xff]
      %v3388 = vld [vmem:[#allocation2 + $0x109] sm:$0xff]
      %v3389 = vld [vmem:[#allocation2 + $0x111] sm:$0xff]
      %v3390 = vld [vmem:[#allocation2 + $0x121] sm:$0xff]
      %v3391 = vld [vmem:[#allocation2 + $0x129] sm:$0xff]
      %v3392 = vld [vmem:[#allocation2 + $0x139] sm:$0xff]
      %v3393 = vld [vmem:[#allocation2 + $0x141] sm:$0xff]
      %v3394 = vld [vmem:[#allocation2 + $0x151] sm:$0xff]
      %v3395 = vld [vmem:[#allocation2 + $0x159] sm:$0xff]
      %v3396 = vld [vmem:[#allocation2 + $0x169] sm:$0xff]
      %v3397 = vld [vmem:[#allocation2 + $0x171] sm:$0xff]
      %s3398 = scalar_lea.vmem %s2, 128
      %v3399 = vld [vmem:[%s3398] sm:$0xff]
      %v3400 = vld [vmem:[%s3398 + $0x8] sm:$0xff]
      %v3401 = vld [vmem:[%s3398 + $0x10] sm:$0xff]
      %v3402 = vld [vmem:[%s3398 + $0x18] sm:$0xff]
      %v3403 = vld [vmem:[%s3398 + $0x20] sm:$0xff]
      %v3404 = vld [vmem:[%s3398 + $0x28] sm:$0xff]
      %v3405 = vld [vmem:[%s3398 + $0x30] sm:$0xff]
      %v3406 = vld [vmem:[%s3398 + $0x38] sm:$0xff]
      %v3407 = vld [vmem:[%s3398 + $0x40] sm:$0xff]
      %v3408 = vld [vmem:[%s3398 + $0x48] sm:$0xff]
      %v3409 = vld [vmem:[%s3398 + $0x50] sm:$0xff]
      %v3410 = vld [vmem:[%s3398 + $0x58] sm:$0xff]
      %v3411 = vld [vmem:[%s3398 + $0x60] sm:$0xff]
      %v3412 = vld [vmem:[%s3398 + $0x68] sm:$0xff]
      %v3413 = vld [vmem:[%s3398 + $0x70] sm:$0xff]
      %v3414 = vld [vmem:[%s3398 + $0x78] sm:$0xff]
      %3415 = vmatprep.subr.mxu0 0.0
      %3416 = vmatpush1.msra.mxu0 %v3414
      %3417 = vmatprep.subr.mxu0 0.0
      %3418 = vmatpush1.msra.mxu0 %v3413
      %3419 = vmatprep.subr.mxu0 0.0
      %3420 = vmatpush1.msra.mxu0 %v3412
      %3421 = vmatprep.subr.mxu0 0.0
      %3422 = vmatpush1.msra.mxu0 %v3411
      %3423 = vmatprep.subr.mxu0 0.0
      %3424 = vmatpush1.msra.mxu0 %v3410
      %3425 = vmatprep.subr.mxu0 0.0
      %3426 = vmatpush1.msra.mxu0 %v3409
      %3427 = vmatprep.subr.mxu0 0.0
      %3428 = vmatpush1.msra.mxu0 %v3408
      %3429 = vmatprep.subr.mxu0 0.0
      %3430 = vmatpush1.msra.mxu0 %v3407
      %3431 = vmatprep.subr.mxu0 0.0
      %3432 = vmatpush1.msra.mxu0 %v3406
      %3433 = vmatprep.subr.mxu0 0.0
      %3434 = vmatpush1.msra.mxu0 %v3405
      %3435 = vmatprep.subr.mxu0 0.0
      %3436 = vmatpush1.msra.mxu0 %v3404
      %3437 = vmatprep.subr.mxu0 0.0
      %3438 = vmatpush1.msra.mxu0 %v3403
      %3439 = vmatprep.subr.mxu0 0.0
      %3440 = vmatpush1.msra.mxu0 %v3402
      %3441 = vmatprep.subr.mxu0 0.0
      %3442 = vmatpush1.msra.mxu0 %v3401
      %3443 = vmatprep.subr.mxu0 0.0
      %3444 = vmatpush1.msra.mxu0 %v3400
      %3445 = vmatprep.subr.mxu0 0.0
      %3446 = vmatpush1.msra.mxu0 %v3399
      %3447 = vmatprep.subr.mxu0 0.0
      %3448 = vmatpush2.msra.mxu0 0.0
      %3449 = vmatprep.subr.mxu0 0.0
      %3450 = vmatpush2.msra.mxu0 0.0
      %3451 = vmatprep.subr.mxu0 0.0
      %3452 = vmatpush2.msra.mxu0 0.0
      %3453 = vmatprep.subr.mxu0 0.0
      %3454 = vmatpush2.msra.mxu0 0.0
      %3455 = vmatprep.subr.mxu0 0.0
      %3456 = vmatpush2.msra.mxu0 0.0
      %3457 = vmatprep.subr.mxu0 0.0
      %3458 = vmatpush2.msra.mxu0 0.0
      %3459 = vmatprep.subr.mxu0 0.0
      %3460 = vmatpush2.msra.mxu0 0.0
      %3461 = vmatprep.subr.mxu0 0.0
      %3462 = vmatpush2.msra.mxu0 0.0
      %3463 = vmatprep.subr.mxu0 0.0
      %3464 = vmatpush2.msra.mxu0 0.0
      %3465 = vmatprep.subr.mxu0 0.0
      %3466 = vmatpush2.msra.mxu0 0.0
      %3467 = vmatprep.subr.mxu0 0.0
      %3468 = vmatpush2.msra.mxu0 0.0
      %3469 = vmatprep.subr.mxu0 0.0
      %3470 = vmatpush2.msra.mxu0 0.0
      %3471 = vmatprep.subr.mxu0 0.0
      %3472 = vmatpush2.msra.mxu0 0.0
      %3473 = vmatprep.subr.mxu0 0.0
      %3474 = vmatpush2.msra.mxu0 0.0
      %3475 = vmatprep.subr.mxu0 0.0
      %3476 = vmatpush2.msra.mxu0 0.0
      %3477 = vmatprep.subr.mxu0 0.0
      %3478 = vmatpush2.msra.mxu0 0.0
      %3479 = vmatprep.mubr.f32.mxu0 0.0
      %3480 = vmatmul.mubr.f32.gmra.mxu0 %v3366
      %v3481 = vpop.f32.mrf.mxu0
      %v3482 = vadd.f32 0.0, %v3481
      %v3483 = vpop.f32.mrf.mxu0
      %3484 = vmatprep.mubr.f32.mxu0 0.0
      %3485 = vmatmul.mubr.f32.gmra.mxu0 %v3367
      %v3486 = vpop.f32.mrf.mxu0
      %v3487 = vadd.f32 0.0, %v3486
      %v3488 = vpop.f32.mrf.mxu0
      %3489 = vmatprep.mubr.f32.mxu0 0.0
      %3490 = vmatmul.mubr.f32.gmra.mxu0 %v3368
      %v3491 = vpop.f32.mrf.mxu0
      %v3492 = vadd.f32 0.0, %v3491
      %v3493 = vpop.f32.mrf.mxu0
      %3494 = vmatprep.mubr.f32.mxu0 0.0
      %3495 = vmatmul.mubr.f32.gmra.mxu0 %v3369
      %v3496 = vpop.f32.mrf.mxu0
      %v3497 = vadd.f32 0.0, %v3496
      %v3498 = vpop.f32.mrf.mxu0
      %3499 = vmatprep.mubr.f32.mxu0 0.0
      %3500 = vmatmul.mubr.f32.gmra.mxu0 %v3370
      %v3501 = vpop.f32.mrf.mxu0
      %v3502 = vadd.f32 0.0, %v3501
      %v3503 = vpop.f32.mrf.mxu0
      %3504 = vmatprep.mubr.f32.mxu0 0.0
      %3505 = vmatmul.mubr.f32.gmra.mxu0 %v3371
      %v3506 = vpop.f32.mrf.mxu0
      %v3507 = vadd.f32 0.0, %v3506
      %v3508 = vpop.f32.mrf.mxu0
      %3509 = vmatprep.mubr.f32.mxu0 0.0
      %3510 = vmatmul.mubr.f32.gmra.mxu0 %v3372
      %v3511 = vpop.f32.mrf.mxu0
      %v3512 = vadd.f32 0.0, %v3511
      %v3513 = vpop.f32.mrf.mxu0
      %3514 = vmatprep.mubr.f32.mxu0 0.0
      %3515 = vmatmul.mubr.f32.gmra.mxu0 %v3373
      %v3516 = vpop.f32.mrf.mxu0
      %v3517 = vadd.f32 0.0, %v3516
      %v3518 = vpop.f32.mrf.mxu0
      %3519 = vmatprep.mubr.f32.mxu0 0.0
      %3520 = vmatmul.mubr.f32.gmra.mxu0 %v3374
      %v3521 = vpop.f32.mrf.mxu0
      %v3522 = vadd.f32 0.0, %v3521
      %v3523 = vpop.f32.mrf.mxu0
      %3524 = vmatprep.mubr.f32.mxu0 0.0
      %3525 = vmatmul.mubr.f32.gmra.mxu0 %v3375
      %v3526 = vpop.f32.mrf.mxu0
      %v3527 = vadd.f32 0.0, %v3526
      %v3528 = vpop.f32.mrf.mxu0
      %3529 = vmatprep.mubr.f32.mxu0 0.0
      %3530 = vmatmul.mubr.f32.gmra.mxu0 %v3376
      %v3531 = vpop.f32.mrf.mxu0
      %v3532 = vadd.f32 0.0, %v3531
      %v3533 = vpop.f32.mrf.mxu0
      %3534 = vmatprep.mubr.f32.mxu0 0.0
      %3535 = vmatmul.mubr.f32.gmra.mxu0 %v3377
      %v3536 = vpop.f32.mrf.mxu0
      %v3537 = vadd.f32 0.0, %v3536
      %v3538 = vpop.f32.mrf.mxu0
      %3539 = vmatprep.mubr.f32.mxu0 0.0
      %3540 = vmatmul.mubr.f32.gmra.mxu0 %v3378
      %v3541 = vpop.f32.mrf.mxu0
      %v3542 = vadd.f32 0.0, %v3541
      %v3543 = vpop.f32.mrf.mxu0
      %3544 = vmatprep.mubr.f32.mxu0 0.0
      %3545 = vmatmul.mubr.f32.gmra.mxu0 %v3379
      %v3546 = vpop.f32.mrf.mxu0
      %v3547 = vadd.f32 0.0, %v3546
      %v3548 = vpop.f32.mrf.mxu0
      %3549 = vmatprep.mubr.f32.mxu0 0.0
      %3550 = vmatmul.mubr.f32.gmra.mxu0 %v3380
      %v3551 = vpop.f32.mrf.mxu0
      %v3552 = vadd.f32 0.0, %v3551
      %v3553 = vpop.f32.mrf.mxu0
      %3554 = vmatprep.mubr.f32.mxu0 0.0
      %3555 = vmatmul.mubr.f32.gmra.mxu0 %v3381
      %v3556 = vpop.f32.mrf.mxu0
      %v3557 = vadd.f32 0.0, %v3556
      %v3558 = vpop.f32.mrf.mxu0
      %3559 = vmatprep.mubr.f32.mxu0 0.0
      %3560 = vmatmul.mubr.f32.gmra.mxu0 %v3382
      %v3561 = vpop.f32.mrf.mxu0
      %v3562 = vadd.f32 0.0, %v3561
      %v3563 = vpop.f32.mrf.mxu0
      %3564 = vmatprep.mubr.f32.mxu0 0.0
      %3565 = vmatmul.mubr.f32.gmra.mxu0 %v3383
      %v3566 = vpop.f32.mrf.mxu0
      %v3567 = vadd.f32 0.0, %v3566
      %v3568 = vpop.f32.mrf.mxu0
      %3569 = vmatprep.mubr.f32.mxu0 0.0
      %3570 = vmatmul.mubr.f32.gmra.mxu0 %v3384
      %v3571 = vpop.f32.mrf.mxu0
      %v3572 = vadd.f32 0.0, %v3571
      %v3573 = vpop.f32.mrf.mxu0
      %3574 = vmatprep.mubr.f32.mxu0 0.0
      %3575 = vmatmul.mubr.f32.gmra.mxu0 %v3385
      %v3576 = vpop.f32.mrf.mxu0
      %v3577 = vadd.f32 0.0, %v3576
      %v3578 = vpop.f32.mrf.mxu0
      %3579 = vmatprep.mubr.f32.mxu0 0.0
      %3580 = vmatmul.mubr.f32.gmra.mxu0 %v3386
      %v3581 = vpop.f32.mrf.mxu0
      %v3582 = vadd.f32 0.0, %v3581
      %v3583 = vpop.f32.mrf.mxu0
      %3584 = vmatprep.mubr.f32.mxu0 0.0
      %3585 = vmatmul.mubr.f32.gmra.mxu0 %v3387
      %v3586 = vpop.f32.mrf.mxu0
      %v3587 = vadd.f32 0.0, %v3586
      %v3588 = vpop.f32.mrf.mxu0
      %3589 = vmatprep.mubr.f32.mxu0 0.0
      %3590 = vmatmul.mubr.f32.gmra.mxu0 %v3388
      %v3591 = vpop.f32.mrf.mxu0
      %v3592 = vadd.f32 0.0, %v3591
      %v3593 = vpop.f32.mrf.mxu0
      %3594 = vmatprep.mubr.f32.mxu0 0.0
      %3595 = vmatmul.mubr.f32.gmra.mxu0 %v3389
      %v3596 = vpop.f32.mrf.mxu0
      %v3597 = vadd.f32 0.0, %v3596
      %v3598 = vpop.f32.mrf.mxu0
      %3599 = vmatprep.mubr.f32.mxu0 0.0
      %3600 = vmatmul.mubr.f32.gmra.mxu0 %v3390
      %v3601 = vpop.f32.mrf.mxu0
      %v3602 = vadd.f32 0.0, %v3601
      %v3603 = vpop.f32.mrf.mxu0
      %3604 = vmatprep.mubr.f32.mxu0 0.0
      %3605 = vmatmul.mubr.f32.gmra.mxu0 %v3391
      %v3606 = vpop.f32.mrf.mxu0
      %v3607 = vadd.f32 0.0, %v3606
      %v3608 = vpop.f32.mrf.mxu0
      %3609 = vmatprep.mubr.f32.mxu0 0.0
      %3610 = vmatmul.mubr.f32.gmra.mxu0 %v3392
      %v3611 = vpop.f32.mrf.mxu0
      %v3612 = vadd.f32 0.0, %v3611
      %v3613 = vpop.f32.mrf.mxu0
      %3614 = vmatprep.mubr.f32.mxu0 0.0
      %3615 = vmatmul.mubr.f32.gmra.mxu0 %v3393
      %v3616 = vpop.f32.mrf.mxu0
      %v3617 = vadd.f32 0.0, %v3616
      %v3618 = vpop.f32.mrf.mxu0
      %3619 = vmatprep.mubr.f32.mxu0 0.0
      %3620 = vmatmul.mubr.f32.gmra.mxu0 %v3394
      %v3621 = vpop.f32.mrf.mxu0
      %v3622 = vadd.f32 0.0, %v3621
      %v3623 = vpop.f32.mrf.mxu0
      %3624 = vmatprep.mubr.f32.mxu0 0.0
      %3625 = vmatmul.mubr.f32.gmra.mxu0 %v3395
      %v3626 = vpop.f32.mrf.mxu0
      %v3627 = vadd.f32 0.0, %v3626
      %v3628 = vpop.f32.mrf.mxu0
      %3629 = vmatprep.mubr.f32.mxu0 0.0
      %3630 = vmatmul.mubr.f32.gmra.mxu0 %v3396
      %v3631 = vpop.f32.mrf.mxu0
      %v3632 = vadd.f32 0.0, %v3631
      %v3633 = vpop.f32.mrf.mxu0
      %3634 = vmatprep.mubr.f32.mxu0 0.0
      %3635 = vmatmul.mubr.f32.gmra.mxu0 %v3397
      %v3636 = vpop.f32.mrf.mxu0
      %v3637 = vadd.f32 0.0, %v3636
      %v3638 = vpop.f32.mrf.mxu0
      %3639 = vdwg.mxu0
      %3640 = vmatprep.subr.mxu0 0.0
      %3641 = vmatpush1.msra.mxu0 %v3365
      %3642 = vmatprep.subr.mxu0 0.0
      %3643 = vmatpush1.msra.mxu0 %v3364
      %3644 = vmatprep.subr.mxu0 0.0
      %3645 = vmatpush1.msra.mxu0 %v3363
      %3646 = vmatprep.subr.mxu0 0.0
      %3647 = vmatpush1.msra.mxu0 %v3362
      %3648 = vmatprep.subr.mxu0 0.0
      %3649 = vmatpush1.msra.mxu0 %v3361
      %3650 = vmatprep.subr.mxu0 0.0
      %3651 = vmatpush1.msra.mxu0 %v3360
      %3652 = vmatprep.subr.mxu0 0.0
      %3653 = vmatpush1.msra.mxu0 %v3359
      %3654 = vmatprep.subr.mxu0 0.0
      %3655 = vmatpush1.msra.mxu0 %v3358
      %3656 = vmatprep.subr.mxu0 0.0
      %3657 = vmatpush1.msra.mxu0 %v3357
      %3658 = vmatprep.subr.mxu0 0.0
      %3659 = vmatpush1.msra.mxu0 %v3356
      %3660 = vmatprep.subr.mxu0 0.0
      %3661 = vmatpush1.msra.mxu0 %v3355
      %3662 = vmatprep.subr.mxu0 0.0
      %3663 = vmatpush1.msra.mxu0 %v3354
      %3664 = vmatprep.subr.mxu0 0.0
      %3665 = vmatpush1.msra.mxu0 %v3353
      %3666 = vmatprep.subr.mxu0 0.0
      %3667 = vmatpush1.msra.mxu0 %v3352
      %3668 = vmatprep.subr.mxu0 0.0
      %3669 = vmatpush1.msra.mxu0 %v3351
      %3670 = vmatprep.subr.mxu0 0.0
      %3671 = vmatpush1.msra.mxu0 %v3350
      %3672 = vmatprep.subr.mxu0 0.0
      %3673 = vmatpush2.msra.mxu0 0.0
      %3674 = vmatprep.subr.mxu0 0.0
      %3675 = vmatpush2.msra.mxu0 0.0
      %3676 = vmatprep.subr.mxu0 0.0
      %3677 = vmatpush2.msra.mxu0 0.0
      %3678 = vmatprep.subr.mxu0 0.0
      %3679 = vmatpush2.msra.mxu0 0.0
      %3680 = vmatprep.subr.mxu0 0.0
      %3681 = vmatpush2.msra.mxu0 0.0
      %3682 = vmatprep.subr.mxu0 0.0
      %3683 = vmatpush2.msra.mxu0 0.0
      %3684 = vmatprep.subr.mxu0 0.0
      %3685 = vmatpush2.msra.mxu0 0.0
      %3686 = vmatprep.subr.mxu0 0.0
      %3687 = vmatpush2.msra.mxu0 0.0
      %3688 = vmatprep.subr.mxu0 0.0
      %3689 = vmatpush2.msra.mxu0 0.0
      %3690 = vmatprep.subr.mxu0 0.0
      %3691 = vmatpush2.msra.mxu0 0.0
      %3692 = vmatprep.subr.mxu0 0.0
      %3693 = vmatpush2.msra.mxu0 0.0
      %3694 = vmatprep.subr.mxu0 0.0
      %3695 = vmatpush2.msra.mxu0 0.0
      %3696 = vmatprep.subr.mxu0 0.0
      %3697 = vmatpush2.msra.mxu0 0.0
      %3698 = vmatprep.subr.mxu0 0.0
      %3699 = vmatpush2.msra.mxu0 0.0
      %3700 = vmatprep.subr.mxu0 0.0
      %3701 = vmatpush2.msra.mxu0 0.0
      %3702 = vmatprep.subr.mxu0 0.0
      %3703 = vmatpush2.msra.mxu0 0.0
      %3704 = vmatprep.mubr.f32.mxu0 0.0
      %3705 = vmatmul.mubr.f32.gmra.mxu0 %v3318
      %v3706 = vpop.f32.mrf.mxu0
      %v3707 = vadd.f32 %v3482, %v3706
      %v3708 = vpop.f32.mrf.mxu0
      %3709 = vmatprep.mubr.f32.mxu0 0.0
      %3710 = vmatmul.mubr.f32.gmra.mxu0 %v3319
      %v3711 = vpop.f32.mrf.mxu0
      %v3712 = vadd.f32 %v3487, %v3711
      %v3713 = vpop.f32.mrf.mxu0
      %3714 = vmatprep.mubr.f32.mxu0 0.0
      %3715 = vmatmul.mubr.f32.gmra.mxu0 %v3320
      %v3716 = vpop.f32.mrf.mxu0
      %v3717 = vadd.f32 %v3492, %v3716
      %v3718 = vpop.f32.mrf.mxu0
      %3719 = vmatprep.mubr.f32.mxu0 0.0
      %3720 = vmatmul.mubr.f32.gmra.mxu0 %v3321
      %v3721 = vpop.f32.mrf.mxu0
      %v3722 = vadd.f32 %v3497, %v3721
      %v3723 = vpop.f32.mrf.mxu0
      %3724 = vmatprep.mubr.f32.mxu0 0.0
      %3725 = vmatmul.mubr.f32.gmra.mxu0 %v3322
      %v3726 = vpop.f32.mrf.mxu0
      %v3727 = vadd.f32 %v3502, %v3726
      %v3728 = vpop.f32.mrf.mxu0
      %3729 = vmatprep.mubr.f32.mxu0 0.0
      %3730 = vmatmul.mubr.f32.gmra.mxu0 %v3323
      %v3731 = vpop.f32.mrf.mxu0
      %v3732 = vadd.f32 %v3507, %v3731
      %v3733 = vpop.f32.mrf.mxu0
      %3734 = vmatprep.mubr.f32.mxu0 0.0
      %3735 = vmatmul.mubr.f32.gmra.mxu0 %v3324
      %v3736 = vpop.f32.mrf.mxu0
      %v3737 = vadd.f32 %v3512, %v3736
      %v3738 = vpop.f32.mrf.mxu0
      %3739 = vmatprep.mubr.f32.mxu0 0.0
      %3740 = vmatmul.mubr.f32.gmra.mxu0 %v3325
      %v3741 = vpop.f32.mrf.mxu0
      %v3742 = vadd.f32 %v3517, %v3741
      %v3743 = vpop.f32.mrf.mxu0
      %3744 = vmatprep.mubr.f32.mxu0 0.0
      %3745 = vmatmul.mubr.f32.gmra.mxu0 %v3326
      %v3746 = vpop.f32.mrf.mxu0
      %v3747 = vadd.f32 %v3522, %v3746
      %v3748 = vpop.f32.mrf.mxu0
      %3749 = vmatprep.mubr.f32.mxu0 0.0
      %3750 = vmatmul.mubr.f32.gmra.mxu0 %v3327
      %v3751 = vpop.f32.mrf.mxu0
      %v3752 = vadd.f32 %v3527, %v3751
      %v3753 = vpop.f32.mrf.mxu0
      %3754 = vmatprep.mubr.f32.mxu0 0.0
      %3755 = vmatmul.mubr.f32.gmra.mxu0 %v3328
      %v3756 = vpop.f32.mrf.mxu0
      %v3757 = vadd.f32 %v3532, %v3756
      %v3758 = vpop.f32.mrf.mxu0
      %3759 = vmatprep.mubr.f32.mxu0 0.0
      %3760 = vmatmul.mubr.f32.gmra.mxu0 %v3329
      %v3761 = vpop.f32.mrf.mxu0
      %v3762 = vadd.f32 %v3537, %v3761
      %v3763 = vpop.f32.mrf.mxu0
      %3764 = vmatprep.mubr.f32.mxu0 0.0
      %3765 = vmatmul.mubr.f32.gmra.mxu0 %v3330
      %v3766 = vpop.f32.mrf.mxu0
      %v3767 = vadd.f32 %v3542, %v3766
      %v3768 = vpop.f32.mrf.mxu0
      %3769 = vmatprep.mubr.f32.mxu0 0.0
      %3770 = vmatmul.mubr.f32.gmra.mxu0 %v3331
      %v3771 = vpop.f32.mrf.mxu0
      %v3772 = vadd.f32 %v3547, %v3771
      %v3773 = vpop.f32.mrf.mxu0
      %3774 = vmatprep.mubr.f32.mxu0 0.0
      %3775 = vmatmul.mubr.f32.gmra.mxu0 %v3332
      %v3776 = vpop.f32.mrf.mxu0
      %v3777 = vadd.f32 %v3552, %v3776
      %v3778 = vpop.f32.mrf.mxu0
      %3779 = vmatprep.mubr.f32.mxu0 0.0
      %3780 = vmatmul.mubr.f32.gmra.mxu0 %v3333
      %v3781 = vpop.f32.mrf.mxu0
      %v3782 = vadd.f32 %v3557, %v3781
      %v3783 = vpop.f32.mrf.mxu0
      %3784 = vmatprep.mubr.f32.mxu0 0.0
      %3785 = vmatmul.mubr.f32.gmra.mxu0 %v3334
      %v3786 = vpop.f32.mrf.mxu0
      %v3787 = vadd.f32 %v3562, %v3786
      %v3788 = vpop.f32.mrf.mxu0
      %3789 = vmatprep.mubr.f32.mxu0 0.0
      %3790 = vmatmul.mubr.f32.gmra.mxu0 %v3335
      %v3791 = vpop.f32.mrf.mxu0
      %v3792 = vadd.f32 %v3567, %v3791
      %v3793 = vpop.f32.mrf.mxu0
      %3794 = vmatprep.mubr.f32.mxu0 0.0
      %3795 = vmatmul.mubr.f32.gmra.mxu0 %v3336
      %v3796 = vpop.f32.mrf.mxu0
      %v3797 = vadd.f32 %v3572, %v3796
      %v3798 = vpop.f32.mrf.mxu0
      %3799 = vmatprep.mubr.f32.mxu0 0.0
      %3800 = vmatmul.mubr.f32.gmra.mxu0 %v3337
      %v3801 = vpop.f32.mrf.mxu0
      %v3802 = vadd.f32 %v3577, %v3801
      %v3803 = vpop.f32.mrf.mxu0
      %3804 = vmatprep.mubr.f32.mxu0 0.0
      %3805 = vmatmul.mubr.f32.gmra.mxu0 %v3338
      %v3806 = vpop.f32.mrf.mxu0
      %v3807 = vadd.f32 %v3582, %v3806
      %v3808 = vpop.f32.mrf.mxu0
      %3809 = vmatprep.mubr.f32.mxu0 0.0
      %3810 = vmatmul.mubr.f32.gmra.mxu0 %v3339
      %v3811 = vpop.f32.mrf.mxu0
      %v3812 = vadd.f32 %v3587, %v3811
      %v3813 = vpop.f32.mrf.mxu0
      %3814 = vmatprep.mubr.f32.mxu0 0.0
      %3815 = vmatmul.mubr.f32.gmra.mxu0 %v3340
      %v3816 = vpop.f32.mrf.mxu0
      %v3817 = vadd.f32 %v3592, %v3816
      %v3818 = vpop.f32.mrf.mxu0
      %3819 = vmatprep.mubr.f32.mxu0 0.0
      %3820 = vmatmul.mubr.f32.gmra.mxu0 %v3341
      %v3821 = vpop.f32.mrf.mxu0
      %v3822 = vadd.f32 %v3597, %v3821
      %v3823 = vpop.f32.mrf.mxu0
      %3824 = vmatprep.mubr.f32.mxu0 0.0
      %3825 = vmatmul.mubr.f32.gmra.mxu0 %v3342
      %v3826 = vpop.f32.mrf.mxu0
      %v3827 = vadd.f32 %v3602, %v3826
      %v3828 = vpop.f32.mrf.mxu0
      %3829 = vmatprep.mubr.f32.mxu0 0.0
      %3830 = vmatmul.mubr.f32.gmra.mxu0 %v3343
      %v3831 = vpop.f32.mrf.mxu0
      %v3832 = vadd.f32 %v3607, %v3831
      %v3833 = vpop.f32.mrf.mxu0
      %3834 = vmatprep.mubr.f32.mxu0 0.0
      %3835 = vmatmul.mubr.f32.gmra.mxu0 %v3344
      %v3836 = vpop.f32.mrf.mxu0
      %v3837 = vadd.f32 %v3612, %v3836
      %v3838 = vpop.f32.mrf.mxu0
      %3839 = vmatprep.mubr.f32.mxu0 0.0
      %3840 = vmatmul.mubr.f32.gmra.mxu0 %v3345
      %v3841 = vpop.f32.mrf.mxu0
      %v3842 = vadd.f32 %v3617, %v3841
      %v3843 = vpop.f32.mrf.mxu0
      %3844 = vmatprep.mubr.f32.mxu0 0.0
      %3845 = vmatmul.mubr.f32.gmra.mxu0 %v3346
      %v3846 = vpop.f32.mrf.mxu0
      %v3847 = vadd.f32 %v3622, %v3846
      %v3848 = vpop.f32.mrf.mxu0
      %3849 = vmatprep.mubr.f32.mxu0 0.0
      %3850 = vmatmul.mubr.f32.gmra.mxu0 %v3347
      %v3851 = vpop.f32.mrf.mxu0
      %v3852 = vadd.f32 %v3627, %v3851
      %v3853 = vpop.f32.mrf.mxu0
      %3854 = vmatprep.mubr.f32.mxu0 0.0
      %3855 = vmatmul.mubr.f32.gmra.mxu0 %v3348
      %v3856 = vpop.f32.mrf.mxu0
      %v3857 = vadd.f32 %v3632, %v3856
      %v3858 = vpop.f32.mrf.mxu0
      %3859 = vmatprep.mubr.f32.mxu0 0.0
      %3860 = vmatmul.mubr.f32.gmra.mxu0 %v3349
      %v3861 = vpop.f32.mrf.mxu0
      %v3862 = vadd.f32 %v3637, %v3861
      %v3863 = vpop.f32.mrf.mxu0
      %3864 = vdwg.mxu0
      %v3865 = vld [vmem:[#allocation2 + $0x2] sm:$0xff]
      %v3866 = vld [vmem:[#allocation2 + $0xa] sm:$0xff]
      %v3867 = vld [vmem:[#allocation2 + $0x1a] sm:$0xff]
      %v3868 = vld [vmem:[#allocation2 + $0x22] sm:$0xff]
      %v3869 = vld [vmem:[#allocation2 + $0x32] sm:$0xff]
      %v3870 = vld [vmem:[#allocation2 + $0x3a] sm:$0xff]
      %v3871 = vld [vmem:[#allocation2 + $0x4a] sm:$0xff]
      %v3872 = vld [vmem:[#allocation2 + $0x52] sm:$0xff]
      %v3873 = vld [vmem:[#allocation2 + $0x62] sm:$0xff]
      %v3874 = vld [vmem:[#allocation2 + $0x6a] sm:$0xff]
      %v3875 = vld [vmem:[#allocation2 + $0x7a] sm:$0xff]
      %v3876 = vld [vmem:[#allocation2 + $0x82] sm:$0xff]
      %v3877 = vld [vmem:[#allocation2 + $0x92] sm:$0xff]
      %v3878 = vld [vmem:[#allocation2 + $0x9a] sm:$0xff]
      %v3879 = vld [vmem:[#allocation2 + $0xaa] sm:$0xff]
      %v3880 = vld [vmem:[#allocation2 + $0xb2] sm:$0xff]
      %v3881 = vld [vmem:[#allocation2 + $0xc2] sm:$0xff]
      %v3882 = vld [vmem:[#allocation2 + $0xca] sm:$0xff]
      %v3883 = vld [vmem:[#allocation2 + $0xda] sm:$0xff]
      %v3884 = vld [vmem:[#allocation2 + $0xe2] sm:$0xff]
      %v3885 = vld [vmem:[#allocation2 + $0xf2] sm:$0xff]
      %v3886 = vld [vmem:[#allocation2 + $0xfa] sm:$0xff]
      %v3887 = vld [vmem:[#allocation2 + $0x10a] sm:$0xff]
      %v3888 = vld [vmem:[#allocation2 + $0x112] sm:$0xff]
      %v3889 = vld [vmem:[#allocation2 + $0x122] sm:$0xff]
      %v3890 = vld [vmem:[#allocation2 + $0x12a] sm:$0xff]
      %v3891 = vld [vmem:[#allocation2 + $0x13a] sm:$0xff]
      %v3892 = vld [vmem:[#allocation2 + $0x142] sm:$0xff]
      %v3893 = vld [vmem:[#allocation2 + $0x152] sm:$0xff]
      %v3894 = vld [vmem:[#allocation2 + $0x15a] sm:$0xff]
      %v3895 = vld [vmem:[#allocation2 + $0x16a] sm:$0xff]
      %v3896 = vld [vmem:[#allocation2 + $0x172] sm:$0xff]
      %s3897 = scalar_lea.vmem %s2, 256
      %v3898 = vld [vmem:[%s3897] sm:$0xff]
      %v3899 = vld [vmem:[%s3897 + $0x8] sm:$0xff]
      %v3900 = vld [vmem:[%s3897 + $0x10] sm:$0xff]
      %v3901 = vld [vmem:[%s3897 + $0x18] sm:$0xff]
      %v3902 = vld [vmem:[%s3897 + $0x20] sm:$0xff]
      %v3903 = vld [vmem:[%s3897 + $0x28] sm:$0xff]
      %v3904 = vld [vmem:[%s3897 + $0x30] sm:$0xff]
      %v3905 = vld [vmem:[%s3897 + $0x38] sm:$0xff]
      %v3906 = vld [vmem:[%s3897 + $0x40] sm:$0xff]
      %v3907 = vld [vmem:[%s3897 + $0x48] sm:$0xff]
      %v3908 = vld [vmem:[%s3897 + $0x50] sm:$0xff]
      %v3909 = vld [vmem:[%s3897 + $0x58] sm:$0xff]
      %v3910 = vld [vmem:[%s3897 + $0x60] sm:$0xff]
      %v3911 = vld [vmem:[%s3897 + $0x68] sm:$0xff]
      %v3912 = vld [vmem:[%s3897 + $0x70] sm:$0xff]
      %v3913 = vld [vmem:[%s3897 + $0x78] sm:$0xff]
      %3914 = vmatprep.subr.mxu0 0.0
      %3915 = vmatpush1.msra.mxu0 %v3913
      %3916 = vmatprep.subr.mxu0 0.0
      %3917 = vmatpush1.msra.mxu0 %v3912
      %3918 = vmatprep.subr.mxu0 0.0
      %3919 = vmatpush1.msra.mxu0 %v3911
      %3920 = vmatprep.subr.mxu0 0.0
      %3921 = vmatpush1.msra.mxu0 %v3910
      %3922 = vmatprep.subr.mxu0 0.0
      %3923 = vmatpush1.msra.mxu0 %v3909
      %3924 = vmatprep.subr.mxu0 0.0
      %3925 = vmatpush1.msra.mxu0 %v3908
      %3926 = vmatprep.subr.mxu0 0.0
      %3927 = vmatpush1.msra.mxu0 %v3907
      %3928 = vmatprep.subr.mxu0 0.0
      %3929 = vmatpush1.msra.mxu0 %v3906
      %3930 = vmatprep.subr.mxu0 0.0
      %3931 = vmatpush1.msra.mxu0 %v3905
      %3932 = vmatprep.subr.mxu0 0.0
      %3933 = vmatpush1.msra.mxu0 %v3904
      %3934 = vmatprep.subr.mxu0 0.0
      %3935 = vmatpush1.msra.mxu0 %v3903
      %3936 = vmatprep.subr.mxu0 0.0
      %3937 = vmatpush1.msra.mxu0 %v3902
      %3938 = vmatprep.subr.mxu0 0.0
      %3939 = vmatpush1.msra.mxu0 %v3901
      %3940 = vmatprep.subr.mxu0 0.0
      %3941 = vmatpush1.msra.mxu0 %v3900
      %3942 = vmatprep.subr.mxu0 0.0
      %3943 = vmatpush1.msra.mxu0 %v3899
      %3944 = vmatprep.subr.mxu0 0.0
      %3945 = vmatpush1.msra.mxu0 %v3898
      %3946 = vmatprep.subr.mxu0 0.0
      %3947 = vmatpush2.msra.mxu0 0.0
      %3948 = vmatprep.subr.mxu0 0.0
      %3949 = vmatpush2.msra.mxu0 0.0
      %3950 = vmatprep.subr.mxu0 0.0
      %3951 = vmatpush2.msra.mxu0 0.0
      %3952 = vmatprep.subr.mxu0 0.0
      %3953 = vmatpush2.msra.mxu0 0.0
      %3954 = vmatprep.subr.mxu0 0.0
      %3955 = vmatpush2.msra.mxu0 0.0
      %3956 = vmatprep.subr.mxu0 0.0
      %3957 = vmatpush2.msra.mxu0 0.0
      %3958 = vmatprep.subr.mxu0 0.0
      %3959 = vmatpush2.msra.mxu0 0.0
      %3960 = vmatprep.subr.mxu0 0.0
      %3961 = vmatpush2.msra.mxu0 0.0
      %3962 = vmatprep.subr.mxu0 0.0
      %3963 = vmatpush2.msra.mxu0 0.0
      %3964 = vmatprep.subr.mxu0 0.0
      %3965 = vmatpush2.msra.mxu0 0.0
      %3966 = vmatprep.subr.mxu0 0.0
      %3967 = vmatpush2.msra.mxu0 0.0
      %3968 = vmatprep.subr.mxu0 0.0
      %3969 = vmatpush2.msra.mxu0 0.0
      %3970 = vmatprep.subr.mxu0 0.0
      %3971 = vmatpush2.msra.mxu0 0.0
      %3972 = vmatprep.subr.mxu0 0.0
      %3973 = vmatpush2.msra.mxu0 0.0
      %3974 = vmatprep.subr.mxu0 0.0
      %3975 = vmatpush2.msra.mxu0 0.0
      %3976 = vmatprep.subr.mxu0 0.0
      %3977 = vmatpush2.msra.mxu0 0.0
      %3978 = vmatprep.mubr.f32.mxu0 0.0
      %3979 = vmatmul.mubr.f32.gmra.mxu0 %v3865
      %v3980 = vpop.f32.mrf.mxu0
      %v3981 = vadd.f32 0.0, %v3980
      %v3982 = vpop.f32.mrf.mxu0
      %3983 = vmatprep.mubr.f32.mxu0 0.0
      %3984 = vmatmul.mubr.f32.gmra.mxu0 %v3866
      %v3985 = vpop.f32.mrf.mxu0
      %v3986 = vadd.f32 0.0, %v3985
      %v3987 = vpop.f32.mrf.mxu0
      %3988 = vmatprep.mubr.f32.mxu0 0.0
      %3989 = vmatmul.mubr.f32.gmra.mxu0 %v3867
      %v3990 = vpop.f32.mrf.mxu0
      %v3991 = vadd.f32 0.0, %v3990
      %v3992 = vpop.f32.mrf.mxu0
      %3993 = vmatprep.mubr.f32.mxu0 0.0
      %3994 = vmatmul.mubr.f32.gmra.mxu0 %v3868
      %v3995 = vpop.f32.mrf.mxu0
      %v3996 = vadd.f32 0.0, %v3995
      %v3997 = vpop.f32.mrf.mxu0
      %3998 = vmatprep.mubr.f32.mxu0 0.0
      %3999 = vmatmul.mubr.f32.gmra.mxu0 %v3869
      %v4000 = vpop.f32.mrf.mxu0
      %v4001 = vadd.f32 0.0, %v4000
      %v4002 = vpop.f32.mrf.mxu0
      %4003 = vmatprep.mubr.f32.mxu0 0.0
      %4004 = vmatmul.mubr.f32.gmra.mxu0 %v3870
      %v4005 = vpop.f32.mrf.mxu0
      %v4006 = vadd.f32 0.0, %v4005
      %v4007 = vpop.f32.mrf.mxu0
      %4008 = vmatprep.mubr.f32.mxu0 0.0
      %4009 = vmatmul.mubr.f32.gmra.mxu0 %v3871
      %v4010 = vpop.f32.mrf.mxu0
      %v4011 = vadd.f32 0.0, %v4010
      %v4012 = vpop.f32.mrf.mxu0
      %4013 = vmatprep.mubr.f32.mxu0 0.0
      %4014 = vmatmul.mubr.f32.gmra.mxu0 %v3872
      %v4015 = vpop.f32.mrf.mxu0
      %v4016 = vadd.f32 0.0, %v4015
      %v4017 = vpop.f32.mrf.mxu0
      %4018 = vmatprep.mubr.f32.mxu0 0.0
      %4019 = vmatmul.mubr.f32.gmra.mxu0 %v3873
      %v4020 = vpop.f32.mrf.mxu0
      %v4021 = vadd.f32 0.0, %v4020
      %v4022 = vpop.f32.mrf.mxu0
      %4023 = vmatprep.mubr.f32.mxu0 0.0
      %4024 = vmatmul.mubr.f32.gmra.mxu0 %v3874
      %v4025 = vpop.f32.mrf.mxu0
      %v4026 = vadd.f32 0.0, %v4025
      %v4027 = vpop.f32.mrf.mxu0
      %4028 = vmatprep.mubr.f32.mxu0 0.0
      %4029 = vmatmul.mubr.f32.gmra.mxu0 %v3875
      %v4030 = vpop.f32.mrf.mxu0
      %v4031 = vadd.f32 0.0, %v4030
      %v4032 = vpop.f32.mrf.mxu0
      %4033 = vmatprep.mubr.f32.mxu0 0.0
      %4034 = vmatmul.mubr.f32.gmra.mxu0 %v3876
      %v4035 = vpop.f32.mrf.mxu0
      %v4036 = vadd.f32 0.0, %v4035
      %v4037 = vpop.f32.mrf.mxu0
      %4038 = vmatprep.mubr.f32.mxu0 0.0
      %4039 = vmatmul.mubr.f32.gmra.mxu0 %v3877
      %v4040 = vpop.f32.mrf.mxu0
      %v4041 = vadd.f32 0.0, %v4040
      %v4042 = vpop.f32.mrf.mxu0
      %4043 = vmatprep.mubr.f32.mxu0 0.0
      %4044 = vmatmul.mubr.f32.gmra.mxu0 %v3878
      %v4045 = vpop.f32.mrf.mxu0
      %v4046 = vadd.f32 0.0, %v4045
      %v4047 = vpop.f32.mrf.mxu0
      %4048 = vmatprep.mubr.f32.mxu0 0.0
      %4049 = vmatmul.mubr.f32.gmra.mxu0 %v3879
      %v4050 = vpop.f32.mrf.mxu0
      %v4051 = vadd.f32 0.0, %v4050
      %v4052 = vpop.f32.mrf.mxu0
      %4053 = vmatprep.mubr.f32.mxu0 0.0
      %4054 = vmatmul.mubr.f32.gmra.mxu0 %v3880
      %v4055 = vpop.f32.mrf.mxu0
      %v4056 = vadd.f32 0.0, %v4055
      %v4057 = vpop.f32.mrf.mxu0
      %4058 = vmatprep.mubr.f32.mxu0 0.0
      %4059 = vmatmul.mubr.f32.gmra.mxu0 %v3881
      %v4060 = vpop.f32.mrf.mxu0
      %v4061 = vadd.f32 0.0, %v4060
      %v4062 = vpop.f32.mrf.mxu0
      %4063 = vmatprep.mubr.f32.mxu0 0.0
      %4064 = vmatmul.mubr.f32.gmra.mxu0 %v3882
      %v4065 = vpop.f32.mrf.mxu0
      %v4066 = vadd.f32 0.0, %v4065
      %v4067 = vpop.f32.mrf.mxu0
      %4068 = vmatprep.mubr.f32.mxu0 0.0
      %4069 = vmatmul.mubr.f32.gmra.mxu0 %v3883
      %v4070 = vpop.f32.mrf.mxu0
      %v4071 = vadd.f32 0.0, %v4070
      %v4072 = vpop.f32.mrf.mxu0
      %4073 = vmatprep.mubr.f32.mxu0 0.0
      %4074 = vmatmul.mubr.f32.gmra.mxu0 %v3884
      %v4075 = vpop.f32.mrf.mxu0
      %v4076 = vadd.f32 0.0, %v4075
      %v4077 = vpop.f32.mrf.mxu0
      %4078 = vmatprep.mubr.f32.mxu0 0.0
      %4079 = vmatmul.mubr.f32.gmra.mxu0 %v3885
      %v4080 = vpop.f32.mrf.mxu0
      %v4081 = vadd.f32 0.0, %v4080
      %v4082 = vpop.f32.mrf.mxu0
      %4083 = vmatprep.mubr.f32.mxu0 0.0
      %4084 = vmatmul.mubr.f32.gmra.mxu0 %v3886
      %v4085 = vpop.f32.mrf.mxu0
      %v4086 = vadd.f32 0.0, %v4085
      %v4087 = vpop.f32.mrf.mxu0
      %4088 = vmatprep.mubr.f32.mxu0 0.0
      %4089 = vmatmul.mubr.f32.gmra.mxu0 %v3887
      %v4090 = vpop.f32.mrf.mxu0
      %v4091 = vadd.f32 0.0, %v4090
      %v4092 = vpop.f32.mrf.mxu0
      %4093 = vmatprep.mubr.f32.mxu0 0.0
      %4094 = vmatmul.mubr.f32.gmra.mxu0 %v3888
      %v4095 = vpop.f32.mrf.mxu0
      %v4096 = vadd.f32 0.0, %v4095
      %v4097 = vpop.f32.mrf.mxu0
      %4098 = vmatprep.mubr.f32.mxu0 0.0
      %4099 = vmatmul.mubr.f32.gmra.mxu0 %v3889
      %v4100 = vpop.f32.mrf.mxu0
      %v4101 = vadd.f32 0.0, %v4100
      %v4102 = vpop.f32.mrf.mxu0
      %4103 = vmatprep.mubr.f32.mxu0 0.0
      %4104 = vmatmul.mubr.f32.gmra.mxu0 %v3890
      %v4105 = vpop.f32.mrf.mxu0
      %v4106 = vadd.f32 0.0, %v4105
      %v4107 = vpop.f32.mrf.mxu0
      %4108 = vmatprep.mubr.f32.mxu0 0.0
      %4109 = vmatmul.mubr.f32.gmra.mxu0 %v3891
      %v4110 = vpop.f32.mrf.mxu0
      %v4111 = vadd.f32 0.0, %v4110
      %v4112 = vpop.f32.mrf.mxu0
      %4113 = vmatprep.mubr.f32.mxu0 0.0
      %4114 = vmatmul.mubr.f32.gmra.mxu0 %v3892
      %v4115 = vpop.f32.mrf.mxu0
      %v4116 = vadd.f32 0.0, %v4115
      %v4117 = vpop.f32.mrf.mxu0
      %4118 = vmatprep.mubr.f32.mxu0 0.0
      %4119 = vmatmul.mubr.f32.gmra.mxu0 %v3893
      %v4120 = vpop.f32.mrf.mxu0
      %v4121 = vadd.f32 0.0, %v4120
      %v4122 = vpop.f32.mrf.mxu0
      %4123 = vmatprep.mubr.f32.mxu0 0.0
      %4124 = vmatmul.mubr.f32.gmra.mxu0 %v3894
      %v4125 = vpop.f32.mrf.mxu0
      %v4126 = vadd.f32 0.0, %v4125
      %v4127 = vpop.f32.mrf.mxu0
      %4128 = vmatprep.mubr.f32.mxu0 0.0
      %4129 = vmatmul.mubr.f32.gmra.mxu0 %v3895
      %v4130 = vpop.f32.mrf.mxu0
      %v4131 = vadd.f32 0.0, %v4130
      %v4132 = vpop.f32.mrf.mxu0
      %4133 = vmatprep.mubr.f32.mxu0 0.0
      %4134 = vmatmul.mubr.f32.gmra.mxu0 %v3896
      %v4135 = vpop.f32.mrf.mxu0
      %v4136 = vadd.f32 0.0, %v4135
      %v4137 = vpop.f32.mrf.mxu0
      %4138 = vdwg.mxu0
      %v4139 = vadd.f32 %v3707, %v3981
      %v4140 = vadd.f32 %v3712, %v3986
      %v4141 = vadd.f32 %v3717, %v3991
      %v4142 = vadd.f32 %v3722, %v3996
      %v4143 = vadd.f32 %v3727, %v4001
      %v4144 = vadd.f32 %v3732, %v4006
      %v4145 = vadd.f32 %v3737, %v4011
      %v4146 = vadd.f32 %v3742, %v4016
      %v4147 = vadd.f32 %v3747, %v4021
      %v4148 = vadd.f32 %v3752, %v4026
      %v4149 = vadd.f32 %v3757, %v4031
      %v4150 = vadd.f32 %v3762, %v4036
      %v4151 = vadd.f32 %v3767, %v4041
      %v4152 = vadd.f32 %v3772, %v4046
      %v4153 = vadd.f32 %v3777, %v4051
      %v4154 = vadd.f32 %v3782, %v4056
      %v4155 = vadd.f32 %v3787, %v4061
      %v4156 = vadd.f32 %v3792, %v4066
      %v4157 = vadd.f32 %v3797, %v4071
      %v4158 = vadd.f32 %v3802, %v4076
      %v4159 = vadd.f32 %v3807, %v4081
      %v4160 = vadd.f32 %v3812, %v4086
      %v4161 = vadd.f32 %v3817, %v4091
      %v4162 = vadd.f32 %v3822, %v4096
      %v4163 = vadd.f32 %v3827, %v4101
      %v4164 = vadd.f32 %v3832, %v4106
      %v4165 = vadd.f32 %v3837, %v4111
      %v4166 = vadd.f32 %v3842, %v4116
      %v4167 = vadd.f32 %v3847, %v4121
      %v4168 = vadd.f32 %v3852, %v4126
      %v4169 = vadd.f32 %v3857, %v4131
      %v4170 = vadd.f32 %v3862, %v4136
      %v4171 = vld [vmem:[%s203] sm:$0xff]
      %v4172 = vld [vmem:[%s203 + $0x8] sm:$0xff]
      %v4173 = vld [vmem:[%s203 + $0x18] sm:$0xff]
      %v4174 = vld [vmem:[%s203 + $0x20] sm:$0xff]
      %v4175 = vld [vmem:[%s203 + $0x30] sm:$0xff]
      %v4176 = vld [vmem:[%s203 + $0x38] sm:$0xff]
      %v4177 = vld [vmem:[%s203 + $0x48] sm:$0xff]
      %v4178 = vld [vmem:[%s203 + $0x50] sm:$0xff]
      %v4179 = vld [vmem:[%s203 + $0x60] sm:$0xff]
      %v4180 = vld [vmem:[%s203 + $0x68] sm:$0xff]
      %v4181 = vld [vmem:[%s203 + $0x78] sm:$0xff]
      %v4182 = vld [vmem:[%s203 + $0x80] sm:$0xff]
      %v4183 = vld [vmem:[%s203 + $0x90] sm:$0xff]
      %v4184 = vld [vmem:[%s203 + $0x98] sm:$0xff]
      %v4185 = vld [vmem:[%s203 + $0xa8] sm:$0xff]
      %v4186 = vld [vmem:[%s203 + $0xb0] sm:$0xff]
      %v4187 = vld [vmem:[%s203 + $0xc0] sm:$0xff]
      %v4188 = vld [vmem:[%s203 + $0xc8] sm:$0xff]
      %v4189 = vld [vmem:[%s203 + $0xd8] sm:$0xff]
      %v4190 = vld [vmem:[%s203 + $0xe0] sm:$0xff]
      %v4191 = vld [vmem:[%s203 + $0xf0] sm:$0xff]
      %v4192 = vld [vmem:[%s203 + $0xf8] sm:$0xff]
      %v4193 = vld [vmem:[%s203 + $0x108] sm:$0xff]
      %v4194 = vld [vmem:[%s203 + $0x110] sm:$0xff]
      %v4195 = vld [vmem:[%s203 + $0x120] sm:$0xff]
      %v4196 = vld [vmem:[%s203 + $0x128] sm:$0xff]
      %v4197 = vld [vmem:[%s203 + $0x138] sm:$0xff]
      %v4198 = vld [vmem:[%s203 + $0x140] sm:$0xff]
      %v4199 = vld [vmem:[%s203 + $0x150] sm:$0xff]
      %v4200 = vld [vmem:[%s203 + $0x158] sm:$0xff]
      %v4201 = vld [vmem:[%s203 + $0x168] sm:$0xff]
      %v4202 = vld [vmem:[%s203 + $0x170] sm:$0xff]
      %s4203 = scalar_lea.vmem %s2, 384
      %v4204 = vld [vmem:[%s4203] sm:$0xff]
      %v4205 = vld [vmem:[%s4203 + $0x8] sm:$0xff]
      %v4206 = vld [vmem:[%s4203 + $0x10] sm:$0xff]
      %v4207 = vld [vmem:[%s4203 + $0x18] sm:$0xff]
      %v4208 = vld [vmem:[%s4203 + $0x20] sm:$0xff]
      %v4209 = vld [vmem:[%s4203 + $0x28] sm:$0xff]
      %v4210 = vld [vmem:[%s4203 + $0x30] sm:$0xff]
      %v4211 = vld [vmem:[%s4203 + $0x38] sm:$0xff]
      %v4212 = vld [vmem:[%s4203 + $0x40] sm:$0xff]
      %v4213 = vld [vmem:[%s4203 + $0x48] sm:$0xff]
      %v4214 = vld [vmem:[%s4203 + $0x50] sm:$0xff]
      %v4215 = vld [vmem:[%s4203 + $0x58] sm:$0xff]
      %v4216 = vld [vmem:[%s4203 + $0x60] sm:$0xff]
      %v4217 = vld [vmem:[%s4203 + $0x68] sm:$0xff]
      %v4218 = vld [vmem:[%s4203 + $0x70] sm:$0xff]
      %v4219 = vld [vmem:[%s4203 + $0x78] sm:$0xff]
      %4220 = vmatprep.subr.mxu0 0.0
      %4221 = vmatpush1.msra.mxu0 %v4219
      %4222 = vmatprep.subr.mxu0 0.0
      %4223 = vmatpush1.msra.mxu0 %v4218
      %4224 = vmatprep.subr.mxu0 0.0
      %4225 = vmatpush1.msra.mxu0 %v4217
      %4226 = vmatprep.subr.mxu0 0.0
      %4227 = vmatpush1.msra.mxu0 %v4216
      %4228 = vmatprep.subr.mxu0 0.0
      %4229 = vmatpush1.msra.mxu0 %v4215
      %4230 = vmatprep.subr.mxu0 0.0
      %4231 = vmatpush1.msra.mxu0 %v4214
      %4232 = vmatprep.subr.mxu0 0.0
      %4233 = vmatpush1.msra.mxu0 %v4213
      %4234 = vmatprep.subr.mxu0 0.0
      %4235 = vmatpush1.msra.mxu0 %v4212
      %4236 = vmatprep.subr.mxu0 0.0
      %4237 = vmatpush1.msra.mxu0 %v4211
      %4238 = vmatprep.subr.mxu0 0.0
      %4239 = vmatpush1.msra.mxu0 %v4210
      %4240 = vmatprep.subr.mxu0 0.0
      %4241 = vmatpush1.msra.mxu0 %v4209
      %4242 = vmatprep.subr.mxu0 0.0
      %4243 = vmatpush1.msra.mxu0 %v4208
      %4244 = vmatprep.subr.mxu0 0.0
      %4245 = vmatpush1.msra.mxu0 %v4207
      %4246 = vmatprep.subr.mxu0 0.0
      %4247 = vmatpush1.msra.mxu0 %v4206
      %4248 = vmatprep.subr.mxu0 0.0
      %4249 = vmatpush1.msra.mxu0 %v4205
      %4250 = vmatprep.subr.mxu0 0.0
      %4251 = vmatpush1.msra.mxu0 %v4204
      %4252 = vmatprep.subr.mxu0 0.0
      %4253 = vmatpush2.msra.mxu0 0.0
      %4254 = vmatprep.subr.mxu0 0.0
      %4255 = vmatpush2.msra.mxu0 0.0
      %4256 = vmatprep.subr.mxu0 0.0
      %4257 = vmatpush2.msra.mxu0 0.0
      %4258 = vmatprep.subr.mxu0 0.0
      %4259 = vmatpush2.msra.mxu0 0.0
      %4260 = vmatprep.subr.mxu0 0.0
      %4261 = vmatpush2.msra.mxu0 0.0
      %4262 = vmatprep.subr.mxu0 0.0
      %4263 = vmatpush2.msra.mxu0 0.0
      %4264 = vmatprep.subr.mxu0 0.0
      %4265 = vmatpush2.msra.mxu0 0.0
      %4266 = vmatprep.subr.mxu0 0.0
      %4267 = vmatpush2.msra.mxu0 0.0
      %4268 = vmatprep.subr.mxu0 0.0
      %4269 = vmatpush2.msra.mxu0 0.0
      %4270 = vmatprep.subr.mxu0 0.0
      %4271 = vmatpush2.msra.mxu0 0.0
      %4272 = vmatprep.subr.mxu0 0.0
      %4273 = vmatpush2.msra.mxu0 0.0
      %4274 = vmatprep.subr.mxu0 0.0
      %4275 = vmatpush2.msra.mxu0 0.0
      %4276 = vmatprep.subr.mxu0 0.0
      %4277 = vmatpush2.msra.mxu0 0.0
      %4278 = vmatprep.subr.mxu0 0.0
      %4279 = vmatpush2.msra.mxu0 0.0
      %4280 = vmatprep.subr.mxu0 0.0
      %4281 = vmatpush2.msra.mxu0 0.0
      %4282 = vmatprep.subr.mxu0 0.0
      %4283 = vmatpush2.msra.mxu0 0.0
      %4284 = vmatprep.mubr.f32.mxu0 0.0
      %4285 = vmatmul.mubr.f32.gmra.mxu0 %v4171
      %v4286 = vpop.f32.mrf.mxu0
      %v4287 = vadd.f32 0.0, %v4286
      %v4288 = vpop.f32.mrf.mxu0
      %4289 = vmatprep.mubr.f32.mxu0 0.0
      %4290 = vmatmul.mubr.f32.gmra.mxu0 %v4172
      %v4291 = vpop.f32.mrf.mxu0
      %v4292 = vadd.f32 0.0, %v4291
      %v4293 = vpop.f32.mrf.mxu0
      %4294 = vmatprep.mubr.f32.mxu0 0.0
      %4295 = vmatmul.mubr.f32.gmra.mxu0 %v4173
      %v4296 = vpop.f32.mrf.mxu0
      %v4297 = vadd.f32 0.0, %v4296
      %v4298 = vpop.f32.mrf.mxu0
      %4299 = vmatprep.mubr.f32.mxu0 0.0
      %4300 = vmatmul.mubr.f32.gmra.mxu0 %v4174
      %v4301 = vpop.f32.mrf.mxu0
      %v4302 = vadd.f32 0.0, %v4301
      %v4303 = vpop.f32.mrf.mxu0
      %4304 = vmatprep.mubr.f32.mxu0 0.0
      %4305 = vmatmul.mubr.f32.gmra.mxu0 %v4175
      %v4306 = vpop.f32.mrf.mxu0
      %v4307 = vadd.f32 0.0, %v4306
      %v4308 = vpop.f32.mrf.mxu0
      %4309 = vmatprep.mubr.f32.mxu0 0.0
      %4310 = vmatmul.mubr.f32.gmra.mxu0 %v4176
      %v4311 = vpop.f32.mrf.mxu0
      %v4312 = vadd.f32 0.0, %v4311
      %v4313 = vpop.f32.mrf.mxu0
      %4314 = vmatprep.mubr.f32.mxu0 0.0
      %4315 = vmatmul.mubr.f32.gmra.mxu0 %v4177
      %v4316 = vpop.f32.mrf.mxu0
      %v4317 = vadd.f32 0.0, %v4316
      %v4318 = vpop.f32.mrf.mxu0
      %4319 = vmatprep.mubr.f32.mxu0 0.0
      %4320 = vmatmul.mubr.f32.gmra.mxu0 %v4178
      %v4321 = vpop.f32.mrf.mxu0
      %v4322 = vadd.f32 0.0, %v4321
      %v4323 = vpop.f32.mrf.mxu0
      %4324 = vmatprep.mubr.f32.mxu0 0.0
      %4325 = vmatmul.mubr.f32.gmra.mxu0 %v4179
      %v4326 = vpop.f32.mrf.mxu0
      %v4327 = vadd.f32 0.0, %v4326
      %v4328 = vpop.f32.mrf.mxu0
      %4329 = vmatprep.mubr.f32.mxu0 0.0
      %4330 = vmatmul.mubr.f32.gmra.mxu0 %v4180
      %v4331 = vpop.f32.mrf.mxu0
      %v4332 = vadd.f32 0.0, %v4331
      %v4333 = vpop.f32.mrf.mxu0
      %4334 = vmatprep.mubr.f32.mxu0 0.0
      %4335 = vmatmul.mubr.f32.gmra.mxu0 %v4181
      %v4336 = vpop.f32.mrf.mxu0
      %v4337 = vadd.f32 0.0, %v4336
      %v4338 = vpop.f32.mrf.mxu0
      %4339 = vmatprep.mubr.f32.mxu0 0.0
      %4340 = vmatmul.mubr.f32.gmra.mxu0 %v4182
      %v4341 = vpop.f32.mrf.mxu0
      %v4342 = vadd.f32 0.0, %v4341
      %v4343 = vpop.f32.mrf.mxu0
      %4344 = vmatprep.mubr.f32.mxu0 0.0
      %4345 = vmatmul.mubr.f32.gmra.mxu0 %v4183
      %v4346 = vpop.f32.mrf.mxu0
      %v4347 = vadd.f32 0.0, %v4346
      %v4348 = vpop.f32.mrf.mxu0
      %4349 = vmatprep.mubr.f32.mxu0 0.0
      %4350 = vmatmul.mubr.f32.gmra.mxu0 %v4184
      %v4351 = vpop.f32.mrf.mxu0
      %v4352 = vadd.f32 0.0, %v4351
      %v4353 = vpop.f32.mrf.mxu0
      %4354 = vmatprep.mubr.f32.mxu0 0.0
      %4355 = vmatmul.mubr.f32.gmra.mxu0 %v4185
      %v4356 = vpop.f32.mrf.mxu0
      %v4357 = vadd.f32 0.0, %v4356
      %v4358 = vpop.f32.mrf.mxu0
      %4359 = vmatprep.mubr.f32.mxu0 0.0
      %4360 = vmatmul.mubr.f32.gmra.mxu0 %v4186
      %v4361 = vpop.f32.mrf.mxu0
      %v4362 = vadd.f32 0.0, %v4361
      %v4363 = vpop.f32.mrf.mxu0
      %4364 = vmatprep.mubr.f32.mxu0 0.0
      %4365 = vmatmul.mubr.f32.gmra.mxu0 %v4187
      %v4366 = vpop.f32.mrf.mxu0
      %v4367 = vadd.f32 0.0, %v4366
      %v4368 = vpop.f32.mrf.mxu0
      %4369 = vmatprep.mubr.f32.mxu0 0.0
      %4370 = vmatmul.mubr.f32.gmra.mxu0 %v4188
      %v4371 = vpop.f32.mrf.mxu0
      %v4372 = vadd.f32 0.0, %v4371
      %v4373 = vpop.f32.mrf.mxu0
      %4374 = vmatprep.mubr.f32.mxu0 0.0
      %4375 = vmatmul.mubr.f32.gmra.mxu0 %v4189
      %v4376 = vpop.f32.mrf.mxu0
      %v4377 = vadd.f32 0.0, %v4376
      %v4378 = vpop.f32.mrf.mxu0
      %4379 = vmatprep.mubr.f32.mxu0 0.0
      %4380 = vmatmul.mubr.f32.gmra.mxu0 %v4190
      %v4381 = vpop.f32.mrf.mxu0
      %v4382 = vadd.f32 0.0, %v4381
      %v4383 = vpop.f32.mrf.mxu0
      %4384 = vmatprep.mubr.f32.mxu0 0.0
      %4385 = vmatmul.mubr.f32.gmra.mxu0 %v4191
      %v4386 = vpop.f32.mrf.mxu0
      %v4387 = vadd.f32 0.0, %v4386
      %v4388 = vpop.f32.mrf.mxu0
      %4389 = vmatprep.mubr.f32.mxu0 0.0
      %4390 = vmatmul.mubr.f32.gmra.mxu0 %v4192
      %v4391 = vpop.f32.mrf.mxu0
      %v4392 = vadd.f32 0.0, %v4391
      %v4393 = vpop.f32.mrf.mxu0
      %4394 = vmatprep.mubr.f32.mxu0 0.0
      %4395 = vmatmul.mubr.f32.gmra.mxu0 %v4193
      %v4396 = vpop.f32.mrf.mxu0
      %v4397 = vadd.f32 0.0, %v4396
      %v4398 = vpop.f32.mrf.mxu0
      %4399 = vmatprep.mubr.f32.mxu0 0.0
      %4400 = vmatmul.mubr.f32.gmra.mxu0 %v4194
      %v4401 = vpop.f32.mrf.mxu0
      %v4402 = vadd.f32 0.0, %v4401
      %v4403 = vpop.f32.mrf.mxu0
      %4404 = vmatprep.mubr.f32.mxu0 0.0
      %4405 = vmatmul.mubr.f32.gmra.mxu0 %v4195
      %v4406 = vpop.f32.mrf.mxu0
      %v4407 = vadd.f32 0.0, %v4406
      %v4408 = vpop.f32.mrf.mxu0
      %4409 = vmatprep.mubr.f32.mxu0 0.0
      %4410 = vmatmul.mubr.f32.gmra.mxu0 %v4196
      %v4411 = vpop.f32.mrf.mxu0
      %v4412 = vadd.f32 0.0, %v4411
      %v4413 = vpop.f32.mrf.mxu0
      %4414 = vmatprep.mubr.f32.mxu0 0.0
      %4415 = vmatmul.mubr.f32.gmra.mxu0 %v4197
      %v4416 = vpop.f32.mrf.mxu0
      %v4417 = vadd.f32 0.0, %v4416
      %v4418 = vpop.f32.mrf.mxu0
      %4419 = vmatprep.mubr.f32.mxu0 0.0
      %4420 = vmatmul.mubr.f32.gmra.mxu0 %v4198
      %v4421 = vpop.f32.mrf.mxu0
      %v4422 = vadd.f32 0.0, %v4421
      %v4423 = vpop.f32.mrf.mxu0
      %4424 = vmatprep.mubr.f32.mxu0 0.0
      %4425 = vmatmul.mubr.f32.gmra.mxu0 %v4199
      %v4426 = vpop.f32.mrf.mxu0
      %v4427 = vadd.f32 0.0, %v4426
      %v4428 = vpop.f32.mrf.mxu0
      %4429 = vmatprep.mubr.f32.mxu0 0.0
      %4430 = vmatmul.mubr.f32.gmra.mxu0 %v4200
      %v4431 = vpop.f32.mrf.mxu0
      %v4432 = vadd.f32 0.0, %v4431
      %v4433 = vpop.f32.mrf.mxu0
      %4434 = vmatprep.mubr.f32.mxu0 0.0
      %4435 = vmatmul.mubr.f32.gmra.mxu0 %v4201
      %v4436 = vpop.f32.mrf.mxu0
      %v4437 = vadd.f32 0.0, %v4436
      %v4438 = vpop.f32.mrf.mxu0
      %4439 = vmatprep.mubr.f32.mxu0 0.0
      %4440 = vmatmul.mubr.f32.gmra.mxu0 %v4202
      %v4441 = vpop.f32.mrf.mxu0
      %v4442 = vadd.f32 0.0, %v4441
      %v4443 = vpop.f32.mrf.mxu0
      %4444 = vdwg.mxu0
      %v4445 = vadd.f32 %v4139, %v4287
      %v4446 = vadd.f32 %v4140, %v4292
      %v4447 = vadd.f32 %v4141, %v4297
      %v4448 = vadd.f32 %v4142, %v4302
      %v4449 = vadd.f32 %v4143, %v4307
      %v4450 = vadd.f32 %v4144, %v4312
      %v4451 = vadd.f32 %v4145, %v4317
      %v4452 = vadd.f32 %v4146, %v4322
      %v4453 = vadd.f32 %v4147, %v4327
      %v4454 = vadd.f32 %v4148, %v4332
      %v4455 = vadd.f32 %v4149, %v4337
      %v4456 = vadd.f32 %v4150, %v4342
      %v4457 = vadd.f32 %v4151, %v4347
      %v4458 = vadd.f32 %v4152, %v4352
      %v4459 = vadd.f32 %v4153, %v4357
      %v4460 = vadd.f32 %v4154, %v4362
      %v4461 = vadd.f32 %v4155, %v4367
      %v4462 = vadd.f32 %v4156, %v4372
      %v4463 = vadd.f32 %v4157, %v4377
      %v4464 = vadd.f32 %v4158, %v4382
      %v4465 = vadd.f32 %v4159, %v4387
      %v4466 = vadd.f32 %v4160, %v4392
      %v4467 = vadd.f32 %v4161, %v4397
      %v4468 = vadd.f32 %v4162, %v4402
      %v4469 = vadd.f32 %v4163, %v4407
      %v4470 = vadd.f32 %v4164, %v4412
      %v4471 = vadd.f32 %v4165, %v4417
      %v4472 = vadd.f32 %v4166, %v4422
      %v4473 = vadd.f32 %v4167, %v4427
      %v4474 = vadd.f32 %v4168, %v4432
      %v4475 = vadd.f32 %v4169, %v4437
      %v4476 = vadd.f32 %v4170, %v4442
      %v4477 = vld [vmem:[%s203 + $0x1] sm:$0xff]
      %v4478 = vld [vmem:[%s203 + $0x9] sm:$0xff]
      %v4479 = vld [vmem:[%s203 + $0x19] sm:$0xff]
      %v4480 = vld [vmem:[%s203 + $0x21] sm:$0xff]
      %v4481 = vld [vmem:[%s203 + $0x31] sm:$0xff]
      %v4482 = vld [vmem:[%s203 + $0x39] sm:$0xff]
      %v4483 = vld [vmem:[%s203 + $0x49] sm:$0xff]
      %v4484 = vld [vmem:[%s203 + $0x51] sm:$0xff]
      %v4485 = vld [vmem:[%s203 + $0x61] sm:$0xff]
      %v4486 = vld [vmem:[%s203 + $0x69] sm:$0xff]
      %v4487 = vld [vmem:[%s203 + $0x79] sm:$0xff]
      %v4488 = vld [vmem:[%s203 + $0x81] sm:$0xff]
      %v4489 = vld [vmem:[%s203 + $0x91] sm:$0xff]
      %v4490 = vld [vmem:[%s203 + $0x99] sm:$0xff]
      %v4491 = vld [vmem:[%s203 + $0xa9] sm:$0xff]
      %v4492 = vld [vmem:[%s203 + $0xb1] sm:$0xff]
      %v4493 = vld [vmem:[%s203 + $0xc1] sm:$0xff]
      %v4494 = vld [vmem:[%s203 + $0xc9] sm:$0xff]
      %v4495 = vld [vmem:[%s203 + $0xd9] sm:$0xff]
      %v4496 = vld [vmem:[%s203 + $0xe1] sm:$0xff]
      %v4497 = vld [vmem:[%s203 + $0xf1] sm:$0xff]
      %v4498 = vld [vmem:[%s203 + $0xf9] sm:$0xff]
      %v4499 = vld [vmem:[%s203 + $0x109] sm:$0xff]
      %v4500 = vld [vmem:[%s203 + $0x111] sm:$0xff]
      %v4501 = vld [vmem:[%s203 + $0x121] sm:$0xff]
      %v4502 = vld [vmem:[%s203 + $0x129] sm:$0xff]
      %v4503 = vld [vmem:[%s203 + $0x139] sm:$0xff]
      %v4504 = vld [vmem:[%s203 + $0x141] sm:$0xff]
      %v4505 = vld [vmem:[%s203 + $0x151] sm:$0xff]
      %v4506 = vld [vmem:[%s203 + $0x159] sm:$0xff]
      %v4507 = vld [vmem:[%s203 + $0x169] sm:$0xff]
      %v4508 = vld [vmem:[%s203 + $0x171] sm:$0xff]
      %s4509 = scalar_lea.vmem %s2, 512
      %v4510 = vld [vmem:[%s4509] sm:$0xff]
      %v4511 = vld [vmem:[%s4509 + $0x8] sm:$0xff]
      %v4512 = vld [vmem:[%s4509 + $0x10] sm:$0xff]
      %v4513 = vld [vmem:[%s4509 + $0x18] sm:$0xff]
      %v4514 = vld [vmem:[%s4509 + $0x20] sm:$0xff]
      %v4515 = vld [vmem:[%s4509 + $0x28] sm:$0xff]
      %v4516 = vld [vmem:[%s4509 + $0x30] sm:$0xff]
      %v4517 = vld [vmem:[%s4509 + $0x38] sm:$0xff]
      %v4518 = vld [vmem:[%s4509 + $0x40] sm:$0xff]
      %v4519 = vld [vmem:[%s4509 + $0x48] sm:$0xff]
      %v4520 = vld [vmem:[%s4509 + $0x50] sm:$0xff]
      %v4521 = vld [vmem:[%s4509 + $0x58] sm:$0xff]
      %v4522 = vld [vmem:[%s4509 + $0x60] sm:$0xff]
      %v4523 = vld [vmem:[%s4509 + $0x68] sm:$0xff]
      %v4524 = vld [vmem:[%s4509 + $0x70] sm:$0xff]
      %v4525 = vld [vmem:[%s4509 + $0x78] sm:$0xff]
      %4526 = vmatprep.subr.mxu0 0.0
      %4527 = vmatpush1.msra.mxu0 %v4525
      %4528 = vmatprep.subr.mxu0 0.0
      %4529 = vmatpush1.msra.mxu0 %v4524
      %4530 = vmatprep.subr.mxu0 0.0
      %4531 = vmatpush1.msra.mxu0 %v4523
      %4532 = vmatprep.subr.mxu0 0.0
      %4533 = vmatpush1.msra.mxu0 %v4522
      %4534 = vmatprep.subr.mxu0 0.0
      %4535 = vmatpush1.msra.mxu0 %v4521
      %4536 = vmatprep.subr.mxu0 0.0
      %4537 = vmatpush1.msra.mxu0 %v4520
      %4538 = vmatprep.subr.mxu0 0.0
      %4539 = vmatpush1.msra.mxu0 %v4519
      %4540 = vmatprep.subr.mxu0 0.0
      %4541 = vmatpush1.msra.mxu0 %v4518
      %4542 = vmatprep.subr.mxu0 0.0
      %4543 = vmatpush1.msra.mxu0 %v4517
      %4544 = vmatprep.subr.mxu0 0.0
      %4545 = vmatpush1.msra.mxu0 %v4516
      %4546 = vmatprep.subr.mxu0 0.0
      %4547 = vmatpush1.msra.mxu0 %v4515
      %4548 = vmatprep.subr.mxu0 0.0
      %4549 = vmatpush1.msra.mxu0 %v4514
      %4550 = vmatprep.subr.mxu0 0.0
      %4551 = vmatpush1.msra.mxu0 %v4513
      %4552 = vmatprep.subr.mxu0 0.0
      %4553 = vmatpush1.msra.mxu0 %v4512
      %4554 = vmatprep.subr.mxu0 0.0
      %4555 = vmatpush1.msra.mxu0 %v4511
      %4556 = vmatprep.subr.mxu0 0.0
      %4557 = vmatpush1.msra.mxu0 %v4510
      %4558 = vmatprep.subr.mxu0 0.0
      %4559 = vmatpush2.msra.mxu0 0.0
      %4560 = vmatprep.subr.mxu0 0.0
      %4561 = vmatpush2.msra.mxu0 0.0
      %4562 = vmatprep.subr.mxu0 0.0
      %4563 = vmatpush2.msra.mxu0 0.0
      %4564 = vmatprep.subr.mxu0 0.0
      %4565 = vmatpush2.msra.mxu0 0.0
      %4566 = vmatprep.subr.mxu0 0.0
      %4567 = vmatpush2.msra.mxu0 0.0
      %4568 = vmatprep.subr.mxu0 0.0
      %4569 = vmatpush2.msra.mxu0 0.0
      %4570 = vmatprep.subr.mxu0 0.0
      %4571 = vmatpush2.msra.mxu0 0.0
      %4572 = vmatprep.subr.mxu0 0.0
      %4573 = vmatpush2.msra.mxu0 0.0
      %4574 = vmatprep.subr.mxu0 0.0
      %4575 = vmatpush2.msra.mxu0 0.0
      %4576 = vmatprep.subr.mxu0 0.0
      %4577 = vmatpush2.msra.mxu0 0.0
      %4578 = vmatprep.subr.mxu0 0.0
      %4579 = vmatpush2.msra.mxu0 0.0
      %4580 = vmatprep.subr.mxu0 0.0
      %4581 = vmatpush2.msra.mxu0 0.0
      %4582 = vmatprep.subr.mxu0 0.0
      %4583 = vmatpush2.msra.mxu0 0.0
      %4584 = vmatprep.subr.mxu0 0.0
      %4585 = vmatpush2.msra.mxu0 0.0
      %4586 = vmatprep.subr.mxu0 0.0
      %4587 = vmatpush2.msra.mxu0 0.0
      %4588 = vmatprep.subr.mxu0 0.0
      %4589 = vmatpush2.msra.mxu0 0.0
      %4590 = vmatprep.mubr.f32.mxu0 0.0
      %4591 = vmatmul.mubr.f32.gmra.mxu0 %v4477
      %v4592 = vpop.f32.mrf.mxu0
      %v4593 = vadd.f32 0.0, %v4592
      %v4594 = vpop.f32.mrf.mxu0
      %4595 = vmatprep.mubr.f32.mxu0 0.0
      %4596 = vmatmul.mubr.f32.gmra.mxu0 %v4478
      %v4597 = vpop.f32.mrf.mxu0
      %v4598 = vadd.f32 0.0, %v4597
      %v4599 = vpop.f32.mrf.mxu0
      %4600 = vmatprep.mubr.f32.mxu0 0.0
      %4601 = vmatmul.mubr.f32.gmra.mxu0 %v4479
      %v4602 = vpop.f32.mrf.mxu0
      %v4603 = vadd.f32 0.0, %v4602
      %v4604 = vpop.f32.mrf.mxu0
      %4605 = vmatprep.mubr.f32.mxu0 0.0
      %4606 = vmatmul.mubr.f32.gmra.mxu0 %v4480
      %v4607 = vpop.f32.mrf.mxu0
      %v4608 = vadd.f32 0.0, %v4607
      %v4609 = vpop.f32.mrf.mxu0
      %4610 = vmatprep.mubr.f32.mxu0 0.0
      %4611 = vmatmul.mubr.f32.gmra.mxu0 %v4481
      %v4612 = vpop.f32.mrf.mxu0
      %v4613 = vadd.f32 0.0, %v4612
      %v4614 = vpop.f32.mrf.mxu0
      %4615 = vmatprep.mubr.f32.mxu0 0.0
      %4616 = vmatmul.mubr.f32.gmra.mxu0 %v4482
      %v4617 = vpop.f32.mrf.mxu0
      %v4618 = vadd.f32 0.0, %v4617
      %v4619 = vpop.f32.mrf.mxu0
      %4620 = vmatprep.mubr.f32.mxu0 0.0
      %4621 = vmatmul.mubr.f32.gmra.mxu0 %v4483
      %v4622 = vpop.f32.mrf.mxu0
      %v4623 = vadd.f32 0.0, %v4622
      %v4624 = vpop.f32.mrf.mxu0
      %4625 = vmatprep.mubr.f32.mxu0 0.0
      %4626 = vmatmul.mubr.f32.gmra.mxu0 %v4484
      %v4627 = vpop.f32.mrf.mxu0
      %v4628 = vadd.f32 0.0, %v4627
      %v4629 = vpop.f32.mrf.mxu0
      %4630 = vmatprep.mubr.f32.mxu0 0.0
      %4631 = vmatmul.mubr.f32.gmra.mxu0 %v4485
      %v4632 = vpop.f32.mrf.mxu0
      %v4633 = vadd.f32 0.0, %v4632
      %v4634 = vpop.f32.mrf.mxu0
      %4635 = vmatprep.mubr.f32.mxu0 0.0
      %4636 = vmatmul.mubr.f32.gmra.mxu0 %v4486
      %v4637 = vpop.f32.mrf.mxu0
      %v4638 = vadd.f32 0.0, %v4637
      %v4639 = vpop.f32.mrf.mxu0
      %4640 = vmatprep.mubr.f32.mxu0 0.0
      %4641 = vmatmul.mubr.f32.gmra.mxu0 %v4487
      %v4642 = vpop.f32.mrf.mxu0
      %v4643 = vadd.f32 0.0, %v4642
      %v4644 = vpop.f32.mrf.mxu0
      %4645 = vmatprep.mubr.f32.mxu0 0.0
      %4646 = vmatmul.mubr.f32.gmra.mxu0 %v4488
      %v4647 = vpop.f32.mrf.mxu0
      %v4648 = vadd.f32 0.0, %v4647
      %v4649 = vpop.f32.mrf.mxu0
      %4650 = vmatprep.mubr.f32.mxu0 0.0
      %4651 = vmatmul.mubr.f32.gmra.mxu0 %v4489
      %v4652 = vpop.f32.mrf.mxu0
      %v4653 = vadd.f32 0.0, %v4652
      %v4654 = vpop.f32.mrf.mxu0
      %4655 = vmatprep.mubr.f32.mxu0 0.0
      %4656 = vmatmul.mubr.f32.gmra.mxu0 %v4490
      %v4657 = vpop.f32.mrf.mxu0
      %v4658 = vadd.f32 0.0, %v4657
      %v4659 = vpop.f32.mrf.mxu0
      %4660 = vmatprep.mubr.f32.mxu0 0.0
      %4661 = vmatmul.mubr.f32.gmra.mxu0 %v4491
      %v4662 = vpop.f32.mrf.mxu0
      %v4663 = vadd.f32 0.0, %v4662
      %v4664 = vpop.f32.mrf.mxu0
      %4665 = vmatprep.mubr.f32.mxu0 0.0
      %4666 = vmatmul.mubr.f32.gmra.mxu0 %v4492
      %v4667 = vpop.f32.mrf.mxu0
      %v4668 = vadd.f32 0.0, %v4667
      %v4669 = vpop.f32.mrf.mxu0
      %4670 = vmatprep.mubr.f32.mxu0 0.0
      %4671 = vmatmul.mubr.f32.gmra.mxu0 %v4493
      %v4672 = vpop.f32.mrf.mxu0
      %v4673 = vadd.f32 0.0, %v4672
      %v4674 = vpop.f32.mrf.mxu0
      %4675 = vmatprep.mubr.f32.mxu0 0.0
      %4676 = vmatmul.mubr.f32.gmra.mxu0 %v4494
      %v4677 = vpop.f32.mrf.mxu0
      %v4678 = vadd.f32 0.0, %v4677
      %v4679 = vpop.f32.mrf.mxu0
      %4680 = vmatprep.mubr.f32.mxu0 0.0
      %4681 = vmatmul.mubr.f32.gmra.mxu0 %v4495
      %v4682 = vpop.f32.mrf.mxu0
      %v4683 = vadd.f32 0.0, %v4682
      %v4684 = vpop.f32.mrf.mxu0
      %4685 = vmatprep.mubr.f32.mxu0 0.0
      %4686 = vmatmul.mubr.f32.gmra.mxu0 %v4496
      %v4687 = vpop.f32.mrf.mxu0
      %v4688 = vadd.f32 0.0, %v4687
      %v4689 = vpop.f32.mrf.mxu0
      %4690 = vmatprep.mubr.f32.mxu0 0.0
      %4691 = vmatmul.mubr.f32.gmra.mxu0 %v4497
      %v4692 = vpop.f32.mrf.mxu0
      %v4693 = vadd.f32 0.0, %v4692
      %v4694 = vpop.f32.mrf.mxu0
      %4695 = vmatprep.mubr.f32.mxu0 0.0
      %4696 = vmatmul.mubr.f32.gmra.mxu0 %v4498
      %v4697 = vpop.f32.mrf.mxu0
      %v4698 = vadd.f32 0.0, %v4697
      %v4699 = vpop.f32.mrf.mxu0
      %4700 = vmatprep.mubr.f32.mxu0 0.0
      %4701 = vmatmul.mubr.f32.gmra.mxu0 %v4499
      %v4702 = vpop.f32.mrf.mxu0
      %v4703 = vadd.f32 0.0, %v4702
      %v4704 = vpop.f32.mrf.mxu0
      %4705 = vmatprep.mubr.f32.mxu0 0.0
      %4706 = vmatmul.mubr.f32.gmra.mxu0 %v4500
      %v4707 = vpop.f32.mrf.mxu0
      %v4708 = vadd.f32 0.0, %v4707
      %v4709 = vpop.f32.mrf.mxu0
      %4710 = vmatprep.mubr.f32.mxu0 0.0
      %4711 = vmatmul.mubr.f32.gmra.mxu0 %v4501
      %v4712 = vpop.f32.mrf.mxu0
      %v4713 = vadd.f32 0.0, %v4712
      %v4714 = vpop.f32.mrf.mxu0
      %4715 = vmatprep.mubr.f32.mxu0 0.0
      %4716 = vmatmul.mubr.f32.gmra.mxu0 %v4502
      %v4717 = vpop.f32.mrf.mxu0
      %v4718 = vadd.f32 0.0, %v4717
      %v4719 = vpop.f32.mrf.mxu0
      %4720 = vmatprep.mubr.f32.mxu0 0.0
      %4721 = vmatmul.mubr.f32.gmra.mxu0 %v4503
      %v4722 = vpop.f32.mrf.mxu0
      %v4723 = vadd.f32 0.0, %v4722
      %v4724 = vpop.f32.mrf.mxu0
      %4725 = vmatprep.mubr.f32.mxu0 0.0
      %4726 = vmatmul.mubr.f32.gmra.mxu0 %v4504
      %v4727 = vpop.f32.mrf.mxu0
      %v4728 = vadd.f32 0.0, %v4727
      %v4729 = vpop.f32.mrf.mxu0
      %4730 = vmatprep.mubr.f32.mxu0 0.0
      %4731 = vmatmul.mubr.f32.gmra.mxu0 %v4505
      %v4732 = vpop.f32.mrf.mxu0
      %v4733 = vadd.f32 0.0, %v4732
      %v4734 = vpop.f32.mrf.mxu0
      %4735 = vmatprep.mubr.f32.mxu0 0.0
      %4736 = vmatmul.mubr.f32.gmra.mxu0 %v4506
      %v4737 = vpop.f32.mrf.mxu0
      %v4738 = vadd.f32 0.0, %v4737
      %v4739 = vpop.f32.mrf.mxu0
      %4740 = vmatprep.mubr.f32.mxu0 0.0
      %4741 = vmatmul.mubr.f32.gmra.mxu0 %v4507
      %v4742 = vpop.f32.mrf.mxu0
      %v4743 = vadd.f32 0.0, %v4742
      %v4744 = vpop.f32.mrf.mxu0
      %4745 = vmatprep.mubr.f32.mxu0 0.0
      %4746 = vmatmul.mubr.f32.gmra.mxu0 %v4508
      %v4747 = vpop.f32.mrf.mxu0
      %v4748 = vadd.f32 0.0, %v4747
      %v4749 = vpop.f32.mrf.mxu0
      %4750 = vdwg.mxu0
      %v4751 = vadd.f32 %v4445, %v4593
      %v4752 = vadd.f32 %v4446, %v4598
      %v4753 = vadd.f32 %v4447, %v4603
      %v4754 = vadd.f32 %v4448, %v4608
      %v4755 = vadd.f32 %v4449, %v4613
      %v4756 = vadd.f32 %v4450, %v4618
      %v4757 = vadd.f32 %v4451, %v4623
      %v4758 = vadd.f32 %v4452, %v4628
      %v4759 = vadd.f32 %v4453, %v4633
      %v4760 = vadd.f32 %v4454, %v4638
      %v4761 = vadd.f32 %v4455, %v4643
      %v4762 = vadd.f32 %v4456, %v4648
      %v4763 = vadd.f32 %v4457, %v4653
      %v4764 = vadd.f32 %v4458, %v4658
      %v4765 = vadd.f32 %v4459, %v4663
      %v4766 = vadd.f32 %v4460, %v4668
      %v4767 = vadd.f32 %v4461, %v4673
      %v4768 = vadd.f32 %v4462, %v4678
      %v4769 = vadd.f32 %v4463, %v4683
      %v4770 = vadd.f32 %v4464, %v4688
      %v4771 = vadd.f32 %v4465, %v4693
      %v4772 = vadd.f32 %v4466, %v4698
      %v4773 = vadd.f32 %v4467, %v4703
      %v4774 = vadd.f32 %v4468, %v4708
      %v4775 = vadd.f32 %v4469, %v4713
      %v4776 = vadd.f32 %v4470, %v4718
      %v4777 = vadd.f32 %v4471, %v4723
      %v4778 = vadd.f32 %v4472, %v4728
      %v4779 = vadd.f32 %v4473, %v4733
      %v4780 = vadd.f32 %v4474, %v4738
      %v4781 = vadd.f32 %v4475, %v4743
      %v4782 = vadd.f32 %v4476, %v4748
      %v4783 = vld [vmem:[%s203 + $0x2] sm:$0xff]
      %v4784 = vld [vmem:[%s203 + $0xa] sm:$0xff]
      %v4785 = vld [vmem:[%s203 + $0x1a] sm:$0xff]
      %v4786 = vld [vmem:[%s203 + $0x22] sm:$0xff]
      %v4787 = vld [vmem:[%s203 + $0x32] sm:$0xff]
      %v4788 = vld [vmem:[%s203 + $0x3a] sm:$0xff]
      %v4789 = vld [vmem:[%s203 + $0x4a] sm:$0xff]
      %v4790 = vld [vmem:[%s203 + $0x52] sm:$0xff]
      %v4791 = vld [vmem:[%s203 + $0x62] sm:$0xff]
      %v4792 = vld [vmem:[%s203 + $0x6a] sm:$0xff]
      %v4793 = vld [vmem:[%s203 + $0x7a] sm:$0xff]
      %v4794 = vld [vmem:[%s203 + $0x82] sm:$0xff]
      %v4795 = vld [vmem:[%s203 + $0x92] sm:$0xff]
      %v4796 = vld [vmem:[%s203 + $0x9a] sm:$0xff]
      %v4797 = vld [vmem:[%s203 + $0xaa] sm:$0xff]
      %v4798 = vld [vmem:[%s203 + $0xb2] sm:$0xff]
      %v4799 = vld [vmem:[%s203 + $0xc2] sm:$0xff]
      %v4800 = vld [vmem:[%s203 + $0xca] sm:$0xff]
      %v4801 = vld [vmem:[%s203 + $0xda] sm:$0xff]
      %v4802 = vld [vmem:[%s203 + $0xe2] sm:$0xff]
      %v4803 = vld [vmem:[%s203 + $0xf2] sm:$0xff]
      %v4804 = vld [vmem:[%s203 + $0xfa] sm:$0xff]
      %v4805 = vld [vmem:[%s203 + $0x10a] sm:$0xff]
      %v4806 = vld [vmem:[%s203 + $0x112] sm:$0xff]
      %v4807 = vld [vmem:[%s203 + $0x122] sm:$0xff]
      %v4808 = vld [vmem:[%s203 + $0x12a] sm:$0xff]
      %v4809 = vld [vmem:[%s203 + $0x13a] sm:$0xff]
      %v4810 = vld [vmem:[%s203 + $0x142] sm:$0xff]
      %v4811 = vld [vmem:[%s203 + $0x152] sm:$0xff]
      %v4812 = vld [vmem:[%s203 + $0x15a] sm:$0xff]
      %v4813 = vld [vmem:[%s203 + $0x16a] sm:$0xff]
      %v4814 = vld [vmem:[%s203 + $0x172] sm:$0xff]
      %s4815 = scalar_lea.vmem %s2, 640
      %v4816 = vld [vmem:[%s4815] sm:$0xff]
      %v4817 = vld [vmem:[%s4815 + $0x8] sm:$0xff]
      %v4818 = vld [vmem:[%s4815 + $0x10] sm:$0xff]
      %v4819 = vld [vmem:[%s4815 + $0x18] sm:$0xff]
      %v4820 = vld [vmem:[%s4815 + $0x20] sm:$0xff]
      %v4821 = vld [vmem:[%s4815 + $0x28] sm:$0xff]
      %v4822 = vld [vmem:[%s4815 + $0x30] sm:$0xff]
      %v4823 = vld [vmem:[%s4815 + $0x38] sm:$0xff]
      %v4824 = vld [vmem:[%s4815 + $0x40] sm:$0xff]
      %v4825 = vld [vmem:[%s4815 + $0x48] sm:$0xff]
      %v4826 = vld [vmem:[%s4815 + $0x50] sm:$0xff]
      %v4827 = vld [vmem:[%s4815 + $0x58] sm:$0xff]
      %v4828 = vld [vmem:[%s4815 + $0x60] sm:$0xff]
      %v4829 = vld [vmem:[%s4815 + $0x68] sm:$0xff]
      %v4830 = vld [vmem:[%s4815 + $0x70] sm:$0xff]
      %v4831 = vld [vmem:[%s4815 + $0x78] sm:$0xff]
      %4832 = vmatprep.subr.mxu0 0.0
      %4833 = vmatpush1.msra.mxu0 %v4831
      %4834 = vmatprep.subr.mxu0 0.0
      %4835 = vmatpush1.msra.mxu0 %v4830
      %4836 = vmatprep.subr.mxu0 0.0
      %4837 = vmatpush1.msra.mxu0 %v4829
      %4838 = vmatprep.subr.mxu0 0.0
      %4839 = vmatpush1.msra.mxu0 %v4828
      %4840 = vmatprep.subr.mxu0 0.0
      %4841 = vmatpush1.msra.mxu0 %v4827
      %4842 = vmatprep.subr.mxu0 0.0
      %4843 = vmatpush1.msra.mxu0 %v4826
      %4844 = vmatprep.subr.mxu0 0.0
      %4845 = vmatpush1.msra.mxu0 %v4825
      %4846 = vmatprep.subr.mxu0 0.0
      %4847 = vmatpush1.msra.mxu0 %v4824
      %4848 = vmatprep.subr.mxu0 0.0
      %4849 = vmatpush1.msra.mxu0 %v4823
      %4850 = vmatprep.subr.mxu0 0.0
      %4851 = vmatpush1.msra.mxu0 %v4822
      %4852 = vmatprep.subr.mxu0 0.0
      %4853 = vmatpush1.msra.mxu0 %v4821
      %4854 = vmatprep.subr.mxu0 0.0
      %4855 = vmatpush1.msra.mxu0 %v4820
      %4856 = vmatprep.subr.mxu0 0.0
      %4857 = vmatpush1.msra.mxu0 %v4819
      %4858 = vmatprep.subr.mxu0 0.0
      %4859 = vmatpush1.msra.mxu0 %v4818
      %4860 = vmatprep.subr.mxu0 0.0
      %4861 = vmatpush1.msra.mxu0 %v4817
      %4862 = vmatprep.subr.mxu0 0.0
      %4863 = vmatpush1.msra.mxu0 %v4816
      %4864 = vmatprep.subr.mxu0 0.0
      %4865 = vmatpush2.msra.mxu0 0.0
      %4866 = vmatprep.subr.mxu0 0.0
      %4867 = vmatpush2.msra.mxu0 0.0
      %4868 = vmatprep.subr.mxu0 0.0
      %4869 = vmatpush2.msra.mxu0 0.0
      %4870 = vmatprep.subr.mxu0 0.0
      %4871 = vmatpush2.msra.mxu0 0.0
      %4872 = vmatprep.subr.mxu0 0.0
      %4873 = vmatpush2.msra.mxu0 0.0
      %4874 = vmatprep.subr.mxu0 0.0
      %4875 = vmatpush2.msra.mxu0 0.0
      %4876 = vmatprep.subr.mxu0 0.0
      %4877 = vmatpush2.msra.mxu0 0.0
      %4878 = vmatprep.subr.mxu0 0.0
      %4879 = vmatpush2.msra.mxu0 0.0
      %4880 = vmatprep.subr.mxu0 0.0
      %4881 = vmatpush2.msra.mxu0 0.0
      %4882 = vmatprep.subr.mxu0 0.0
      %4883 = vmatpush2.msra.mxu0 0.0
      %4884 = vmatprep.subr.mxu0 0.0
      %4885 = vmatpush2.msra.mxu0 0.0
      %4886 = vmatprep.subr.mxu0 0.0
      %4887 = vmatpush2.msra.mxu0 0.0
      %4888 = vmatprep.subr.mxu0 0.0
      %4889 = vmatpush2.msra.mxu0 0.0
      %4890 = vmatprep.subr.mxu0 0.0
      %4891 = vmatpush2.msra.mxu0 0.0
      %4892 = vmatprep.subr.mxu0 0.0
      %4893 = vmatpush2.msra.mxu0 0.0
      %4894 = vmatprep.subr.mxu0 0.0
      %4895 = vmatpush2.msra.mxu0 0.0
      %4896 = vmatprep.mubr.f32.mxu0 0.0
      %4897 = vmatmul.mubr.f32.gmra.mxu0 %v4783
      %v4898 = vpop.f32.mrf.mxu0
      %v4899 = vadd.f32 0.0, %v4898
      %v4900 = vpop.f32.mrf.mxu0
      %4901 = vmatprep.mubr.f32.mxu0 0.0
      %4902 = vmatmul.mubr.f32.gmra.mxu0 %v4784
      %v4903 = vpop.f32.mrf.mxu0
      %v4904 = vadd.f32 0.0, %v4903
      %v4905 = vpop.f32.mrf.mxu0
      %4906 = vmatprep.mubr.f32.mxu0 0.0
      %4907 = vmatmul.mubr.f32.gmra.mxu0 %v4785
      %v4908 = vpop.f32.mrf.mxu0
      %v4909 = vadd.f32 0.0, %v4908
      %v4910 = vpop.f32.mrf.mxu0
      %4911 = vmatprep.mubr.f32.mxu0 0.0
      %4912 = vmatmul.mubr.f32.gmra.mxu0 %v4786
      %v4913 = vpop.f32.mrf.mxu0
      %v4914 = vadd.f32 0.0, %v4913
      %v4915 = vpop.f32.mrf.mxu0
      %4916 = vmatprep.mubr.f32.mxu0 0.0
      %4917 = vmatmul.mubr.f32.gmra.mxu0 %v4787
      %v4918 = vpop.f32.mrf.mxu0
      %v4919 = vadd.f32 0.0, %v4918
      %v4920 = vpop.f32.mrf.mxu0
      %4921 = vmatprep.mubr.f32.mxu0 0.0
      %4922 = vmatmul.mubr.f32.gmra.mxu0 %v4788
      %v4923 = vpop.f32.mrf.mxu0
      %v4924 = vadd.f32 0.0, %v4923
      %v4925 = vpop.f32.mrf.mxu0
      %4926 = vmatprep.mubr.f32.mxu0 0.0
      %4927 = vmatmul.mubr.f32.gmra.mxu0 %v4789
      %v4928 = vpop.f32.mrf.mxu0
      %v4929 = vadd.f32 0.0, %v4928
      %v4930 = vpop.f32.mrf.mxu0
      %4931 = vmatprep.mubr.f32.mxu0 0.0
      %4932 = vmatmul.mubr.f32.gmra.mxu0 %v4790
      %v4933 = vpop.f32.mrf.mxu0
      %v4934 = vadd.f32 0.0, %v4933
      %v4935 = vpop.f32.mrf.mxu0
      %4936 = vmatprep.mubr.f32.mxu0 0.0
      %4937 = vmatmul.mubr.f32.gmra.mxu0 %v4791
      %v4938 = vpop.f32.mrf.mxu0
      %v4939 = vadd.f32 0.0, %v4938
      %v4940 = vpop.f32.mrf.mxu0
      %4941 = vmatprep.mubr.f32.mxu0 0.0
      %4942 = vmatmul.mubr.f32.gmra.mxu0 %v4792
      %v4943 = vpop.f32.mrf.mxu0
      %v4944 = vadd.f32 0.0, %v4943
      %v4945 = vpop.f32.mrf.mxu0
      %4946 = vmatprep.mubr.f32.mxu0 0.0
      %4947 = vmatmul.mubr.f32.gmra.mxu0 %v4793
      %v4948 = vpop.f32.mrf.mxu0
      %v4949 = vadd.f32 0.0, %v4948
      %v4950 = vpop.f32.mrf.mxu0
      %4951 = vmatprep.mubr.f32.mxu0 0.0
      %4952 = vmatmul.mubr.f32.gmra.mxu0 %v4794
      %v4953 = vpop.f32.mrf.mxu0
      %v4954 = vadd.f32 0.0, %v4953
      %v4955 = vpop.f32.mrf.mxu0
      %4956 = vmatprep.mubr.f32.mxu0 0.0
      %4957 = vmatmul.mubr.f32.gmra.mxu0 %v4795
      %v4958 = vpop.f32.mrf.mxu0
      %v4959 = vadd.f32 0.0, %v4958
      %v4960 = vpop.f32.mrf.mxu0
      %4961 = vmatprep.mubr.f32.mxu0 0.0
      %4962 = vmatmul.mubr.f32.gmra.mxu0 %v4796
      %v4963 = vpop.f32.mrf.mxu0
      %v4964 = vadd.f32 0.0, %v4963
      %v4965 = vpop.f32.mrf.mxu0
      %4966 = vmatprep.mubr.f32.mxu0 0.0
      %4967 = vmatmul.mubr.f32.gmra.mxu0 %v4797
      %v4968 = vpop.f32.mrf.mxu0
      %v4969 = vadd.f32 0.0, %v4968
      %v4970 = vpop.f32.mrf.mxu0
      %4971 = vmatprep.mubr.f32.mxu0 0.0
      %4972 = vmatmul.mubr.f32.gmra.mxu0 %v4798
      %v4973 = vpop.f32.mrf.mxu0
      %v4974 = vadd.f32 0.0, %v4973
      %v4975 = vpop.f32.mrf.mxu0
      %4976 = vmatprep.mubr.f32.mxu0 0.0
      %4977 = vmatmul.mubr.f32.gmra.mxu0 %v4799
      %v4978 = vpop.f32.mrf.mxu0
      %v4979 = vadd.f32 0.0, %v4978
      %v4980 = vpop.f32.mrf.mxu0
      %4981 = vmatprep.mubr.f32.mxu0 0.0
      %4982 = vmatmul.mubr.f32.gmra.mxu0 %v4800
      %v4983 = vpop.f32.mrf.mxu0
      %v4984 = vadd.f32 0.0, %v4983
      %v4985 = vpop.f32.mrf.mxu0
      %4986 = vmatprep.mubr.f32.mxu0 0.0
      %4987 = vmatmul.mubr.f32.gmra.mxu0 %v4801
      %v4988 = vpop.f32.mrf.mxu0
      %v4989 = vadd.f32 0.0, %v4988
      %v4990 = vpop.f32.mrf.mxu0
      %4991 = vmatprep.mubr.f32.mxu0 0.0
      %4992 = vmatmul.mubr.f32.gmra.mxu0 %v4802
      %v4993 = vpop.f32.mrf.mxu0
      %v4994 = vadd.f32 0.0, %v4993
      %v4995 = vpop.f32.mrf.mxu0
      %4996 = vmatprep.mubr.f32.mxu0 0.0
      %4997 = vmatmul.mubr.f32.gmra.mxu0 %v4803
      %v4998 = vpop.f32.mrf.mxu0
      %v4999 = vadd.f32 0.0, %v4998
      %v5000 = vpop.f32.mrf.mxu0
      %5001 = vmatprep.mubr.f32.mxu0 0.0
      %5002 = vmatmul.mubr.f32.gmra.mxu0 %v4804
      %v5003 = vpop.f32.mrf.mxu0
      %v5004 = vadd.f32 0.0, %v5003
      %v5005 = vpop.f32.mrf.mxu0
      %5006 = vmatprep.mubr.f32.mxu0 0.0
      %5007 = vmatmul.mubr.f32.gmra.mxu0 %v4805
      %v5008 = vpop.f32.mrf.mxu0
      %v5009 = vadd.f32 0.0, %v5008
      %v5010 = vpop.f32.mrf.mxu0
      %5011 = vmatprep.mubr.f32.mxu0 0.0
      %5012 = vmatmul.mubr.f32.gmra.mxu0 %v4806
      %v5013 = vpop.f32.mrf.mxu0
      %v5014 = vadd.f32 0.0, %v5013
      %v5015 = vpop.f32.mrf.mxu0
      %5016 = vmatprep.mubr.f32.mxu0 0.0
      %5017 = vmatmul.mubr.f32.gmra.mxu0 %v4807
      %v5018 = vpop.f32.mrf.mxu0
      %v5019 = vadd.f32 0.0, %v5018
      %v5020 = vpop.f32.mrf.mxu0
      %5021 = vmatprep.mubr.f32.mxu0 0.0
      %5022 = vmatmul.mubr.f32.gmra.mxu0 %v4808
      %v5023 = vpop.f32.mrf.mxu0
      %v5024 = vadd.f32 0.0, %v5023
      %v5025 = vpop.f32.mrf.mxu0
      %5026 = vmatprep.mubr.f32.mxu0 0.0
      %5027 = vmatmul.mubr.f32.gmra.mxu0 %v4809
      %v5028 = vpop.f32.mrf.mxu0
      %v5029 = vadd.f32 0.0, %v5028
      %v5030 = vpop.f32.mrf.mxu0
      %5031 = vmatprep.mubr.f32.mxu0 0.0
      %5032 = vmatmul.mubr.f32.gmra.mxu0 %v4810
      %v5033 = vpop.f32.mrf.mxu0
      %v5034 = vadd.f32 0.0, %v5033
      %v5035 = vpop.f32.mrf.mxu0
      %5036 = vmatprep.mubr.f32.mxu0 0.0
      %5037 = vmatmul.mubr.f32.gmra.mxu0 %v4811
      %v5038 = vpop.f32.mrf.mxu0
      %v5039 = vadd.f32 0.0, %v5038
      %v5040 = vpop.f32.mrf.mxu0
      %5041 = vmatprep.mubr.f32.mxu0 0.0
      %5042 = vmatmul.mubr.f32.gmra.mxu0 %v4812
      %v5043 = vpop.f32.mrf.mxu0
      %v5044 = vadd.f32 0.0, %v5043
      %v5045 = vpop.f32.mrf.mxu0
      %5046 = vmatprep.mubr.f32.mxu0 0.0
      %5047 = vmatmul.mubr.f32.gmra.mxu0 %v4813
      %v5048 = vpop.f32.mrf.mxu0
      %v5049 = vadd.f32 0.0, %v5048
      %v5050 = vpop.f32.mrf.mxu0
      %5051 = vmatprep.mubr.f32.mxu0 0.0
      %5052 = vmatmul.mubr.f32.gmra.mxu0 %v4814
      %v5053 = vpop.f32.mrf.mxu0
      %v5054 = vadd.f32 0.0, %v5053
      %v5055 = vpop.f32.mrf.mxu0
      %5056 = vdwg.mxu0
      %v5057 = vadd.f32 %v4751, %v4899
      %v5058 = vadd.f32 %v4752, %v4904
      %v5059 = vadd.f32 %v4753, %v4909
      %v5060 = vadd.f32 %v4754, %v4914
      %v5061 = vadd.f32 %v4755, %v4919
      %v5062 = vadd.f32 %v4756, %v4924
      %v5063 = vadd.f32 %v4757, %v4929
      %v5064 = vadd.f32 %v4758, %v4934
      %v5065 = vadd.f32 %v4759, %v4939
      %v5066 = vadd.f32 %v4760, %v4944
      %v5067 = vadd.f32 %v4761, %v4949
      %v5068 = vadd.f32 %v4762, %v4954
      %v5069 = vadd.f32 %v4763, %v4959
      %v5070 = vadd.f32 %v4764, %v4964
      %v5071 = vadd.f32 %v4765, %v4969
      %v5072 = vadd.f32 %v4766, %v4974
      %v5073 = vadd.f32 %v4767, %v4979
      %v5074 = vadd.f32 %v4768, %v4984
      %v5075 = vadd.f32 %v4769, %v4989
      %v5076 = vadd.f32 %v4770, %v4994
      %v5077 = vadd.f32 %v4771, %v4999
      %v5078 = vadd.f32 %v4772, %v5004
      %v5079 = vadd.f32 %v4773, %v5009
      %v5080 = vadd.f32 %v4774, %v5014
      %v5081 = vadd.f32 %v4775, %v5019
      %v5082 = vadd.f32 %v4776, %v5024
      %v5083 = vadd.f32 %v4777, %v5029
      %v5084 = vadd.f32 %v4778, %v5034
      %v5085 = vadd.f32 %v4779, %v5039
      %v5086 = vadd.f32 %v4780, %v5044
      %v5087 = vadd.f32 %v4781, %v5049
      %v5088 = vadd.f32 %v4782, %v5054
      %v5089 = vld [vmem:[%s2084] sm:$0xff]
      %v5090 = vld [vmem:[%s2084 + $0x8] sm:$0xff]
      %v5091 = vld [vmem:[%s2084 + $0x18] sm:$0xff]
      %v5092 = vld [vmem:[%s2084 + $0x20] sm:$0xff]
      %v5093 = vld [vmem:[%s2084 + $0x30] sm:$0xff]
      %v5094 = vld [vmem:[%s2084 + $0x38] sm:$0xff]
      %v5095 = vld [vmem:[%s2084 + $0x48] sm:$0xff]
      %v5096 = vld [vmem:[%s2084 + $0x50] sm:$0xff]
      %v5097 = vld [vmem:[%s2084 + $0x60] sm:$0xff]
      %v5098 = vld [vmem:[%s2084 + $0x68] sm:$0xff]
      %v5099 = vld [vmem:[%s2084 + $0x78] sm:$0xff]
      %v5100 = vld [vmem:[%s2084 + $0x80] sm:$0xff]
      %v5101 = vld [vmem:[%s2084 + $0x90] sm:$0xff]
      %v5102 = vld [vmem:[%s2084 + $0x98] sm:$0xff]
      %v5103 = vld [vmem:[%s2084 + $0xa8] sm:$0xff]
      %v5104 = vld [vmem:[%s2084 + $0xb0] sm:$0xff]
      %v5105 = vld [vmem:[%s2084 + $0xc0] sm:$0xff]
      %v5106 = vld [vmem:[%s2084 + $0xc8] sm:$0xff]
      %v5107 = vld [vmem:[%s2084 + $0xd8] sm:$0xff]
      %v5108 = vld [vmem:[%s2084 + $0xe0] sm:$0xff]
      %v5109 = vld [vmem:[%s2084 + $0xf0] sm:$0xff]
      %v5110 = vld [vmem:[%s2084 + $0xf8] sm:$0xff]
      %v5111 = vld [vmem:[%s2084 + $0x108] sm:$0xff]
      %v5112 = vld [vmem:[%s2084 + $0x110] sm:$0xff]
      %v5113 = vld [vmem:[%s2084 + $0x120] sm:$0xff]
      %v5114 = vld [vmem:[%s2084 + $0x128] sm:$0xff]
      %v5115 = vld [vmem:[%s2084 + $0x138] sm:$0xff]
      %v5116 = vld [vmem:[%s2084 + $0x140] sm:$0xff]
      %v5117 = vld [vmem:[%s2084 + $0x150] sm:$0xff]
      %v5118 = vld [vmem:[%s2084 + $0x158] sm:$0xff]
      %v5119 = vld [vmem:[%s2084 + $0x168] sm:$0xff]
      %v5120 = vld [vmem:[%s2084 + $0x170] sm:$0xff]
      %s5121 = scalar_lea.vmem %s2, 768
      %v5122 = vld [vmem:[%s5121] sm:$0xff]
      %v5123 = vld [vmem:[%s5121 + $0x8] sm:$0xff]
      %v5124 = vld [vmem:[%s5121 + $0x10] sm:$0xff]
      %v5125 = vld [vmem:[%s5121 + $0x18] sm:$0xff]
      %v5126 = vld [vmem:[%s5121 + $0x20] sm:$0xff]
      %v5127 = vld [vmem:[%s5121 + $0x28] sm:$0xff]
      %v5128 = vld [vmem:[%s5121 + $0x30] sm:$0xff]
      %v5129 = vld [vmem:[%s5121 + $0x38] sm:$0xff]
      %v5130 = vld [vmem:[%s5121 + $0x40] sm:$0xff]
      %v5131 = vld [vmem:[%s5121 + $0x48] sm:$0xff]
      %v5132 = vld [vmem:[%s5121 + $0x50] sm:$0xff]
      %v5133 = vld [vmem:[%s5121 + $0x58] sm:$0xff]
      %v5134 = vld [vmem:[%s5121 + $0x60] sm:$0xff]
      %v5135 = vld [vmem:[%s5121 + $0x68] sm:$0xff]
      %v5136 = vld [vmem:[%s5121 + $0x70] sm:$0xff]
      %v5137 = vld [vmem:[%s5121 + $0x78] sm:$0xff]
      %5138 = vmatprep.subr.mxu0 0.0
      %5139 = vmatpush1.msra.mxu0 %v5137
      %5140 = vmatprep.subr.mxu0 0.0
      %5141 = vmatpush1.msra.mxu0 %v5136
      %5142 = vmatprep.subr.mxu0 0.0
      %5143 = vmatpush1.msra.mxu0 %v5135
      %5144 = vmatprep.subr.mxu0 0.0
      %5145 = vmatpush1.msra.mxu0 %v5134
      %5146 = vmatprep.subr.mxu0 0.0
      %5147 = vmatpush1.msra.mxu0 %v5133
      %5148 = vmatprep.subr.mxu0 0.0
      %5149 = vmatpush1.msra.mxu0 %v5132
      %5150 = vmatprep.subr.mxu0 0.0
      %5151 = vmatpush1.msra.mxu0 %v5131
      %5152 = vmatprep.subr.mxu0 0.0
      %5153 = vmatpush1.msra.mxu0 %v5130
      %5154 = vmatprep.subr.mxu0 0.0
      %5155 = vmatpush1.msra.mxu0 %v5129
      %5156 = vmatprep.subr.mxu0 0.0
      %5157 = vmatpush1.msra.mxu0 %v5128
      %5158 = vmatprep.subr.mxu0 0.0
      %5159 = vmatpush1.msra.mxu0 %v5127
      %5160 = vmatprep.subr.mxu0 0.0
      %5161 = vmatpush1.msra.mxu0 %v5126
      %5162 = vmatprep.subr.mxu0 0.0
      %5163 = vmatpush1.msra.mxu0 %v5125
      %5164 = vmatprep.subr.mxu0 0.0
      %5165 = vmatpush1.msra.mxu0 %v5124
      %5166 = vmatprep.subr.mxu0 0.0
      %5167 = vmatpush1.msra.mxu0 %v5123
      %5168 = vmatprep.subr.mxu0 0.0
      %5169 = vmatpush1.msra.mxu0 %v5122
      %5170 = vmatprep.subr.mxu0 0.0
      %5171 = vmatpush2.msra.mxu0 0.0
      %5172 = vmatprep.subr.mxu0 0.0
      %5173 = vmatpush2.msra.mxu0 0.0
      %5174 = vmatprep.subr.mxu0 0.0
      %5175 = vmatpush2.msra.mxu0 0.0
      %5176 = vmatprep.subr.mxu0 0.0
      %5177 = vmatpush2.msra.mxu0 0.0
      %5178 = vmatprep.subr.mxu0 0.0
      %5179 = vmatpush2.msra.mxu0 0.0
      %5180 = vmatprep.subr.mxu0 0.0
      %5181 = vmatpush2.msra.mxu0 0.0
      %5182 = vmatprep.subr.mxu0 0.0
      %5183 = vmatpush2.msra.mxu0 0.0
      %5184 = vmatprep.subr.mxu0 0.0
      %5185 = vmatpush2.msra.mxu0 0.0
      %5186 = vmatprep.subr.mxu0 0.0
      %5187 = vmatpush2.msra.mxu0 0.0
      %5188 = vmatprep.subr.mxu0 0.0
      %5189 = vmatpush2.msra.mxu0 0.0
      %5190 = vmatprep.subr.mxu0 0.0
      %5191 = vmatpush2.msra.mxu0 0.0
      %5192 = vmatprep.subr.mxu0 0.0
      %5193 = vmatpush2.msra.mxu0 0.0
      %5194 = vmatprep.subr.mxu0 0.0
      %5195 = vmatpush2.msra.mxu0 0.0
      %5196 = vmatprep.subr.mxu0 0.0
      %5197 = vmatpush2.msra.mxu0 0.0
      %5198 = vmatprep.subr.mxu0 0.0
      %5199 = vmatpush2.msra.mxu0 0.0
      %5200 = vmatprep.subr.mxu0 0.0
      %5201 = vmatpush2.msra.mxu0 0.0
      %5202 = vmatprep.mubr.f32.mxu0 0.0
      %5203 = vmatmul.mubr.f32.gmra.mxu0 %v5089
      %v5204 = vpop.f32.mrf.mxu0
      %v5205 = vadd.f32 0.0, %v5204
      %v5206 = vpop.f32.mrf.mxu0
      %5207 = vmatprep.mubr.f32.mxu0 0.0
      %5208 = vmatmul.mubr.f32.gmra.mxu0 %v5090
      %v5209 = vpop.f32.mrf.mxu0
      %v5210 = vadd.f32 0.0, %v5209
      %v5211 = vpop.f32.mrf.mxu0
      %5212 = vmatprep.mubr.f32.mxu0 0.0
      %5213 = vmatmul.mubr.f32.gmra.mxu0 %v5091
      %v5214 = vpop.f32.mrf.mxu0
      %v5215 = vadd.f32 0.0, %v5214
      %v5216 = vpop.f32.mrf.mxu0
      %5217 = vmatprep.mubr.f32.mxu0 0.0
      %5218 = vmatmul.mubr.f32.gmra.mxu0 %v5092
      %v5219 = vpop.f32.mrf.mxu0
      %v5220 = vadd.f32 0.0, %v5219
      %v5221 = vpop.f32.mrf.mxu0
      %5222 = vmatprep.mubr.f32.mxu0 0.0
      %5223 = vmatmul.mubr.f32.gmra.mxu0 %v5093
      %v5224 = vpop.f32.mrf.mxu0
      %v5225 = vadd.f32 0.0, %v5224
      %v5226 = vpop.f32.mrf.mxu0
      %5227 = vmatprep.mubr.f32.mxu0 0.0
      %5228 = vmatmul.mubr.f32.gmra.mxu0 %v5094
      %v5229 = vpop.f32.mrf.mxu0
      %v5230 = vadd.f32 0.0, %v5229
      %v5231 = vpop.f32.mrf.mxu0
      %5232 = vmatprep.mubr.f32.mxu0 0.0
      %5233 = vmatmul.mubr.f32.gmra.mxu0 %v5095
      %v5234 = vpop.f32.mrf.mxu0
      %v5235 = vadd.f32 0.0, %v5234
      %v5236 = vpop.f32.mrf.mxu0
      %5237 = vmatprep.mubr.f32.mxu0 0.0
      %5238 = vmatmul.mubr.f32.gmra.mxu0 %v5096
      %v5239 = vpop.f32.mrf.mxu0
      %v5240 = vadd.f32 0.0, %v5239
      %v5241 = vpop.f32.mrf.mxu0
      %5242 = vmatprep.mubr.f32.mxu0 0.0
      %5243 = vmatmul.mubr.f32.gmra.mxu0 %v5097
      %v5244 = vpop.f32.mrf.mxu0
      %v5245 = vadd.f32 0.0, %v5244
      %v5246 = vpop.f32.mrf.mxu0
      %5247 = vmatprep.mubr.f32.mxu0 0.0
      %5248 = vmatmul.mubr.f32.gmra.mxu0 %v5098
      %v5249 = vpop.f32.mrf.mxu0
      %v5250 = vadd.f32 0.0, %v5249
      %v5251 = vpop.f32.mrf.mxu0
      %5252 = vmatprep.mubr.f32.mxu0 0.0
      %5253 = vmatmul.mubr.f32.gmra.mxu0 %v5099
      %v5254 = vpop.f32.mrf.mxu0
      %v5255 = vadd.f32 0.0, %v5254
      %v5256 = vpop.f32.mrf.mxu0
      %5257 = vmatprep.mubr.f32.mxu0 0.0
      %5258 = vmatmul.mubr.f32.gmra.mxu0 %v5100
      %v5259 = vpop.f32.mrf.mxu0
      %v5260 = vadd.f32 0.0, %v5259
      %v5261 = vpop.f32.mrf.mxu0
      %5262 = vmatprep.mubr.f32.mxu0 0.0
      %5263 = vmatmul.mubr.f32.gmra.mxu0 %v5101
      %v5264 = vpop.f32.mrf.mxu0
      %v5265 = vadd.f32 0.0, %v5264
      %v5266 = vpop.f32.mrf.mxu0
      %5267 = vmatprep.mubr.f32.mxu0 0.0
      %5268 = vmatmul.mubr.f32.gmra.mxu0 %v5102
      %v5269 = vpop.f32.mrf.mxu0
      %v5270 = vadd.f32 0.0, %v5269
      %v5271 = vpop.f32.mrf.mxu0
      %5272 = vmatprep.mubr.f32.mxu0 0.0
      %5273 = vmatmul.mubr.f32.gmra.mxu0 %v5103
      %v5274 = vpop.f32.mrf.mxu0
      %v5275 = vadd.f32 0.0, %v5274
      %v5276 = vpop.f32.mrf.mxu0
      %5277 = vmatprep.mubr.f32.mxu0 0.0
      %5278 = vmatmul.mubr.f32.gmra.mxu0 %v5104
      %v5279 = vpop.f32.mrf.mxu0
      %v5280 = vadd.f32 0.0, %v5279
      %v5281 = vpop.f32.mrf.mxu0
      %5282 = vmatprep.mubr.f32.mxu0 0.0
      %5283 = vmatmul.mubr.f32.gmra.mxu0 %v5105
      %v5284 = vpop.f32.mrf.mxu0
      %v5285 = vadd.f32 0.0, %v5284
      %v5286 = vpop.f32.mrf.mxu0
      %5287 = vmatprep.mubr.f32.mxu0 0.0
      %5288 = vmatmul.mubr.f32.gmra.mxu0 %v5106
      %v5289 = vpop.f32.mrf.mxu0
      %v5290 = vadd.f32 0.0, %v5289
      %v5291 = vpop.f32.mrf.mxu0
      %5292 = vmatprep.mubr.f32.mxu0 0.0
      %5293 = vmatmul.mubr.f32.gmra.mxu0 %v5107
      %v5294 = vpop.f32.mrf.mxu0
      %v5295 = vadd.f32 0.0, %v5294
      %v5296 = vpop.f32.mrf.mxu0
      %5297 = vmatprep.mubr.f32.mxu0 0.0
      %5298 = vmatmul.mubr.f32.gmra.mxu0 %v5108
      %v5299 = vpop.f32.mrf.mxu0
      %v5300 = vadd.f32 0.0, %v5299
      %v5301 = vpop.f32.mrf.mxu0
      %5302 = vmatprep.mubr.f32.mxu0 0.0
      %5303 = vmatmul.mubr.f32.gmra.mxu0 %v5109
      %v5304 = vpop.f32.mrf.mxu0
      %v5305 = vadd.f32 0.0, %v5304
      %v5306 = vpop.f32.mrf.mxu0
      %5307 = vmatprep.mubr.f32.mxu0 0.0
      %5308 = vmatmul.mubr.f32.gmra.mxu0 %v5110
      %v5309 = vpop.f32.mrf.mxu0
      %v5310 = vadd.f32 0.0, %v5309
      %v5311 = vpop.f32.mrf.mxu0
      %5312 = vmatprep.mubr.f32.mxu0 0.0
      %5313 = vmatmul.mubr.f32.gmra.mxu0 %v5111
      %v5314 = vpop.f32.mrf.mxu0
      %v5315 = vadd.f32 0.0, %v5314
      %v5316 = vpop.f32.mrf.mxu0
      %5317 = vmatprep.mubr.f32.mxu0 0.0
      %5318 = vmatmul.mubr.f32.gmra.mxu0 %v5112
      %v5319 = vpop.f32.mrf.mxu0
      %v5320 = vadd.f32 0.0, %v5319
      %v5321 = vpop.f32.mrf.mxu0
      %5322 = vmatprep.mubr.f32.mxu0 0.0
      %5323 = vmatmul.mubr.f32.gmra.mxu0 %v5113
      %v5324 = vpop.f32.mrf.mxu0
      %v5325 = vadd.f32 0.0, %v5324
      %v5326 = vpop.f32.mrf.mxu0
      %5327 = vmatprep.mubr.f32.mxu0 0.0
      %5328 = vmatmul.mubr.f32.gmra.mxu0 %v5114
      %v5329 = vpop.f32.mrf.mxu0
      %v5330 = vadd.f32 0.0, %v5329
      %v5331 = vpop.f32.mrf.mxu0
      %5332 = vmatprep.mubr.f32.mxu0 0.0
      %5333 = vmatmul.mubr.f32.gmra.mxu0 %v5115
      %v5334 = vpop.f32.mrf.mxu0
      %v5335 = vadd.f32 0.0, %v5334
      %v5336 = vpop.f32.mrf.mxu0
      %5337 = vmatprep.mubr.f32.mxu0 0.0
      %5338 = vmatmul.mubr.f32.gmra.mxu0 %v5116
      %v5339 = vpop.f32.mrf.mxu0
      %v5340 = vadd.f32 0.0, %v5339
      %v5341 = vpop.f32.mrf.mxu0
      %5342 = vmatprep.mubr.f32.mxu0 0.0
      %5343 = vmatmul.mubr.f32.gmra.mxu0 %v5117
      %v5344 = vpop.f32.mrf.mxu0
      %v5345 = vadd.f32 0.0, %v5344
      %v5346 = vpop.f32.mrf.mxu0
      %5347 = vmatprep.mubr.f32.mxu0 0.0
      %5348 = vmatmul.mubr.f32.gmra.mxu0 %v5118
      %v5349 = vpop.f32.mrf.mxu0
      %v5350 = vadd.f32 0.0, %v5349
      %v5351 = vpop.f32.mrf.mxu0
      %5352 = vmatprep.mubr.f32.mxu0 0.0
      %5353 = vmatmul.mubr.f32.gmra.mxu0 %v5119
      %v5354 = vpop.f32.mrf.mxu0
      %v5355 = vadd.f32 0.0, %v5354
      %v5356 = vpop.f32.mrf.mxu0
      %5357 = vmatprep.mubr.f32.mxu0 0.0
      %5358 = vmatmul.mubr.f32.gmra.mxu0 %v5120
      %v5359 = vpop.f32.mrf.mxu0
      %v5360 = vadd.f32 0.0, %v5359
      %v5361 = vpop.f32.mrf.mxu0
      %5362 = vdwg.mxu0
      %v5363 = vadd.f32 %v5057, %v5205
      %v5364 = vadd.f32 %v5058, %v5210
      %v5365 = vadd.f32 %v5059, %v5215
      %v5366 = vadd.f32 %v5060, %v5220
      %v5367 = vadd.f32 %v5061, %v5225
      %v5368 = vadd.f32 %v5062, %v5230
      %v5369 = vadd.f32 %v5063, %v5235
      %v5370 = vadd.f32 %v5064, %v5240
      %v5371 = vadd.f32 %v5065, %v5245
      %v5372 = vadd.f32 %v5066, %v5250
      %v5373 = vadd.f32 %v5067, %v5255
      %v5374 = vadd.f32 %v5068, %v5260
      %v5375 = vadd.f32 %v5069, %v5265
      %v5376 = vadd.f32 %v5070, %v5270
      %v5377 = vadd.f32 %v5071, %v5275
      %v5378 = vadd.f32 %v5072, %v5280
      %v5379 = vadd.f32 %v5073, %v5285
      %v5380 = vadd.f32 %v5074, %v5290
      %v5381 = vadd.f32 %v5075, %v5295
      %v5382 = vadd.f32 %v5076, %v5300
      %v5383 = vadd.f32 %v5077, %v5305
      %v5384 = vadd.f32 %v5078, %v5310
      %v5385 = vadd.f32 %v5079, %v5315
      %v5386 = vadd.f32 %v5080, %v5320
      %v5387 = vadd.f32 %v5081, %v5325
      %v5388 = vadd.f32 %v5082, %v5330
      %v5389 = vadd.f32 %v5083, %v5335
      %v5390 = vadd.f32 %v5084, %v5340
      %v5391 = vadd.f32 %v5085, %v5345
      %v5392 = vadd.f32 %v5086, %v5350
      %v5393 = vadd.f32 %v5087, %v5355
      %v5394 = vadd.f32 %v5088, %v5360
      %v5395 = vld [vmem:[%s2084 + $0x1] sm:$0xff]
      %v5396 = vld [vmem:[%s2084 + $0x9] sm:$0xff]
      %v5397 = vld [vmem:[%s2084 + $0x19] sm:$0xff]
      %v5398 = vld [vmem:[%s2084 + $0x21] sm:$0xff]
      %v5399 = vld [vmem:[%s2084 + $0x31] sm:$0xff]
      %v5400 = vld [vmem:[%s2084 + $0x39] sm:$0xff]
      %v5401 = vld [vmem:[%s2084 + $0x49] sm:$0xff]
      %v5402 = vld [vmem:[%s2084 + $0x51] sm:$0xff]
      %v5403 = vld [vmem:[%s2084 + $0x61] sm:$0xff]
      %v5404 = vld [vmem:[%s2084 + $0x69] sm:$0xff]
      %v5405 = vld [vmem:[%s2084 + $0x79] sm:$0xff]
      %v5406 = vld [vmem:[%s2084 + $0x81] sm:$0xff]
      %v5407 = vld [vmem:[%s2084 + $0x91] sm:$0xff]
      %v5408 = vld [vmem:[%s2084 + $0x99] sm:$0xff]
      %v5409 = vld [vmem:[%s2084 + $0xa9] sm:$0xff]
      %v5410 = vld [vmem:[%s2084 + $0xb1] sm:$0xff]
      %v5411 = vld [vmem:[%s2084 + $0xc1] sm:$0xff]
      %v5412 = vld [vmem:[%s2084 + $0xc9] sm:$0xff]
      %v5413 = vld [vmem:[%s2084 + $0xd9] sm:$0xff]
      %v5414 = vld [vmem:[%s2084 + $0xe1] sm:$0xff]
      %v5415 = vld [vmem:[%s2084 + $0xf1] sm:$0xff]
      %v5416 = vld [vmem:[%s2084 + $0xf9] sm:$0xff]
      %v5417 = vld [vmem:[%s2084 + $0x109] sm:$0xff]
      %v5418 = vld [vmem:[%s2084 + $0x111] sm:$0xff]
      %v5419 = vld [vmem:[%s2084 + $0x121] sm:$0xff]
      %v5420 = vld [vmem:[%s2084 + $0x129] sm:$0xff]
      %v5421 = vld [vmem:[%s2084 + $0x139] sm:$0xff]
      %v5422 = vld [vmem:[%s2084 + $0x141] sm:$0xff]
      %v5423 = vld [vmem:[%s2084 + $0x151] sm:$0xff]
      %v5424 = vld [vmem:[%s2084 + $0x159] sm:$0xff]
      %v5425 = vld [vmem:[%s2084 + $0x169] sm:$0xff]
      %v5426 = vld [vmem:[%s2084 + $0x171] sm:$0xff]
      %s5427 = scalar_lea.vmem %s2, 896
      %v5428 = vld [vmem:[%s5427] sm:$0xff]
      %v5429 = vld [vmem:[%s5427 + $0x8] sm:$0xff]
      %v5430 = vld [vmem:[%s5427 + $0x10] sm:$0xff]
      %v5431 = vld [vmem:[%s5427 + $0x18] sm:$0xff]
      %v5432 = vld [vmem:[%s5427 + $0x20] sm:$0xff]
      %v5433 = vld [vmem:[%s5427 + $0x28] sm:$0xff]
      %v5434 = vld [vmem:[%s5427 + $0x30] sm:$0xff]
      %v5435 = vld [vmem:[%s5427 + $0x38] sm:$0xff]
      %v5436 = vld [vmem:[%s5427 + $0x40] sm:$0xff]
      %v5437 = vld [vmem:[%s5427 + $0x48] sm:$0xff]
      %v5438 = vld [vmem:[%s5427 + $0x50] sm:$0xff]
      %v5439 = vld [vmem:[%s5427 + $0x58] sm:$0xff]
      %v5440 = vld [vmem:[%s5427 + $0x60] sm:$0xff]
      %v5441 = vld [vmem:[%s5427 + $0x68] sm:$0xff]
      %v5442 = vld [vmem:[%s5427 + $0x70] sm:$0xff]
      %v5443 = vld [vmem:[%s5427 + $0x78] sm:$0xff]
      %5444 = vmatprep.subr.mxu0 0.0
      %5445 = vmatpush1.msra.mxu0 %v5443
      %5446 = vmatprep.subr.mxu0 0.0
      %5447 = vmatpush1.msra.mxu0 %v5442
      %5448 = vmatprep.subr.mxu0 0.0
      %5449 = vmatpush1.msra.mxu0 %v5441
      %5450 = vmatprep.subr.mxu0 0.0
      %5451 = vmatpush1.msra.mxu0 %v5440
      %5452 = vmatprep.subr.mxu0 0.0
      %5453 = vmatpush1.msra.mxu0 %v5439
      %5454 = vmatprep.subr.mxu0 0.0
      %5455 = vmatpush1.msra.mxu0 %v5438
      %5456 = vmatprep.subr.mxu0 0.0
      %5457 = vmatpush1.msra.mxu0 %v5437
      %5458 = vmatprep.subr.mxu0 0.0
      %5459 = vmatpush1.msra.mxu0 %v5436
      %5460 = vmatprep.subr.mxu0 0.0
      %5461 = vmatpush1.msra.mxu0 %v5435
      %5462 = vmatprep.subr.mxu0 0.0
      %5463 = vmatpush1.msra.mxu0 %v5434
      %5464 = vmatprep.subr.mxu0 0.0
      %5465 = vmatpush1.msra.mxu0 %v5433
      %5466 = vmatprep.subr.mxu0 0.0
      %5467 = vmatpush1.msra.mxu0 %v5432
      %5468 = vmatprep.subr.mxu0 0.0
      %5469 = vmatpush1.msra.mxu0 %v5431
      %5470 = vmatprep.subr.mxu0 0.0
      %5471 = vmatpush1.msra.mxu0 %v5430
      %5472 = vmatprep.subr.mxu0 0.0
      %5473 = vmatpush1.msra.mxu0 %v5429
      %5474 = vmatprep.subr.mxu0 0.0
      %5475 = vmatpush1.msra.mxu0 %v5428
      %5476 = vmatprep.subr.mxu0 0.0
      %5477 = vmatpush2.msra.mxu0 0.0
      %5478 = vmatprep.subr.mxu0 0.0
      %5479 = vmatpush2.msra.mxu0 0.0
      %5480 = vmatprep.subr.mxu0 0.0
      %5481 = vmatpush2.msra.mxu0 0.0
      %5482 = vmatprep.subr.mxu0 0.0
      %5483 = vmatpush2.msra.mxu0 0.0
      %5484 = vmatprep.subr.mxu0 0.0
      %5485 = vmatpush2.msra.mxu0 0.0
      %5486 = vmatprep.subr.mxu0 0.0
      %5487 = vmatpush2.msra.mxu0 0.0
      %5488 = vmatprep.subr.mxu0 0.0
      %5489 = vmatpush2.msra.mxu0 0.0
      %5490 = vmatprep.subr.mxu0 0.0
      %5491 = vmatpush2.msra.mxu0 0.0
      %5492 = vmatprep.subr.mxu0 0.0
      %5493 = vmatpush2.msra.mxu0 0.0
      %5494 = vmatprep.subr.mxu0 0.0
      %5495 = vmatpush2.msra.mxu0 0.0
      %5496 = vmatprep.subr.mxu0 0.0
      %5497 = vmatpush2.msra.mxu0 0.0
      %5498 = vmatprep.subr.mxu0 0.0
      %5499 = vmatpush2.msra.mxu0 0.0
      %5500 = vmatprep.subr.mxu0 0.0
      %5501 = vmatpush2.msra.mxu0 0.0
      %5502 = vmatprep.subr.mxu0 0.0
      %5503 = vmatpush2.msra.mxu0 0.0
      %5504 = vmatprep.subr.mxu0 0.0
      %5505 = vmatpush2.msra.mxu0 0.0
      %5506 = vmatprep.subr.mxu0 0.0
      %5507 = vmatpush2.msra.mxu0 0.0
      %5508 = vmatprep.mubr.f32.mxu0 0.0
      %5509 = vmatmul.mubr.f32.gmra.mxu0 %v5395
      %v5510 = vpop.f32.mrf.mxu0
      %v5511 = vadd.f32 0.0, %v5510
      %v5512 = vpop.f32.mrf.mxu0
      %5513 = vmatprep.mubr.f32.mxu0 0.0
      %5514 = vmatmul.mubr.f32.gmra.mxu0 %v5396
      %v5515 = vpop.f32.mrf.mxu0
      %v5516 = vadd.f32 0.0, %v5515
      %v5517 = vpop.f32.mrf.mxu0
      %5518 = vmatprep.mubr.f32.mxu0 0.0
      %5519 = vmatmul.mubr.f32.gmra.mxu0 %v5397
      %v5520 = vpop.f32.mrf.mxu0
      %v5521 = vadd.f32 0.0, %v5520
      %v5522 = vpop.f32.mrf.mxu0
      %5523 = vmatprep.mubr.f32.mxu0 0.0
      %5524 = vmatmul.mubr.f32.gmra.mxu0 %v5398
      %v5525 = vpop.f32.mrf.mxu0
      %v5526 = vadd.f32 0.0, %v5525
      %v5527 = vpop.f32.mrf.mxu0
      %5528 = vmatprep.mubr.f32.mxu0 0.0
      %5529 = vmatmul.mubr.f32.gmra.mxu0 %v5399
      %v5530 = vpop.f32.mrf.mxu0
      %v5531 = vadd.f32 0.0, %v5530
      %v5532 = vpop.f32.mrf.mxu0
      %5533 = vmatprep.mubr.f32.mxu0 0.0
      %5534 = vmatmul.mubr.f32.gmra.mxu0 %v5400
      %v5535 = vpop.f32.mrf.mxu0
      %v5536 = vadd.f32 0.0, %v5535
      %v5537 = vpop.f32.mrf.mxu0
      %5538 = vmatprep.mubr.f32.mxu0 0.0
      %5539 = vmatmul.mubr.f32.gmra.mxu0 %v5401
      %v5540 = vpop.f32.mrf.mxu0
      %v5541 = vadd.f32 0.0, %v5540
      %v5542 = vpop.f32.mrf.mxu0
      %5543 = vmatprep.mubr.f32.mxu0 0.0
      %5544 = vmatmul.mubr.f32.gmra.mxu0 %v5402
      %v5545 = vpop.f32.mrf.mxu0
      %v5546 = vadd.f32 0.0, %v5545
      %v5547 = vpop.f32.mrf.mxu0
      %5548 = vmatprep.mubr.f32.mxu0 0.0
      %5549 = vmatmul.mubr.f32.gmra.mxu0 %v5403
      %v5550 = vpop.f32.mrf.mxu0
      %v5551 = vadd.f32 0.0, %v5550
      %v5552 = vpop.f32.mrf.mxu0
      %5553 = vmatprep.mubr.f32.mxu0 0.0
      %5554 = vmatmul.mubr.f32.gmra.mxu0 %v5404
      %v5555 = vpop.f32.mrf.mxu0
      %v5556 = vadd.f32 0.0, %v5555
      %v5557 = vpop.f32.mrf.mxu0
      %5558 = vmatprep.mubr.f32.mxu0 0.0
      %5559 = vmatmul.mubr.f32.gmra.mxu0 %v5405
      %v5560 = vpop.f32.mrf.mxu0
      %v5561 = vadd.f32 0.0, %v5560
      %v5562 = vpop.f32.mrf.mxu0
      %5563 = vmatprep.mubr.f32.mxu0 0.0
      %5564 = vmatmul.mubr.f32.gmra.mxu0 %v5406
      %v5565 = vpop.f32.mrf.mxu0
      %v5566 = vadd.f32 0.0, %v5565
      %v5567 = vpop.f32.mrf.mxu0
      %5568 = vmatprep.mubr.f32.mxu0 0.0
      %5569 = vmatmul.mubr.f32.gmra.mxu0 %v5407
      %v5570 = vpop.f32.mrf.mxu0
      %v5571 = vadd.f32 0.0, %v5570
      %v5572 = vpop.f32.mrf.mxu0
      %5573 = vmatprep.mubr.f32.mxu0 0.0
      %5574 = vmatmul.mubr.f32.gmra.mxu0 %v5408
      %v5575 = vpop.f32.mrf.mxu0
      %v5576 = vadd.f32 0.0, %v5575
      %v5577 = vpop.f32.mrf.mxu0
      %5578 = vmatprep.mubr.f32.mxu0 0.0
      %5579 = vmatmul.mubr.f32.gmra.mxu0 %v5409
      %v5580 = vpop.f32.mrf.mxu0
      %v5581 = vadd.f32 0.0, %v5580
      %v5582 = vpop.f32.mrf.mxu0
      %5583 = vmatprep.mubr.f32.mxu0 0.0
      %5584 = vmatmul.mubr.f32.gmra.mxu0 %v5410
      %v5585 = vpop.f32.mrf.mxu0
      %v5586 = vadd.f32 0.0, %v5585
      %v5587 = vpop.f32.mrf.mxu0
      %5588 = vmatprep.mubr.f32.mxu0 0.0
      %5589 = vmatmul.mubr.f32.gmra.mxu0 %v5411
      %v5590 = vpop.f32.mrf.mxu0
      %v5591 = vadd.f32 0.0, %v5590
      %v5592 = vpop.f32.mrf.mxu0
      %5593 = vmatprep.mubr.f32.mxu0 0.0
      %5594 = vmatmul.mubr.f32.gmra.mxu0 %v5412
      %v5595 = vpop.f32.mrf.mxu0
      %v5596 = vadd.f32 0.0, %v5595
      %v5597 = vpop.f32.mrf.mxu0
      %5598 = vmatprep.mubr.f32.mxu0 0.0
      %5599 = vmatmul.mubr.f32.gmra.mxu0 %v5413
      %v5600 = vpop.f32.mrf.mxu0
      %v5601 = vadd.f32 0.0, %v5600
      %v5602 = vpop.f32.mrf.mxu0
      %5603 = vmatprep.mubr.f32.mxu0 0.0
      %5604 = vmatmul.mubr.f32.gmra.mxu0 %v5414
      %v5605 = vpop.f32.mrf.mxu0
      %v5606 = vadd.f32 0.0, %v5605
      %v5607 = vpop.f32.mrf.mxu0
      %5608 = vmatprep.mubr.f32.mxu0 0.0
      %5609 = vmatmul.mubr.f32.gmra.mxu0 %v5415
      %v5610 = vpop.f32.mrf.mxu0
      %v5611 = vadd.f32 0.0, %v5610
      %v5612 = vpop.f32.mrf.mxu0
      %5613 = vmatprep.mubr.f32.mxu0 0.0
      %5614 = vmatmul.mubr.f32.gmra.mxu0 %v5416
      %v5615 = vpop.f32.mrf.mxu0
      %v5616 = vadd.f32 0.0, %v5615
      %v5617 = vpop.f32.mrf.mxu0
      %5618 = vmatprep.mubr.f32.mxu0 0.0
      %5619 = vmatmul.mubr.f32.gmra.mxu0 %v5417
      %v5620 = vpop.f32.mrf.mxu0
      %v5621 = vadd.f32 0.0, %v5620
      %v5622 = vpop.f32.mrf.mxu0
      %5623 = vmatprep.mubr.f32.mxu0 0.0
      %5624 = vmatmul.mubr.f32.gmra.mxu0 %v5418
      %v5625 = vpop.f32.mrf.mxu0
      %v5626 = vadd.f32 0.0, %v5625
      %v5627 = vpop.f32.mrf.mxu0
      %5628 = vmatprep.mubr.f32.mxu0 0.0
      %5629 = vmatmul.mubr.f32.gmra.mxu0 %v5419
      %v5630 = vpop.f32.mrf.mxu0
      %v5631 = vadd.f32 0.0, %v5630
      %v5632 = vpop.f32.mrf.mxu0
      %5633 = vmatprep.mubr.f32.mxu0 0.0
      %5634 = vmatmul.mubr.f32.gmra.mxu0 %v5420
      %v5635 = vpop.f32.mrf.mxu0
      %v5636 = vadd.f32 0.0, %v5635
      %v5637 = vpop.f32.mrf.mxu0
      %5638 = vmatprep.mubr.f32.mxu0 0.0
      %5639 = vmatmul.mubr.f32.gmra.mxu0 %v5421
      %v5640 = vpop.f32.mrf.mxu0
      %v5641 = vadd.f32 0.0, %v5640
      %v5642 = vpop.f32.mrf.mxu0
      %5643 = vmatprep.mubr.f32.mxu0 0.0
      %5644 = vmatmul.mubr.f32.gmra.mxu0 %v5422
      %v5645 = vpop.f32.mrf.mxu0
      %v5646 = vadd.f32 0.0, %v5645
      %v5647 = vpop.f32.mrf.mxu0
      %5648 = vmatprep.mubr.f32.mxu0 0.0
      %5649 = vmatmul.mubr.f32.gmra.mxu0 %v5423
      %v5650 = vpop.f32.mrf.mxu0
      %v5651 = vadd.f32 0.0, %v5650
      %v5652 = vpop.f32.mrf.mxu0
      %5653 = vmatprep.mubr.f32.mxu0 0.0
      %5654 = vmatmul.mubr.f32.gmra.mxu0 %v5424
      %v5655 = vpop.f32.mrf.mxu0
      %v5656 = vadd.f32 0.0, %v5655
      %v5657 = vpop.f32.mrf.mxu0
      %5658 = vmatprep.mubr.f32.mxu0 0.0
      %5659 = vmatmul.mubr.f32.gmra.mxu0 %v5425
      %v5660 = vpop.f32.mrf.mxu0
      %v5661 = vadd.f32 0.0, %v5660
      %v5662 = vpop.f32.mrf.mxu0
      %5663 = vmatprep.mubr.f32.mxu0 0.0
      %5664 = vmatmul.mubr.f32.gmra.mxu0 %v5426
      %v5665 = vpop.f32.mrf.mxu0
      %v5666 = vadd.f32 0.0, %v5665
      %v5667 = vpop.f32.mrf.mxu0
      %5668 = vdwg.mxu0
      %v5669 = vadd.f32 %v5363, %v5511
      %v5670 = vadd.f32 %v5364, %v5516
      %v5671 = vadd.f32 %v5365, %v5521
      %v5672 = vadd.f32 %v5366, %v5526
      %v5673 = vadd.f32 %v5367, %v5531
      %v5674 = vadd.f32 %v5368, %v5536
      %v5675 = vadd.f32 %v5369, %v5541
      %v5676 = vadd.f32 %v5370, %v5546
      %v5677 = vadd.f32 %v5371, %v5551
      %v5678 = vadd.f32 %v5372, %v5556
      %v5679 = vadd.f32 %v5373, %v5561
      %v5680 = vadd.f32 %v5374, %v5566
      %v5681 = vadd.f32 %v5375, %v5571
      %v5682 = vadd.f32 %v5376, %v5576
      %v5683 = vadd.f32 %v5377, %v5581
      %v5684 = vadd.f32 %v5378, %v5586
      %v5685 = vadd.f32 %v5379, %v5591
      %v5686 = vadd.f32 %v5380, %v5596
      %v5687 = vadd.f32 %v5381, %v5601
      %v5688 = vadd.f32 %v5382, %v5606
      %v5689 = vadd.f32 %v5383, %v5611
      %v5690 = vadd.f32 %v5384, %v5616
      %v5691 = vadd.f32 %v5385, %v5621
      %v5692 = vadd.f32 %v5386, %v5626
      %v5693 = vadd.f32 %v5387, %v5631
      %v5694 = vadd.f32 %v5388, %v5636
      %v5695 = vadd.f32 %v5389, %v5641
      %v5696 = vadd.f32 %v5390, %v5646
      %v5697 = vadd.f32 %v5391, %v5651
      %v5698 = vadd.f32 %v5392, %v5656
      %v5699 = vadd.f32 %v5393, %v5661
      %v5700 = vadd.f32 %v5394, %v5666
      %v5701 = vld [vmem:[%s2084 + $0x2] sm:$0xff]
      %v5702 = vld [vmem:[%s2084 + $0xa] sm:$0xff]
      %v5703 = vld [vmem:[%s2084 + $0x1a] sm:$0xff]
      %v5704 = vld [vmem:[%s2084 + $0x22] sm:$0xff]
      %v5705 = vld [vmem:[%s2084 + $0x32] sm:$0xff]
      %v5706 = vld [vmem:[%s2084 + $0x3a] sm:$0xff]
      %v5707 = vld [vmem:[%s2084 + $0x4a] sm:$0xff]
      %v5708 = vld [vmem:[%s2084 + $0x52] sm:$0xff]
      %v5709 = vld [vmem:[%s2084 + $0x62] sm:$0xff]
      %v5710 = vld [vmem:[%s2084 + $0x6a] sm:$0xff]
      %v5711 = vld [vmem:[%s2084 + $0x7a] sm:$0xff]
      %v5712 = vld [vmem:[%s2084 + $0x82] sm:$0xff]
      %v5713 = vld [vmem:[%s2084 + $0x92] sm:$0xff]
      %v5714 = vld [vmem:[%s2084 + $0x9a] sm:$0xff]
      %v5715 = vld [vmem:[%s2084 + $0xaa] sm:$0xff]
      %v5716 = vld [vmem:[%s2084 + $0xb2] sm:$0xff]
      %v5717 = vld [vmem:[%s2084 + $0xc2] sm:$0xff]
      %v5718 = vld [vmem:[%s2084 + $0xca] sm:$0xff]
      %v5719 = vld [vmem:[%s2084 + $0xda] sm:$0xff]
      %v5720 = vld [vmem:[%s2084 + $0xe2] sm:$0xff]
      %v5721 = vld [vmem:[%s2084 + $0xf2] sm:$0xff]
      %v5722 = vld [vmem:[%s2084 + $0xfa] sm:$0xff]
      %v5723 = vld [vmem:[%s2084 + $0x10a] sm:$0xff]
      %v5724 = vld [vmem:[%s2084 + $0x112] sm:$0xff]
      %v5725 = vld [vmem:[%s2084 + $0x122] sm:$0xff]
      %v5726 = vld [vmem:[%s2084 + $0x12a] sm:$0xff]
      %v5727 = vld [vmem:[%s2084 + $0x13a] sm:$0xff]
      %v5728 = vld [vmem:[%s2084 + $0x142] sm:$0xff]
      %v5729 = vld [vmem:[%s2084 + $0x152] sm:$0xff]
      %v5730 = vld [vmem:[%s2084 + $0x15a] sm:$0xff]
      %v5731 = vld [vmem:[%s2084 + $0x16a] sm:$0xff]
      %v5732 = vld [vmem:[%s2084 + $0x172] sm:$0xff]
      %s5733 = scalar_lea.vmem %s2, 1024
      %v5734 = vld [vmem:[%s5733] sm:$0xff]
      %v5735 = vld [vmem:[%s5733 + $0x8] sm:$0xff]
      %v5736 = vld [vmem:[%s5733 + $0x10] sm:$0xff]
      %v5737 = vld [vmem:[%s5733 + $0x18] sm:$0xff]
      %v5738 = vld [vmem:[%s5733 + $0x20] sm:$0xff]
      %v5739 = vld [vmem:[%s5733 + $0x28] sm:$0xff]
      %v5740 = vld [vmem:[%s5733 + $0x30] sm:$0xff]
      %v5741 = vld [vmem:[%s5733 + $0x38] sm:$0xff]
      %v5742 = vld [vmem:[%s5733 + $0x40] sm:$0xff]
      %v5743 = vld [vmem:[%s5733 + $0x48] sm:$0xff]
      %v5744 = vld [vmem:[%s5733 + $0x50] sm:$0xff]
      %v5745 = vld [vmem:[%s5733 + $0x58] sm:$0xff]
      %v5746 = vld [vmem:[%s5733 + $0x60] sm:$0xff]
      %v5747 = vld [vmem:[%s5733 + $0x68] sm:$0xff]
      %v5748 = vld [vmem:[%s5733 + $0x70] sm:$0xff]
      %v5749 = vld [vmem:[%s5733 + $0x78] sm:$0xff]
      %5750 = vmatprep.subr.mxu0 0.0
      %5751 = vmatpush1.msra.mxu0 %v5749
      %5752 = vmatprep.subr.mxu0 0.0
      %5753 = vmatpush1.msra.mxu0 %v5748
      %5754 = vmatprep.subr.mxu0 0.0
      %5755 = vmatpush1.msra.mxu0 %v5747
      %5756 = vmatprep.subr.mxu0 0.0
      %5757 = vmatpush1.msra.mxu0 %v5746
      %5758 = vmatprep.subr.mxu0 0.0
      %5759 = vmatpush1.msra.mxu0 %v5745
      %5760 = vmatprep.subr.mxu0 0.0
      %5761 = vmatpush1.msra.mxu0 %v5744
      %5762 = vmatprep.subr.mxu0 0.0
      %5763 = vmatpush1.msra.mxu0 %v5743
      %5764 = vmatprep.subr.mxu0 0.0
      %5765 = vmatpush1.msra.mxu0 %v5742
      %5766 = vmatprep.subr.mxu0 0.0
      %5767 = vmatpush1.msra.mxu0 %v5741
      %5768 = vmatprep.subr.mxu0 0.0
      %5769 = vmatpush1.msra.mxu0 %v5740
      %5770 = vmatprep.subr.mxu0 0.0
      %5771 = vmatpush1.msra.mxu0 %v5739
      %5772 = vmatprep.subr.mxu0 0.0
      %5773 = vmatpush1.msra.mxu0 %v5738
      %5774 = vmatprep.subr.mxu0 0.0
      %5775 = vmatpush1.msra.mxu0 %v5737
      %5776 = vmatprep.subr.mxu0 0.0
      %5777 = vmatpush1.msra.mxu0 %v5736
      %5778 = vmatprep.subr.mxu0 0.0
      %5779 = vmatpush1.msra.mxu0 %v5735
      %5780 = vmatprep.subr.mxu0 0.0
      %5781 = vmatpush1.msra.mxu0 %v5734
      %5782 = vmatprep.subr.mxu0 0.0
      %5783 = vmatpush2.msra.mxu0 0.0
      %5784 = vmatprep.subr.mxu0 0.0
      %5785 = vmatpush2.msra.mxu0 0.0
      %5786 = vmatprep.subr.mxu0 0.0
      %5787 = vmatpush2.msra.mxu0 0.0
      %5788 = vmatprep.subr.mxu0 0.0
      %5789 = vmatpush2.msra.mxu0 0.0
      %5790 = vmatprep.subr.mxu0 0.0
      %5791 = vmatpush2.msra.mxu0 0.0
      %5792 = vmatprep.subr.mxu0 0.0
      %5793 = vmatpush2.msra.mxu0 0.0
      %5794 = vmatprep.subr.mxu0 0.0
      %5795 = vmatpush2.msra.mxu0 0.0
      %5796 = vmatprep.subr.mxu0 0.0
      %5797 = vmatpush2.msra.mxu0 0.0
      %5798 = vmatprep.subr.mxu0 0.0
      %5799 = vmatpush2.msra.mxu0 0.0
      %5800 = vmatprep.subr.mxu0 0.0
      %5801 = vmatpush2.msra.mxu0 0.0
      %5802 = vmatprep.subr.mxu0 0.0
      %5803 = vmatpush2.msra.mxu0 0.0
      %5804 = vmatprep.subr.mxu0 0.0
      %5805 = vmatpush2.msra.mxu0 0.0
      %5806 = vmatprep.subr.mxu0 0.0
      %5807 = vmatpush2.msra.mxu0 0.0
      %5808 = vmatprep.subr.mxu0 0.0
      %5809 = vmatpush2.msra.mxu0 0.0
      %5810 = vmatprep.subr.mxu0 0.0
      %5811 = vmatpush2.msra.mxu0 0.0
      %5812 = vmatprep.subr.mxu0 0.0
      %5813 = vmatpush2.msra.mxu0 0.0
      %5814 = vmatprep.mubr.f32.mxu0 0.0
      %5815 = vmatmul.mubr.f32.gmra.mxu0 %v5701
      %v5816 = vpop.f32.mrf.mxu0
      %v5817 = vadd.f32 0.0, %v5816
      %v5818 = vpop.f32.mrf.mxu0
      %5819 = vmatprep.mubr.f32.mxu0 0.0
      %5820 = vmatmul.mubr.f32.gmra.mxu0 %v5702
      %v5821 = vpop.f32.mrf.mxu0
      %v5822 = vadd.f32 0.0, %v5821
      %v5823 = vpop.f32.mrf.mxu0
      %5824 = vmatprep.mubr.f32.mxu0 0.0
      %5825 = vmatmul.mubr.f32.gmra.mxu0 %v5703
      %v5826 = vpop.f32.mrf.mxu0
      %v5827 = vadd.f32 0.0, %v5826
      %v5828 = vpop.f32.mrf.mxu0
      %5829 = vmatprep.mubr.f32.mxu0 0.0
      %5830 = vmatmul.mubr.f32.gmra.mxu0 %v5704
      %v5831 = vpop.f32.mrf.mxu0
      %v5832 = vadd.f32 0.0, %v5831
      %v5833 = vpop.f32.mrf.mxu0
      %5834 = vmatprep.mubr.f32.mxu0 0.0
      %5835 = vmatmul.mubr.f32.gmra.mxu0 %v5705
      %v5836 = vpop.f32.mrf.mxu0
      %v5837 = vadd.f32 0.0, %v5836
      %v5838 = vpop.f32.mrf.mxu0
      %5839 = vmatprep.mubr.f32.mxu0 0.0
      %5840 = vmatmul.mubr.f32.gmra.mxu0 %v5706
      %v5841 = vpop.f32.mrf.mxu0
      %v5842 = vadd.f32 0.0, %v5841
      %v5843 = vpop.f32.mrf.mxu0
      %5844 = vmatprep.mubr.f32.mxu0 0.0
      %5845 = vmatmul.mubr.f32.gmra.mxu0 %v5707
      %v5846 = vpop.f32.mrf.mxu0
      %v5847 = vadd.f32 0.0, %v5846
      %v5848 = vpop.f32.mrf.mxu0
      %5849 = vmatprep.mubr.f32.mxu0 0.0
      %5850 = vmatmul.mubr.f32.gmra.mxu0 %v5708
      %v5851 = vpop.f32.mrf.mxu0
      %v5852 = vadd.f32 0.0, %v5851
      %v5853 = vpop.f32.mrf.mxu0
      %5854 = vmatprep.mubr.f32.mxu0 0.0
      %5855 = vmatmul.mubr.f32.gmra.mxu0 %v5709
      %v5856 = vpop.f32.mrf.mxu0
      %v5857 = vadd.f32 0.0, %v5856
      %v5858 = vpop.f32.mrf.mxu0
      %5859 = vmatprep.mubr.f32.mxu0 0.0
      %5860 = vmatmul.mubr.f32.gmra.mxu0 %v5710
      %v5861 = vpop.f32.mrf.mxu0
      %v5862 = vadd.f32 0.0, %v5861
      %v5863 = vpop.f32.mrf.mxu0
      %5864 = vmatprep.mubr.f32.mxu0 0.0
      %5865 = vmatmul.mubr.f32.gmra.mxu0 %v5711
      %v5866 = vpop.f32.mrf.mxu0
      %v5867 = vadd.f32 0.0, %v5866
      %v5868 = vpop.f32.mrf.mxu0
      %5869 = vmatprep.mubr.f32.mxu0 0.0
      %5870 = vmatmul.mubr.f32.gmra.mxu0 %v5712
      %v5871 = vpop.f32.mrf.mxu0
      %v5872 = vadd.f32 0.0, %v5871
      %v5873 = vpop.f32.mrf.mxu0
      %5874 = vmatprep.mubr.f32.mxu0 0.0
      %5875 = vmatmul.mubr.f32.gmra.mxu0 %v5713
      %v5876 = vpop.f32.mrf.mxu0
      %v5877 = vadd.f32 0.0, %v5876
      %v5878 = vpop.f32.mrf.mxu0
      %5879 = vmatprep.mubr.f32.mxu0 0.0
      %5880 = vmatmul.mubr.f32.gmra.mxu0 %v5714
      %v5881 = vpop.f32.mrf.mxu0
      %v5882 = vadd.f32 0.0, %v5881
      %v5883 = vpop.f32.mrf.mxu0
      %5884 = vmatprep.mubr.f32.mxu0 0.0
      %5885 = vmatmul.mubr.f32.gmra.mxu0 %v5715
      %v5886 = vpop.f32.mrf.mxu0
      %v5887 = vadd.f32 0.0, %v5886
      %v5888 = vpop.f32.mrf.mxu0
      %5889 = vmatprep.mubr.f32.mxu0 0.0
      %5890 = vmatmul.mubr.f32.gmra.mxu0 %v5716
      %v5891 = vpop.f32.mrf.mxu0
      %v5892 = vadd.f32 0.0, %v5891
      %v5893 = vpop.f32.mrf.mxu0
      %5894 = vmatprep.mubr.f32.mxu0 0.0
      %5895 = vmatmul.mubr.f32.gmra.mxu0 %v5717
      %v5896 = vpop.f32.mrf.mxu0
      %v5897 = vadd.f32 0.0, %v5896
      %v5898 = vpop.f32.mrf.mxu0
      %5899 = vmatprep.mubr.f32.mxu0 0.0
      %5900 = vmatmul.mubr.f32.gmra.mxu0 %v5718
      %v5901 = vpop.f32.mrf.mxu0
      %v5902 = vadd.f32 0.0, %v5901
      %v5903 = vpop.f32.mrf.mxu0
      %5904 = vmatprep.mubr.f32.mxu0 0.0
      %5905 = vmatmul.mubr.f32.gmra.mxu0 %v5719
      %v5906 = vpop.f32.mrf.mxu0
      %v5907 = vadd.f32 0.0, %v5906
      %v5908 = vpop.f32.mrf.mxu0
      %5909 = vmatprep.mubr.f32.mxu0 0.0
      %5910 = vmatmul.mubr.f32.gmra.mxu0 %v5720
      %v5911 = vpop.f32.mrf.mxu0
      %v5912 = vadd.f32 0.0, %v5911
      %v5913 = vpop.f32.mrf.mxu0
      %5914 = vmatprep.mubr.f32.mxu0 0.0
      %5915 = vmatmul.mubr.f32.gmra.mxu0 %v5721
      %v5916 = vpop.f32.mrf.mxu0
      %v5917 = vadd.f32 0.0, %v5916
      %v5918 = vpop.f32.mrf.mxu0
      %5919 = vmatprep.mubr.f32.mxu0 0.0
      %5920 = vmatmul.mubr.f32.gmra.mxu0 %v5722
      %v5921 = vpop.f32.mrf.mxu0
      %v5922 = vadd.f32 0.0, %v5921
      %v5923 = vpop.f32.mrf.mxu0
      %5924 = vmatprep.mubr.f32.mxu0 0.0
      %5925 = vmatmul.mubr.f32.gmra.mxu0 %v5723
      %v5926 = vpop.f32.mrf.mxu0
      %v5927 = vadd.f32 0.0, %v5926
      %v5928 = vpop.f32.mrf.mxu0
      %5929 = vmatprep.mubr.f32.mxu0 0.0
      %5930 = vmatmul.mubr.f32.gmra.mxu0 %v5724
      %v5931 = vpop.f32.mrf.mxu0
      %v5932 = vadd.f32 0.0, %v5931
      %v5933 = vpop.f32.mrf.mxu0
      %5934 = vmatprep.mubr.f32.mxu0 0.0
      %5935 = vmatmul.mubr.f32.gmra.mxu0 %v5725
      %v5936 = vpop.f32.mrf.mxu0
      %v5937 = vadd.f32 0.0, %v5936
      %v5938 = vpop.f32.mrf.mxu0
      %5939 = vmatprep.mubr.f32.mxu0 0.0
      %5940 = vmatmul.mubr.f32.gmra.mxu0 %v5726
      %v5941 = vpop.f32.mrf.mxu0
      %v5942 = vadd.f32 0.0, %v5941
      %v5943 = vpop.f32.mrf.mxu0
      %5944 = vmatprep.mubr.f32.mxu0 0.0
      %5945 = vmatmul.mubr.f32.gmra.mxu0 %v5727
      %v5946 = vpop.f32.mrf.mxu0
      %v5947 = vadd.f32 0.0, %v5946
      %v5948 = vpop.f32.mrf.mxu0
      %5949 = vmatprep.mubr.f32.mxu0 0.0
      %5950 = vmatmul.mubr.f32.gmra.mxu0 %v5728
      %v5951 = vpop.f32.mrf.mxu0
      %v5952 = vadd.f32 0.0, %v5951
      %v5953 = vpop.f32.mrf.mxu0
      %5954 = vmatprep.mubr.f32.mxu0 0.0
      %5955 = vmatmul.mubr.f32.gmra.mxu0 %v5729
      %v5956 = vpop.f32.mrf.mxu0
      %v5957 = vadd.f32 0.0, %v5956
      %v5958 = vpop.f32.mrf.mxu0
      %5959 = vmatprep.mubr.f32.mxu0 0.0
      %5960 = vmatmul.mubr.f32.gmra.mxu0 %v5730
      %v5961 = vpop.f32.mrf.mxu0
      %v5962 = vadd.f32 0.0, %v5961
      %v5963 = vpop.f32.mrf.mxu0
      %5964 = vmatprep.mubr.f32.mxu0 0.0
      %5965 = vmatmul.mubr.f32.gmra.mxu0 %v5731
      %v5966 = vpop.f32.mrf.mxu0
      %v5967 = vadd.f32 0.0, %v5966
      %v5968 = vpop.f32.mrf.mxu0
      %5969 = vmatprep.mubr.f32.mxu0 0.0
      %5970 = vmatmul.mubr.f32.gmra.mxu0 %v5732
      %v5971 = vpop.f32.mrf.mxu0
      %v5972 = vadd.f32 0.0, %v5971
      %v5973 = vpop.f32.mrf.mxu0
      %5974 = vdwg.mxu0
      %v5975 = vadd.f32 %v5669, %v5817
      %v5976 = vadd.f32 %v5670, %v5822
      %v5977 = vadd.f32 %v5671, %v5827
      %v5978 = vadd.f32 %v5672, %v5832
      %v5979 = vadd.f32 %v5673, %v5837
      %v5980 = vadd.f32 %v5674, %v5842
      %v5981 = vadd.f32 %v5675, %v5847
      %v5982 = vadd.f32 %v5676, %v5852
      %v5983 = vadd.f32 %v5677, %v5857
      %v5984 = vadd.f32 %v5678, %v5862
      %v5985 = vadd.f32 %v5679, %v5867
      %v5986 = vadd.f32 %v5680, %v5872
      %v5987 = vadd.f32 %v5681, %v5877
      %v5988 = vadd.f32 %v5682, %v5882
      %v5989 = vadd.f32 %v5683, %v5887
      %v5990 = vadd.f32 %v5684, %v5892
      %v5991 = vadd.f32 %v5685, %v5897
      %v5992 = vadd.f32 %v5686, %v5902
      %v5993 = vadd.f32 %v5687, %v5907
      %v5994 = vadd.f32 %v5688, %v5912
      %v5995 = vadd.f32 %v5689, %v5917
      %v5996 = vadd.f32 %v5690, %v5922
      %v5997 = vadd.f32 %v5691, %v5927
      %v5998 = vadd.f32 %v5692, %v5932
      %v5999 = vadd.f32 %v5693, %v5937
      %v6000 = vadd.f32 %v5694, %v5942
      %v6001 = vadd.f32 %v5695, %v5947
      %v6002 = vadd.f32 %v5696, %v5952
      %v6003 = vadd.f32 %v5697, %v5957
      %v6004 = vadd.f32 %v5698, %v5962
      %v6005 = vadd.f32 %v5699, %v5967
      %v6006 = vadd.f32 %v5700, %v5972
      %v6007 = vadd.f32 %v5975, %v5976
      %v6008 = vadd.f32 %v6007, %v5977
      %v6009 = vadd.f32 %v6008, %v5978
      %v6010 = vadd.f32 %v6009, %v5979
      %v6011 = vadd.f32 %v6010, %v5980
      %v6012 = vadd.f32 %v6011, %v5981
      %v6013 = vadd.f32 %v6012, %v5982
      %v6014 = vadd.f32 %v6013, %v5983
      %v6015 = vadd.f32 %v6014, %v5984
      %v6016 = vadd.f32 %v6015, %v5985
      %v6017 = vadd.f32 %v6016, %v5986
      %v6018 = vadd.f32 %v6017, %v5987
      %v6019 = vadd.f32 %v6018, %v5988
      %v6020 = vadd.f32 %v6019, %v5989
      %v6021 = vadd.f32 %v6020, %v5990
      %v6022 = vadd.f32 %v6021, %v5991
      %v6023 = vadd.f32 %v6022, %v5992
      %v6024 = vadd.f32 %v6023, %v5993
      %v6025 = vadd.f32 %v6024, %v5994
      %v6026 = vadd.f32 %v6025, %v5995
      %v6027 = vadd.f32 %v6026, %v5996
      %v6028 = vadd.f32 %v6027, %v5997
      %v6029 = vadd.f32 %v6028, %v5998
      %v6030 = vadd.f32 %v6029, %v5999
      %v6031 = vadd.f32 %v6030, %v6000
      %v6032 = vadd.f32 %v6031, %v6001
      %v6033 = vadd.f32 %v6032, %v6002
      %v6034 = vadd.f32 %v6033, %v6003
      %v6035 = vadd.f32 %v6034, %v6004
      %v6036 = vadd.f32 %v6035, %v6005
      %v6037 = vadd.f32 %v6036, %v6006
      %v6038 = vrot.slane %v6037, 4
      %v6039 = vadd.f32 %v6037, %v6038
      %v6040 = vrot.slane %v6039, 2
      %v6041 = vadd.f32 %v6039, %v6040
      %v6042 = vrot.slane %v6041, 1
      %v6043 = vadd.f32 %v6041, %v6042
      %v6044 = vmul.f32 %v6043, %v3040
      %v6045 = vsub.f32 %v5975, %v6044
      %v6046 = vsub.f32 %v5976, %v6044
      %v6047 = vsub.f32 %v5977, %v6044
      %v6048 = vsub.f32 %v5978, %v6044
      %v6049 = vsub.f32 %v5979, %v6044
      %v6050 = vsub.f32 %v5980, %v6044
      %v6051 = vsub.f32 %v5981, %v6044
      %v6052 = vsub.f32 %v5982, %v6044
      %v6053 = vsub.f32 %v5983, %v6044
      %v6054 = vsub.f32 %v5984, %v6044
      %v6055 = vsub.f32 %v5985, %v6044
      %v6056 = vsub.f32 %v5986, %v6044
      %v6057 = vsub.f32 %v5987, %v6044
      %v6058 = vsub.f32 %v5988, %v6044
      %v6059 = vsub.f32 %v5989, %v6044
      %v6060 = vsub.f32 %v5990, %v6044
      %v6061 = vsub.f32 %v5991, %v6044
      %v6062 = vsub.f32 %v5992, %v6044
      %v6063 = vsub.f32 %v5993, %v6044
      %v6064 = vsub.f32 %v5994, %v6044
      %v6065 = vsub.f32 %v5995, %v6044
      %v6066 = vsub.f32 %v5996, %v6044
      %v6067 = vsub.f32 %v5997, %v6044
      %v6068 = vsub.f32 %v5998, %v6044
      %v6069 = vsub.f32 %v5999, %v6044
      %v6070 = vsub.f32 %v6000, %v6044
      %v6071 = vsub.f32 %v6001, %v6044
      %v6072 = vsub.f32 %v6002, %v6044
      %v6073 = vsub.f32 %v6003, %v6044
      %v6074 = vsub.f32 %v6004, %v6044
      %v6075 = vsub.f32 %v6005, %v6044
      %v6076 = vsub.f32 %v6006, %v6044
      %v6077 = vmul.f32 %v6045, %v6045
      %v6078 = vmul.f32 %v6046, %v6046
      %v6079 = vmul.f32 %v6047, %v6047
      %v6080 = vmul.f32 %v6048, %v6048
      %v6081 = vmul.f32 %v6049, %v6049
      %v6082 = vmul.f32 %v6050, %v6050
      %v6083 = vmul.f32 %v6051, %v6051
      %v6084 = vmul.f32 %v6052, %v6052
      %v6085 = vmul.f32 %v6053, %v6053
      %v6086 = vmul.f32 %v6054, %v6054
      %v6087 = vmul.f32 %v6055, %v6055
      %v6088 = vmul.f32 %v6056, %v6056
      %v6089 = vmul.f32 %v6057, %v6057
      %v6090 = vmul.f32 %v6058, %v6058
      %v6091 = vmul.f32 %v6059, %v6059
      %v6092 = vmul.f32 %v6060, %v6060
      %v6093 = vmul.f32 %v6061, %v6061
      %v6094 = vmul.f32 %v6062, %v6062
      %v6095 = vmul.f32 %v6063, %v6063
      %v6096 = vmul.f32 %v6064, %v6064
      %v6097 = vmul.f32 %v6065, %v6065
      %v6098 = vmul.f32 %v6066, %v6066
      %v6099 = vmul.f32 %v6067, %v6067
      %v6100 = vmul.f32 %v6068, %v6068
      %v6101 = vmul.f32 %v6069, %v6069
      %v6102 = vmul.f32 %v6070, %v6070
      %v6103 = vmul.f32 %v6071, %v6071
      %v6104 = vmul.f32 %v6072, %v6072
      %v6105 = vmul.f32 %v6073, %v6073
      %v6106 = vmul.f32 %v6074, %v6074
      %v6107 = vmul.f32 %v6075, %v6075
      %v6108 = vmul.f32 %v6076, %v6076
      %v6109 = vadd.f32 %v6077, %v6078
      %v6110 = vadd.f32 %v6109, %v6079
      %v6111 = vadd.f32 %v6110, %v6080
      %v6112 = vadd.f32 %v6111, %v6081
      %v6113 = vadd.f32 %v6112, %v6082
      %v6114 = vadd.f32 %v6113, %v6083
      %v6115 = vadd.f32 %v6114, %v6084
      %v6116 = vadd.f32 %v6115, %v6085
      %v6117 = vadd.f32 %v6116, %v6086
      %v6118 = vadd.f32 %v6117, %v6087
      %v6119 = vadd.f32 %v6118, %v6088
      %v6120 = vadd.f32 %v6119, %v6089
      %v6121 = vadd.f32 %v6120, %v6090
      %v6122 = vadd.f32 %v6121, %v6091
      %v6123 = vadd.f32 %v6122, %v6092
      %v6124 = vadd.f32 %v6123, %v6093
      %v6125 = vadd.f32 %v6124, %v6094
      %v6126 = vadd.f32 %v6125, %v6095
      %v6127 = vadd.f32 %v6126, %v6096
      %v6128 = vadd.f32 %v6127, %v6097
      %v6129 = vadd.f32 %v6128, %v6098
      %v6130 = vadd.f32 %v6129, %v6099
      %v6131 = vadd.f32 %v6130, %v6100
      %v6132 = vadd.f32 %v6131, %v6101
      %v6133 = vadd.f32 %v6132, %v6102
      %v6134 = vadd.f32 %v6133, %v6103
      %v6135 = vadd.f32 %v6134, %v6104
      %v6136 = vadd.f32 %v6135, %v6105
      %v6137 = vadd.f32 %v6136, %v6106
      %v6138 = vadd.f32 %v6137, %v6107
      %v6139 = vadd.f32 %v6138, %v6108
      %v6140 = vrot.slane %v6139, 4
      %v6141 = vadd.f32 %v6139, %v6140
      %v6142 = vrot.slane %v6141, 2
      %v6143 = vadd.f32 %v6141, %v6142
      %v6144 = vrot.slane %v6143, 1
      %v6145 = vadd.f32 %v6143, %v6144
      %v6146 = vmul.f32 %v6145, %v3040
      %v6147 = vadd.f32 %v6146, 1e-05
      %v6148 = vrsqrt.pop %v6147
      %v6149 = vmul.f32 %v6045, %v6148
      %v6150 = vmul.f32 %v6046, %v6148
      %v6151 = vmul.f32 %v6047, %v6148
      %v6152 = vmul.f32 %v6048, %v6148
      %v6153 = vmul.f32 %v6049, %v6148
      %v6154 = vmul.f32 %v6050, %v6148
      %v6155 = vmul.f32 %v6051, %v6148
      %v6156 = vmul.f32 %v6052, %v6148
      %v6157 = vmul.f32 %v6053, %v6148
      %v6158 = vmul.f32 %v6054, %v6148
      %v6159 = vmul.f32 %v6055, %v6148
      %v6160 = vmul.f32 %v6056, %v6148
      %v6161 = vmul.f32 %v6057, %v6148
      %v6162 = vmul.f32 %v6058, %v6148
      %v6163 = vmul.f32 %v6059, %v6148
      %v6164 = vmul.f32 %v6060, %v6148
      %v6165 = vmul.f32 %v6061, %v6148
      %v6166 = vmul.f32 %v6062, %v6148
      %v6167 = vmul.f32 %v6063, %v6148
      %v6168 = vmul.f32 %v6064, %v6148
      %v6169 = vmul.f32 %v6065, %v6148
      %v6170 = vmul.f32 %v6066, %v6148
      %v6171 = vmul.f32 %v6067, %v6148
      %v6172 = vmul.f32 %v6068, %v6148
      %v6173 = vmul.f32 %v6069, %v6148
      %v6174 = vmul.f32 %v6070, %v6148
      %v6175 = vmul.f32 %v6071, %v6148
      %v6176 = vmul.f32 %v6072, %v6148
      %v6177 = vmul.f32 %v6073, %v6148
      %v6178 = vmul.f32 %v6074, %v6148
      %v6179 = vmul.f32 %v6075, %v6148
      %v6180 = vmul.f32 %v6076, %v6148
      %v6181 = vld [vmem:[%s165] sm:$0xff]
      %v6182 = vld [vmem:[%s165 + $0x8] sm:$0xff]
      %v6183 = vld [vmem:[%s165 + $0x10] sm:$0xff]
      %v6184 = vld [vmem:[%s165 + $0x18] sm:$0xff]
      %v6185 = vld [vmem:[%s165 + $0x20] sm:$0xff]
      %v6186 = vld [vmem:[%s165 + $0x28] sm:$0xff]
      %v6187 = vld [vmem:[%s165 + $0x30] sm:$0xff]
      %v6188 = vld [vmem:[%s165 + $0x38] sm:$0xff]
      %v6189 = vld [vmem:[%s165 + $0x40] sm:$0xff]
      %v6190 = vld [vmem:[%s165 + $0x48] sm:$0xff]
      %v6191 = vld [vmem:[%s165 + $0x50] sm:$0xff]
      %v6192 = vld [vmem:[%s165 + $0x58] sm:$0xff]
      %v6193 = vld [vmem:[%s165 + $0x60] sm:$0xff]
      %v6194 = vld [vmem:[%s165 + $0x68] sm:$0xff]
      %v6195 = vld [vmem:[%s165 + $0x70] sm:$0xff]
      %v6196 = vld [vmem:[%s165 + $0x78] sm:$0xff]
      %v6197 = vld [vmem:[%s165 + $0x80] sm:$0xff]
      %v6198 = vld [vmem:[%s165 + $0x88] sm:$0xff]
      %v6199 = vld [vmem:[%s165 + $0x90] sm:$0xff]
      %v6200 = vld [vmem:[%s165 + $0x98] sm:$0xff]
      %v6201 = vld [vmem:[%s165 + $0xa0] sm:$0xff]
      %v6202 = vld [vmem:[%s165 + $0xa8] sm:$0xff]
      %v6203 = vld [vmem:[%s165 + $0xb0] sm:$0xff]
      %v6204 = vld [vmem:[%s165 + $0xb8] sm:$0xff]
      %v6205 = vld [vmem:[%s165 + $0xc0] sm:$0xff]
      %v6206 = vld [vmem:[%s165 + $0xc8] sm:$0xff]
      %v6207 = vld [vmem:[%s165 + $0xd0] sm:$0xff]
      %v6208 = vld [vmem:[%s165 + $0xd8] sm:$0xff]
      %v6209 = vld [vmem:[%s165 + $0xe0] sm:$0xff]
      %v6210 = vld [vmem:[%s165 + $0xe8] sm:$0xff]
      %v6211 = vld [vmem:[%s165 + $0xf0] sm:$0xff]
      %v6212 = vld [vmem:[%s165 + $0xf8] sm:$0xff]
      %v6213 = vadd.f32 %v6181, %v6149
      %v6214 = vadd.f32 %v6182, %v6150
      %v6215 = vadd.f32 %v6183, %v6151
      %v6216 = vadd.f32 %v6184, %v6152
      %v6217 = vadd.f32 %v6185, %v6153
      %v6218 = vadd.f32 %v6186, %v6154
      %v6219 = vadd.f32 %v6187, %v6155
      %v6220 = vadd.f32 %v6188, %v6156
      %v6221 = vadd.f32 %v6189, %v6157
      %v6222 = vadd.f32 %v6190, %v6158
      %v6223 = vadd.f32 %v6191, %v6159
      %v6224 = vadd.f32 %v6192, %v6160
      %v6225 = vadd.f32 %v6193, %v6161
      %v6226 = vadd.f32 %v6194, %v6162
      %v6227 = vadd.f32 %v6195, %v6163
      %v6228 = vadd.f32 %v6196, %v6164
      %v6229 = vadd.f32 %v6197, %v6165
      %v6230 = vadd.f32 %v6198, %v6166
      %v6231 = vadd.f32 %v6199, %v6167
      %v6232 = vadd.f32 %v6200, %v6168
      %v6233 = vadd.f32 %v6201, %v6169
      %v6234 = vadd.f32 %v6202, %v6170
      %v6235 = vadd.f32 %v6203, %v6171
      %v6236 = vadd.f32 %v6204, %v6172
      %v6237 = vadd.f32 %v6205, %v6173
      %v6238 = vadd.f32 %v6206, %v6174
      %v6239 = vadd.f32 %v6207, %v6175
      %v6240 = vadd.f32 %v6208, %v6176
      %v6241 = vadd.f32 %v6209, %v6177
      %v6242 = vadd.f32 %v6210, %v6178
      %v6243 = vadd.f32 %v6211, %v6179
      %v6244 = vadd.f32 %v6212, %v6180
      %6245 = vst [vmem:[%s170] sm:$0xff] %v6213
      %6246 = vst [vmem:[%s170 + $0x8] sm:$0xff] %v6214
      %6247 = vst [vmem:[%s170 + $0x10] sm:$0xff] %v6215
      %6248 = vst [vmem:[%s170 + $0x18] sm:$0xff] %v6216
      %6249 = vst [vmem:[%s170 + $0x20] sm:$0xff] %v6217
      %6250 = vst [vmem:[%s170 + $0x28] sm:$0xff] %v6218
      %6251 = vst [vmem:[%s170 + $0x30] sm:$0xff] %v6219
      %6252 = vst [vmem:[%s170 + $0x38] sm:$0xff] %v6220
      %6253 = vst [vmem:[%s170 + $0x40] sm:$0xff] %v6221
      %6254 = vst [vmem:[%s170 + $0x48] sm:$0xff] %v6222
      %6255 = vst [vmem:[%s170 + $0x50] sm:$0xff] %v6223
      %6256 = vst [vmem:[%s170 + $0x58] sm:$0xff] %v6224
      %6257 = vst [vmem:[%s170 + $0x60] sm:$0xff] %v6225
      %6258 = vst [vmem:[%s170 + $0x68] sm:$0xff] %v6226
      %6259 = vst [vmem:[%s170 + $0x70] sm:$0xff] %v6227
      %6260 = vst [vmem:[%s170 + $0x78] sm:$0xff] %v6228
      %6261 = vst [vmem:[%s170 + $0x80] sm:$0xff] %v6229
      %6262 = vst [vmem:[%s170 + $0x88] sm:$0xff] %v6230
      %6263 = vst [vmem:[%s170 + $0x90] sm:$0xff] %v6231
      %6264 = vst [vmem:[%s170 + $0x98] sm:$0xff] %v6232
      %6265 = vst [vmem:[%s170 + $0xa0] sm:$0xff] %v6233
      %6266 = vst [vmem:[%s170 + $0xa8] sm:$0xff] %v6234
      %6267 = vst [vmem:[%s170 + $0xb0] sm:$0xff] %v6235
      %6268 = vst [vmem:[%s170 + $0xb8] sm:$0xff] %v6236
      %6269 = vst [vmem:[%s170 + $0xc0] sm:$0xff] %v6237
      %6270 = vst [vmem:[%s170 + $0xc8] sm:$0xff] %v6238
      %6271 = vst [vmem:[%s170 + $0xd0] sm:$0xff] %v6239
      %6272 = vst [vmem:[%s170 + $0xd8] sm:$0xff] %v6240
      %6273 = vst [vmem:[%s170 + $0xe0] sm:$0xff] %v6241
      %6274 = vst [vmem:[%s170 + $0xe8] sm:$0xff] %v6242
      %6275 = vst [vmem:[%s170 + $0xf0] sm:$0xff] %v6243
      %6276 = vst [vmem:[%s170 + $0xf8] sm:$0xff] %v6244
      %p6277 = scmp.lt.s32.totalorder %s14, 1
      %s6278 = scalar_select %p6277, %s14, 1
      %s6279 = smul.addr %s6278, 32
      %s6280 = smul.addr %s6279, 8
      %s6281 = scalar_lea.vmem %s3, %s6280
      // Predicated region
      $region33: #{resnet_block_forward.1} parent=31 // pred_check
        %p6282 = pneg %p100
      $region34: #{resnet_block_forward.1} parent=31 // pred_check_branch
        %6284 = sbr.rel (%p6282) target = $region36
      $region35: #{resnet_block_forward.1} parent=31 // pred_region
        _
      $region36: #{resnet_block_forward.1} parent=31 // pred_fallthru
        _
    $region32: #{resnet_block_forward.1} parent=5 // pred_fallthru
      _
    %p6285 = scmp.le.s32.totalorder 2, %s9
    // Predicated region
    $region37: #{resnet_block_forward.1} parent=5 // pred_check
      %p6286 = pneg %p6285
    $region38: #{resnet_block_forward.1} parent=5 // pred_check_branch
      %6288 = sbr.rel (%p6286) target = $region40
    $region39: #{resnet_block_forward.1} parent=5 // pred_region
      %s6289 = ssub.s32 %s9, 2
      // Predicated region
      $region41: #{resnet_block_forward.1} parent=39 // pred_check
        %p6290 = pneg %p106
      $region42: #{resnet_block_forward.1} parent=39 // pred_check_branch
        %6292 = sbr.rel (%p6290) target = $region44
      $region43: #{resnet_block_forward.1} parent=39 // pred_region
        %p6293 = scmp.lt.s32.totalorder %s15, 1
        %s6294 = scalar_select %p6293, %s15, 1
        %s6295 = smul.addr %s6294, 32
        %s6296 = smul.addr %s6295, 8
        %s6297 = scalar_lea.vmem %s3, %s6296
      $region44: #{resnet_block_forward.1} parent=39 // pred_fallthru
        _
    $region40: #{resnet_block_forward.1} parent=5 // pred_fallthru
      _
  $region6: #{resnet_block_forward.1} parent=0 // loop_footer
    %s13 = sadd.s32 1, %s9
  $region7: #{resnet_block_forward.1} parent=0 // loop_footer_branch
    %8 = sbr.rel target = $region3
  $region8: #{resnet_block_forward.1} parent=0 // loop_exit
    _

</llo_original>
